<compile_context>
chip_gen: v7x
topology: tpu7x:2x2x1
jax: 0.10.0
libtpu: 0.0.40
codegen_flags: <defaults>
</compile_context>

<pallas_src>
import functools

import jax
import jax.numpy as jnp
from jax import lax
from jax.experimental import pallas as pl
from jax.experimental.pallas import tpu as pltpu

EPS = 1e-5  # eps of nn.BatchNorm2d / nn.InstanceNorm2d


# ---------------------------------------------------------------------------
# Small helpers
# ---------------------------------------------------------------------------
def _lane_tile(s):
    """Largest multiple-of-128 lane tile that divides S (capped at 512)."""
    for t in (512, 384, 256, 128):
        if s % t == 0:
            return t
    return s  # TODO(synk): cdiv grid + masked tail for S not a multiple of 128


def _chunk_w(s):
    """Lane chunk for the in-kernel 3x3-conv loop (bounds the f32 accumulator)."""
    for t in (512, 256, 128):
        if s % t == 0 and s // t >= 2:
            return t
    return s  # TODO(synk): masked tail chunk for S not a multiple of 128


def _round_up(x, m):
    return ((x + m - 1) // m) * m


def _compiler_params(semantics, block_bytes, scratch_bytes=0):
    # size VMEM from actual double-buffered block bytes (v7x has only 64 MiB)
    need = 2 * block_bytes + scratch_bytes + (2 << 20)
    return pltpu.CompilerParams(
        dimension_semantics=semantics,
        vmem_limit_bytes=int(min(max(need, 16 << 20), 64 << 20)),
    )


def _scale_shift(sum_, ssq, count, gamma, beta):
    mu = sum_ / count
    var = jnp.maximum(ssq / count - mu * mu, 0.0)  # clamped E[y^2]-mu^2, f32
    scale = gamma * lax.rsqrt(var + EPS)
    shift = beta - mu * scale
    return scale, shift


# ---------------------------------------------------------------------------
# Kernel A: 1x1 conv1 (bf16 MXU) + per-sample {sum, sumsq} moments.
# grid = (N, S//TS); activations channel-major (C, S_tile).
# ---------------------------------------------------------------------------
def _conv1_stats_kernel(x_ref, w1_ref, y1_ref, st_ref):
    y = jnp.dot(w1_ref[...], x_ref[...].astype(jnp.bfloat16),
                preferred_element_type=jnp.float32)          # (P, TS) f32
    yb = y.astype(jnp.bfloat16)
    y1_ref[...] = yb                                          # bf16 storage

    @pl.when(pl.program_id(1) == 0)
    def _init():
        st_ref[...] = jnp.zeros_like(st_ref)

    y32 = yb.astype(jnp.float32)                              # stats on stored values
    st_ref[:, 0:1] += jnp.sum(y32, axis=1, keepdims=True)
    st_ref[:, 1:2] += jnp.sum(y32 * y32, axis=1, keepdims=True)


# ---------------------------------------------------------------------------
# Kernel B: IBN scale/shift + ReLU, 3x3 conv as implicit GEMM from a lane-padded
# bf16 plane (3 fused K=3P matmuls per dh-row of taps), + moments.  grid = (N,)
# ---------------------------------------------------------------------------
def _conv2_stats_kernel(y1_ref, sc_ref, sh_ref, w2k_ref, y2_ref, st_ref, pad_ref,
                        *, hh, ww, cw, pad0):
    p = y1_ref.shape[0]
    s = hh * ww

    # zero only the (W+1)-wide borders the taps can touch (cheap, every step:
    # correct under any megacore split of the N axis; interior is overwritten below)
    pad_ref[:, pad0 - ww - 1:pad0] = jnp.zeros((p, ww + 1), jnp.bfloat16)
    pad_ref[:, pad0 + s:pad0 + s + ww + 1] = jnp.zeros((p, ww + 1), jnp.bfloat16)

    # IBN scale/shift + ReLU in f32, single bf16 cast when filling the plane
    yhat = jnp.maximum(y1_ref[...].astype(jnp.float32) * sc_ref[...] + sh_ref[...], 0.0)
    pad_ref[:, pad0:pad0 + s] = yhat.astype(jnp.bfloat16)

    jj = lax.broadcasted_iota(jnp.int32, (1, cw), 1)
    ssum = jnp.zeros((p, 1), jnp.float32)
    ssq = jnp.zeros((p, 1), jnp.float32)

    n_chunks = s // cw
    for tc in range(n_chunks):                 # static unroll; bounded acc live range
        base = pad0 + tc * cw
        jcol = (jj + tc * cw) % ww
        m_left = jcol != 0                     # dw=0 tap invalid at j == 0
        m_right = jcol != (ww - 1)             # dw=2 tap invalid at j == W-1
        acc = jnp.zeros((p, cw), jnp.float32)
        for dh in range(3):                    # 3 matmuls, K = 3P (dw taps fused)
            row = base + (dh - 1) * ww
            p_l = pad_ref[:, row - 1:row - 1 + cw]
            p_c = pad_ref[:, row:row + cw]
            p_r = pad_ref[:, row + 1:row + 1 + cw]
            p_l = jnp.where(m_left, p_l, jnp.zeros_like(p_l))
            p_r = jnp.where(m_right, p_r, jnp.zeros_like(p_r))
            rhs = jnp.concatenate([p_l, p_c, p_r], axis=0)     # (3P, cw) bf16
            acc = acc + jnp.dot(w2k_ref[dh], rhs,
                                preferred_element_type=jnp.float32)
        yb = acc.astype(jnp.bfloat16)
        y2_ref[:, tc * cw:(tc + 1) * cw] = yb                  # bf16, lane-dense store
        y32 = yb.astype(jnp.float32)
        ssum = ssum + jnp.sum(y32, axis=1, keepdims=True)
        ssq = ssq + jnp.sum(y32 * y32, axis=1, keepdims=True)

    st_ref[:, 0:1] = ssum
    st_ref[:, 1:2] = ssq


# ---------------------------------------------------------------------------
# Kernel C: bn2 scale/shift + ReLU, 1x1 conv3 (bf16 MXU), + moments.
# grid = (N, S//TS)
# ---------------------------------------------------------------------------
def _conv3_stats_kernel(y2_ref, sc_ref, sh_ref, w3_ref, y3_ref, st_ref):
    y = jnp.maximum(y2_ref[...].astype(jnp.float32) * sc_ref[...] + sh_ref[...], 0.0)
    z = jnp.dot(w3_ref[...], y.astype(jnp.bfloat16),
                preferred_element_type=jnp.float32)           # (4P, TS) f32
    zb = z.astype(jnp.bfloat16)
    y3_ref[...] = zb

    @pl.when(pl.program_id(1) == 0)
    def _init():
        st_ref[...] = jnp.zeros_like(st_ref)

    z32 = zb.astype(jnp.float32)
    st_ref[:, 0:1] += jnp.sum(z32, axis=1, keepdims=True)
    st_ref[:, 1:2] += jnp.sum(z32 * z32, axis=1, keepdims=True)


# ---------------------------------------------------------------------------
# Kernel D: bn3 scale/shift + residual add (f32 x, no transpose) + ReLU.
# grid = (N, S//TS)
# ---------------------------------------------------------------------------
def _bn3_res_relu_kernel(y3_ref, res_ref, sc_ref, sh_ref, o_ref):
    o_ref[...] = jnp.maximum(
        y3_ref[...].astype(jnp.float32) * sc_ref[...] + sh_ref[...] + res_ref[...],
        0.0)


# ---------------------------------------------------------------------------
# Wrapper
# ---------------------------------------------------------------------------
def bottleneck_ibn_forward(x_nchw, params):
    n, cin, h, w = x_nchw.shape
    p = params["conv1_w"].shape[0]          # planes
    half = params["half"]
    assert cin == 4 * p, "no downsample: residual requires inplanes == planes * 4"
    s = h * w
    ts = _lane_tile(s)
    cw = _chunk_w(s)
    pad0 = _round_up(w + 1, 128)

    x = x_nchw.astype(jnp.float32).reshape(n, cin, s)          # NCHW-native, no transpose

    # weights pre-cast to bf16 once; VMEM-resident via constant index_maps
    w1t = params["conv1_w"].reshape(p, cin).astype(jnp.bfloat16)       # (P, Cin)
    # w2k[dh, p_out, dw*P + q] = conv2_w[p_out, q, dh, dw]
    w2k = (jnp.transpose(params["conv2_w"], (2, 0, 3, 1))
           .reshape(3, p, 3 * p).astype(jnp.bfloat16))                 # (3, P, 3P)
    w3t = params["conv3_w"].reshape(4 * p, p).astype(jnp.bfloat16)     # (4P, P)

    # ---- Pass A: conv1 + moments ------------------------------------------
    blk_a = cin * ts * 4 + p * cin * 2 + p * ts * 2 + p * 8
    y1, st1 = pl.pallas_call(
        _conv1_stats_kernel,
        grid=(n, s // ts),
        in_specs=[
            pl.BlockSpec((None, cin, ts), lambda i, j: (i, 0, j)),
            pl.BlockSpec((p, cin), lambda i, j: (0, 0)),
        ],
        out_specs=[
            pl.BlockSpec((None, p, ts), lambda i, j: (i, 0, j)),
            pl.BlockSpec((None, p, 2), lambda i, j: (i, 0, 0)),
        ],
        out_shape=[
            jax.ShapeDtypeStruct((n, p, s), jnp.bfloat16),
            jax.ShapeDtypeStruct((n, p, 2), jnp.float32),
        ],
        compiler_params=_compiler_params(("parallel", "arbitrary"), blk_a),
    )(x, w1t)

    # IBN: InstanceNorm (per-sample) on [:half], BatchNorm (batch) on the rest
    gamma1 = jnp.concatenate([params["in_gamma"], params["bn1_gamma"]])
    beta1 = jnp.concatenate([params["in_beta"], params["bn1_beta"]])
    sum1, ssq1 = st1[:, :, 0], st1[:, :, 1]                              # (N, P)
    sc_i, sh_i = _scale_shift(sum1, ssq1, float(s), gamma1[None, :], beta1[None, :])
    sc_b, sh_b = _scale_shift(jnp.sum(sum1, 0), jnp.sum(ssq1, 0),
                              float(n * s), gamma1, beta1)
    is_in = (jnp.arange(p) < half)[None, :]
    scale1 = jnp.where(is_in, sc_i, sc_b[None, :])[:, :, None]           # (N, P, 1)
    shift1 = jnp.where(is_in, sh_i, sh_b[None, :])[:, :, None]

    # ---- Pass B: IBN-apply + ReLU + 3x3 conv (implicit GEMM) + moments ----
    scr_b = p * (s + 2 * pad0) * 2
    blk_b = 2 * p * s * 2 + 2 * p * 4 + 9 * p * p * 2 + p * 8
    y2, st2 = pl.pallas_call(
        functools.partial(_conv2_stats_kernel, hh=h, ww=w, cw=cw, pad0=pad0),
        grid=(n,),
        in_specs=[
            pl.BlockSpec((None, p, s), lambda i: (i, 0, 0)),
            pl.BlockSpec((None, p, 1), lambda i: (i, 0, 0)),
            pl.BlockSpec((None, p, 1), lambda i: (i, 0, 0)),
            pl.BlockSpec((3, p, 3 * p), lambda i: (0, 0, 0)),
        ],
        out_specs=[
            pl.BlockSpec((None, p, s), lambda i: (i, 0, 0)),
            pl.BlockSpec((None, p, 2), lambda i: (i, 0, 0)),
        ],
        out_shape=[
            jax.ShapeDtypeStruct((n, p, s), jnp.bfloat16),
            jax.ShapeDtypeStruct((n, p, 2), jnp.float32),
        ],
        scratch_shapes=[pltpu.VMEM((p, s + 2 * pad0), jnp.bfloat16)],
        compiler_params=_compiler_params(("parallel",), blk_b, scr_b),
    )(y1, scale1, shift1, w2k)

    sc2, sh2 = _scale_shift(jnp.sum(st2[:, :, 0], 0), jnp.sum(st2[:, :, 1], 0),
                            float(n * s), params["bn2_gamma"], params["bn2_beta"])
    sc2, sh2 = sc2[:, None], sh2[:, None]                                # (P, 1)

    # ---- Pass C: bn2-apply + ReLU + conv3 + moments -------------------------
    blk_c = p * ts * 2 + 2 * p * 4 + 4 * p * p * 2 + 4 * p * ts * 2 + 4 * p * 8
    y3, st3 = pl.pallas_call(
        _conv3_stats_kernel,
        grid=(n, s // ts),
        in_specs=[
            pl.BlockSpec((None, p, ts), lambda i, j: (i, 0, j)),
            pl.BlockSpec((p, 1), lambda i, j: (0, 0)),
            pl.BlockSpec((p, 1), lambda i, j: (0, 0)),
            pl.BlockSpec((4 * p, p), lambda i, j: (0, 0)),
        ],
        out_specs=[
            pl.BlockSpec((None, 4 * p, ts), lambda i, j: (i, 0, j)),
            pl.BlockSpec((None, 4 * p, 2), lambda i, j: (i, 0, 0)),
        ],
        out_shape=[
            jax.ShapeDtypeStruct((n, 4 * p, s), jnp.bfloat16),
            jax.ShapeDtypeStruct((n, 4 * p, 2), jnp.float32),
        ],
        compiler_params=_compiler_params(("parallel", "arbitrary"), blk_c),
    )(y2, sc2, sh2, w3t)

    sc3, sh3 = _scale_shift(jnp.sum(st3[:, :, 0], 0), jnp.sum(st3[:, :, 1], 0),
                            float(n * s), params["bn3_gamma"], params["bn3_beta"])
    sc3, sh3 = sc3[:, None], sh3[:, None]                                # (4P, 1)

    # ---- Pass D: bn3-apply + residual (f32 x, NCHW native) + ReLU -----------
    blk_d = 4 * p * ts * 2 + cin * ts * 4 + 8 * p * 4 + 4 * p * ts * 4
    out = pl.pallas_call(
        _bn3_res_relu_kernel,
        grid=(n, s // ts),
        in_specs=[
            pl.BlockSpec((None, 4 * p, ts), lambda i, j: (i, 0, j)),
            pl.BlockSpec((None, cin, ts), lambda i, j: (i, 0, j)),
            pl.BlockSpec((4 * p, 1), lambda i, j: (0, 0)),
            pl.BlockSpec((4 * p, 1), lambda i, j: (0, 0)),
        ],
        out_specs=pl.BlockSpec((None, 4 * p, ts), lambda i, j: (i, 0, j)),
        out_shape=jax.ShapeDtypeStruct((n, 4 * p, s), jnp.float32),
        compiler_params=_compiler_params(("parallel", "parallel"), blk_d),
    )(y3, x, sc3, sh3)

    return out.reshape(n, 4 * p, h, w)       # NCHW already: zero-cost reshape


# ---------------------------------------------------------------------------
# Pure-JAX reference mirroring the kernel's precision policy:
# bf16 MXU operands + bf16 activation storage, f32 accumulation / norm math.
# ---------------------------------------------------------------------------
def ref_forward(x_nchw, params):
    x = x_nchw.astype(jnp.float32)
    half = params["half"]
    p = params["conv1_w"].shape[0]

    w1 = params["conv1_w"].reshape(p, -1).astype(jnp.bfloat16)
    w2 = params["conv2_w"].astype(jnp.bfloat16)
    w3 = params["conv3_w"].reshape(4 * p, p).astype(jnp.bfloat16)

    y1 = jnp.einsum("pc,nchw->nphw", w1, x.astype(jnp.bfloat16),
                    preferred_element_type=jnp.float32)
    y1 = y1.astype(jnp.bfloat16).astype(jnp.float32)

    y_in, y_bn = y1[:, :half], y1[:, half:]
    mu_i = y_in.mean(axis=(2, 3), keepdims=True)
    var_i = y_in.var(axis=(2, 3), keepdims=True)
    y_in = (y_in - mu_i) * lax.rsqrt(var_i + EPS) \
        * params["in_gamma"][None, :, None, None] + params["in_beta"][None, :, None, None]
    mu_b = y_bn.mean(axis=(0, 2, 3), keepdims=True)
    var_b = y_bn.var(axis=(0, 2, 3), keepdims=True)
    y_bn = (y_bn - mu_b) * lax.rsqrt(var_b + EPS) \
        * params["bn1_gamma"][None, :, None, None] + params["bn1_beta"][None, :, None, None]
    y = jnp.maximum(jnp.concatenate([y_in, y_bn], axis=1), 0.0)

    y2 = lax.conv_general_dilated(y.astype(jnp.bfloat16), w2, (1, 1), "SAME",
                                  dimension_numbers=("NCHW", "OIHW", "NCHW"),
                                  preferred_element_type=jnp.float32)
    y2 = y2.astype(jnp.bfloat16).astype(jnp.float32)
    mu2 = y2.mean(axis=(0, 2, 3), keepdims=True)
    var2 = y2.var(axis=(0, 2, 3), keepdims=True)
    y2 = jnp.maximum((y2 - mu2) * lax.rsqrt(var2 + EPS)
                     * params["bn2_gamma"][None, :, None, None]
                     + params["bn2_beta"][None, :, None, None], 0.0)

    y3 = jnp.einsum("qp,nphw->nqhw", w3, y2.astype(jnp.bfloat16),
                    preferred_element_type=jnp.float32)
    y3 = y3.astype(jnp.bfloat16).astype(jnp.float32)
    mu3 = y3.mean(axis=(0, 2, 3), keepdims=True)
    var3 = y3.var(axis=(0, 2, 3), keepdims=True)
    y3 = (y3 - mu3) * lax.rsqrt(var3 + EPS) \
        * params["bn3_gamma"][None, :, None, None] + params["bn3_beta"][None, :, None, None]
    return jnp.maximum(y3 + x, 0.0)


if __name__ == "__main__":
    key = jax.random.PRNGKey(0)
    keys = jax.random.split(key, 12)

    N, H, W = 2, 16, 16
    planes = 64                     # realistic minimum (ResNet-50 layer1)
    inplanes = 4 * planes           # 256: identity residual (downsample=None)
    half = planes // 2              # IBN: InstanceNorm first half, BatchNorm rest

    x = jax.random.normal(keys[0], (N, inplanes, H, W), jnp.float32)

    params = dict(
        half=half,
        # PyTorch-shaped conv weights (OIHW)
        conv1_w=0.05 * jax.random.normal(keys[1], (planes, inplanes, 1, 1), jnp.float32),
        conv2_w=0.05 * jax.random.normal(keys[2], (planes, planes, 3, 3), jnp.float32),
        conv3_w=0.15 * jax.random.normal(keys[3], (4 * planes, planes, 1, 1), jnp.float32),
        # IBN affine params
        in_gamma=1.0 + 0.1 * jax.random.normal(keys[4], (half,), jnp.float32),
        in_beta=0.1 * jax.random.normal(keys[5], (half,), jnp.float32),
        bn1_gamma=1.0 + 0.1 * jax.random.normal(keys[6], (planes - half,), jnp.float32),
        bn1_beta=0.1 * jax.random.normal(keys[7], (planes - half,), jnp.float32),
        # bn2 / bn3 affine params
        bn2_gamma=1.0 + 0.1 * jax.random.normal(keys[8], (planes,), jnp.float32),
        bn2_beta=0.1 * jax.random.normal(keys[9], (planes,), jnp.float32),
        bn3_gamma=1.0 + 0.1 * jax.random.normal(keys[10], (4 * planes,), jnp.float32),
        bn3_beta=0.1 * jax.random.normal(keys[11], (4 * planes,), jnp.float32),
    )

    fwd = jax.jit(bottleneck_ibn_forward)
    out = jax.block_until_ready(fwd(x, params))
    ref = jax.block_until_ready(ref_forward(x, params))

    assert out.shape == (N, inplanes, H, W), out.shape
    max_diff = float(jnp.max(jnp.abs(out - ref)))
    assert jnp.allclose(out, ref, rtol=1e-2, atol=1e-2), f"max abs diff {max_diff}"

    print("KERNEL_OK")
</pallas_src>

<mosaic_0001>
module attributes {stable_mosaic.version = 11 : i64} {
  func.func @_conv1_stats_kernel(%arg0: i32, %arg1: i32, %arg2: memref<1x256x256xf32, #tpu.memory_space<vmem>>, %arg3: memref<64x256xbf16, #tpu.memory_space<vmem>>, %arg4: memref<1x64x256xbf16, #tpu.memory_space<vmem>>, %arg5: memref<1x64x2xf32, #tpu.memory_space<vmem>>) attributes {dimension_semantics = [#tpu.dimension_semantics<parallel>, #tpu.dimension_semantics<arbitrary>], iteration_bounds = array<i64: 2, 1>, scalar_prefetch = 0 : i64, scratch_operands = 0 : i64, tpu.core_type = #tpu.core_type<tc>, window_params = [{transform_indices = @transform_0, window_bounds = array<i64: 1, 256, 256>}, {pipeline_mode = #tpu.pipeline_mode<synchronous>, transform_indices = @transform_1, window_bounds = array<i64: 64, 256>}, {transform_indices = @transform_2, window_bounds = array<i64: 1, 64, 256>}, {transform_indices = @transform_3, window_bounds = array<i64: 1, 64, 2>}]} {
    %c0 = arith.constant 0 : index
    %c0_0 = arith.constant 0 : index
    %0 = vector.load %arg3[%c0, %c0_0] : memref<64x256xbf16, #tpu.memory_space<vmem>>, vector<64x256xbf16>
    %c0_1 = arith.constant 0 : index
    %c0_2 = arith.constant 0 : index
    %c0_3 = arith.constant 0 : index
    %1 = vector.load %arg2[%c0_1, %c0_2, %c0_3] : memref<1x256x256xf32, #tpu.memory_space<vmem>>, vector<1x256x256xf32>
    %2 = vector.shape_cast %1 : vector<1x256x256xf32> to vector<256x256xf32>
    %3 = arith.truncf %2 : vector<256x256xf32> to vector<256x256xbf16>
    %cst = arith.constant dense<0.000000e+00> : vector<64x256xf32>
    %4 = tpu.matmul %0, %3, %cst {dimension_numbers = #tpu.dot_dimension_numbers<[1], [0], [0], [1], [0, 0, 1, 1], [], []>} : vector<64x256xbf16>, vector<256x256xbf16>, vector<64x256xf32> -> vector<64x256xf32>
    %5 = arith.truncf %4 : vector<64x256xf32> to vector<64x256xbf16>
    %c0_4 = arith.constant 0 : index
    %c0_5 = arith.constant 0 : index
    %c0_6 = arith.constant 0 : index
    %6 = vector.load %arg4[%c0_4, %c0_5, %c0_6] : memref<1x64x256xbf16, #tpu.memory_space<vmem>>, vector<1x64x256xbf16>
    %7 = vector.shape_cast %6 : vector<1x64x256xbf16> to vector<64x256xbf16>
    %8 = vector.shape_cast %5 : vector<64x256xbf16> to vector<1x64x256xbf16>
    tpu.vector_store %arg4[%c0_4, %c0_5, %c0_6], %8 {strides = array<i32>} : memref<1x64x256xbf16, #tpu.memory_space<vmem>>, vector<1x64x256xbf16>,
    %c0_i32 = arith.constant 0 : i32
    %9 = arith.cmpi eq, %arg1, %c0_i32 : i32
    %10 = arith.extui %9 : i1 to i32
    %c0_i32_7 = arith.constant 0 : i32
    %11 = arith.cmpi ne, %10, %c0_i32_7 : i32
    scf.if %11 {
      %cst_21 = arith.constant 0.000000e+00 : f32
      %30 = vector.broadcast %cst_21 : f32 to vector<64x2xf32>
      %c0_22 = arith.constant 0 : index
      %c0_23 = arith.constant 0 : index
      %c0_24 = arith.constant 0 : index
      %31 = vector.load %arg5[%c0_22, %c0_23, %c0_24] : memref<1x64x2xf32, #tpu.memory_space<vmem>>, vector<1x64x2xf32>
      %32 = vector.shape_cast %31 : vector<1x64x2xf32> to vector<64x2xf32>
      %33 = vector.shape_cast %30 : vector<64x2xf32> to vector<1x64x2xf32>
      tpu.vector_store %arg5[%c0_22, %c0_23, %c0_24], %33 {strides = array<i32>} : memref<1x64x2xf32, #tpu.memory_space<vmem>>, vector<1x64x2xf32>,
    } else {
    }
    %12 = arith.extf %5 : vector<64x256xbf16> to vector<64x256xf32>
    %c0_8 = arith.constant 0 : index
    %c0_9 = arith.constant 0 : index
    %c0_10 = arith.constant 0 : index
    %13 = vector.load %arg5[%c0_8, %c0_9, %c0_10] : memref<1x64x2xf32, #tpu.memory_space<vmem>>, vector<1x64x1xf32>
    %14 = vector.shape_cast %13 : vector<1x64x1xf32> to vector<64x1xf32>
    %cst_11 = arith.constant dense<0.000000e+00> : vector<64xf32>
    %15 = vector.multi_reduction <add>, %12, %cst_11 [1] : vector<64x256xf32> to vector<64xf32>
    %16 = vector.shape_cast %15 : vector<64xf32> to vector<64x1xf32>
    %17 = arith.addf %14, %16 : vector<64x1xf32>
    %c0_12 = arith.constant 0 : index
    %c0_13 = arith.constant 0 : index
    %c0_14 = arith.constant 0 : index
    %18 = vector.load %arg5[%c0_12, %c0_13, %c0_14] : memref<1x64x2xf32, #tpu.memory_space<vmem>>, vector<1x64x1xf32>
    %19 = vector.shape_cast %18 : vector<1x64x1xf32> to vector<64x1xf32>
    %20 = vector.shape_cast %17 : vector<64x1xf32> to vector<1x64x1xf32>
    tpu.vector_store %arg5[%c0_12, %c0_13, %c0_14], %20 {strides = array<i32>} : memref<1x64x2xf32, #tpu.memory_space<vmem>>, vector<1x64x1xf32>,
    %c0_15 = arith.constant 0 : index
    %c0_16 = arith.constant 0 : index
    %c1 = arith.constant 1 : index
    %21 = vector.load %arg5[%c0_15, %c0_16, %c1] : memref<1x64x2xf32, #tpu.memory_space<vmem>>, vector<1x64x1xf32>
    %22 = vector.shape_cast %21 : vector<1x64x1xf32> to vector<64x1xf32>
    %23 = arith.mulf %12, %12 : vector<64x256xf32>
    %cst_17 = arith.constant dense<0.000000e+00> : vector<64xf32>
    %24 = vector.multi_reduction <add>, %23, %cst_17 [1] : vector<64x256xf32> to vector<64xf32>
    %25 = vector.shape_cast %24 : vector<64xf32> to vector<64x1xf32>
    %26 = arith.addf %22, %25 : vector<64x1xf32>
    %c0_18 = arith.constant 0 : index
    %c0_19 = arith.constant 0 : index
    %c1_20 = arith.constant 1 : index
    %27 = vector.load %arg5[%c0_18, %c0_19, %c1_20] : memref<1x64x2xf32, #tpu.memory_space<vmem>>, vector<1x64x1xf32>
    %28 = vector.shape_cast %27 : vector<1x64x1xf32> to vector<64x1xf32>
    %29 = vector.shape_cast %26 : vector<64x1xf32> to vector<1x64x1xf32>
    tpu.vector_store %arg5[%c0_18, %c0_19, %c1_20], %29 {strides = array<i32>} : memref<1x64x2xf32, #tpu.memory_space<vmem>>, vector<1x64x1xf32>,
    return
  }
  func.func @transform_0(%arg0: i32, %arg1: i32) -> (i32, i32, i32) {
    %c0_i32 = arith.constant 0 : i32
    %c0_i32_0 = arith.constant 0 : i32
    return %arg0, %c0_i32, %arg1 : i32, i32, i32
  }
  func.func @transform_1(%arg0: i32, %arg1: i32) -> (i32, i32) {
    %c0_i32 = arith.constant 0 : i32
    %c0_i32_0 = arith.constant 0 : i32
    %c0_i32_1 = arith.constant 0 : i32
    return %c0_i32, %c0_i32_0 : i32, i32
  }
  func.func @transform_2(%arg0: i32, %arg1: i32) -> (i32, i32, i32) {
    %c0_i32 = arith.constant 0 : i32
    %c0_i32_0 = arith.constant 0 : i32
    return %arg0, %c0_i32, %arg1 : i32, i32, i32
  }
  func.func @transform_3(%arg0: i32, %arg1: i32) -> (i32, i32, i32) {
    %c0_i32 = arith.constant 0 : i32
    %c0_i32_0 = arith.constant 0 : i32
    %c0_i32_1 = arith.constant 0 : i32
    return %arg0, %c0_i32, %c0_i32_0 : i32, i32, i32
  }
}

module attributes {stable_mosaic.version = 11 : i64} {
  func.func @_conv3_stats_kernel(%arg0: i32, %arg1: i32, %arg2: memref<1x64x256xbf16, #tpu.memory_space<vmem>>, %arg3: memref<64x1xf32, #tpu.memory_space<vmem>>, %arg4: memref<64x1xf32, #tpu.memory_space<vmem>>, %arg5: memref<256x64xbf16, #tpu.memory_space<vmem>>, %arg6: memref<1x256x256xbf16, #tpu.memory_space<vmem>>, %arg7: memref<1x256x2xf32, #tpu.memory_space<vmem>>) attributes {dimension_semantics = [#tpu.dimension_semantics<parallel>, #tpu.dimension_semantics<arbitrary>], iteration_bounds = array<i64: 2, 1>, scalar_prefetch = 0 : i64, scratch_operands = 0 : i64, tpu.core_type = #tpu.core_type<tc>, window_params = [{transform_indices = @transform_0, window_bounds = array<i64: 1, 64, 256>}, {pipeline_mode = #tpu.pipeline_mode<synchronous>, transform_indices = @transform_1, window_bounds = array<i64: 64, 1>}, {pipeline_mode = #tpu.pipeline_mode<synchronous>, transform_indices = @transform_2, window_bounds = array<i64: 64, 1>}, {pipeline_mode = #tpu.pipeline_mode<synchronous>, transform_indices = @transform_3, window_bounds = array<i64: 256, 64>}, {transform_indices = @transform_4, window_bounds = array<i64: 1, 256, 256>}, {transform_indices = @transform_5, window_bounds = array<i64: 1, 256, 2>}]} {
    %c0 = arith.constant 0 : index
    %c0_0 = arith.constant 0 : index
    %c0_1 = arith.constant 0 : index
    %0 = vector.load %arg2[%c0, %c0_0, %c0_1] : memref<1x64x256xbf16, #tpu.memory_space<vmem>>, vector<1x64x256xbf16>
    %1 = vector.shape_cast %0 : vector<1x64x256xbf16> to vector<64x256xbf16>
    %2 = arith.extf %1 : vector<64x256xbf16> to vector<64x256xf32>
    %c0_2 = arith.constant 0 : index
    %c0_3 = arith.constant 0 : index
    %3 = vector.load %arg3[%c0_2, %c0_3] : memref<64x1xf32, #tpu.memory_space<vmem>>, vector<64x1xf32>
    %4 = vector.broadcast %3 : vector<64x1xf32> to vector<64x256xf32>
    %5 = arith.mulf %2, %4 : vector<64x256xf32>
    %c0_4 = arith.constant 0 : index
    %c0_5 = arith.constant 0 : index
    %6 = vector.load %arg4[%c0_4, %c0_5] : memref<64x1xf32, #tpu.memory_space<vmem>>, vector<64x1xf32>
    %7 = vector.broadcast %6 : vector<64x1xf32> to vector<64x256xf32>
    %8 = arith.addf %5, %7 : vector<64x256xf32>
    %cst = arith.constant 0.000000e+00 : f32
    %9 = vector.broadcast %cst : f32 to vector<64x256xf32>
    %10 = arith.maximumf %8, %9 : vector<64x256xf32>
    %c0_6 = arith.constant 0 : index
    %c0_7 = arith.constant 0 : index
    %11 = vector.load %arg5[%c0_6, %c0_7] : memref<256x64xbf16, #tpu.memory_space<vmem>>, vector<256x64xbf16>
    %12 = arith.truncf %10 : vector<64x256xf32> to vector<64x256xbf16>
    %cst_8 = arith.constant dense<0.000000e+00> : vector<256x256xf32>
    %13 = tpu.matmul %11, %12, %cst_8 {dimension_numbers = #tpu.dot_dimension_numbers<[1], [0], [0], [1], [0, 0, 1, 1], [], []>} : vector<256x64xbf16>, vector<64x256xbf16>, vector<256x256xf32> -> vector<256x256xf32>
    %14 = arith.truncf %13 : vector<256x256xf32> to vector<256x256xbf16>
    %c0_9 = arith.constant 0 : index
    %c0_10 = arith.constant 0 : index
    %c0_11 = arith.constant 0 : index
    %15 = vector.load %arg6[%c0_9, %c0_10, %c0_11] : memref<1x256x256xbf16, #tpu.memory_space<vmem>>, vector<1x256x256xbf16>
    %16 = vector.shape_cast %15 : vector<1x256x256xbf16> to vector<256x256xbf16>
    %17 = vector.shape_cast %14 : vector<256x256xbf16> to vector<1x256x256xbf16>
    tpu.vector_store %arg6[%c0_9, %c0_10, %c0_11], %17 {strides = array<i32>} : memref<1x256x256xbf16, #tpu.memory_space<vmem>>, vector<1x256x256xbf16>,
    %c0_i32 = arith.constant 0 : i32
    %18 = arith.cmpi eq, %arg1, %c0_i32 : i32
    %19 = arith.extui %18 : i1 to i32
    %c0_i32_12 = arith.constant 0 : i32
    %20 = arith.cmpi ne, %19, %c0_i32_12 : i32
    scf.if %20 {
      %cst_26 = arith.constant 0.000000e+00 : f32
      %39 = vector.broadcast %cst_26 : f32 to vector<256x2xf32>
      %c0_27 = arith.constant 0 : index
      %c0_28 = arith.constant 0 : index
      %c0_29 = arith.constant 0 : index
      %40 = vector.load %arg7[%c0_27, %c0_28, %c0_29] : memref<1x256x2xf32, #tpu.memory_space<vmem>>, vector<1x256x2xf32>
      %41 = vector.shape_cast %40 : vector<1x256x2xf32> to vector<256x2xf32>
      %42 = vector.shape_cast %39 : vector<256x2xf32> to vector<1x256x2xf32>
      tpu.vector_store %arg7[%c0_27, %c0_28, %c0_29], %42 {strides = array<i32>} : memref<1x256x2xf32, #tpu.memory_space<vmem>>, vector<1x256x2xf32>,
    } else {
    }
    %21 = arith.extf %14 : vector<256x256xbf16> to vector<256x256xf32>
    %c0_13 = arith.constant 0 : index
    %c0_14 = arith.constant 0 : index
    %c0_15 = arith.constant 0 : index
    %22 = vector.load %arg7[%c0_13, %c0_14, %c0_15] : memref<1x256x2xf32, #tpu.memory_space<vmem>>, vector<1x256x1xf32>
    %23 = vector.shape_cast %22 : vector<1x256x1xf32> to vector<256x1xf32>
    %cst_16 = arith.constant dense<0.000000e+00> : vector<256xf32>
    %24 = vector.multi_reduction <add>, %21, %cst_16 [1] : vector<256x256xf32> to vector<256xf32>
    %25 = vector.shape_cast %24 : vector<256xf32> to vector<256x1xf32>
    %26 = arith.addf %23, %25 : vector<256x1xf32>
    %c0_17 = arith.constant 0 : index
    %c0_18 = arith.constant 0 : index
    %c0_19 = arith.constant 0 : index
    %27 = vector.load %arg7[%c0_17, %c0_18, %c0_19] : memref<1x256x2xf32, #tpu.memory_space<vmem>>, vector<1x256x1xf32>
    %28 = vector.shape_cast %27 : vector<1x256x1xf32> to vector<256x1xf32>
    %29 = vector.shape_cast %26 : vector<256x1xf32> to vector<1x256x1xf32>
    tpu.vector_store %arg7[%c0_17, %c0_18, %c0_19], %29 {strides = array<i32>} : memref<1x256x2xf32, #tpu.memory_space<vmem>>, vector<1x256x1xf32>,
    %c0_20 = arith.constant 0 : index
    %c0_21 = arith.constant 0 : index
    %c1 = arith.constant 1 : index
    %30 = vector.load %arg7[%c0_20, %c0_21, %c1] : memref<1x256x2xf32, #tpu.memory_space<vmem>>, vector<1x256x1xf32>
    %31 = vector.shape_cast %30 : vector<1x256x1xf32> to vector<256x1xf32>
    %32 = arith.mulf %21, %21 : vector<256x256xf32>
    %cst_22 = arith.constant dense<0.000000e+00> : vector<256xf32>
    %33 = vector.multi_reduction <add>, %32, %cst_22 [1] : vector<256x256xf32> to vector<256xf32>
    %34 = vector.shape_cast %33 : vector<256xf32> to vector<256x1xf32>
    %35 = arith.addf %31, %34 : vector<256x1xf32>
    %c0_23 = arith.constant 0 : index
    %c0_24 = arith.constant 0 : index
    %c1_25 = arith.constant 1 : index
    %36 = vector.load %arg7[%c0_23, %c0_24, %c1_25] : memref<1x256x2xf32, #tpu.memory_space<vmem>>, vector<1x256x1xf32>
    %37 = vector.shape_cast %36 : vector<1x256x1xf32> to vector<256x1xf32>
    %38 = vector.shape_cast %35 : vector<256x1xf32> to vector<1x256x1xf32>
    tpu.vector_store %arg7[%c0_23, %c0_24, %c1_25], %38 {strides = array<i32>} : memref<1x256x2xf32, #tpu.memory_space<vmem>>, vector<1x256x1xf32>,
    return
  }
  func.func @transform_0(%arg0: i32, %arg1: i32) -> (i32, i32, i32) {
    %c0_i32 = arith.constant 0 : i32
    %c0_i32_0 = arith.constant 0 : i32
    return %arg0, %c0_i32, %arg1 : i32, i32, i32
  }
  func.func @transform_1(%arg0: i32, %arg1: i32) -> (i32, i32) {
    %c0_i32 = arith.constant 0 : i32
    %c0_i32_0 = arith.constant 0 : i32
    %c0_i32_1 = arith.constant 0 : i32
    return %c0_i32, %c0_i32_0 : i32, i32
  }
  func.func @transform_2(%arg0: i32, %arg1: i32) -> (i32, i32) {
    %c0_i32 = arith.constant 0 : i32
    %c0_i32_0 = arith.constant 0 : i32
    %c0_i32_1 = arith.constant 0 : i32
    return %c0_i32, %c0_i32_0 : i32, i32
  }
  func.func @transform_3(%arg0: i32, %arg1: i32) -> (i32, i32) {
    %c0_i32 = arith.constant 0 : i32
    %c0_i32_0 = arith.constant 0 : i32
    %c0_i32_1 = arith.constant 0 : i32
    return %c0_i32, %c0_i32_0 : i32, i32
  }
  func.func @transform_4(%arg0: i32, %arg1: i32) -> (i32, i32, i32) {
    %c0_i32 = arith.constant 0 : i32
    %c0_i32_0 = arith.constant 0 : i32
    return %arg0, %c0_i32, %arg1 : i32, i32, i32
  }
  func.func @transform_5(%arg0: i32, %arg1: i32) -> (i32, i32, i32) {
    %c0_i32 = arith.constant 0 : i32
    %c0_i32_0 = arith.constant 0 : i32
    %c0_i32_1 = arith.constant 0 : i32
    return %arg0, %c0_i32, %c0_i32_0 : i32, i32, i32
  }
}

module attributes {stable_mosaic.version = 11 : i64} {
  func.func @_conv2_stats_kernel(%arg0: i32, %arg1: memref<1x64x256xbf16, #tpu.memory_space<vmem>>, %arg2: memref<1x64x1xf32, #tpu.memory_space<vmem>>, %arg3: memref<1x64x1xf32, #tpu.memory_space<vmem>>, %arg4: memref<3x64x192xbf16, #tpu.memory_space<vmem>>, %arg5: memref<1x64x256xbf16, #tpu.memory_space<vmem>>, %arg6: memref<1x64x2xf32, #tpu.memory_space<vmem>>, %arg7: memref<64x512xbf16, #tpu.memory_space<vmem>>) attributes {dimension_semantics = [#tpu.dimension_semantics<parallel>], iteration_bounds = array<i64: 2>, scalar_prefetch = 0 : i64, scratch_operands = 1 : i64, tpu.core_type = #tpu.core_type<tc>, window_params = [{transform_indices = @transform_0, window_bounds = array<i64: 1, 64, 256>}, {transform_indices = @transform_1, window_bounds = array<i64: 1, 64, 1>}, {transform_indices = @transform_2, window_bounds = array<i64: 1, 64, 1>}, {pipeline_mode = #tpu.pipeline_mode<synchronous>, transform_indices = @transform_3, window_bounds = array<i64: 3, 64, 192>}, {transform_indices = @transform_4, window_bounds = array<i64: 1, 64, 256>}, {transform_indices = @transform_5, window_bounds = array<i64: 1, 64, 2>}]} {
    %cst = arith.constant 0.000000e+00 : bf16
    %0 = vector.broadcast %cst : bf16 to vector<64x17xbf16>
    %c0 = arith.constant 0 : index
    %c111 = arith.constant 111 : index
    %1 = vector.load %arg7[%c0, %c111] : memref<64x512xbf16, #tpu.memory_space<vmem>>, vector<64x17xbf16>
    tpu.vector_store %arg7[%c0, %c111], %0 {strides = array<i32>} : memref<64x512xbf16, #tpu.memory_space<vmem>>, vector<64x17xbf16>,
    %cst_0 = arith.constant 0.000000e+00 : bf16
    %2 = vector.broadcast %cst_0 : bf16 to vector<64x17xbf16>
    %c0_1 = arith.constant 0 : index
    %c384 = arith.constant 384 : index
    %3 = vector.load %arg7[%c0_1, %c384] : memref<64x512xbf16, #tpu.memory_space<vmem>>, vector<64x17xbf16>
    tpu.vector_store %arg7[%c0_1, %c384], %2 {strides = array<i32>} : memref<64x512xbf16, #tpu.memory_space<vmem>>, vector<64x17xbf16>,
    %c0_2 = arith.constant 0 : index
    %c0_3 = arith.constant 0 : index
    %c0_4 = arith.constant 0 : index
    %4 = vector.load %arg1[%c0_2, %c0_3, %c0_4] : memref<1x64x256xbf16, #tpu.memory_space<vmem>>, vector<1x64x256xbf16>
    %5 = vector.shape_cast %4 : vector<1x64x256xbf16> to vector<64x256xbf16>
    %6 = arith.extf %5 : vector<64x256xbf16> to vector<64x256xf32>
    %c0_5 = arith.constant 0 : index
    %c0_6 = arith.constant 0 : index
    %c0_7 = arith.constant 0 : index
    %7 = vector.load %arg2[%c0_5, %c0_6, %c0_7] : memref<1x64x1xf32, #tpu.memory_space<vmem>>, vector<1x64x1xf32>
    %8 = vector.shape_cast %7 : vector<1x64x1xf32> to vector<64x1xf32>
    %9 = vector.broadcast %8 : vector<64x1xf32> to vector<64x256xf32>
    %10 = arith.mulf %6, %9 : vector<64x256xf32>
    %c0_8 = arith.constant 0 : index
    %c0_9 = arith.constant 0 : index
    %c0_10 = arith.constant 0 : index
    %11 = vector.load %arg3[%c0_8, %c0_9, %c0_10] : memref<1x64x1xf32, #tpu.memory_space<vmem>>, vector<1x64x1xf32>
    %12 = vector.shape_cast %11 : vector<1x64x1xf32> to vector<64x1xf32>
    %13 = vector.broadcast %12 : vector<64x1xf32> to vector<64x256xf32>
    %14 = arith.addf %10, %13 : vector<64x256xf32>
    %cst_11 = arith.constant 0.000000e+00 : f32
    %15 = vector.broadcast %cst_11 : f32 to vector<64x256xf32>
    %16 = arith.maximumf %14, %15 : vector<64x256xf32>
    %17 = arith.truncf %16 : vector<64x256xf32> to vector<64x256xbf16>
    %c0_12 = arith.constant 0 : index
    %c128 = arith.constant 128 : index
    %18 = vector.load %arg7[%c0_12, %c128] : memref<64x512xbf16, #tpu.memory_space<vmem>>, vector<64x256xbf16>
    tpu.vector_store %arg7[%c0_12, %c128], %17 {strides = array<i32>} : memref<64x512xbf16, #tpu.memory_space<vmem>>, vector<64x256xbf16>,
    %19 = tpu.iota {dimensions = array<i32: 1>} : vector<1x128xi32>
    %cst_13 = arith.constant 0.000000e+00 : f32
    %20 = vector.broadcast %cst_13 : f32 to vector<64x1xf32>
    %cst_14 = arith.constant 0.000000e+00 : f32
    %21 = vector.broadcast %cst_14 : f32 to vector<64x1xf32>
    %c0_i32 = arith.constant 0 : i32
    %22 = vector.broadcast %c0_i32 : i32 to vector<1x128xi32>
    %23 = arith.addi %19, %22 : vector<1x128xi32>
    %c16_i32 = arith.constant 16 : i32
    %c0_i32_15 = arith.constant 0 : i32
    %24 = arith.cmpi eq, %c16_i32, %c0_i32_15 : i32
    %c1_i32 = arith.constant 1 : i32
    %25 = arith.select %24, %c1_i32, %c16_i32 : i32
    %26 = vector.broadcast %25 : i32 to vector<1x128xi32>
    %27 = arith.remsi %23, %26 : vector<1x128xi32>
    %c0_i32_16 = arith.constant 0 : i32
    %28 = vector.broadcast %c0_i32_16 : i32 to vector<1x128xi32>
    %29 = arith.cmpi ne, %27, %28 : vector<1x128xi32>
    %c0_i32_17 = arith.constant 0 : i32
    %30 = vector.broadcast %c0_i32_17 : i32 to vector<1x128xi32>
    %31 = arith.cmpi slt, %27, %30 : vector<1x128xi32>
    %c0_i32_18 = arith.constant 0 : i32
    %32 = arith.cmpi slt, %25, %c0_i32_18 : i32
    %33 = vector.broadcast %32 : i1 to vector<1x128xi1>
    %34 = vector.broadcast %33 : vector<1x128xi1> to vector<1x128xi1>
    %35 = arith.xori %31, %34 : vector<1x128xi1>
    %36 = arith.andi %35, %29 : vector<1x128xi1>
    %37 = vector.broadcast %25 : i32 to vector<1x128xi32>
    %38 = arith.addi %27, %37 : vector<1x128xi32>
    %39 = arith.select %36, %38, %27 : vector<1x128xi1>, vector<1x128xi32>
    %c0_i32_19 = arith.constant 0 : i32
    %40 = vector.broadcast %c0_i32_19 : i32 to vector<1x128xi32>
    %41 = arith.cmpi ne, %39, %40 : vector<1x128xi32>
    %c15_i32 = arith.constant 15 : i32
    %42 = vector.broadcast %c15_i32 : i32 to vector<1x128xi32>
    %43 = arith.cmpi ne, %39, %42 : vector<1x128xi32>
    %cst_20 = arith.constant 0.000000e+00 : f32
    %44 = vector.broadcast %cst_20 : f32 to vector<64x128xf32>
    %c0_21 = arith.constant 0 : index
    %c111_22 = arith.constant 111 : index
    %45 = vector.load %arg7[%c0_21, %c111_22] : memref<64x512xbf16, #tpu.memory_space<vmem>>, vector<64x128xbf16>
    %c0_23 = arith.constant 0 : index
    %c112 = arith.constant 112 : index
    %46 = vector.load %arg7[%c0_23, %c112] : memref<64x512xbf16, #tpu.memory_space<vmem>>, vector<64x128xbf16>
    %c0_24 = arith.constant 0 : index
    %c113 = arith.constant 113 : index
    %47 = vector.load %arg7[%c0_24, %c113] : memref<64x512xbf16, #tpu.memory_space<vmem>>, vector<64x128xbf16>
    %cst_25 = arith.constant 0.000000e+00 : bf16
    %48 = vector.broadcast %cst_25 : bf16 to vector<64x128xbf16>
    %49 = vector.shape_cast %41 : vector<1x128xi1> to vector<1x128xi1>
    %50 = vector.broadcast %49 : vector<1x128xi1> to vector<64x128xi1>
    %51 = arith.select %50, %45, %48 : vector<64x128xi1>, vector<64x128xbf16>
    %cst_26 = arith.constant 0.000000e+00 : bf16
    %52 = vector.broadcast %cst_26 : bf16 to vector<64x128xbf16>
    %53 = vector.shape_cast %43 : vector<1x128xi1> to vector<1x128xi1>
    %54 = vector.broadcast %53 : vector<1x128xi1> to vector<64x128xi1>
    %55 = arith.select %54, %47, %52 : vector<64x128xi1>, vector<64x128xbf16>
    %56 = tpu.concatenate %51, %46, %55 in 0 : vector<64x128xbf16>, vector<64x128xbf16>, vector<64x128xbf16> -> vector<192x128xbf16>
    %c0_27 = arith.constant 0 : index
    %c0_28 = arith.constant 0 : index
    %c0_29 = arith.constant 0 : index
    %57 = vector.load %arg4[%c0_27, %c0_28, %c0_29] : memref<3x64x192xbf16, #tpu.memory_space<vmem>>, vector<1x64x192xbf16>
    %58 = vector.shape_cast %57 : vector<1x64x192xbf16> to vector<64x192xbf16>
    %cst_30 = arith.constant dense<0.000000e+00> : vector<64x128xf32>
    %59 = tpu.matmul %58, %56, %cst_30 {dimension_numbers = #tpu.dot_dimension_numbers<[1], [0], [0], [1], [0, 0, 1, 1], [], []>} : vector<64x192xbf16>, vector<192x128xbf16>, vector<64x128xf32> -> vector<64x128xf32>
    %60 = arith.addf %44, %59 : vector<64x128xf32>
    %c0_31 = arith.constant 0 : index
    %c127 = arith.constant 127 : index
    %61 = vector.load %arg7[%c0_31, %c127] : memref<64x512xbf16, #tpu.memory_space<vmem>>, vector<64x128xbf16>
    %c0_32 = arith.constant 0 : index
    %c128_33 = arith.constant 128 : index
    %62 = vector.load %arg7[%c0_32, %c128_33] : memref<64x512xbf16, #tpu.memory_space<vmem>>, vector<64x128xbf16>
    %c0_34 = arith.constant 0 : index
    %c129 = arith.constant 129 : index
    %63 = vector.load %arg7[%c0_34, %c129] : memref<64x512xbf16, #tpu.memory_space<vmem>>, vector<64x128xbf16>
    %cst_35 = arith.constant 0.000000e+00 : bf16
    %64 = vector.broadcast %cst_35 : bf16 to vector<64x128xbf16>
    %65 = vector.shape_cast %41 : vector<1x128xi1> to vector<1x128xi1>
    %66 = vector.broadcast %65 : vector<1x128xi1> to vector<64x128xi1>
    %67 = arith.select %66, %61, %64 : vector<64x128xi1>, vector<64x128xbf16>
    %cst_36 = arith.constant 0.000000e+00 : bf16
    %68 = vector.broadcast %cst_36 : bf16 to vector<64x128xbf16>
    %69 = vector.shape_cast %43 : vector<1x128xi1> to vector<1x128xi1>
    %70 = vector.broadcast %69 : vector<1x128xi1> to vector<64x128xi1>
    %71 = arith.select %70, %63, %68 : vector<64x128xi1>, vector<64x128xbf16>
    %72 = tpu.concatenate %67, %62, %71 in 0 : vector<64x128xbf16>, vector<64x128xbf16>, vector<64x128xbf16> -> vector<192x128xbf16>
    %c1 = arith.constant 1 : index
    %c0_37 = arith.constant 0 : index
    %c0_38 = arith.constant 0 : index
    %73 = vector.load %arg4[%c1, %c0_37, %c0_38] : memref<3x64x192xbf16, #tpu.memory_space<vmem>>, vector<1x64x192xbf16>
    %74 = vector.shape_cast %73 : vector<1x64x192xbf16> to vector<64x192xbf16>
    %cst_39 = arith.constant dense<0.000000e+00> : vector<64x128xf32>
    %75 = tpu.matmul %74, %72, %cst_39 {dimension_numbers = #tpu.dot_dimension_numbers<[1], [0], [0], [1], [0, 0, 1, 1], [], []>} : vector<64x192xbf16>, vector<192x128xbf16>, vector<64x128xf32> -> vector<64x128xf32>
    %76 = arith.addf %60, %75 : vector<64x128xf32>
    %c0_40 = arith.constant 0 : index
    %c143 = arith.constant 143 : index
    %77 = vector.load %arg7[%c0_40, %c143] : memref<64x512xbf16, #tpu.memory_space<vmem>>, vector<64x128xbf16>
    %c0_41 = arith.constant 0 : index
    %c144 = arith.constant 144 : index
    %78 = vector.load %arg7[%c0_41, %c144] : memref<64x512xbf16, #tpu.memory_space<vmem>>, vector<64x128xbf16>
    %c0_42 = arith.constant 0 : index
    %c145 = arith.constant 145 : index
    %79 = vector.load %arg7[%c0_42, %c145] : memref<64x512xbf16, #tpu.memory_space<vmem>>, vector<64x128xbf16>
    %cst_43 = arith.constant 0.000000e+00 : bf16
    %80 = vector.broadcast %cst_43 : bf16 to vector<64x128xbf16>
    %81 = vector.shape_cast %41 : vector<1x128xi1> to vector<1x128xi1>
    %82 = vector.broadcast %81 : vector<1x128xi1> to vector<64x128xi1>
    %83 = arith.select %82, %77, %80 : vector<64x128xi1>, vector<64x128xbf16>
    %cst_44 = arith.constant 0.000000e+00 : bf16
    %84 = vector.broadcast %cst_44 : bf16 to vector<64x128xbf16>
    %85 = vector.shape_cast %43 : vector<1x128xi1> to vector<1x128xi1>
    %86 = vector.broadcast %85 : vector<1x128xi1> to vector<64x128xi1>
    %87 = arith.select %86, %79, %84 : vector<64x128xi1>, vector<64x128xbf16>
    %88 = tpu.concatenate %83, %78, %87 in 0 : vector<64x128xbf16>, vector<64x128xbf16>, vector<64x128xbf16> -> vector<192x128xbf16>
    %c2 = arith.constant 2 : index
    %c0_45 = arith.constant 0 : index
    %c0_46 = arith.constant 0 : index
    %89 = vector.load %arg4[%c2, %c0_45, %c0_46] : memref<3x64x192xbf16, #tpu.memory_space<vmem>>, vector<1x64x192xbf16>
    %90 = vector.shape_cast %89 : vector<1x64x192xbf16> to vector<64x192xbf16>
    %cst_47 = arith.constant dense<0.000000e+00> : vector<64x128xf32>
    %91 = tpu.matmul %90, %88, %cst_47 {dimension_numbers = #tpu.dot_dimension_numbers<[1], [0], [0], [1], [0, 0, 1, 1], [], []>} : vector<64x192xbf16>, vector<192x128xbf16>, vector<64x128xf32> -> vector<64x128xf32>
    %92 = arith.addf %76, %91 : vector<64x128xf32>
    %93 = arith.truncf %92 : vector<64x128xf32> to vector<64x128xbf16>
    %c0_48 = arith.constant 0 : index
    %c0_49 = arith.constant 0 : index
    %c0_50 = arith.constant 0 : index
    %94 = vector.load %arg5[%c0_48, %c0_49, %c0_50] : memref<1x64x256xbf16, #tpu.memory_space<vmem>>, vector<1x64x128xbf16>
    %95 = vector.shape_cast %94 : vector<1x64x128xbf16> to vector<64x128xbf16>
    %96 = vector.shape_cast %93 : vector<64x128xbf16> to vector<1x64x128xbf16>
    tpu.vector_store %arg5[%c0_48, %c0_49, %c0_50], %96 {strides = array<i32>} : memref<1x64x256xbf16, #tpu.memory_space<vmem>>, vector<1x64x128xbf16>,
    %97 = arith.extf %93 : vector<64x128xbf16> to vector<64x128xf32>
    %cst_51 = arith.constant dense<0.000000e+00> : vector<64xf32>
    %98 = vector.multi_reduction <add>, %97, %cst_51 [1] : vector<64x128xf32> to vector<64xf32>
    %99 = vector.shape_cast %98 : vector<64xf32> to vector<64x1xf32>
    %100 = arith.addf %20, %99 : vector<64x1xf32>
    %101 = arith.mulf %97, %97 : vector<64x128xf32>
    %cst_52 = arith.constant dense<0.000000e+00> : vector<64xf32>
    %102 = vector.multi_reduction <add>, %101, %cst_52 [1] : vector<64x128xf32> to vector<64xf32>
    %103 = vector.shape_cast %102 : vector<64xf32> to vector<64x1xf32>
    %104 = arith.addf %21, %103 : vector<64x1xf32>
    %c128_i32 = arith.constant 128 : i32
    %105 = vector.broadcast %c128_i32 : i32 to vector<1x128xi32>
    %106 = arith.addi %19, %105 : vector<1x128xi32>
    %c16_i32_53 = arith.constant 16 : i32
    %c0_i32_54 = arith.constant 0 : i32
    %107 = arith.cmpi eq, %c16_i32_53, %c0_i32_54 : i32
    %c1_i32_55 = arith.constant 1 : i32
    %108 = arith.select %107, %c1_i32_55, %c16_i32_53 : i32
    %109 = vector.broadcast %108 : i32 to vector<1x128xi32>
    %110 = arith.remsi %106, %109 : vector<1x128xi32>
    %c0_i32_56 = arith.constant 0 : i32
    %111 = vector.broadcast %c0_i32_56 : i32 to vector<1x128xi32>
    %112 = arith.cmpi ne, %110, %111 : vector<1x128xi32>
    %c0_i32_57 = arith.constant 0 : i32
    %113 = vector.broadcast %c0_i32_57 : i32 to vector<1x128xi32>
    %114 = arith.cmpi slt, %110, %113 : vector<1x128xi32>
    %c0_i32_58 = arith.constant 0 : i32
    %115 = arith.cmpi slt, %108, %c0_i32_58 : i32
    %116 = vector.broadcast %115 : i1 to vector<1x128xi1>
    %117 = vector.broadcast %116 : vector<1x128xi1> to vector<1x128xi1>
    %118 = arith.xori %114, %117 : vector<1x128xi1>
    %119 = arith.andi %118, %112 : vector<1x128xi1>
    %120 = vector.broadcast %108 : i32 to vector<1x128xi32>
    %121 = arith.addi %110, %120 : vector<1x128xi32>
    %122 = arith.select %119, %121, %110 : vector<1x128xi1>, vector<1x128xi32>
    %c0_i32_59 = arith.constant 0 : i32
    %123 = vector.broadcast %c0_i32_59 : i32 to vector<1x128xi32>
    %124 = arith.cmpi ne, %122, %123 : vector<1x128xi32>
    %c15_i32_60 = arith.constant 15 : i32
    %125 = vector.broadcast %c15_i32_60 : i32 to vector<1x128xi32>
    %126 = arith.cmpi ne, %122, %125 : vector<1x128xi32>
    %cst_61 = arith.constant 0.000000e+00 : f32
    %127 = vector.broadcast %cst_61 : f32 to vector<64x128xf32>
    %c0_62 = arith.constant 0 : index
    %c239 = arith.constant 239 : index
    %128 = vector.load %arg7[%c0_62, %c239] : memref<64x512xbf16, #tpu.memory_space<vmem>>, vector<64x128xbf16>
    %c0_63 = arith.constant 0 : index
    %c240 = arith.constant 240 : index
    %129 = vector.load %arg7[%c0_63, %c240] : memref<64x512xbf16, #tpu.memory_space<vmem>>, vector<64x128xbf16>
    %c0_64 = arith.constant 0 : index
    %c241 = arith.constant 241 : index
    %130 = vector.load %arg7[%c0_64, %c241] : memref<64x512xbf16, #tpu.memory_space<vmem>>, vector<64x128xbf16>
    %cst_65 = arith.constant 0.000000e+00 : bf16
    %131 = vector.broadcast %cst_65 : bf16 to vector<64x128xbf16>
    %132 = vector.shape_cast %124 : vector<1x128xi1> to vector<1x128xi1>
    %133 = vector.broadcast %132 : vector<1x128xi1> to vector<64x128xi1>
    %134 = arith.select %133, %128, %131 : vector<64x128xi1>, vector<64x128xbf16>
    %cst_66 = arith.constant 0.000000e+00 : bf16
    %135 = vector.broadcast %cst_66 : bf16 to vector<64x128xbf16>
    %136 = vector.shape_cast %126 : vector<1x128xi1> to vector<1x128xi1>
    %137 = vector.broadcast %136 : vector<1x128xi1> to vector<64x128xi1>
    %138 = arith.select %137, %130, %135 : vector<64x128xi1>, vector<64x128xbf16>
    %139 = tpu.concatenate %134, %129, %138 in 0 : vector<64x128xbf16>, vector<64x128xbf16>, vector<64x128xbf16> -> vector<192x128xbf16>
    %c0_67 = arith.constant 0 : index
    %c0_68 = arith.constant 0 : index
    %c0_69 = arith.constant 0 : index
    %140 = vector.load %arg4[%c0_67, %c0_68, %c0_69] : memref<3x64x192xbf16, #tpu.memory_space<vmem>>, vector<1x64x192xbf16>
    %141 = vector.shape_cast %140 : vector<1x64x192xbf16> to vector<64x192xbf16>
    %cst_70 = arith.constant dense<0.000000e+00> : vector<64x128xf32>
    %142 = tpu.matmul %141, %139, %cst_70 {dimension_numbers = #tpu.dot_dimension_numbers<[1], [0], [0], [1], [0, 0, 1, 1], [], []>} : vector<64x192xbf16>, vector<192x128xbf16>, vector<64x128xf32> -> vector<64x128xf32>
    %143 = arith.addf %127, %142 : vector<64x128xf32>
    %c0_71 = arith.constant 0 : index
    %c255 = arith.constant 255 : index
    %144 = vector.load %arg7[%c0_71, %c255] : memref<64x512xbf16, #tpu.memory_space<vmem>>, vector<64x128xbf16>
    %c0_72 = arith.constant 0 : index
    %c256 = arith.constant 256 : index
    %145 = vector.load %arg7[%c0_72, %c256] : memref<64x512xbf16, #tpu.memory_space<vmem>>, vector<64x128xbf16>
    %c0_73 = arith.constant 0 : index
    %c257 = arith.constant 257 : index
    %146 = vector.load %arg7[%c0_73, %c257] : memref<64x512xbf16, #tpu.memory_space<vmem>>, vector<64x128xbf16>
    %cst_74 = arith.constant 0.000000e+00 : bf16
    %147 = vector.broadcast %cst_74 : bf16 to vector<64x128xbf16>
    %148 = vector.shape_cast %124 : vector<1x128xi1> to vector<1x128xi1>
    %149 = vector.broadcast %148 : vector<1x128xi1> to vector<64x128xi1>
    %150 = arith.select %149, %144, %147 : vector<64x128xi1>, vector<64x128xbf16>
    %cst_75 = arith.constant 0.000000e+00 : bf16
    %151 = vector.broadcast %cst_75 : bf16 to vector<64x128xbf16>
    %152 = vector.shape_cast %126 : vector<1x128xi1> to vector<1x128xi1>
    %153 = vector.broadcast %152 : vector<1x128xi1> to vector<64x128xi1>
    %154 = arith.select %153, %146, %151 : vector<64x128xi1>, vector<64x128xbf16>
    %155 = tpu.concatenate %150, %145, %154 in 0 : vector<64x128xbf16>, vector<64x128xbf16>, vector<64x128xbf16> -> vector<192x128xbf16>
    %c1_76 = arith.constant 1 : index
    %c0_77 = arith.constant 0 : index
    %c0_78 = arith.constant 0 : index
    %156 = vector.load %arg4[%c1_76, %c0_77, %c0_78] : memref<3x64x192xbf16, #tpu.memory_space<vmem>>, vector<1x64x192xbf16>
    %157 = vector.shape_cast %156 : vector<1x64x192xbf16> to vector<64x192xbf16>
    %cst_79 = arith.constant dense<0.000000e+00> : vector<64x128xf32>
    %158 = tpu.matmul %157, %155, %cst_79 {dimension_numbers = #tpu.dot_dimension_numbers<[1], [0], [0], [1], [0, 0, 1, 1], [], []>} : vector<64x192xbf16>, vector<192x128xbf16>, vector<64x128xf32> -> vector<64x128xf32>
    %159 = arith.addf %143, %158 : vector<64x128xf32>
    %c0_80 = arith.constant 0 : index
    %c271 = arith.constant 271 : index
    %160 = vector.load %arg7[%c0_80, %c271] : memref<64x512xbf16, #tpu.memory_space<vmem>>, vector<64x128xbf16>
    %c0_81 = arith.constant 0 : index
    %c272 = arith.constant 272 : index
    %161 = vector.load %arg7[%c0_81, %c272] : memref<64x512xbf16, #tpu.memory_space<vmem>>, vector<64x128xbf16>
    %c0_82 = arith.constant 0 : index
    %c273 = arith.constant 273 : index
    %162 = vector.load %arg7[%c0_82, %c273] : memref<64x512xbf16, #tpu.memory_space<vmem>>, vector<64x128xbf16>
    %cst_83 = arith.constant 0.000000e+00 : bf16
    %163 = vector.broadcast %cst_83 : bf16 to vector<64x128xbf16>
    %164 = vector.shape_cast %124 : vector<1x128xi1> to vector<1x128xi1>
    %165 = vector.broadcast %164 : vector<1x128xi1> to vector<64x128xi1>
    %166 = arith.select %165, %160, %163 : vector<64x128xi1>, vector<64x128xbf16>
    %cst_84 = arith.constant 0.000000e+00 : bf16
    %167 = vector.broadcast %cst_84 : bf16 to vector<64x128xbf16>
    %168 = vector.shape_cast %126 : vector<1x128xi1> to vector<1x128xi1>
    %169 = vector.broadcast %168 : vector<1x128xi1> to vector<64x128xi1>
    %170 = arith.select %169, %162, %167 : vector<64x128xi1>, vector<64x128xbf16>
    %171 = tpu.concatenate %166, %161, %170 in 0 : vector<64x128xbf16>, vector<64x128xbf16>, vector<64x128xbf16> -> vector<192x128xbf16>
    %c2_85 = arith.constant 2 : index
    %c0_86 = arith.constant 0 : index
    %c0_87 = arith.constant 0 : index
    %172 = vector.load %arg4[%c2_85, %c0_86, %c0_87] : memref<3x64x192xbf16, #tpu.memory_space<vmem>>, vector<1x64x192xbf16>
    %173 = vector.shape_cast %172 : vector<1x64x192xbf16> to vector<64x192xbf16>
    %cst_88 = arith.constant dense<0.000000e+00> : vector<64x128xf32>
    %174 = tpu.matmul %173, %171, %cst_88 {dimension_numbers = #tpu.dot_dimension_numbers<[1], [0], [0], [1], [0, 0, 1, 1], [], []>} : vector<64x192xbf16>, vector<192x128xbf16>, vector<64x128xf32> -> vector<64x128xf32>
    %175 = arith.addf %159, %174 : vector<64x128xf32>
    %176 = arith.truncf %175 : vector<64x128xf32> to vector<64x128xbf16>
    %c0_89 = arith.constant 0 : index
    %c0_90 = arith.constant 0 : index
    %c128_91 = arith.constant 128 : index
    %177 = vector.load %arg5[%c0_89, %c0_90, %c128_91] : memref<1x64x256xbf16, #tpu.memory_space<vmem>>, vector<1x64x128xbf16>
    %178 = vector.shape_cast %177 : vector<1x64x128xbf16> to vector<64x128xbf16>
    %179 = vector.shape_cast %176 : vector<64x128xbf16> to vector<1x64x128xbf16>
    tpu.vector_store %arg5[%c0_89, %c0_90, %c128_91], %179 {strides = array<i32>} : memref<1x64x256xbf16, #tpu.memory_space<vmem>>, vector<1x64x128xbf16>,
    %180 = arith.extf %176 : vector<64x128xbf16> to vector<64x128xf32>
    %cst_92 = arith.constant dense<0.000000e+00> : vector<64xf32>
    %181 = vector.multi_reduction <add>, %180, %cst_92 [1] : vector<64x128xf32> to vector<64xf32>
    %182 = vector.shape_cast %181 : vector<64xf32> to vector<64x1xf32>
    %183 = arith.addf %100, %182 : vector<64x1xf32>
    %184 = arith.mulf %180, %180 : vector<64x128xf32>
    %cst_93 = arith.constant dense<0.000000e+00> : vector<64xf32>
    %185 = vector.multi_reduction <add>, %184, %cst_93 [1] : vector<64x128xf32> to vector<64xf32>
    %186 = vector.shape_cast %185 : vector<64xf32> to vector<64x1xf32>
    %187 = arith.addf %104, %186 : vector<64x1xf32>
    %c0_94 = arith.constant 0 : index
    %c0_95 = arith.constant 0 : index
    %c0_96 = arith.constant 0 : index
    %188 = vector.load %arg6[%c0_94, %c0_95, %c0_96] : memref<1x64x2xf32, #tpu.memory_space<vmem>>, vector<1x64x1xf32>
    %189 = vector.shape_cast %188 : vector<1x64x1xf32> to vector<64x1xf32>
    %190 = vector.shape_cast %183 : vector<64x1xf32> to vector<1x64x1xf32>
    tpu.vector_store %arg6[%c0_94, %c0_95, %c0_96], %190 {strides = array<i32>} : memref<1x64x2xf32, #tpu.memory_space<vmem>>, vector<1x64x1xf32>,
    %c0_97 = arith.constant 0 : index
    %c0_98 = arith.constant 0 : index
    %c1_99 = arith.constant 1 : index
    %191 = vector.load %arg6[%c0_97, %c0_98, %c1_99] : memref<1x64x2xf32, #tpu.memory_space<vmem>>, vector<1x64x1xf32>
    %192 = vector.shape_cast %191 : vector<1x64x1xf32> to vector<64x1xf32>
    %193 = vector.shape_cast %187 : vector<64x1xf32> to vector<1x64x1xf32>
    tpu.vector_store %arg6[%c0_97, %c0_98, %c1_99], %193 {strides = array<i32>} : memref<1x64x2xf32, #tpu.memory_space<vmem>>, vector<1x64x1xf32>,
    return
  }
  func.func @transform_0(%arg0: i32) -> (i32, i32, i32) {
    %c0_i32 = arith.constant 0 : i32
    %c0_i32_0 = arith.constant 0 : i32
    %c0_i32_1 = arith.constant 0 : i32
    return %arg0, %c0_i32, %c0_i32_0 : i32, i32, i32
  }
  func.func @transform_1(%arg0: i32) -> (i32, i32, i32) {
    %c0_i32 = arith.constant 0 : i32
    %c0_i32_0 = arith.constant 0 : i32
    %c0_i32_1 = arith.constant 0 : i32
    return %arg0, %c0_i32, %c0_i32_0 : i32, i32, i32
  }
  func.func @transform_2(%arg0: i32) -> (i32, i32, i32) {
    %c0_i32 = arith.constant 0 : i32
    %c0_i32_0 = arith.constant 0 : i32
    %c0_i32_1 = arith.constant 0 : i32
    return %arg0, %c0_i32, %c0_i32_0 : i32, i32, i32
  }
  func.func @transform_3(%arg0: i32) -> (i32, i32, i32) {
    %c0_i32 = arith.constant 0 : i32
    %c0_i32_0 = arith.constant 0 : i32
    %c0_i32_1 = arith.constant 0 : i32
    %c0_i32_2 = arith.constant 0 : i32
    return %c0_i32, %c0_i32_0, %c0_i32_1 : i32, i32, i32
  }
  func.func @transform_4(%arg0: i32) -> (i32, i32, i32) {
    %c0_i32 = arith.constant 0 : i32
    %c0_i32_0 = arith.constant 0 : i32
    %c0_i32_1 = arith.constant 0 : i32
    return %arg0, %c0_i32, %c0_i32_0 : i32, i32, i32
  }
  func.func @transform_5(%arg0: i32) -> (i32, i32, i32) {
    %c0_i32 = arith.constant 0 : i32
    %c0_i32_0 = arith.constant 0 : i32
    %c0_i32_1 = arith.constant 0 : i32
    return %arg0, %c0_i32, %c0_i32_0 : i32, i32, i32
  }
}

module attributes {stable_mosaic.version = 11 : i64} {
  func.func @_bn3_res_relu_kernel(%arg0: i32, %arg1: i32, %arg2: memref<1x256x256xbf16, #tpu.memory_space<vmem>>, %arg3: memref<1x256x256xf32, #tpu.memory_space<vmem>>, %arg4: memref<256x1xf32, #tpu.memory_space<vmem>>, %arg5: memref<256x1xf32, #tpu.memory_space<vmem>>, %arg6: memref<1x256x256xf32, #tpu.memory_space<vmem>>) attributes {dimension_semantics = [#tpu.dimension_semantics<parallel>, #tpu.dimension_semantics<parallel>], iteration_bounds = array<i64: 2, 1>, scalar_prefetch = 0 : i64, scratch_operands = 0 : i64, tpu.core_type = #tpu.core_type<tc>, window_params = [{transform_indices = @transform_0, window_bounds = array<i64: 1, 256, 256>}, {transform_indices = @transform_1, window_bounds = array<i64: 1, 256, 256>}, {pipeline_mode = #tpu.pipeline_mode<synchronous>, transform_indices = @transform_2, window_bounds = array<i64: 256, 1>}, {pipeline_mode = #tpu.pipeline_mode<synchronous>, transform_indices = @transform_3, window_bounds = array<i64: 256, 1>}, {transform_indices = @transform_4, window_bounds = array<i64: 1, 256, 256>}]} {
    %c0 = arith.constant 0 : index
    %c0_0 = arith.constant 0 : index
    %c0_1 = arith.constant 0 : index
    %0 = vector.load %arg2[%c0, %c0_0, %c0_1] : memref<1x256x256xbf16, #tpu.memory_space<vmem>>, vector<1x256x256xbf16>
    %1 = vector.shape_cast %0 : vector<1x256x256xbf16> to vector<256x256xbf16>
    %2 = arith.extf %1 : vector<256x256xbf16> to vector<256x256xf32>
    %c0_2 = arith.constant 0 : index
    %c0_3 = arith.constant 0 : index
    %3 = vector.load %arg4[%c0_2, %c0_3] : memref<256x1xf32, #tpu.memory_space<vmem>>, vector<256x1xf32>
    %4 = vector.broadcast %3 : vector<256x1xf32> to vector<256x256xf32>
    %5 = arith.mulf %2, %4 : vector<256x256xf32>
    %c0_4 = arith.constant 0 : index
    %c0_5 = arith.constant 0 : index
    %6 = vector.load %arg5[%c0_4, %c0_5] : memref<256x1xf32, #tpu.memory_space<vmem>>, vector<256x1xf32>
    %7 = vector.broadcast %6 : vector<256x1xf32> to vector<256x256xf32>
    %8 = arith.addf %5, %7 : vector<256x256xf32>
    %c0_6 = arith.constant 0 : index
    %c0_7 = arith.constant 0 : index
    %c0_8 = arith.constant 0 : index
    %9 = vector.load %arg3[%c0_6, %c0_7, %c0_8] : memref<1x256x256xf32, #tpu.memory_space<vmem>>, vector<1x256x256xf32>
    %10 = vector.shape_cast %9 : vector<1x256x256xf32> to vector<256x256xf32>
    %11 = arith.addf %8, %10 : vector<256x256xf32>
    %cst = arith.constant 0.000000e+00 : f32
    %12 = vector.broadcast %cst : f32 to vector<256x256xf32>
    %13 = arith.maximumf %11, %12 : vector<256x256xf32>
    %c0_9 = arith.constant 0 : index
    %c0_10 = arith.constant 0 : index
    %c0_11 = arith.constant 0 : index
    %14 = vector.load %arg6[%c0_9, %c0_10, %c0_11] : memref<1x256x256xf32, #tpu.memory_space<vmem>>, vector<1x256x256xf32>
    %15 = vector.shape_cast %14 : vector<1x256x256xf32> to vector<256x256xf32>
    %16 = vector.shape_cast %13 : vector<256x256xf32> to vector<1x256x256xf32>
    tpu.vector_store %arg6[%c0_9, %c0_10, %c0_11], %16 {strides = array<i32>} : memref<1x256x256xf32, #tpu.memory_space<vmem>>, vector<1x256x256xf32>,
    return
  }
  func.func @transform_0(%arg0: i32, %arg1: i32) -> (i32, i32, i32) {
    %c0_i32 = arith.constant 0 : i32
    %c0_i32_0 = arith.constant 0 : i32
    return %arg0, %c0_i32, %arg1 : i32, i32, i32
  }
  func.func @transform_1(%arg0: i32, %arg1: i32) -> (i32, i32, i32) {
    %c0_i32 = arith.constant 0 : i32
    %c0_i32_0 = arith.constant 0 : i32
    return %arg0, %c0_i32, %arg1 : i32, i32, i32
  }
  func.func @transform_2(%arg0: i32, %arg1: i32) -> (i32, i32) {
    %c0_i32 = arith.constant 0 : i32
    %c0_i32_0 = arith.constant 0 : i32
    %c0_i32_1 = arith.constant 0 : i32
    return %c0_i32, %c0_i32_0 : i32, i32
  }
  func.func @transform_3(%arg0: i32, %arg1: i32) -> (i32, i32) {
    %c0_i32 = arith.constant 0 : i32
    %c0_i32_0 = arith.constant 0 : i32
    %c0_i32_1 = arith.constant 0 : i32
    return %c0_i32, %c0_i32_0 : i32, i32
  }
  func.func @transform_4(%arg0: i32, %arg1: i32) -> (i32, i32, i32) {
    %c0_i32 = arith.constant 0 : i32
    %c0_i32_0 = arith.constant 0 : i32
    return %arg0, %c0_i32, %arg1 : i32, i32, i32
  }
}

</mosaic_0001>

<llo_original>
// kernel: bottleneck_ibn_forward.4
$region0: #{bottleneck_ibn_forward.4}
  #allocation0 [shape = 'u32[]', space=smem, size = 0x4, offset = 0x4, fixed_abs, tag = 'smem constant byte address 0x4 - core index']
  #allocation1 [shape = 'u32[144,128]{1,0:T(1,128)}', space=vmem, size = 0x12000, scoped, tag = 'internal scratch']
  %s0 = inlined_call_operand.vmem [shape: f32[2,256,256], index: 0, kind: input, shape index: {}]
  %s1 = inlined_call_operand.vmem [shape: bf16[64,256], index: 1, kind: input, shape index: {}]
  %s2 = inlined_call_operand.vmem [shape: bf16[2,64,256], index: 2, kind: output, shape index: {0}]
  %s3 = inlined_call_operand.vmem [shape: f32[2,64,2], index: 3, kind: output, shape index: {1}]
  %4 = xla_tuple %s2, %s3
  %s5 = sld [smem:[#allocation0]]
  $region53: #{bottleneck_ibn_forward.4} parent=0
    _
  %s7 = ssub.s32 1, %s5
  %s8 = scalar_select 0, %s7, %s5
  loop: start=0, step=1, limit=4
  $region2: #{bottleneck_ibn_forward.4} parent=0 // loop_pre_header
    _
  $region3: #{bottleneck_ibn_forward.4} parent=0 // loop_header
    %s10 = sphi 0, %s14
    %p11 = scmp.ge.s32.totalorder %s10, 4
    %s17 = sphi 0, %s29
    %s18 = sphi 0, %s25
    %s19 = sphi 0, %s17
    %s20 = sphi 0, %s18
    %s21 = sphi 0, %s19
    %s22 = sphi 0, %s20
    %s34 = sphi 0, %s36
    %s37 = sphi 0, %s34
    %s38 = sphi 0, %s37
    %s54 = sphi 0, %s38
    %s58 = sphi 0, %s58
    %s60 = sphi 0, %s58
    %s61 = sphi 0, %s60
    %s75 = sphi 0, %s61
    %s83 = sphi 0, %s85
    %s86 = sphi 0, %s83
    %s87 = sphi 0, %s86
    %s103 = sphi 0, %s87
    %s109 = sphi 0, %s111
    %s112 = sphi 0, %s109
    %s113 = sphi 0, %s112
    %s129 = sphi 0, %s113
  $region4: #{bottleneck_ibn_forward.4} parent=0 // loop_header_branch
    %13 = sbr.rel (%p11) target = $region8
  $region5: #{bottleneck_ibn_forward.4} parent=0 // loop_body
    %s15 = ssub.s32 %s10, 1
    %s16 = ssub.s32 %s10, 2
    %s23 = sadd.s32 1, %s18
    %p24 = scmp.ge.s32.totalorder %s23, 1
    %s25 = scalar_select %p24, 0, %s23
    %s26 = sadd.s32 1, %s17
    %s27 = scalar_select %p24, %s26, %s17
    %p28 = scmp.ge.s32.totalorder %s27, 2
    %s29 = scalar_select %p28, 0, %s27
    %s30 = ssub.s32 %s17, %s29
    %s31 = ssub.s32 %s18, %s25
    %s32 = sor.u32 %s30, %s31
    %p33 = scmp.eq.s32.totalorder %s32, 0
    %s35 = sadd.s32 %s34, 1
    %s36 = scalar_select %p33, %s34, %s35
    %p39 = pneg %p33
    %p40 = scmp.eq.s32.totalorder %s10, 1
    %p41 = por %p39, %p40
    %p42 = scmp.ne.s32.totalorder %s34, %s37
    %p43 = scmp.eq.s32.totalorder %s10, 0
    %p44 = por %p42, %p43
    %p45 = scmp.ne.s32.totalorder %s34, %s37
    %p46 = scmp.eq.s32.totalorder %s15, 1
    %p47 = por %p45, %p46
    %p48 = scmp.ne.s32.totalorder %s37, %s38
    %p49 = scmp.eq.s32.totalorder %s15, 0
    %p50 = por %p48, %p49
    %p51 = scmp.ne.s32.totalorder %s37, %s38
    %p52 = scmp.eq.s32.totalorder %s16, 1
    %p53 = por %p51, %p52
    %p55 = scmp.ne.s32.totalorder %s38, %s54
    %p56 = scmp.eq.s32.totalorder %s16, 0
    %p57 = por %p55, %p56
    %s59 = sadd.s32 %s58, 1
    %p62 = scmp.eq.s32.totalorder %s10, 1
    %p63 = scmp.ne.s32.totalorder %s58, %s60
    %p64 = scmp.eq.s32.totalorder %s10, 0
    %p65 = por %p63, %p64
    %p66 = scmp.ne.s32.totalorder %s58, %s60
    %p67 = scmp.eq.s32.totalorder %s15, 1
    %p68 = por %p66, %p67
    %p69 = scmp.ne.s32.totalorder %s60, %s61
    %p70 = scmp.eq.s32.totalorder %s15, 0
    %p71 = por %p69, %p70
    %p72 = scmp.ne.s32.totalorder %s60, %s61
    %p73 = scmp.eq.s32.totalorder %s16, 1
    %p74 = por %p72, %p73
    %p76 = scmp.ne.s32.totalorder %s61, %s75
    %p77 = scmp.eq.s32.totalorder %s16, 0
    %p78 = por %p76, %p77
    %s79 = ssub.s32 %s17, %s29
    %s80 = ssub.s32 %s18, %s25
    %s81 = sor.u32 %s79, %s80
    %p82 = scmp.eq.s32.totalorder %s81, 0
    %s84 = sadd.s32 %s83, 1
    %s85 = scalar_select %p82, %s83, %s84
    %p88 = pneg %p82
    %p89 = scmp.eq.s32.totalorder %s10, 1
    %p90 = por %p88, %p89
    %p91 = scmp.ne.s32.totalorder %s83, %s86
    %p92 = scmp.eq.s32.totalorder %s10, 0
    %p93 = por %p91, %p92
    %p94 = scmp.ne.s32.totalorder %s83, %s86
    %p95 = scmp.eq.s32.totalorder %s15, 1
    %p96 = por %p94, %p95
    %p97 = scmp.ne.s32.totalorder %s86, %s87
    %p98 = scmp.eq.s32.totalorder %s15, 0
    %p99 = por %p97, %p98
    %p100 = scmp.ne.s32.totalorder %s86, %s87
    %p101 = scmp.eq.s32.totalorder %s16, 1
    %p102 = por %p100, %p101
    %p104 = scmp.ne.s32.totalorder %s87, %s103
    %p105 = scmp.eq.s32.totalorder %s16, 0
    %p106 = por %p104, %p105
    %s107 = ssub.s32 %s17, %s29
    %p108 = scmp.eq.s32.totalorder %s107, 0
    %s110 = sadd.s32 %s109, 1
    %s111 = scalar_select %p108, %s109, %s110
    %p114 = pneg %p108
    %p115 = scmp.eq.s32.totalorder %s10, 1
    %p116 = por %p114, %p115
    %p117 = scmp.ne.s32.totalorder %s109, %s112
    %p118 = scmp.eq.s32.totalorder %s10, 0
    %p119 = por %p117, %p118
    %p120 = scmp.ne.s32.totalorder %s109, %s112
    %p121 = scmp.eq.s32.totalorder %s15, 1
    %p122 = por %p120, %p121
    %p123 = scmp.ne.s32.totalorder %s112, %s113
    %p124 = scmp.eq.s32.totalorder %s15, 0
    %p125 = por %p123, %p124
    %p126 = scmp.ne.s32.totalorder %s112, %s113
    %p127 = scmp.eq.s32.totalorder %s16, 1
    %p128 = por %p126, %p127
    %p130 = scmp.ne.s32.totalorder %s113, %s129
    %p131 = scmp.eq.s32.totalorder %s16, 0
    %p132 = por %p130, %p131
    %p133 = scmp.le.s32.totalorder 1, %s10
    %p134 = scmp.lt.s32.totalorder %s10, 3
    %p135 = pnand %p133, %p134
    %p136 = pneg %p135
    // Predicated region
    $region9: #{bottleneck_ibn_forward.4} parent=5 // pred_check
      _
    $region10: #{bottleneck_ibn_forward.4} parent=5 // pred_check_branch
      %138 = sbr.rel (%p135) target = $region12
    $region11: #{bottleneck_ibn_forward.4} parent=5 // pred_region
      %s139 = ssub.s32 %s10, 1
      // Predicated region
      $region13: #{bottleneck_ibn_forward.4} parent=11 // pred_check
        %p140 = pneg %p71
      $region14: #{bottleneck_ibn_forward.4} parent=11 // pred_check_branch
        %142 = sbr.rel (%p140) target = $region16
      $region15: #{bottleneck_ibn_forward.4} parent=11 // pred_region
        _
      $region16: #{bottleneck_ibn_forward.4} parent=11 // pred_fallthru
        _
    $region12: #{bottleneck_ibn_forward.4} parent=5 // pred_fallthru
      _
    %p143 = scmp.lt.s32.totalorder %s10, 2
    // Predicated region
    $region17: #{bottleneck_ibn_forward.4} parent=5 // pred_check
      %p144 = pneg %p143
    $region18: #{bottleneck_ibn_forward.4} parent=5 // pred_check_branch
      %146 = sbr.rel (%p144) target = $region20
    $region19: #{bottleneck_ibn_forward.4} parent=5 // pred_region
      // Predicated region
      $region21: #{bottleneck_ibn_forward.4} parent=19 // pred_check
        %p147 = pneg %p44
      $region22: #{bottleneck_ibn_forward.4} parent=19 // pred_check_branch
        %149 = sbr.rel (%p147) target = $region24
      $region23: #{bottleneck_ibn_forward.4} parent=19 // pred_region
        %s150 = smul.u32 2, %s18
        %p151 = scmp.lt.s32.totalorder %s17, 1
        %s152 = scalar_select %p151, %s17, 1
        %p153 = scmp.lt.s32.totalorder %s150, 1
        %s154 = scalar_select %p153, %s150, 1
        %s155 = smul.addr %s152, 64
        %s156 = sadd.s32 %s154, %s155
        %s157 = smul.addr %s156, 8
        %s158 = scalar_lea.vmem %s0, %s157
        %s159 = smul.u32 2, %s18
      $region24: #{bottleneck_ibn_forward.4} parent=19 // pred_fallthru
        _
    $region20: #{bottleneck_ibn_forward.4} parent=5 // pred_fallthru
      _
    %p160 = scmp.le.s32.totalorder 1, %s10
    %p161 = scmp.lt.s32.totalorder %s10, 3
    %p162 = pnand %p160, %p161
    %p163 = pneg %p162
    // Predicated region
    $region25: #{bottleneck_ibn_forward.4} parent=5 // pred_check
      _
    $region26: #{bottleneck_ibn_forward.4} parent=5 // pred_check_branch
      %165 = sbr.rel (%p162) target = $region28
    $region27: #{bottleneck_ibn_forward.4} parent=5 // pred_region
      %s166 = ssub.s32 %s10, 1
      %s167 = smul.u32 2, %s20
      %p168 = scmp.lt.s32.totalorder %s19, 1
      %s169 = scalar_select %p168, %s19, 1
      %p170 = scmp.lt.s32.totalorder %s167, 1
      %s171 = scalar_select %p170, %s167, 1
      %s172 = smul.addr %s169, 64
      %s173 = sadd.s32 %s171, %s172
      %s174 = smul.addr %s173, 8
      %s175 = scalar_lea.vmem %s0, %s174
      %p176 = pneg %p50
      %p177 = pneg %p47
      %p178 = pneg %p71
      %p179 = pneg %p68
      %p180 = pneg %p99
      %p181 = pneg %p96
      %s182 = smul.u32 2, %s20
      %p183 = scmp.lt.s32.totalorder %s19, 1
      %s184 = scalar_select %p183, %s19, 1
      %p185 = scmp.lt.s32.totalorder %s182, 1
      %s186 = scalar_select %p185, %s182, 1
      %s187 = smul.addr %s184, 16
      %s188 = sadd.s32 %s186, %s187
      %s189 = smul.addr %s188, 4
      %s190 = scalar_lea.vmem %s2, %s189
      %p191 = pneg %p125
      %p192 = pneg %p122
      %p193 = scmp.lt.s32.totalorder %s19, 1
      %s194 = scalar_select %p193, %s19, 1
      %s195 = smul.addr %s194, 8
      %s196 = smul.addr %s195, 8
      %s197 = scalar_lea.vmem %s3, %s196
      %s198 = smul.u32 2, %s20
      %p199 = scmp.lt.s32.totalorder %s19, 1
      %s200 = scalar_select %p199, %s19, 1
      %p201 = scmp.lt.s32.totalorder %s198, 1
      %s202 = scalar_select %p201, %s198, 1
      %s203 = smul.addr %s200, 64
      %s204 = sadd.s32 %s202, %s203
      %s205 = smul.addr %s204, 8
      %s206 = scalar_lea.vmem %s0, %s205
      %s207 = smul.u32 2, %s20
      %s208 = smul.u32 2, %s20
      %p209 = scmp.lt.s32.totalorder %s19, 1
      %s210 = scalar_select %p209, %s19, 1
      %p211 = scmp.lt.s32.totalorder %s208, 1
      %s212 = scalar_select %p211, %s208, 1
      %s213 = smul.addr %s210, 16
      %s214 = sadd.s32 %s212, %s213
      %s215 = smul.addr %s214, 4
      %s216 = scalar_lea.vmem %s2, %s215
      %s217 = smul.u32 2, %s20
      %p218 = scmp.lt.s32.totalorder %s19, 1
      %s219 = scalar_select %p218, %s19, 1
      %s220 = smul.addr %s219, 8
      %s221 = smul.addr %s220, 8
      %s222 = scalar_lea.vmem %s3, %s221
      %v223 = vld [vmem:[%s1] sm:$0xff]
      %v224 = vld [vmem:[%s1 + $0x8] sm:$0xff]
      %v225 = vld [vmem:[%s1 + $0x10] sm:$0xff]
      %v226 = vld [vmem:[%s1 + $0x18] sm:$0xff]
      %v227 = vld [vmem:[%s1 + $0x20] sm:$0xff]
      %v228 = vld [vmem:[%s1 + $0x28] sm:$0xff]
      %v229 = vld [vmem:[%s1 + $0x30] sm:$0xff]
      %v230 = vld [vmem:[%s1 + $0x38] sm:$0xff]
      %v231 = vld [vmem:[%s206] sm:$0xff]
      %v232 = vld [vmem:[%s206 + $0x8] sm:$0xff]
      %v233 = vld [vmem:[%s206 + $0x10] sm:$0xff]
      %v234 = vld [vmem:[%s206 + $0x18] sm:$0xff]
      %v235 = vld [vmem:[%s206 + $0x20] sm:$0xff]
      %v236 = vld [vmem:[%s206 + $0x28] sm:$0xff]
      %v237 = vld [vmem:[%s206 + $0x30] sm:$0xff]
      %v238 = vld [vmem:[%s206 + $0x38] sm:$0xff]
      %v239 = vld [vmem:[%s206 + $0x40] sm:$0xff]
      %v240 = vld [vmem:[%s206 + $0x48] sm:$0xff]
      %v241 = vld [vmem:[%s206 + $0x50] sm:$0xff]
      %v242 = vld [vmem:[%s206 + $0x58] sm:$0xff]
      %v243 = vld [vmem:[%s206 + $0x60] sm:$0xff]
      %v244 = vld [vmem:[%s206 + $0x68] sm:$0xff]
      %v245 = vld [vmem:[%s206 + $0x70] sm:$0xff]
      %v246 = vld [vmem:[%s206 + $0x78] sm:$0xff]
      %v247 = vld [vmem:[%s206 + $0x80] sm:$0xff]
      %v248 = vld [vmem:[%s206 + $0x88] sm:$0xff]
      %v249 = vld [vmem:[%s206 + $0x90] sm:$0xff]
      %v250 = vld [vmem:[%s206 + $0x98] sm:$0xff]
      %v251 = vld [vmem:[%s206 + $0xa0] sm:$0xff]
      %v252 = vld [vmem:[%s206 + $0xa8] sm:$0xff]
      %v253 = vld [vmem:[%s206 + $0xb0] sm:$0xff]
      %v254 = vld [vmem:[%s206 + $0xb8] sm:$0xff]
      %v255 = vld [vmem:[%s206 + $0xc0] sm:$0xff]
      %v256 = vld [vmem:[%s206 + $0xc8] sm:$0xff]
      %v257 = vld [vmem:[%s206 + $0xd0] sm:$0xff]
      %v258 = vld [vmem:[%s206 + $0xd8] sm:$0xff]
      %v259 = vld [vmem:[%s206 + $0xe0] sm:$0xff]
      %v260 = vld [vmem:[%s206 + $0xe8] sm:$0xff]
      %v261 = vld [vmem:[%s206 + $0xf0] sm:$0xff]
      %v262 = vld [vmem:[%s206 + $0xf8] sm:$0xff]
      %v263 = vld [vmem:[%s206 + $0x100] sm:$0xff]
      %v264 = vld [vmem:[%s206 + $0x108] sm:$0xff]
      %v265 = vld [vmem:[%s206 + $0x110] sm:$0xff]
      %v266 = vld [vmem:[%s206 + $0x118] sm:$0xff]
      %v267 = vld [vmem:[%s206 + $0x120] sm:$0xff]
      %v268 = vld [vmem:[%s206 + $0x128] sm:$0xff]
      %v269 = vld [vmem:[%s206 + $0x130] sm:$0xff]
      %v270 = vld [vmem:[%s206 + $0x138] sm:$0xff]
      %v271 = vld [vmem:[%s206 + $0x140] sm:$0xff]
      %v272 = vld [vmem:[%s206 + $0x148] sm:$0xff]
      %v273 = vld [vmem:[%s206 + $0x150] sm:$0xff]
      %v274 = vld [vmem:[%s206 + $0x158] sm:$0xff]
      %v275 = vld [vmem:[%s206 + $0x160] sm:$0xff]
      %v276 = vld [vmem:[%s206 + $0x168] sm:$0xff]
      %v277 = vld [vmem:[%s206 + $0x170] sm:$0xff]
      %v278 = vld [vmem:[%s206 + $0x178] sm:$0xff]
      %v279 = vld [vmem:[%s206 + $0x180] sm:$0xff]
      %v280 = vld [vmem:[%s206 + $0x188] sm:$0xff]
      %v281 = vld [vmem:[%s206 + $0x190] sm:$0xff]
      %v282 = vld [vmem:[%s206 + $0x198] sm:$0xff]
      %v283 = vld [vmem:[%s206 + $0x1a0] sm:$0xff]
      %v284 = vld [vmem:[%s206 + $0x1a8] sm:$0xff]
      %v285 = vld [vmem:[%s206 + $0x1b0] sm:$0xff]
      %v286 = vld [vmem:[%s206 + $0x1b8] sm:$0xff]
      %v287 = vld [vmem:[%s206 + $0x1c0] sm:$0xff]
      %v288 = vld [vmem:[%s206 + $0x1c8] sm:$0xff]
      %v289 = vld [vmem:[%s206 + $0x1d0] sm:$0xff]
      %v290 = vld [vmem:[%s206 + $0x1d8] sm:$0xff]
      %v291 = vld [vmem:[%s206 + $0x1e0] sm:$0xff]
      %v292 = vld [vmem:[%s206 + $0x1e8] sm:$0xff]
      %v293 = vld [vmem:[%s206 + $0x1f0] sm:$0xff]
      %v294 = vld [vmem:[%s206 + $0x1f8] sm:$0xff]
      %v295 = vpack.c.bf16 %v233, %v231
      %v296 = vpack.c.bf16 %v234, %v232
      %v297 = vpack.c.bf16 %v237, %v235
      %v298 = vpack.c.bf16 %v238, %v236
      %v299 = vpack.c.bf16 %v241, %v239
      %v300 = vpack.c.bf16 %v242, %v240
      %v301 = vpack.c.bf16 %v245, %v243
      %v302 = vpack.c.bf16 %v246, %v244
      %v303 = vpack.c.bf16 %v249, %v247
      %v304 = vpack.c.bf16 %v250, %v248
      %v305 = vpack.c.bf16 %v253, %v251
      %v306 = vpack.c.bf16 %v254, %v252
      %v307 = vpack.c.bf16 %v257, %v255
      %v308 = vpack.c.bf16 %v258, %v256
      %v309 = vpack.c.bf16 %v261, %v259
      %v310 = vpack.c.bf16 %v262, %v260
      %v311 = vpack.c.bf16 %v265, %v263
      %v312 = vpack.c.bf16 %v266, %v264
      %v313 = vpack.c.bf16 %v269, %v267
      %v314 = vpack.c.bf16 %v270, %v268
      %v315 = vpack.c.bf16 %v273, %v271
      %v316 = vpack.c.bf16 %v274, %v272
      %v317 = vpack.c.bf16 %v277, %v275
      %v318 = vpack.c.bf16 %v278, %v276
      %v319 = vpack.c.bf16 %v281, %v279
      %v320 = vpack.c.bf16 %v282, %v280
      %v321 = vpack.c.bf16 %v285, %v283
      %v322 = vpack.c.bf16 %v286, %v284
      %v323 = vpack.c.bf16 %v289, %v287
      %v324 = vpack.c.bf16 %v290, %v288
      %v325 = vpack.c.bf16 %v293, %v291
      %v326 = vpack.c.bf16 %v294, %v292
      %v335 = vunpack.c.l.b16 %v223
      %v336 = vunpack.c.h.b16 %v223
      %v337 = vunpack.c.l.b16 %v224
      %v338 = vunpack.c.h.b16 %v224
      %v339 = vunpack.c.l.b16 %v225
      %v340 = vunpack.c.h.b16 %v225
      %v341 = vunpack.c.l.b16 %v226
      %v342 = vunpack.c.h.b16 %v226
      %v343 = vunpack.c.l.b16 %v227
      %v344 = vunpack.c.h.b16 %v227
      %v345 = vunpack.c.l.b16 %v228
      %v346 = vunpack.c.h.b16 %v228
      %v347 = vunpack.c.l.b16 %v229
      %v348 = vunpack.c.h.b16 %v229
      %v349 = vunpack.c.l.b16 %v230
      %v350 = vunpack.c.h.b16 %v230
      %v351 = vpack.c.b16 %v337, %v335
      %v352 = vpack.c.b16 %v338, %v336
      %v353 = vpack.c.b16 %v341, %v339
      %v354 = vpack.c.b16 %v342, %v340
      %v355 = vpack.c.b16 %v345, %v343
      %v356 = vpack.c.b16 %v346, %v344
      %v357 = vpack.c.b16 %v349, %v347
      %v358 = vpack.c.b16 %v350, %v348
      %367 = vmatprep.subr.bf16.mxu0 %v296
      %368 = vmatpush1.bf16.msra.mxu0 %v295
      %369 = vmatprep.subr.bf16.mxu0 %v298
      %370 = vmatpush1.bf16.msra.mxu0 %v297
      %371 = vmatprep.subr.bf16.mxu0 %v300
      %372 = vmatpush1.bf16.msra.mxu0 %v299
      %373 = vmatprep.subr.bf16.mxu0 %v302
      %374 = vmatpush1.bf16.msra.mxu0 %v301
      %375 = vmatprep.subr.bf16.mxu0 %v304
      %376 = vmatpush1.bf16.msra.mxu0 %v303
      %377 = vmatprep.subr.bf16.mxu0 %v306
      %378 = vmatpush1.bf16.msra.mxu0 %v305
      %379 = vmatprep.subr.bf16.mxu0 %v308
      %380 = vmatpush1.bf16.msra.mxu0 %v307
      %381 = vmatprep.subr.bf16.mxu0 %v310
      %382 = vmatpush1.bf16.msra.mxu0 %v309
      %383 = vmatprep.subr.bf16.mxu0 %v312
      %384 = vmatpush1.bf16.msra.mxu0 %v311
      %385 = vmatprep.subr.bf16.mxu0 %v314
      %386 = vmatpush1.bf16.msra.mxu0 %v313
      %387 = vmatprep.subr.bf16.mxu0 %v316
      %388 = vmatpush1.bf16.msra.mxu0 %v315
      %389 = vmatprep.subr.bf16.mxu0 %v318
      %390 = vmatpush1.bf16.msra.mxu0 %v317
      %391 = vmatprep.subr.bf16.mxu0 %v320
      %392 = vmatpush1.bf16.msra.mxu0 %v319
      %393 = vmatprep.subr.bf16.mxu0 %v322
      %394 = vmatpush1.bf16.msra.mxu0 %v321
      %395 = vmatprep.subr.bf16.mxu0 %v324
      %396 = vmatpush1.bf16.msra.mxu0 %v323
      %397 = vmatprep.subr.bf16.mxu0 %v326
      %398 = vmatpush1.bf16.msra.mxu0 %v325
      %399 = vmatprep.mubr.bf16.mxu0 %v352
      %400 = vmatmul.mubr.bf16.gmra.mrb[0].mxu0 %v351
      %v401 = vpop.f32.mrb[0].mxu0
      %v402 = vadd.f32 0.0, %v401
      %v403 = vpop.f32.mrb[0].mxu0
      %v404 = vadd.f32 0.0, %v403
      %v405 = vpop.f32.mrb[0].mxu0
      %v406 = vadd.f32 0.0, %v405
      %v407 = vpop.f32.mrb[0].mxu0
      %v408 = vadd.f32 0.0, %v407
      %409 = vmatprep.mubr.bf16.mxu0 %v354
      %410 = vmatmul.mubr.bf16.gmra.mrb[0].mxu0 %v353
      %v411 = vpop.f32.mrb[0].mxu0
      %v412 = vadd.f32 0.0, %v411
      %v413 = vpop.f32.mrb[0].mxu0
      %v414 = vadd.f32 0.0, %v413
      %v415 = vpop.f32.mrb[0].mxu0
      %v416 = vadd.f32 0.0, %v415
      %v417 = vpop.f32.mrb[0].mxu0
      %v418 = vadd.f32 0.0, %v417
      %419 = vmatprep.mubr.bf16.mxu0 %v356
      %420 = vmatmul.mubr.bf16.gmra.mrb[0].mxu0 %v355
      %v421 = vpop.f32.mrb[0].mxu0
      %v422 = vadd.f32 0.0, %v421
      %v423 = vpop.f32.mrb[0].mxu0
      %v424 = vadd.f32 0.0, %v423
      %v425 = vpop.f32.mrb[0].mxu0
      %v426 = vadd.f32 0.0, %v425
      %v427 = vpop.f32.mrb[0].mxu0
      %v428 = vadd.f32 0.0, %v427
      %429 = vmatprep.mubr.bf16.mxu0 %v358
      %430 = vmatmul.mubr.bf16.gmra.mrb[0].mxu0 %v357
      %v431 = vpop.f32.mrb[0].mxu0
      %v432 = vadd.f32 0.0, %v431
      %v433 = vpop.f32.mrb[0].mxu0
      %v434 = vadd.f32 0.0, %v433
      %v435 = vpop.f32.mrb[0].mxu0
      %v436 = vadd.f32 0.0, %v435
      %v437 = vpop.f32.mrb[0].mxu0
      %v438 = vadd.f32 0.0, %v437
      %439 = vdwg.mxu0
      %v440 = vpack.c.bf16 %v406, %v402
      %v441 = vpack.c.bf16 %v408, %v404
      %v442 = vpack.c.bf16 %v416, %v412
      %v443 = vpack.c.bf16 %v418, %v414
      %v444 = vpack.c.bf16 %v426, %v422
      %v445 = vpack.c.bf16 %v428, %v424
      %v446 = vpack.c.bf16 %v436, %v432
      %v447 = vpack.c.bf16 %v438, %v434
      %v456 = vunpack.c.l.b16 %v440
      %v457 = vunpack.c.l.b16 %v441
      %v458 = vunpack.c.h.b16 %v440
      %v459 = vunpack.c.h.b16 %v441
      %v460 = vunpack.c.l.b16 %v442
      %v461 = vunpack.c.l.b16 %v443
      %v462 = vunpack.c.h.b16 %v442
      %v463 = vunpack.c.h.b16 %v443
      %v464 = vunpack.c.l.b16 %v444
      %v465 = vunpack.c.l.b16 %v445
      %v466 = vunpack.c.h.b16 %v444
      %v467 = vunpack.c.h.b16 %v445
      %v468 = vunpack.c.l.b16 %v446
      %v469 = vunpack.c.l.b16 %v447
      %v470 = vunpack.c.h.b16 %v446
      %v471 = vunpack.c.h.b16 %v447
      %v472 = vpack.c.b16 %v457, %v456
      %v473 = vpack.c.b16 %v459, %v458
      %v474 = vpack.c.b16 %v461, %v460
      %v475 = vpack.c.b16 %v463, %v462
      %v476 = vpack.c.b16 %v465, %v464
      %v477 = vpack.c.b16 %v467, %v466
      %v478 = vpack.c.b16 %v469, %v468
      %v479 = vpack.c.b16 %v471, %v470
      %488 = vst [vmem:[%s216] sm:$0xff] %v472
      %489 = vst [vmem:[%s216 + $0x8] sm:$0xff] %v473
      %490 = vst [vmem:[%s216 + $0x10] sm:$0xff] %v474
      %491 = vst [vmem:[%s216 + $0x18] sm:$0xff] %v475
      %492 = vst [vmem:[%s216 + $0x20] sm:$0xff] %v476
      %493 = vst [vmem:[%s216 + $0x28] sm:$0xff] %v477
      %494 = vst [vmem:[%s216 + $0x30] sm:$0xff] %v478
      %495 = vst [vmem:[%s216 + $0x38] sm:$0xff] %v479
      %p496 = scmp.eq.s32.totalorder %s20, 0
      // Predicated region
      $region29: #{bottleneck_ibn_forward.4} parent=27 // pred_check
        %p497 = pneg %p496
      $region30: #{bottleneck_ibn_forward.4} parent=27 // pred_check_branch
        %499 = sbr.rel (%p497) target = $region32
      $region31: #{bottleneck_ibn_forward.4} parent=27 // pred_region
        %vm500 = vcmask 15360
        %501 = vst.msk [vmem:[%s222] sm:$0xff] %vm500, 0.0
        %502 = vst.msk [vmem:[%s222 + $0x8] sm:$0xff] %vm500, 0.0
        %503 = vst.msk [vmem:[%s222 + $0x10] sm:$0xff] %vm500, 0.0
        %504 = vst.msk [vmem:[%s222 + $0x18] sm:$0xff] %vm500, 0.0
        %505 = vst.msk [vmem:[%s222 + $0x20] sm:$0xff] %vm500, 0.0
        %506 = vst.msk [vmem:[%s222 + $0x28] sm:$0xff] %vm500, 0.0
        %507 = vst.msk [vmem:[%s222 + $0x30] sm:$0xff] %vm500, 0.0
        %508 = vst.msk [vmem:[%s222 + $0x38] sm:$0xff] %vm500, 0.0
      $region32: #{bottleneck_ibn_forward.4} parent=27 // pred_fallthru
        _
      %v509 = vunpack.c.l.bf16 %v440
      %v510 = vunpack.c.l.bf16 %v441
      %v511 = vunpack.c.h.bf16 %v440
      %v512 = vunpack.c.h.bf16 %v441
      %v513 = vunpack.c.l.bf16 %v442
      %v514 = vunpack.c.l.bf16 %v443
      %v515 = vunpack.c.h.bf16 %v442
      %v516 = vunpack.c.h.bf16 %v443
      %v517 = vunpack.c.l.bf16 %v444
      %v518 = vunpack.c.l.bf16 %v445
      %v519 = vunpack.c.h.bf16 %v444
      %v520 = vunpack.c.h.bf16 %v445
      %v521 = vunpack.c.l.bf16 %v446
      %v522 = vunpack.c.l.bf16 %v447
      %v523 = vunpack.c.h.bf16 %v446
      %v524 = vunpack.c.h.bf16 %v447
      %v525 = vld [vmem:[%s222] sm:$0xff]
      %v526 = vld [vmem:[%s222 + $0x8] sm:$0xff]
      %v527 = vld [vmem:[%s222 + $0x10] sm:$0xff]
      %v528 = vld [vmem:[%s222 + $0x18] sm:$0xff]
      %v529 = vld [vmem:[%s222 + $0x20] sm:$0xff]
      %v530 = vld [vmem:[%s222 + $0x28] sm:$0xff]
      %v531 = vld [vmem:[%s222 + $0x30] sm:$0xff]
      %v532 = vld [vmem:[%s222 + $0x38] sm:$0xff]
      %v533 = vadd.f32 %v509, %v510
      %534 = vadd.xlane.f32.xlu0 %v533
      %v535 = vpop.xlane.xlu0 %534
      %v536 = vadd.f32 %v511, %v512
      %537 = vadd.xlane.f32.xlu0 %v536
      %v538 = vpop.xlane.xlu0 %537
      %v539 = vadd.f32 %v513, %v514
      %540 = vadd.xlane.f32.xlu0 %v539
      %v541 = vpop.xlane.xlu0 %540
      %v542 = vadd.f32 %v515, %v516
      %543 = vadd.xlane.f32.xlu0 %v542
      %v544 = vpop.xlane.xlu0 %543
      %v545 = vadd.f32 %v517, %v518
      %546 = vadd.xlane.f32.xlu0 %v545
      %v547 = vpop.xlane.xlu0 %546
      %v548 = vadd.f32 %v519, %v520
      %549 = vadd.xlane.f32.xlu0 %v548
      %v550 = vpop.xlane.xlu0 %549
      %v551 = vadd.f32 %v521, %v522
      %552 = vadd.xlane.f32.xlu0 %v551
      %v553 = vpop.xlane.xlu0 %552
      %v554 = vadd.f32 %v523, %v524
      %555 = vadd.xlane.f32.xlu0 %v554
      %v556 = vpop.xlane.xlu0 %555
      %v557 = vadd.f32 %v525, %v535
      %v558 = vadd.f32 %v526, %v538
      %v559 = vadd.f32 %v527, %v541
      %v560 = vadd.f32 %v528, %v544
      %v561 = vadd.f32 %v529, %v547
      %v562 = vadd.f32 %v530, %v550
      %v563 = vadd.f32 %v531, %v553
      %v564 = vadd.f32 %v532, %v556
      %vm565 = vcmask 7168
      %566 = vst.msk [vmem:[%s222] sm:$0xff] %vm565, %v557
      %567 = vst.msk [vmem:[%s222 + $0x8] sm:$0xff] %vm565, %v558
      %568 = vst.msk [vmem:[%s222 + $0x10] sm:$0xff] %vm565, %v559
      %569 = vst.msk [vmem:[%s222 + $0x18] sm:$0xff] %vm565, %v560
      %570 = vst.msk [vmem:[%s222 + $0x20] sm:$0xff] %vm565, %v561
      %571 = vst.msk [vmem:[%s222 + $0x28] sm:$0xff] %vm565, %v562
      %572 = vst.msk [vmem:[%s222 + $0x30] sm:$0xff] %vm565, %v563
      %573 = vst.msk [vmem:[%s222 + $0x38] sm:$0xff] %vm565, %v564
      %v574 = vld [vmem:[%s222] sm:$0xff]
      %v575 = vld [vmem:[%s222 + $0x8] sm:$0xff]
      %v576 = vld [vmem:[%s222 + $0x10] sm:$0xff]
      %v577 = vld [vmem:[%s222 + $0x18] sm:$0xff]
      %v578 = vld [vmem:[%s222 + $0x20] sm:$0xff]
      %v579 = vld [vmem:[%s222 + $0x28] sm:$0xff]
      %v580 = vld [vmem:[%s222 + $0x30] sm:$0xff]
      %v581 = vld [vmem:[%s222 + $0x38] sm:$0xff]
      %v582 = vmul.f32 %v509, %v509
      %v583 = vmul.f32 %v510, %v510
      %v584 = vmul.f32 %v511, %v511
      %v585 = vmul.f32 %v512, %v512
      %v586 = vmul.f32 %v513, %v513
      %v587 = vmul.f32 %v514, %v514
      %v588 = vmul.f32 %v515, %v515
      %v589 = vmul.f32 %v516, %v516
      %v590 = vmul.f32 %v517, %v517
      %v591 = vmul.f32 %v518, %v518
      %v592 = vmul.f32 %v519, %v519
      %v593 = vmul.f32 %v520, %v520
      %v594 = vmul.f32 %v521, %v521
      %v595 = vmul.f32 %v522, %v522
      %v596 = vmul.f32 %v523, %v523
      %v597 = vmul.f32 %v524, %v524
      %v598 = vadd.f32 %v582, %v583
      %599 = vadd.xlane.f32.xlu0 %v598
      %v600 = vpop.xlane.xlu0 %599
      %v601 = vadd.f32 %v584, %v585
      %602 = vadd.xlane.f32.xlu0 %v601
      %v603 = vpop.xlane.xlu0 %602
      %v604 = vadd.f32 %v586, %v587
      %605 = vadd.xlane.f32.xlu0 %v604
      %v606 = vpop.xlane.xlu0 %605
      %v607 = vadd.f32 %v588, %v589
      %608 = vadd.xlane.f32.xlu0 %v607
      %v609 = vpop.xlane.xlu0 %608
      %v610 = vadd.f32 %v590, %v591
      %611 = vadd.xlane.f32.xlu0 %v610
      %v612 = vpop.xlane.xlu0 %611
      %v613 = vadd.f32 %v592, %v593
      %614 = vadd.xlane.f32.xlu0 %v613
      %v615 = vpop.xlane.xlu0 %614
      %v616 = vadd.f32 %v594, %v595
      %617 = vadd.xlane.f32.xlu0 %v616
      %v618 = vpop.xlane.xlu0 %617
      %v619 = vadd.f32 %v596, %v597
      %620 = vadd.xlane.f32.xlu0 %v619
      %v621 = vpop.xlane.xlu0 %620
      %v622 = vadd.f32 %v574, %v600
      %v623 = vadd.f32 %v575, %v603
      %v624 = vadd.f32 %v576, %v606
      %v625 = vadd.f32 %v577, %v609
      %v626 = vadd.f32 %v578, %v612
      %v627 = vadd.f32 %v579, %v615
      %v628 = vadd.f32 %v580, %v618
      %v629 = vadd.f32 %v581, %v621
      %vm630 = vcmask 15368
      %631 = vst.msk [vmem:[%s222] sm:$0xff] %vm630, %v622
      %632 = vst.msk [vmem:[%s222 + $0x8] sm:$0xff] %vm630, %v623
      %633 = vst.msk [vmem:[%s222 + $0x10] sm:$0xff] %vm630, %v624
      %634 = vst.msk [vmem:[%s222 + $0x18] sm:$0xff] %vm630, %v625
      %635 = vst.msk [vmem:[%s222 + $0x20] sm:$0xff] %vm630, %v626
      %636 = vst.msk [vmem:[%s222 + $0x28] sm:$0xff] %vm630, %v627
      %637 = vst.msk [vmem:[%s222 + $0x30] sm:$0xff] %vm630, %v628
      %638 = vst.msk [vmem:[%s222 + $0x38] sm:$0xff] %vm630, %v629
      %s639 = smul.u32 2, %s20
      %p640 = scmp.lt.s32.totalorder %s19, 1
      %s641 = scalar_select %p640, %s19, 1
      %p642 = scmp.lt.s32.totalorder %s639, 1
      %s643 = scalar_select %p642, %s639, 1
      %s644 = smul.addr %s641, 16
      %s645 = sadd.s32 %s643, %s644
      %s646 = smul.addr %s645, 4
      %s647 = scalar_lea.vmem %s2, %s646
      %p648 = scmp.lt.s32.totalorder %s19, 1
      %s649 = scalar_select %p648, %s19, 1
      %s650 = smul.addr %s649, 8
      %s651 = smul.addr %s650, 8
      %s652 = scalar_lea.vmem %s3, %s651
      // Predicated region
      $region33: #{bottleneck_ibn_forward.4} parent=27 // pred_check
        %p653 = pneg %p96
      $region34: #{bottleneck_ibn_forward.4} parent=27 // pred_check_branch
        %655 = sbr.rel (%p653) target = $region36
      $region35: #{bottleneck_ibn_forward.4} parent=27 // pred_region
        %s656 = smul.u32 2, %s20
      $region36: #{bottleneck_ibn_forward.4} parent=27 // pred_fallthru
        _
      // Predicated region
      $region37: #{bottleneck_ibn_forward.4} parent=27 // pred_check
        %p657 = pneg %p122
      $region38: #{bottleneck_ibn_forward.4} parent=27 // pred_check_branch
        %659 = sbr.rel (%p657) target = $region40
      $region39: #{bottleneck_ibn_forward.4} parent=27 // pred_region
        _
      $region40: #{bottleneck_ibn_forward.4} parent=27 // pred_fallthru
        _
    $region28: #{bottleneck_ibn_forward.4} parent=5 // pred_fallthru
      _
    %p660 = scmp.le.s32.totalorder 2, %s10
    // Predicated region
    $region41: #{bottleneck_ibn_forward.4} parent=5 // pred_check
      %p661 = pneg %p660
    $region42: #{bottleneck_ibn_forward.4} parent=5 // pred_check_branch
      %663 = sbr.rel (%p661) target = $region44
    $region43: #{bottleneck_ibn_forward.4} parent=5 // pred_region
      %s664 = ssub.s32 %s10, 2
      // Predicated region
      $region45: #{bottleneck_ibn_forward.4} parent=43 // pred_check
        %p665 = pneg %p102
      $region46: #{bottleneck_ibn_forward.4} parent=43 // pred_check_branch
        %667 = sbr.rel (%p665) target = $region48
      $region47: #{bottleneck_ibn_forward.4} parent=43 // pred_region
        %s668 = smul.u32 2, %s22
        %p669 = scmp.lt.s32.totalorder %s21, 1
        %s670 = scalar_select %p669, %s21, 1
        %p671 = scmp.lt.s32.totalorder %s668, 1
        %s672 = scalar_select %p671, %s668, 1
        %s673 = smul.addr %s670, 16
        %s674 = sadd.s32 %s672, %s673
        %s675 = smul.addr %s674, 4
        %s676 = scalar_lea.vmem %s2, %s675
      $region48: #{bottleneck_ibn_forward.4} parent=43 // pred_fallthru
        _
      // Predicated region
      $region49: #{bottleneck_ibn_forward.4} parent=43 // pred_check
        %p677 = pneg %p128
      $region50: #{bottleneck_ibn_forward.4} parent=43 // pred_check_branch
        %679 = sbr.rel (%p677) target = $region52
      $region51: #{bottleneck_ibn_forward.4} parent=43 // pred_region
        %p680 = scmp.lt.s32.totalorder %s21, 1
        %s681 = scalar_select %p680, %s21, 1
        %s682 = smul.addr %s681, 8
        %s683 = smul.addr %s682, 8
        %s684 = scalar_lea.vmem %s3, %s683
      $region52: #{bottleneck_ibn_forward.4} parent=43 // pred_fallthru
        _
    $region44: #{bottleneck_ibn_forward.4} parent=5 // pred_fallthru
      _
  $region6: #{bottleneck_ibn_forward.4} parent=0 // loop_footer
    %s14 = sadd.s32 1, %s10
  $region7: #{bottleneck_ibn_forward.4} parent=0 // loop_footer_branch
    %9 = sbr.rel target = $region3
  $region8: #{bottleneck_ibn_forward.4} parent=0 // loop_exit
    _

// kernel: bottleneck_ibn_forward.6
$region0: #{bottleneck_ibn_forward.6}
  #allocation0 [shape = 'u32[]', space=smem, size = 0x4, offset = 0x4, fixed_abs, tag = 'smem constant byte address 0x4 - core index']
  #allocation1 [shape = 'u32[144,128]{1,0:T(1,128)}', space=vmem, size = 0x12000, scoped, tag = 'internal scratch']
  %s0 = inlined_call_operand.vmem [shape: bf16[2,64,256], index: 0, kind: input, shape index: {}]
  %s1 = inlined_call_operand.vmem [shape: f32[64,1], index: 1, kind: input, shape index: {}]
  %s2 = inlined_call_operand.vmem [shape: f32[64,1], index: 2, kind: input, shape index: {}]
  %s3 = inlined_call_operand.vmem [shape: bf16[256,64], index: 3, kind: input, shape index: {}]
  %s4 = inlined_call_operand.vmem [shape: bf16[2,256,256], index: 4, kind: output, shape index: {0}]
  %s5 = inlined_call_operand.vmem [shape: f32[2,256,2], index: 5, kind: output, shape index: {1}]
  %6 = xla_tuple %s4, %s5
  %s7 = sld [smem:[#allocation0]]
  $region61: #{bottleneck_ibn_forward.6} parent=0
    _
  %s9 = ssub.s32 1, %s7
  %s10 = scalar_select 0, %s9, %s7
  loop: start=0, step=1, limit=4
  $region2: #{bottleneck_ibn_forward.6} parent=0 // loop_pre_header
    _
  $region3: #{bottleneck_ibn_forward.6} parent=0 // loop_header
    %s12 = sphi 0, %s16
    %p13 = scmp.ge.s32.totalorder %s12, 4
    %s19 = sphi 0, %s31
    %s20 = sphi 0, %s27
    %s21 = sphi 0, %s19
    %s22 = sphi 0, %s20
    %s23 = sphi 0, %s21
    %s24 = sphi 0, %s22
    %s36 = sphi 0, %s38
    %s39 = sphi 0, %s36
    %s40 = sphi 0, %s39
    %s56 = sphi 0, %s40
    %s60 = sphi 0, %s60
    %s62 = sphi 0, %s60
    %s63 = sphi 0, %s62
    %s77 = sphi 0, %s63
    %s81 = sphi 0, %s81
    %s83 = sphi 0, %s81
    %s84 = sphi 0, %s83
    %s98 = sphi 0, %s84
    %s102 = sphi 0, %s102
    %s104 = sphi 0, %s102
    %s105 = sphi 0, %s104
    %s119 = sphi 0, %s105
    %s127 = sphi 0, %s129
    %s130 = sphi 0, %s127
    %s131 = sphi 0, %s130
    %s147 = sphi 0, %s131
    %s153 = sphi 0, %s155
    %s156 = sphi 0, %s153
    %s157 = sphi 0, %s156
    %s173 = sphi 0, %s157
  $region4: #{bottleneck_ibn_forward.6} parent=0 // loop_header_branch
    %15 = sbr.rel (%p13) target = $region8
  $region5: #{bottleneck_ibn_forward.6} parent=0 // loop_body
    %s17 = ssub.s32 %s12, 1
    %s18 = ssub.s32 %s12, 2
    %s25 = sadd.s32 1, %s20
    %p26 = scmp.ge.s32.totalorder %s25, 1
    %s27 = scalar_select %p26, 0, %s25
    %s28 = sadd.s32 1, %s19
    %s29 = scalar_select %p26, %s28, %s19
    %p30 = scmp.ge.s32.totalorder %s29, 2
    %s31 = scalar_select %p30, 0, %s29
    %s32 = ssub.s32 %s19, %s31
    %s33 = ssub.s32 %s20, %s27
    %s34 = sor.u32 %s32, %s33
    %p35 = scmp.eq.s32.totalorder %s34, 0
    %s37 = sadd.s32 %s36, 1
    %s38 = scalar_select %p35, %s36, %s37
    %p41 = pneg %p35
    %p42 = scmp.eq.s32.totalorder %s12, 1
    %p43 = por %p41, %p42
    %p44 = scmp.ne.s32.totalorder %s36, %s39
    %p45 = scmp.eq.s32.totalorder %s12, 0
    %p46 = por %p44, %p45
    %p47 = scmp.ne.s32.totalorder %s36, %s39
    %p48 = scmp.eq.s32.totalorder %s17, 1
    %p49 = por %p47, %p48
    %p50 = scmp.ne.s32.totalorder %s39, %s40
    %p51 = scmp.eq.s32.totalorder %s17, 0
    %p52 = por %p50, %p51
    %p53 = scmp.ne.s32.totalorder %s39, %s40
    %p54 = scmp.eq.s32.totalorder %s18, 1
    %p55 = por %p53, %p54
    %p57 = scmp.ne.s32.totalorder %s40, %s56
    %p58 = scmp.eq.s32.totalorder %s18, 0
    %p59 = por %p57, %p58
    %s61 = sadd.s32 %s60, 1
    %p64 = scmp.eq.s32.totalorder %s12, 1
    %p65 = scmp.ne.s32.totalorder %s60, %s62
    %p66 = scmp.eq.s32.totalorder %s12, 0
    %p67 = por %p65, %p66
    %p68 = scmp.ne.s32.totalorder %s60, %s62
    %p69 = scmp.eq.s32.totalorder %s17, 1
    %p70 = por %p68, %p69
    %p71 = scmp.ne.s32.totalorder %s62, %s63
    %p72 = scmp.eq.s32.totalorder %s17, 0
    %p73 = por %p71, %p72
    %p74 = scmp.ne.s32.totalorder %s62, %s63
    %p75 = scmp.eq.s32.totalorder %s18, 1
    %p76 = por %p74, %p75
    %p78 = scmp.ne.s32.totalorder %s63, %s77
    %p79 = scmp.eq.s32.totalorder %s18, 0
    %p80 = por %p78, %p79
    %s82 = sadd.s32 %s81, 1
    %p85 = scmp.eq.s32.totalorder %s12, 1
    %p86 = scmp.ne.s32.totalorder %s81, %s83
    %p87 = scmp.eq.s32.totalorder %s12, 0
    %p88 = por %p86, %p87
    %p89 = scmp.ne.s32.totalorder %s81, %s83
    %p90 = scmp.eq.s32.totalorder %s17, 1
    %p91 = por %p89, %p90
    %p92 = scmp.ne.s32.totalorder %s83, %s84
    %p93 = scmp.eq.s32.totalorder %s17, 0
    %p94 = por %p92, %p93
    %p95 = scmp.ne.s32.totalorder %s83, %s84
    %p96 = scmp.eq.s32.totalorder %s18, 1
    %p97 = por %p95, %p96
    %p99 = scmp.ne.s32.totalorder %s84, %s98
    %p100 = scmp.eq.s32.totalorder %s18, 0
    %p101 = por %p99, %p100
    %s103 = sadd.s32 %s102, 1
    %p106 = scmp.eq.s32.totalorder %s12, 1
    %p107 = scmp.ne.s32.totalorder %s102, %s104
    %p108 = scmp.eq.s32.totalorder %s12, 0
    %p109 = por %p107, %p108
    %p110 = scmp.ne.s32.totalorder %s102, %s104
    %p111 = scmp.eq.s32.totalorder %s17, 1
    %p112 = por %p110, %p111
    %p113 = scmp.ne.s32.totalorder %s104, %s105
    %p114 = scmp.eq.s32.totalorder %s17, 0
    %p115 = por %p113, %p114
    %p116 = scmp.ne.s32.totalorder %s104, %s105
    %p117 = scmp.eq.s32.totalorder %s18, 1
    %p118 = por %p116, %p117
    %p120 = scmp.ne.s32.totalorder %s105, %s119
    %p121 = scmp.eq.s32.totalorder %s18, 0
    %p122 = por %p120, %p121
    %s123 = ssub.s32 %s19, %s31
    %s124 = ssub.s32 %s20, %s27
    %s125 = sor.u32 %s123, %s124
    %p126 = scmp.eq.s32.totalorder %s125, 0
    %s128 = sadd.s32 %s127, 1
    %s129 = scalar_select %p126, %s127, %s128
    %p132 = pneg %p126
    %p133 = scmp.eq.s32.totalorder %s12, 1
    %p134 = por %p132, %p133
    %p135 = scmp.ne.s32.totalorder %s127, %s130
    %p136 = scmp.eq.s32.totalorder %s12, 0
    %p137 = por %p135, %p136
    %p138 = scmp.ne.s32.totalorder %s127, %s130
    %p139 = scmp.eq.s32.totalorder %s17, 1
    %p140 = por %p138, %p139
    %p141 = scmp.ne.s32.totalorder %s130, %s131
    %p142 = scmp.eq.s32.totalorder %s17, 0
    %p143 = por %p141, %p142
    %p144 = scmp.ne.s32.totalorder %s130, %s131
    %p145 = scmp.eq.s32.totalorder %s18, 1
    %p146 = por %p144, %p145
    %p148 = scmp.ne.s32.totalorder %s131, %s147
    %p149 = scmp.eq.s32.totalorder %s18, 0
    %p150 = por %p148, %p149
    %s151 = ssub.s32 %s19, %s31
    %p152 = scmp.eq.s32.totalorder %s151, 0
    %s154 = sadd.s32 %s153, 1
    %s155 = scalar_select %p152, %s153, %s154
    %p158 = pneg %p152
    %p159 = scmp.eq.s32.totalorder %s12, 1
    %p160 = por %p158, %p159
    %p161 = scmp.ne.s32.totalorder %s153, %s156
    %p162 = scmp.eq.s32.totalorder %s12, 0
    %p163 = por %p161, %p162
    %p164 = scmp.ne.s32.totalorder %s153, %s156
    %p165 = scmp.eq.s32.totalorder %s17, 1
    %p166 = por %p164, %p165
    %p167 = scmp.ne.s32.totalorder %s156, %s157
    %p168 = scmp.eq.s32.totalorder %s17, 0
    %p169 = por %p167, %p168
    %p170 = scmp.ne.s32.totalorder %s156, %s157
    %p171 = scmp.eq.s32.totalorder %s18, 1
    %p172 = por %p170, %p171
    %p174 = scmp.ne.s32.totalorder %s157, %s173
    %p175 = scmp.eq.s32.totalorder %s18, 0
    %p176 = por %p174, %p175
    %p177 = scmp.le.s32.totalorder 1, %s12
    %p178 = scmp.lt.s32.totalorder %s12, 3
    %p179 = pnand %p177, %p178
    %p180 = pneg %p179
    // Predicated region
    $region9: #{bottleneck_ibn_forward.6} parent=5 // pred_check
      _
    $region10: #{bottleneck_ibn_forward.6} parent=5 // pred_check_branch
      %182 = sbr.rel (%p179) target = $region12
    $region11: #{bottleneck_ibn_forward.6} parent=5 // pred_region
      %s183 = ssub.s32 %s12, 1
      // Predicated region
      $region13: #{bottleneck_ibn_forward.6} parent=11 // pred_check
        %p184 = pneg %p73
      $region14: #{bottleneck_ibn_forward.6} parent=11 // pred_check_branch
        %186 = sbr.rel (%p184) target = $region16
      $region15: #{bottleneck_ibn_forward.6} parent=11 // pred_region
        _
      $region16: #{bottleneck_ibn_forward.6} parent=11 // pred_fallthru
        _
      // Predicated region
      $region17: #{bottleneck_ibn_forward.6} parent=11 // pred_check
        %p187 = pneg %p94
      $region18: #{bottleneck_ibn_forward.6} parent=11 // pred_check_branch
        %189 = sbr.rel (%p187) target = $region20
      $region19: #{bottleneck_ibn_forward.6} parent=11 // pred_region
        _
      $region20: #{bottleneck_ibn_forward.6} parent=11 // pred_fallthru
        _
      // Predicated region
      $region21: #{bottleneck_ibn_forward.6} parent=11 // pred_check
        %p190 = pneg %p115
      $region22: #{bottleneck_ibn_forward.6} parent=11 // pred_check_branch
        %192 = sbr.rel (%p190) target = $region24
      $region23: #{bottleneck_ibn_forward.6} parent=11 // pred_region
        _
      $region24: #{bottleneck_ibn_forward.6} parent=11 // pred_fallthru
        _
    $region12: #{bottleneck_ibn_forward.6} parent=5 // pred_fallthru
      _
    %p193 = scmp.lt.s32.totalorder %s12, 2
    // Predicated region
    $region25: #{bottleneck_ibn_forward.6} parent=5 // pred_check
      %p194 = pneg %p193
    $region26: #{bottleneck_ibn_forward.6} parent=5 // pred_check_branch
      %196 = sbr.rel (%p194) target = $region28
    $region27: #{bottleneck_ibn_forward.6} parent=5 // pred_region
      // Predicated region
      $region29: #{bottleneck_ibn_forward.6} parent=27 // pred_check
        %p197 = pneg %p46
      $region30: #{bottleneck_ibn_forward.6} parent=27 // pred_check_branch
        %199 = sbr.rel (%p197) target = $region32
      $region31: #{bottleneck_ibn_forward.6} parent=27 // pred_region
        %s200 = smul.u32 2, %s20
        %p201 = scmp.lt.s32.totalorder %s19, 1
        %s202 = scalar_select %p201, %s19, 1
        %p203 = scmp.lt.s32.totalorder %s200, 1
        %s204 = scalar_select %p203, %s200, 1
        %s205 = smul.addr %s202, 16
        %s206 = sadd.s32 %s204, %s205
        %s207 = smul.addr %s206, 4
        %s208 = scalar_lea.vmem %s0, %s207
        %s209 = smul.u32 2, %s20
      $region32: #{bottleneck_ibn_forward.6} parent=27 // pred_fallthru
        _
    $region28: #{bottleneck_ibn_forward.6} parent=5 // pred_fallthru
      _
    %p210 = scmp.le.s32.totalorder 1, %s12
    %p211 = scmp.lt.s32.totalorder %s12, 3
    %p212 = pnand %p210, %p211
    %p213 = pneg %p212
    // Predicated region
    $region33: #{bottleneck_ibn_forward.6} parent=5 // pred_check
      _
    $region34: #{bottleneck_ibn_forward.6} parent=5 // pred_check_branch
      %215 = sbr.rel (%p212) target = $region36
    $region35: #{bottleneck_ibn_forward.6} parent=5 // pred_region
      %s216 = ssub.s32 %s12, 1
      %s217 = smul.u32 2, %s22
      %p218 = scmp.lt.s32.totalorder %s21, 1
      %s219 = scalar_select %p218, %s21, 1
      %p220 = scmp.lt.s32.totalorder %s217, 1
      %s221 = scalar_select %p220, %s217, 1
      %s222 = smul.addr %s219, 16
      %s223 = sadd.s32 %s221, %s222
      %s224 = smul.addr %s223, 4
      %s225 = scalar_lea.vmem %s0, %s224
      %p226 = pneg %p52
      %p227 = pneg %p49
      %p228 = pneg %p73
      %p229 = pneg %p70
      %p230 = pneg %p94
      %p231 = pneg %p91
      %p232 = pneg %p115
      %p233 = pneg %p112
      %p234 = pneg %p143
      %p235 = pneg %p140
      %s236 = smul.u32 2, %s22
      %p237 = scmp.lt.s32.totalorder %s21, 1
      %s238 = scalar_select %p237, %s21, 1
      %p239 = scmp.lt.s32.totalorder %s236, 1
      %s240 = scalar_select %p239, %s236, 1
      %s241 = smul.addr %s238, 64
      %s242 = sadd.s32 %s240, %s241
      %s243 = smul.addr %s242, 4
      %s244 = scalar_lea.vmem %s4, %s243
      %p245 = pneg %p169
      %p246 = pneg %p166
      %p247 = scmp.lt.s32.totalorder %s21, 1
      %s248 = scalar_select %p247, %s21, 1
      %s249 = smul.addr %s248, 32
      %s250 = smul.addr %s249, 8
      %s251 = scalar_lea.vmem %s5, %s250
      %s252 = smul.u32 2, %s22
      %p253 = scmp.lt.s32.totalorder %s21, 1
      %s254 = scalar_select %p253, %s21, 1
      %p255 = scmp.lt.s32.totalorder %s252, 1
      %s256 = scalar_select %p255, %s252, 1
      %s257 = smul.addr %s254, 16
      %s258 = sadd.s32 %s256, %s257
      %s259 = smul.addr %s258, 4
      %s260 = scalar_lea.vmem %s0, %s259
      %s261 = smul.u32 2, %s22
      %s262 = smul.u32 2, %s22
      %p263 = scmp.lt.s32.totalorder %s21, 1
      %s264 = scalar_select %p263, %s21, 1
      %p265 = scmp.lt.s32.totalorder %s262, 1
      %s266 = scalar_select %p265, %s262, 1
      %s267 = smul.addr %s264, 64
      %s268 = sadd.s32 %s266, %s267
      %s269 = smul.addr %s268, 4
      %s270 = scalar_lea.vmem %s4, %s269
      %s271 = smul.u32 2, %s22
      %p272 = scmp.lt.s32.totalorder %s21, 1
      %s273 = scalar_select %p272, %s21, 1
      %s274 = smul.addr %s273, 32
      %s275 = smul.addr %s274, 8
      %s276 = scalar_lea.vmem %s5, %s275
      %v278 = vld [vmem:[%s260] sm:$0xff]
      %v279 = vld [vmem:[%s260 + $0x8] sm:$0xff]
      %v280 = vld [vmem:[%s260 + $0x10] sm:$0xff]
      %v281 = vld [vmem:[%s260 + $0x18] sm:$0xff]
      %v282 = vld [vmem:[%s260 + $0x20] sm:$0xff]
      %v283 = vld [vmem:[%s260 + $0x28] sm:$0xff]
      %v284 = vld [vmem:[%s260 + $0x30] sm:$0xff]
      %v285 = vld [vmem:[%s260 + $0x38] sm:$0xff]
      %v286 = vunpack.c.l.bf16 %v278
      %v287 = vunpack.c.h.bf16 %v278
      %v288 = vunpack.c.l.bf16 %v279
      %v289 = vunpack.c.h.bf16 %v279
      %v290 = vunpack.c.l.bf16 %v280
      %v291 = vunpack.c.h.bf16 %v280
      %v292 = vunpack.c.l.bf16 %v281
      %v293 = vunpack.c.h.bf16 %v281
      %v294 = vunpack.c.l.bf16 %v282
      %v295 = vunpack.c.h.bf16 %v282
      %v296 = vunpack.c.l.bf16 %v283
      %v297 = vunpack.c.h.bf16 %v283
      %v298 = vunpack.c.l.bf16 %v284
      %v299 = vunpack.c.h.bf16 %v284
      %v300 = vunpack.c.l.bf16 %v285
      %v301 = vunpack.c.h.bf16 %v285
      %v302 = vld [vmem:[%s1] sm:$0xff]
      %v303 = vld [vmem:[%s1 + $0x8] sm:$0xff]
      %v304 = vld [vmem:[%s1 + $0x10] sm:$0xff]
      %v305 = vld [vmem:[%s1 + $0x18] sm:$0xff]
      %v306 = vld [vmem:[%s1 + $0x20] sm:$0xff]
      %v307 = vld [vmem:[%s1 + $0x28] sm:$0xff]
      %v308 = vld [vmem:[%s1 + $0x30] sm:$0xff]
      %v309 = vld [vmem:[%s1 + $0x38] sm:$0xff]
      %311 = vset.pattern.permute.xlu0 0
      %312 = vperm.xlu0 %311, %v302
      %v313 = vpop.permute.xlu0 %312
      %316 = vset.pattern.permute.xlu0 0
      %317 = vperm.xlu0 %316, %v303
      %v318 = vpop.permute.xlu0 %317
      %321 = vset.pattern.permute.xlu0 0
      %322 = vperm.xlu0 %321, %v304
      %v323 = vpop.permute.xlu0 %322
      %326 = vset.pattern.permute.xlu0 0
      %327 = vperm.xlu0 %326, %v305
      %v328 = vpop.permute.xlu0 %327
      %331 = vset.pattern.permute.xlu0 0
      %332 = vperm.xlu0 %331, %v306
      %v333 = vpop.permute.xlu0 %332
      %336 = vset.pattern.permute.xlu0 0
      %337 = vperm.xlu0 %336, %v307
      %v338 = vpop.permute.xlu0 %337
      %341 = vset.pattern.permute.xlu0 0
      %342 = vperm.xlu0 %341, %v308
      %v343 = vpop.permute.xlu0 %342
      %346 = vset.pattern.permute.xlu0 0
      %347 = vperm.xlu0 %346, %v309
      %v348 = vpop.permute.xlu0 %347
      %v350 = vmul.f32 %v286, %v313
      %v351 = vmul.f32 %v287, %v313
      %v352 = vmul.f32 %v288, %v318
      %v353 = vmul.f32 %v289, %v318
      %v354 = vmul.f32 %v290, %v323
      %v355 = vmul.f32 %v291, %v323
      %v356 = vmul.f32 %v292, %v328
      %v357 = vmul.f32 %v293, %v328
      %v358 = vmul.f32 %v294, %v333
      %v359 = vmul.f32 %v295, %v333
      %v360 = vmul.f32 %v296, %v338
      %v361 = vmul.f32 %v297, %v338
      %v362 = vmul.f32 %v298, %v343
      %v363 = vmul.f32 %v299, %v343
      %v364 = vmul.f32 %v300, %v348
      %v365 = vmul.f32 %v301, %v348
      %v366 = vld [vmem:[%s2] sm:$0xff]
      %v367 = vld [vmem:[%s2 + $0x8] sm:$0xff]
      %v368 = vld [vmem:[%s2 + $0x10] sm:$0xff]
      %v369 = vld [vmem:[%s2 + $0x18] sm:$0xff]
      %v370 = vld [vmem:[%s2 + $0x20] sm:$0xff]
      %v371 = vld [vmem:[%s2 + $0x28] sm:$0xff]
      %v372 = vld [vmem:[%s2 + $0x30] sm:$0xff]
      %v373 = vld [vmem:[%s2 + $0x38] sm:$0xff]
      %375 = vset.pattern.permute.xlu0 0
      %376 = vperm.xlu0 %375, %v366
      %v377 = vpop.permute.xlu0 %376
      %380 = vset.pattern.permute.xlu0 0
      %381 = vperm.xlu0 %380, %v367
      %v382 = vpop.permute.xlu0 %381
      %385 = vset.pattern.permute.xlu0 0
      %386 = vperm.xlu0 %385, %v368
      %v387 = vpop.permute.xlu0 %386
      %390 = vset.pattern.permute.xlu0 0
      %391 = vperm.xlu0 %390, %v369
      %v392 = vpop.permute.xlu0 %391
      %395 = vset.pattern.permute.xlu0 0
      %396 = vperm.xlu0 %395, %v370
      %v397 = vpop.permute.xlu0 %396
      %400 = vset.pattern.permute.xlu0 0
      %401 = vperm.xlu0 %400, %v371
      %v402 = vpop.permute.xlu0 %401
      %405 = vset.pattern.permute.xlu0 0
      %406 = vperm.xlu0 %405, %v372
      %v407 = vpop.permute.xlu0 %406
      %410 = vset.pattern.permute.xlu0 0
      %411 = vperm.xlu0 %410, %v373
      %v412 = vpop.permute.xlu0 %411
      %v414 = vadd.f32 %v350, %v377
      %v415 = vadd.f32 %v351, %v377
      %v416 = vadd.f32 %v352, %v382
      %v417 = vadd.f32 %v353, %v382
      %v418 = vadd.f32 %v354, %v387
      %v419 = vadd.f32 %v355, %v387
      %v420 = vadd.f32 %v356, %v392
      %v421 = vadd.f32 %v357, %v392
      %v422 = vadd.f32 %v358, %v397
      %v423 = vadd.f32 %v359, %v397
      %v424 = vadd.f32 %v360, %v402
      %v425 = vadd.f32 %v361, %v402
      %v426 = vadd.f32 %v362, %v407
      %v427 = vadd.f32 %v363, %v407
      %v428 = vadd.f32 %v364, %v412
      %v429 = vadd.f32 %v365, %v412
      %v430 = vmax.f32 %v414, 0.0
      %v431 = vmax.f32 %v415, 0.0
      %v432 = vmax.f32 %v416, 0.0
      %v433 = vmax.f32 %v417, 0.0
      %v434 = vmax.f32 %v418, 0.0
      %v435 = vmax.f32 %v419, 0.0
      %v436 = vmax.f32 %v420, 0.0
      %v437 = vmax.f32 %v421, 0.0
      %v438 = vmax.f32 %v422, 0.0
      %v439 = vmax.f32 %v423, 0.0
      %v440 = vmax.f32 %v424, 0.0
      %v441 = vmax.f32 %v425, 0.0
      %v442 = vmax.f32 %v426, 0.0
      %v443 = vmax.f32 %v427, 0.0
      %v444 = vmax.f32 %v428, 0.0
      %v445 = vmax.f32 %v429, 0.0
      %v446 = vld [vmem:[%s3] sm:$0xf]
      %v447 = vld [vmem:[%s3 + $0x4] sm:$0xf]
      %v448 = vld [vmem:[%s3 + $0x8] sm:$0xf]
      %v449 = vld [vmem:[%s3 + $0xc] sm:$0xf]
      %v450 = vld [vmem:[%s3 + $0x10] sm:$0xf]
      %v451 = vld [vmem:[%s3 + $0x14] sm:$0xf]
      %v452 = vld [vmem:[%s3 + $0x18] sm:$0xf]
      %v453 = vld [vmem:[%s3 + $0x1c] sm:$0xf]
      %v454 = vld [vmem:[%s3 + $0x20] sm:$0xf]
      %v455 = vld [vmem:[%s3 + $0x24] sm:$0xf]
      %v456 = vld [vmem:[%s3 + $0x28] sm:$0xf]
      %v457 = vld [vmem:[%s3 + $0x2c] sm:$0xf]
      %v458 = vld [vmem:[%s3 + $0x30] sm:$0xf]
      %v459 = vld [vmem:[%s3 + $0x34] sm:$0xf]
      %v460 = vld [vmem:[%s3 + $0x38] sm:$0xf]
      %v461 = vld [vmem:[%s3 + $0x3c] sm:$0xf]
      %v462 = vld [vmem:[%s3 + $0x40] sm:$0xf]
      %v463 = vld [vmem:[%s3 + $0x44] sm:$0xf]
      %v464 = vld [vmem:[%s3 + $0x48] sm:$0xf]
      %v465 = vld [vmem:[%s3 + $0x4c] sm:$0xf]
      %v466 = vld [vmem:[%s3 + $0x50] sm:$0xf]
      %v467 = vld [vmem:[%s3 + $0x54] sm:$0xf]
      %v468 = vld [vmem:[%s3 + $0x58] sm:$0xf]
      %v469 = vld [vmem:[%s3 + $0x5c] sm:$0xf]
      %v470 = vld [vmem:[%s3 + $0x60] sm:$0xf]
      %v471 = vld [vmem:[%s3 + $0x64] sm:$0xf]
      %v472 = vld [vmem:[%s3 + $0x68] sm:$0xf]
      %v473 = vld [vmem:[%s3 + $0x6c] sm:$0xf]
      %v474 = vld [vmem:[%s3 + $0x70] sm:$0xf]
      %v475 = vld [vmem:[%s3 + $0x74] sm:$0xf]
      %v476 = vld [vmem:[%s3 + $0x78] sm:$0xf]
      %v477 = vld [vmem:[%s3 + $0x7c] sm:$0xf]
      %v478 = vpack.c.bf16 %v432, %v430
      %v479 = vpack.c.bf16 %v433, %v431
      %v480 = vpack.c.bf16 %v436, %v434
      %v481 = vpack.c.bf16 %v437, %v435
      %v482 = vpack.c.bf16 %v440, %v438
      %v483 = vpack.c.bf16 %v441, %v439
      %v484 = vpack.c.bf16 %v444, %v442
      %v485 = vpack.c.bf16 %v445, %v443
      %v518 = vunpack.c.l.b16 %v446
      %v519 = vunpack.c.l.b16 %v447
      %v520 = vunpack.c.l.b16 %v448
      %v521 = vunpack.c.l.b16 %v449
      %v522 = vunpack.c.l.b16 %v450
      %v523 = vunpack.c.l.b16 %v451
      %v524 = vunpack.c.l.b16 %v452
      %v525 = vunpack.c.l.b16 %v453
      %v526 = vunpack.c.l.b16 %v454
      %v527 = vunpack.c.l.b16 %v455
      %v528 = vunpack.c.l.b16 %v456
      %v529 = vunpack.c.l.b16 %v457
      %v530 = vunpack.c.l.b16 %v458
      %v531 = vunpack.c.l.b16 %v459
      %v532 = vunpack.c.l.b16 %v460
      %v533 = vunpack.c.l.b16 %v461
      %v534 = vunpack.c.l.b16 %v462
      %v535 = vunpack.c.l.b16 %v463
      %v536 = vunpack.c.l.b16 %v464
      %v537 = vunpack.c.l.b16 %v465
      %v538 = vunpack.c.l.b16 %v466
      %v539 = vunpack.c.l.b16 %v467
      %v540 = vunpack.c.l.b16 %v468
      %v541 = vunpack.c.l.b16 %v469
      %v542 = vunpack.c.l.b16 %v470
      %v543 = vunpack.c.l.b16 %v471
      %v544 = vunpack.c.l.b16 %v472
      %v545 = vunpack.c.l.b16 %v473
      %v546 = vunpack.c.l.b16 %v474
      %v547 = vunpack.c.l.b16 %v475
      %v548 = vunpack.c.l.b16 %v476
      %v549 = vunpack.c.l.b16 %v477
      %v550 = vpack.c.b16 %v519, %v518
      %v551 = vpack.c.b16 %v521, %v520
      %v552 = vpack.c.b16 %v523, %v522
      %v553 = vpack.c.b16 %v525, %v524
      %v554 = vpack.c.b16 %v527, %v526
      %v555 = vpack.c.b16 %v529, %v528
      %v556 = vpack.c.b16 %v531, %v530
      %v557 = vpack.c.b16 %v533, %v532
      %v558 = vpack.c.b16 %v535, %v534
      %v559 = vpack.c.b16 %v537, %v536
      %v560 = vpack.c.b16 %v539, %v538
      %v561 = vpack.c.b16 %v541, %v540
      %v562 = vpack.c.b16 %v543, %v542
      %v563 = vpack.c.b16 %v545, %v544
      %v564 = vpack.c.b16 %v547, %v546
      %v565 = vpack.c.b16 %v549, %v548
      %vm566 = vcmask 523264
      %v568 = vsel %vm566, %v550, 0
      %v571 = vsel %vm566, %v551, 0
      %v574 = vsel %vm566, %v552, 0
      %v577 = vsel %vm566, %v553, 0
      %v580 = vsel %vm566, %v554, 0
      %v583 = vsel %vm566, %v555, 0
      %v586 = vsel %vm566, %v556, 0
      %v589 = vsel %vm566, %v557, 0
      %v592 = vsel %vm566, %v558, 0
      %v595 = vsel %vm566, %v559, 0
      %v598 = vsel %vm566, %v560, 0
      %v601 = vsel %vm566, %v561, 0
      %v604 = vsel %vm566, %v562, 0
      %v607 = vsel %vm566, %v563, 0
      %v610 = vsel %vm566, %v564, 0
      %v613 = vsel %vm566, %v565, 0
      %615 = vmatprep.subr.bf16.mxu0 %v479
      %616 = vmatpush1.bf16.msra.mxu0 %v478
      %617 = vmatprep.subr.bf16.mxu0 %v481
      %618 = vmatpush1.bf16.msra.mxu0 %v480
      %619 = vmatprep.subr.bf16.mxu0 %v483
      %620 = vmatpush1.bf16.msra.mxu0 %v482
      %621 = vmatprep.subr.bf16.mxu0 %v485
      %622 = vmatpush1.bf16.msra.mxu0 %v484
      %623 = vmatprep.subr.bf16.mxu0 0
      %624 = vmatpush1.bf16.msra.mxu0 0
      %625 = vmatprep.subr.bf16.mxu0 0
      %626 = vmatpush1.bf16.msra.mxu0 0
      %627 = vmatprep.subr.bf16.mxu0 0
      %628 = vmatpush1.bf16.msra.mxu0 0
      %629 = vmatprep.subr.bf16.mxu0 0
      %630 = vmatpush1.bf16.msra.mxu0 0
      %631 = vmatprep.subr.bf16.mxu0 0
      %632 = vmatpush1.bf16.msra.mxu0 0
      %633 = vmatprep.subr.bf16.mxu0 0
      %634 = vmatpush1.bf16.msra.mxu0 0
      %635 = vmatprep.subr.bf16.mxu0 0
      %636 = vmatpush1.bf16.msra.mxu0 0
      %637 = vmatprep.subr.bf16.mxu0 0
      %638 = vmatpush1.bf16.msra.mxu0 0
      %639 = vmatprep.subr.bf16.mxu0 0
      %640 = vmatpush1.bf16.msra.mxu0 0
      %641 = vmatprep.subr.bf16.mxu0 0
      %642 = vmatpush1.bf16.msra.mxu0 0
      %643 = vmatprep.subr.bf16.mxu0 0
      %644 = vmatpush1.bf16.msra.mxu0 0
      %645 = vmatprep.subr.bf16.mxu0 0
      %646 = vmatpush1.bf16.msra.mxu0 0
      %647 = vmatprep.mubr.bf16.mxu0 0
      %648 = vmatmul.mubr.bf16.gmra.mrb[0].mxu0 %v568
      %v649 = vpop.f32.mrb[0].mxu0
      %v650 = vadd.f32 0.0, %v649
      %v651 = vpop.f32.mrb[0].mxu0
      %v652 = vadd.f32 0.0, %v651
      %v653 = vpop.f32.mrb[0].mxu0
      %v654 = vadd.f32 0.0, %v653
      %v655 = vpop.f32.mrb[0].mxu0
      %v656 = vadd.f32 0.0, %v655
      %657 = vmatprep.mubr.bf16.mxu0 0
      %658 = vmatmul.mubr.bf16.gmra.mrb[0].mxu0 %v571
      %v659 = vpop.f32.mrb[0].mxu0
      %v660 = vadd.f32 0.0, %v659
      %v661 = vpop.f32.mrb[0].mxu0
      %v662 = vadd.f32 0.0, %v661
      %v663 = vpop.f32.mrb[0].mxu0
      %v664 = vadd.f32 0.0, %v663
      %v665 = vpop.f32.mrb[0].mxu0
      %v666 = vadd.f32 0.0, %v665
      %667 = vmatprep.mubr.bf16.mxu0 0
      %668 = vmatmul.mubr.bf16.gmra.mrb[0].mxu0 %v574
      %v669 = vpop.f32.mrb[0].mxu0
      %v670 = vadd.f32 0.0, %v669
      %v671 = vpop.f32.mrb[0].mxu0
      %v672 = vadd.f32 0.0, %v671
      %v673 = vpop.f32.mrb[0].mxu0
      %v674 = vadd.f32 0.0, %v673
      %v675 = vpop.f32.mrb[0].mxu0
      %v676 = vadd.f32 0.0, %v675
      %677 = vmatprep.mubr.bf16.mxu0 0
      %678 = vmatmul.mubr.bf16.gmra.mrb[0].mxu0 %v577
      %v679 = vpop.f32.mrb[0].mxu0
      %v680 = vadd.f32 0.0, %v679
      %v681 = vpop.f32.mrb[0].mxu0
      %v682 = vadd.f32 0.0, %v681
      %v683 = vpop.f32.mrb[0].mxu0
      %v684 = vadd.f32 0.0, %v683
      %v685 = vpop.f32.mrb[0].mxu0
      %v686 = vadd.f32 0.0, %v685
      %687 = vmatprep.mubr.bf16.mxu0 0
      %688 = vmatmul.mubr.bf16.gmra.mrb[0].mxu0 %v580
      %v689 = vpop.f32.mrb[0].mxu0
      %v690 = vadd.f32 0.0, %v689
      %v691 = vpop.f32.mrb[0].mxu0
      %v692 = vadd.f32 0.0, %v691
      %v693 = vpop.f32.mrb[0].mxu0
      %v694 = vadd.f32 0.0, %v693
      %v695 = vpop.f32.mrb[0].mxu0
      %v696 = vadd.f32 0.0, %v695
      %697 = vmatprep.mubr.bf16.mxu0 0
      %698 = vmatmul.mubr.bf16.gmra.mrb[0].mxu0 %v583
      %v699 = vpop.f32.mrb[0].mxu0
      %v700 = vadd.f32 0.0, %v699
      %v701 = vpop.f32.mrb[0].mxu0
      %v702 = vadd.f32 0.0, %v701
      %v703 = vpop.f32.mrb[0].mxu0
      %v704 = vadd.f32 0.0, %v703
      %v705 = vpop.f32.mrb[0].mxu0
      %v706 = vadd.f32 0.0, %v705
      %707 = vmatprep.mubr.bf16.mxu0 0
      %708 = vmatmul.mubr.bf16.gmra.mrb[0].mxu0 %v586
      %v709 = vpop.f32.mrb[0].mxu0
      %v710 = vadd.f32 0.0, %v709
      %v711 = vpop.f32.mrb[0].mxu0
      %v712 = vadd.f32 0.0, %v711
      %v713 = vpop.f32.mrb[0].mxu0
      %v714 = vadd.f32 0.0, %v713
      %v715 = vpop.f32.mrb[0].mxu0
      %v716 = vadd.f32 0.0, %v715
      %717 = vmatprep.mubr.bf16.mxu0 0
      %718 = vmatmul.mubr.bf16.gmra.mrb[0].mxu0 %v589
      %v719 = vpop.f32.mrb[0].mxu0
      %v720 = vadd.f32 0.0, %v719
      %v721 = vpop.f32.mrb[0].mxu0
      %v722 = vadd.f32 0.0, %v721
      %v723 = vpop.f32.mrb[0].mxu0
      %v724 = vadd.f32 0.0, %v723
      %v725 = vpop.f32.mrb[0].mxu0
      %v726 = vadd.f32 0.0, %v725
      %727 = vmatprep.mubr.bf16.mxu0 0
      %728 = vmatmul.mubr.bf16.gmra.mrb[0].mxu0 %v592
      %v729 = vpop.f32.mrb[0].mxu0
      %v730 = vadd.f32 0.0, %v729
      %v731 = vpop.f32.mrb[0].mxu0
      %v732 = vadd.f32 0.0, %v731
      %v733 = vpop.f32.mrb[0].mxu0
      %v734 = vadd.f32 0.0, %v733
      %v735 = vpop.f32.mrb[0].mxu0
      %v736 = vadd.f32 0.0, %v735
      %737 = vmatprep.mubr.bf16.mxu0 0
      %738 = vmatmul.mubr.bf16.gmra.mrb[0].mxu0 %v595
      %v739 = vpop.f32.mrb[0].mxu0
      %v740 = vadd.f32 0.0, %v739
      %v741 = vpop.f32.mrb[0].mxu0
      %v742 = vadd.f32 0.0, %v741
      %v743 = vpop.f32.mrb[0].mxu0
      %v744 = vadd.f32 0.0, %v743
      %v745 = vpop.f32.mrb[0].mxu0
      %v746 = vadd.f32 0.0, %v745
      %747 = vmatprep.mubr.bf16.mxu0 0
      %748 = vmatmul.mubr.bf16.gmra.mrb[0].mxu0 %v598
      %v749 = vpop.f32.mrb[0].mxu0
      %v750 = vadd.f32 0.0, %v749
      %v751 = vpop.f32.mrb[0].mxu0
      %v752 = vadd.f32 0.0, %v751
      %v753 = vpop.f32.mrb[0].mxu0
      %v754 = vadd.f32 0.0, %v753
      %v755 = vpop.f32.mrb[0].mxu0
      %v756 = vadd.f32 0.0, %v755
      %757 = vmatprep.mubr.bf16.mxu0 0
      %758 = vmatmul.mubr.bf16.gmra.mrb[0].mxu0 %v601
      %v759 = vpop.f32.mrb[0].mxu0
      %v760 = vadd.f32 0.0, %v759
      %v761 = vpop.f32.mrb[0].mxu0
      %v762 = vadd.f32 0.0, %v761
      %v763 = vpop.f32.mrb[0].mxu0
      %v764 = vadd.f32 0.0, %v763
      %v765 = vpop.f32.mrb[0].mxu0
      %v766 = vadd.f32 0.0, %v765
      %767 = vmatprep.mubr.bf16.mxu0 0
      %768 = vmatmul.mubr.bf16.gmra.mrb[0].mxu0 %v604
      %v769 = vpop.f32.mrb[0].mxu0
      %v770 = vadd.f32 0.0, %v769
      %v771 = vpop.f32.mrb[0].mxu0
      %v772 = vadd.f32 0.0, %v771
      %v773 = vpop.f32.mrb[0].mxu0
      %v774 = vadd.f32 0.0, %v773
      %v775 = vpop.f32.mrb[0].mxu0
      %v776 = vadd.f32 0.0, %v775
      %777 = vmatprep.mubr.bf16.mxu0 0
      %778 = vmatmul.mubr.bf16.gmra.mrb[0].mxu0 %v607
      %v779 = vpop.f32.mrb[0].mxu0
      %v780 = vadd.f32 0.0, %v779
      %v781 = vpop.f32.mrb[0].mxu0
      %v782 = vadd.f32 0.0, %v781
      %v783 = vpop.f32.mrb[0].mxu0
      %v784 = vadd.f32 0.0, %v783
      %v785 = vpop.f32.mrb[0].mxu0
      %v786 = vadd.f32 0.0, %v785
      %787 = vmatprep.mubr.bf16.mxu0 0
      %788 = vmatmul.mubr.bf16.gmra.mrb[0].mxu0 %v610
      %v789 = vpop.f32.mrb[0].mxu0
      %v790 = vadd.f32 0.0, %v789
      %v791 = vpop.f32.mrb[0].mxu0
      %v792 = vadd.f32 0.0, %v791
      %v793 = vpop.f32.mrb[0].mxu0
      %v794 = vadd.f32 0.0, %v793
      %v795 = vpop.f32.mrb[0].mxu0
      %v796 = vadd.f32 0.0, %v795
      %797 = vmatprep.mubr.bf16.mxu0 0
      %798 = vmatmul.mubr.bf16.gmra.mrb[0].mxu0 %v613
      %v799 = vpop.f32.mrb[0].mxu0
      %v800 = vadd.f32 0.0, %v799
      %v801 = vpop.f32.mrb[0].mxu0
      %v802 = vadd.f32 0.0, %v801
      %v803 = vpop.f32.mrb[0].mxu0
      %v804 = vadd.f32 0.0, %v803
      %v805 = vpop.f32.mrb[0].mxu0
      %v806 = vadd.f32 0.0, %v805
      %807 = vdwg.mxu0
      %v808 = vpack.c.bf16 %v654, %v650
      %v809 = vpack.c.bf16 %v656, %v652
      %v810 = vpack.c.bf16 %v664, %v660
      %v811 = vpack.c.bf16 %v666, %v662
      %v812 = vpack.c.bf16 %v674, %v670
      %v813 = vpack.c.bf16 %v676, %v672
      %v814 = vpack.c.bf16 %v684, %v680
      %v815 = vpack.c.bf16 %v686, %v682
      %v816 = vpack.c.bf16 %v694, %v690
      %v817 = vpack.c.bf16 %v696, %v692
      %v818 = vpack.c.bf16 %v704, %v700
      %v819 = vpack.c.bf16 %v706, %v702
      %v820 = vpack.c.bf16 %v714, %v710
      %v821 = vpack.c.bf16 %v716, %v712
      %v822 = vpack.c.bf16 %v724, %v720
      %v823 = vpack.c.bf16 %v726, %v722
      %v824 = vpack.c.bf16 %v734, %v730
      %v825 = vpack.c.bf16 %v736, %v732
      %v826 = vpack.c.bf16 %v744, %v740
      %v827 = vpack.c.bf16 %v746, %v742
      %v828 = vpack.c.bf16 %v754, %v750
      %v829 = vpack.c.bf16 %v756, %v752
      %v830 = vpack.c.bf16 %v764, %v760
      %v831 = vpack.c.bf16 %v766, %v762
      %v832 = vpack.c.bf16 %v774, %v770
      %v833 = vpack.c.bf16 %v776, %v772
      %v834 = vpack.c.bf16 %v784, %v780
      %v835 = vpack.c.bf16 %v786, %v782
      %v836 = vpack.c.bf16 %v794, %v790
      %v837 = vpack.c.bf16 %v796, %v792
      %v838 = vpack.c.bf16 %v804, %v800
      %v839 = vpack.c.bf16 %v806, %v802
      %v872 = vunpack.c.l.b16 %v808
      %v873 = vunpack.c.l.b16 %v809
      %v874 = vunpack.c.h.b16 %v808
      %v875 = vunpack.c.h.b16 %v809
      %v876 = vunpack.c.l.b16 %v810
      %v877 = vunpack.c.l.b16 %v811
      %v878 = vunpack.c.h.b16 %v810
      %v879 = vunpack.c.h.b16 %v811
      %v880 = vunpack.c.l.b16 %v812
      %v881 = vunpack.c.l.b16 %v813
      %v882 = vunpack.c.h.b16 %v812
      %v883 = vunpack.c.h.b16 %v813
      %v884 = vunpack.c.l.b16 %v814
      %v885 = vunpack.c.l.b16 %v815
      %v886 = vunpack.c.h.b16 %v814
      %v887 = vunpack.c.h.b16 %v815
      %v888 = vunpack.c.l.b16 %v816
      %v889 = vunpack.c.l.b16 %v817
      %v890 = vunpack.c.h.b16 %v816
      %v891 = vunpack.c.h.b16 %v817
      %v892 = vunpack.c.l.b16 %v818
      %v893 = vunpack.c.l.b16 %v819
      %v894 = vunpack.c.h.b16 %v818
      %v895 = vunpack.c.h.b16 %v819
      %v896 = vunpack.c.l.b16 %v820
      %v897 = vunpack.c.l.b16 %v821
      %v898 = vunpack.c.h.b16 %v820
      %v899 = vunpack.c.h.b16 %v821
      %v900 = vunpack.c.l.b16 %v822
      %v901 = vunpack.c.l.b16 %v823
      %v902 = vunpack.c.h.b16 %v822
      %v903 = vunpack.c.h.b16 %v823
      %v904 = vunpack.c.l.b16 %v824
      %v905 = vunpack.c.l.b16 %v825
      %v906 = vunpack.c.h.b16 %v824
      %v907 = vunpack.c.h.b16 %v825
      %v908 = vunpack.c.l.b16 %v826
      %v909 = vunpack.c.l.b16 %v827
      %v910 = vunpack.c.h.b16 %v826
      %v911 = vunpack.c.h.b16 %v827
      %v912 = vunpack.c.l.b16 %v828
      %v913 = vunpack.c.l.b16 %v829
      %v914 = vunpack.c.h.b16 %v828
      %v915 = vunpack.c.h.b16 %v829
      %v916 = vunpack.c.l.b16 %v830
      %v917 = vunpack.c.l.b16 %v831
      %v918 = vunpack.c.h.b16 %v830
      %v919 = vunpack.c.h.b16 %v831
      %v920 = vunpack.c.l.b16 %v832
      %v921 = vunpack.c.l.b16 %v833
      %v922 = vunpack.c.h.b16 %v832
      %v923 = vunpack.c.h.b16 %v833
      %v924 = vunpack.c.l.b16 %v834
      %v925 = vunpack.c.l.b16 %v835
      %v926 = vunpack.c.h.b16 %v834
      %v927 = vunpack.c.h.b16 %v835
      %v928 = vunpack.c.l.b16 %v836
      %v929 = vunpack.c.l.b16 %v837
      %v930 = vunpack.c.h.b16 %v836
      %v931 = vunpack.c.h.b16 %v837
      %v932 = vunpack.c.l.b16 %v838
      %v933 = vunpack.c.l.b16 %v839
      %v934 = vunpack.c.h.b16 %v838
      %v935 = vunpack.c.h.b16 %v839
      %v936 = vpack.c.b16 %v873, %v872
      %v937 = vpack.c.b16 %v875, %v874
      %v938 = vpack.c.b16 %v877, %v876
      %v939 = vpack.c.b16 %v879, %v878
      %v940 = vpack.c.b16 %v881, %v880
      %v941 = vpack.c.b16 %v883, %v882
      %v942 = vpack.c.b16 %v885, %v884
      %v943 = vpack.c.b16 %v887, %v886
      %v944 = vpack.c.b16 %v889, %v888
      %v945 = vpack.c.b16 %v891, %v890
      %v946 = vpack.c.b16 %v893, %v892
      %v947 = vpack.c.b16 %v895, %v894
      %v948 = vpack.c.b16 %v897, %v896
      %v949 = vpack.c.b16 %v899, %v898
      %v950 = vpack.c.b16 %v901, %v900
      %v951 = vpack.c.b16 %v903, %v902
      %v952 = vpack.c.b16 %v905, %v904
      %v953 = vpack.c.b16 %v907, %v906
      %v954 = vpack.c.b16 %v909, %v908
      %v955 = vpack.c.b16 %v911, %v910
      %v956 = vpack.c.b16 %v913, %v912
      %v957 = vpack.c.b16 %v915, %v914
      %v958 = vpack.c.b16 %v917, %v916
      %v959 = vpack.c.b16 %v919, %v918
      %v960 = vpack.c.b16 %v921, %v920
      %v961 = vpack.c.b16 %v923, %v922
      %v962 = vpack.c.b16 %v925, %v924
      %v963 = vpack.c.b16 %v927, %v926
      %v964 = vpack.c.b16 %v929, %v928
      %v965 = vpack.c.b16 %v931, %v930
      %v966 = vpack.c.b16 %v933, %v932
      %v967 = vpack.c.b16 %v935, %v934
      %1000 = vst [vmem:[%s270] sm:$0xff] %v936
      %1001 = vst [vmem:[%s270 + $0x8] sm:$0xff] %v937
      %1002 = vst [vmem:[%s270 + $0x10] sm:$0xff] %v938
      %1003 = vst [vmem:[%s270 + $0x18] sm:$0xff] %v939
      %1004 = vst [vmem:[%s270 + $0x20] sm:$0xff] %v940
      %1005 = vst [vmem:[%s270 + $0x28] sm:$0xff] %v941
      %1006 = vst [vmem:[%s270 + $0x30] sm:$0xff] %v942
      %1007 = vst [vmem:[%s270 + $0x38] sm:$0xff] %v943
      %1008 = vst [vmem:[%s270 + $0x40] sm:$0xff] %v944
      %1009 = vst [vmem:[%s270 + $0x48] sm:$0xff] %v945
      %1010 = vst [vmem:[%s270 + $0x50] sm:$0xff] %v946
      %1011 = vst [vmem:[%s270 + $0x58] sm:$0xff] %v947
      %1012 = vst [vmem:[%s270 + $0x60] sm:$0xff] %v948
      %1013 = vst [vmem:[%s270 + $0x68] sm:$0xff] %v949
      %1014 = vst [vmem:[%s270 + $0x70] sm:$0xff] %v950
      %1015 = vst [vmem:[%s270 + $0x78] sm:$0xff] %v951
      %1016 = vst [vmem:[%s270 + $0x80] sm:$0xff] %v952
      %1017 = vst [vmem:[%s270 + $0x88] sm:$0xff] %v953
      %1018 = vst [vmem:[%s270 + $0x90] sm:$0xff] %v954
      %1019 = vst [vmem:[%s270 + $0x98] sm:$0xff] %v955
      %1020 = vst [vmem:[%s270 + $0xa0] sm:$0xff] %v956
      %1021 = vst [vmem:[%s270 + $0xa8] sm:$0xff] %v957
      %1022 = vst [vmem:[%s270 + $0xb0] sm:$0xff] %v958
      %1023 = vst [vmem:[%s270 + $0xb8] sm:$0xff] %v959
      %1024 = vst [vmem:[%s270 + $0xc0] sm:$0xff] %v960
      %1025 = vst [vmem:[%s270 + $0xc8] sm:$0xff] %v961
      %1026 = vst [vmem:[%s270 + $0xd0] sm:$0xff] %v962
      %1027 = vst [vmem:[%s270 + $0xd8] sm:$0xff] %v963
      %1028 = vst [vmem:[%s270 + $0xe0] sm:$0xff] %v964
      %1029 = vst [vmem:[%s270 + $0xe8] sm:$0xff] %v965
      %1030 = vst [vmem:[%s270 + $0xf0] sm:$0xff] %v966
      %1031 = vst [vmem:[%s270 + $0xf8] sm:$0xff] %v967
      %p1032 = scmp.eq.s32.totalorder %s22, 0
      // Predicated region
      $region37: #{bottleneck_ibn_forward.6} parent=35 // pred_check
        %p1033 = pneg %p1032
      $region38: #{bottleneck_ibn_forward.6} parent=35 // pred_check_branch
        %1035 = sbr.rel (%p1033) target = $region40
      $region39: #{bottleneck_ibn_forward.6} parent=35 // pred_region
        %vm1036 = vcmask 15360
        %1037 = vst.msk [vmem:[%s276] sm:$0xff] %vm1036, 0.0
        %1038 = vst.msk [vmem:[%s276 + $0x8] sm:$0xff] %vm1036, 0.0
        %1039 = vst.msk [vmem:[%s276 + $0x10] sm:$0xff] %vm1036, 0.0
        %1040 = vst.msk [vmem:[%s276 + $0x18] sm:$0xff] %vm1036, 0.0
        %1041 = vst.msk [vmem:[%s276 + $0x20] sm:$0xff] %vm1036, 0.0
        %1042 = vst.msk [vmem:[%s276 + $0x28] sm:$0xff] %vm1036, 0.0
        %1043 = vst.msk [vmem:[%s276 + $0x30] sm:$0xff] %vm1036, 0.0
        %1044 = vst.msk [vmem:[%s276 + $0x38] sm:$0xff] %vm1036, 0.0
        %1045 = vst.msk [vmem:[%s276 + $0x40] sm:$0xff] %vm1036, 0.0
        %1046 = vst.msk [vmem:[%s276 + $0x48] sm:$0xff] %vm1036, 0.0
        %1047 = vst.msk [vmem:[%s276 + $0x50] sm:$0xff] %vm1036, 0.0
        %1048 = vst.msk [vmem:[%s276 + $0x58] sm:$0xff] %vm1036, 0.0
        %1049 = vst.msk [vmem:[%s276 + $0x60] sm:$0xff] %vm1036, 0.0
        %1050 = vst.msk [vmem:[%s276 + $0x68] sm:$0xff] %vm1036, 0.0
        %1051 = vst.msk [vmem:[%s276 + $0x70] sm:$0xff] %vm1036, 0.0
        %1052 = vst.msk [vmem:[%s276 + $0x78] sm:$0xff] %vm1036, 0.0
        %1053 = vst.msk [vmem:[%s276 + $0x80] sm:$0xff] %vm1036, 0.0
        %1054 = vst.msk [vmem:[%s276 + $0x88] sm:$0xff] %vm1036, 0.0
        %1055 = vst.msk [vmem:[%s276 + $0x90] sm:$0xff] %vm1036, 0.0
        %1056 = vst.msk [vmem:[%s276 + $0x98] sm:$0xff] %vm1036, 0.0
        %1057 = vst.msk [vmem:[%s276 + $0xa0] sm:$0xff] %vm1036, 0.0
        %1058 = vst.msk [vmem:[%s276 + $0xa8] sm:$0xff] %vm1036, 0.0
        %1059 = vst.msk [vmem:[%s276 + $0xb0] sm:$0xff] %vm1036, 0.0
        %1060 = vst.msk [vmem:[%s276 + $0xb8] sm:$0xff] %vm1036, 0.0
        %1061 = vst.msk [vmem:[%s276 + $0xc0] sm:$0xff] %vm1036, 0.0
        %1062 = vst.msk [vmem:[%s276 + $0xc8] sm:$0xff] %vm1036, 0.0
        %1063 = vst.msk [vmem:[%s276 + $0xd0] sm:$0xff] %vm1036, 0.0
        %1064 = vst.msk [vmem:[%s276 + $0xd8] sm:$0xff] %vm1036, 0.0
        %1065 = vst.msk [vmem:[%s276 + $0xe0] sm:$0xff] %vm1036, 0.0
        %1066 = vst.msk [vmem:[%s276 + $0xe8] sm:$0xff] %vm1036, 0.0
        %1067 = vst.msk [vmem:[%s276 + $0xf0] sm:$0xff] %vm1036, 0.0
        %1068 = vst.msk [vmem:[%s276 + $0xf8] sm:$0xff] %vm1036, 0.0
      $region40: #{bottleneck_ibn_forward.6} parent=35 // pred_fallthru
        _
      %v1069 = vunpack.c.l.bf16 %v808
      %v1070 = vunpack.c.l.bf16 %v809
      %v1071 = vunpack.c.h.bf16 %v808
      %v1072 = vunpack.c.h.bf16 %v809
      %v1073 = vunpack.c.l.bf16 %v810
      %v1074 = vunpack.c.l.bf16 %v811
      %v1075 = vunpack.c.h.bf16 %v810
      %v1076 = vunpack.c.h.bf16 %v811
      %v1077 = vunpack.c.l.bf16 %v812
      %v1078 = vunpack.c.l.bf16 %v813
      %v1079 = vunpack.c.h.bf16 %v812
      %v1080 = vunpack.c.h.bf16 %v813
      %v1081 = vunpack.c.l.bf16 %v814
      %v1082 = vunpack.c.l.bf16 %v815
      %v1083 = vunpack.c.h.bf16 %v814
      %v1084 = vunpack.c.h.bf16 %v815
      %v1085 = vunpack.c.l.bf16 %v816
      %v1086 = vunpack.c.l.bf16 %v817
      %v1087 = vunpack.c.h.bf16 %v816
      %v1088 = vunpack.c.h.bf16 %v817
      %v1089 = vunpack.c.l.bf16 %v818
      %v1090 = vunpack.c.l.bf16 %v819
      %v1091 = vunpack.c.h.bf16 %v818
      %v1092 = vunpack.c.h.bf16 %v819
      %v1093 = vunpack.c.l.bf16 %v820
      %v1094 = vunpack.c.l.bf16 %v821
      %v1095 = vunpack.c.h.bf16 %v820
      %v1096 = vunpack.c.h.bf16 %v821
      %v1097 = vunpack.c.l.bf16 %v822
      %v1098 = vunpack.c.l.bf16 %v823
      %v1099 = vunpack.c.h.bf16 %v822
      %v1100 = vunpack.c.h.bf16 %v823
      %v1101 = vunpack.c.l.bf16 %v824
      %v1102 = vunpack.c.l.bf16 %v825
      %v1103 = vunpack.c.h.bf16 %v824
      %v1104 = vunpack.c.h.bf16 %v825
      %v1105 = vunpack.c.l.bf16 %v826
      %v1106 = vunpack.c.l.bf16 %v827
      %v1107 = vunpack.c.h.bf16 %v826
      %v1108 = vunpack.c.h.bf16 %v827
      %v1109 = vunpack.c.l.bf16 %v828
      %v1110 = vunpack.c.l.bf16 %v829
      %v1111 = vunpack.c.h.bf16 %v828
      %v1112 = vunpack.c.h.bf16 %v829
      %v1113 = vunpack.c.l.bf16 %v830
      %v1114 = vunpack.c.l.bf16 %v831
      %v1115 = vunpack.c.h.bf16 %v830
      %v1116 = vunpack.c.h.bf16 %v831
      %v1117 = vunpack.c.l.bf16 %v832
      %v1118 = vunpack.c.l.bf16 %v833
      %v1119 = vunpack.c.h.bf16 %v832
      %v1120 = vunpack.c.h.bf16 %v833
      %v1121 = vunpack.c.l.bf16 %v834
      %v1122 = vunpack.c.l.bf16 %v835
      %v1123 = vunpack.c.h.bf16 %v834
      %v1124 = vunpack.c.h.bf16 %v835
      %v1125 = vunpack.c.l.bf16 %v836
      %v1126 = vunpack.c.l.bf16 %v837
      %v1127 = vunpack.c.h.bf16 %v836
      %v1128 = vunpack.c.h.bf16 %v837
      %v1129 = vunpack.c.l.bf16 %v838
      %v1130 = vunpack.c.l.bf16 %v839
      %v1131 = vunpack.c.h.bf16 %v838
      %v1132 = vunpack.c.h.bf16 %v839
      %v1133 = vld [vmem:[%s276] sm:$0xff]
      %v1134 = vld [vmem:[%s276 + $0x8] sm:$0xff]
      %v1135 = vld [vmem:[%s276 + $0x10] sm:$0xff]
      %v1136 = vld [vmem:[%s276 + $0x18] sm:$0xff]
      %v1137 = vld [vmem:[%s276 + $0x20] sm:$0xff]
      %v1138 = vld [vmem:[%s276 + $0x28] sm:$0xff]
      %v1139 = vld [vmem:[%s276 + $0x30] sm:$0xff]
      %v1140 = vld [vmem:[%s276 + $0x38] sm:$0xff]
      %v1141 = vld [vmem:[%s276 + $0x40] sm:$0xff]
      %v1142 = vld [vmem:[%s276 + $0x48] sm:$0xff]
      %v1143 = vld [vmem:[%s276 + $0x50] sm:$0xff]
      %v1144 = vld [vmem:[%s276 + $0x58] sm:$0xff]
      %v1145 = vld [vmem:[%s276 + $0x60] sm:$0xff]
      %v1146 = vld [vmem:[%s276 + $0x68] sm:$0xff]
      %v1147 = vld [vmem:[%s276 + $0x70] sm:$0xff]
      %v1148 = vld [vmem:[%s276 + $0x78] sm:$0xff]
      %v1149 = vld [vmem:[%s276 + $0x80] sm:$0xff]
      %v1150 = vld [vmem:[%s276 + $0x88] sm:$0xff]
      %v1151 = vld [vmem:[%s276 + $0x90] sm:$0xff]
      %v1152 = vld [vmem:[%s276 + $0x98] sm:$0xff]
      %v1153 = vld [vmem:[%s276 + $0xa0] sm:$0xff]
      %v1154 = vld [vmem:[%s276 + $0xa8] sm:$0xff]
      %v1155 = vld [vmem:[%s276 + $0xb0] sm:$0xff]
      %v1156 = vld [vmem:[%s276 + $0xb8] sm:$0xff]
      %v1157 = vld [vmem:[%s276 + $0xc0] sm:$0xff]
      %v1158 = vld [vmem:[%s276 + $0xc8] sm:$0xff]
      %v1159 = vld [vmem:[%s276 + $0xd0] sm:$0xff]
      %v1160 = vld [vmem:[%s276 + $0xd8] sm:$0xff]
      %v1161 = vld [vmem:[%s276 + $0xe0] sm:$0xff]
      %v1162 = vld [vmem:[%s276 + $0xe8] sm:$0xff]
      %v1163 = vld [vmem:[%s276 + $0xf0] sm:$0xff]
      %v1164 = vld [vmem:[%s276 + $0xf8] sm:$0xff]
      %v1165 = vadd.f32 %v1069, %v1070
      %1166 = vadd.xlane.f32.xlu0 %v1165
      %v1167 = vpop.xlane.xlu0 %1166
      %v1168 = vadd.f32 %v1071, %v1072
      %1169 = vadd.xlane.f32.xlu0 %v1168
      %v1170 = vpop.xlane.xlu0 %1169
      %v1171 = vadd.f32 %v1073, %v1074
      %1172 = vadd.xlane.f32.xlu0 %v1171
      %v1173 = vpop.xlane.xlu0 %1172
      %v1174 = vadd.f32 %v1075, %v1076
      %1175 = vadd.xlane.f32.xlu0 %v1174
      %v1176 = vpop.xlane.xlu0 %1175
      %v1177 = vadd.f32 %v1077, %v1078
      %1178 = vadd.xlane.f32.xlu0 %v1177
      %v1179 = vpop.xlane.xlu0 %1178
      %v1180 = vadd.f32 %v1079, %v1080
      %1181 = vadd.xlane.f32.xlu0 %v1180
      %v1182 = vpop.xlane.xlu0 %1181
      %v1183 = vadd.f32 %v1081, %v1082
      %1184 = vadd.xlane.f32.xlu0 %v1183
      %v1185 = vpop.xlane.xlu0 %1184
      %v1186 = vadd.f32 %v1083, %v1084
      %1187 = vadd.xlane.f32.xlu0 %v1186
      %v1188 = vpop.xlane.xlu0 %1187
      %v1189 = vadd.f32 %v1085, %v1086
      %1190 = vadd.xlane.f32.xlu0 %v1189
      %v1191 = vpop.xlane.xlu0 %1190
      %v1192 = vadd.f32 %v1087, %v1088
      %1193 = vadd.xlane.f32.xlu0 %v1192
      %v1194 = vpop.xlane.xlu0 %1193
      %v1195 = vadd.f32 %v1089, %v1090
      %1196 = vadd.xlane.f32.xlu0 %v1195
      %v1197 = vpop.xlane.xlu0 %1196
      %v1198 = vadd.f32 %v1091, %v1092
      %1199 = vadd.xlane.f32.xlu0 %v1198
      %v1200 = vpop.xlane.xlu0 %1199
      %v1201 = vadd.f32 %v1093, %v1094
      %1202 = vadd.xlane.f32.xlu0 %v1201
      %v1203 = vpop.xlane.xlu0 %1202
      %v1204 = vadd.f32 %v1095, %v1096
      %1205 = vadd.xlane.f32.xlu0 %v1204
      %v1206 = vpop.xlane.xlu0 %1205
      %v1207 = vadd.f32 %v1097, %v1098
      %1208 = vadd.xlane.f32.xlu0 %v1207
      %v1209 = vpop.xlane.xlu0 %1208
      %v1210 = vadd.f32 %v1099, %v1100
      %1211 = vadd.xlane.f32.xlu0 %v1210
      %v1212 = vpop.xlane.xlu0 %1211
      %v1213 = vadd.f32 %v1101, %v1102
      %1214 = vadd.xlane.f32.xlu0 %v1213
      %v1215 = vpop.xlane.xlu0 %1214
      %v1216 = vadd.f32 %v1103, %v1104
      %1217 = vadd.xlane.f32.xlu0 %v1216
      %v1218 = vpop.xlane.xlu0 %1217
      %v1219 = vadd.f32 %v1105, %v1106
      %1220 = vadd.xlane.f32.xlu0 %v1219
      %v1221 = vpop.xlane.xlu0 %1220
      %v1222 = vadd.f32 %v1107, %v1108
      %1223 = vadd.xlane.f32.xlu0 %v1222
      %v1224 = vpop.xlane.xlu0 %1223
      %v1225 = vadd.f32 %v1109, %v1110
      %1226 = vadd.xlane.f32.xlu0 %v1225
      %v1227 = vpop.xlane.xlu0 %1226
      %v1228 = vadd.f32 %v1111, %v1112
      %1229 = vadd.xlane.f32.xlu0 %v1228
      %v1230 = vpop.xlane.xlu0 %1229
      %v1231 = vadd.f32 %v1113, %v1114
      %1232 = vadd.xlane.f32.xlu0 %v1231
      %v1233 = vpop.xlane.xlu0 %1232
      %v1234 = vadd.f32 %v1115, %v1116
      %1235 = vadd.xlane.f32.xlu0 %v1234
      %v1236 = vpop.xlane.xlu0 %1235
      %v1237 = vadd.f32 %v1117, %v1118
      %1238 = vadd.xlane.f32.xlu0 %v1237
      %v1239 = vpop.xlane.xlu0 %1238
      %v1240 = vadd.f32 %v1119, %v1120
      %1241 = vadd.xlane.f32.xlu0 %v1240
      %v1242 = vpop.xlane.xlu0 %1241
      %v1243 = vadd.f32 %v1121, %v1122
      %1244 = vadd.xlane.f32.xlu0 %v1243
      %v1245 = vpop.xlane.xlu0 %1244
      %v1246 = vadd.f32 %v1123, %v1124
      %1247 = vadd.xlane.f32.xlu0 %v1246
      %v1248 = vpop.xlane.xlu0 %1247
      %v1249 = vadd.f32 %v1125, %v1126
      %1250 = vadd.xlane.f32.xlu0 %v1249
      %v1251 = vpop.xlane.xlu0 %1250
      %v1252 = vadd.f32 %v1127, %v1128
      %1253 = vadd.xlane.f32.xlu0 %v1252
      %v1254 = vpop.xlane.xlu0 %1253
      %v1255 = vadd.f32 %v1129, %v1130
      %1256 = vadd.xlane.f32.xlu0 %v1255
      %v1257 = vpop.xlane.xlu0 %1256
      %v1258 = vadd.f32 %v1131, %v1132
      %1259 = vadd.xlane.f32.xlu0 %v1258
      %v1260 = vpop.xlane.xlu0 %1259
      %v1261 = vadd.f32 %v1133, %v1167
      %v1262 = vadd.f32 %v1134, %v1170
      %v1263 = vadd.f32 %v1135, %v1173
      %v1264 = vadd.f32 %v1136, %v1176
      %v1265 = vadd.f32 %v1137, %v1179
      %v1266 = vadd.f32 %v1138, %v1182
      %v1267 = vadd.f32 %v1139, %v1185
      %v1268 = vadd.f32 %v1140, %v1188
      %v1269 = vadd.f32 %v1141, %v1191
      %v1270 = vadd.f32 %v1142, %v1194
      %v1271 = vadd.f32 %v1143, %v1197
      %v1272 = vadd.f32 %v1144, %v1200
      %v1273 = vadd.f32 %v1145, %v1203
      %v1274 = vadd.f32 %v1146, %v1206
      %v1275 = vadd.f32 %v1147, %v1209
      %v1276 = vadd.f32 %v1148, %v1212
      %v1277 = vadd.f32 %v1149, %v1215
      %v1278 = vadd.f32 %v1150, %v1218
      %v1279 = vadd.f32 %v1151, %v1221
      %v1280 = vadd.f32 %v1152, %v1224
      %v1281 = vadd.f32 %v1153, %v1227
      %v1282 = vadd.f32 %v1154, %v1230
      %v1283 = vadd.f32 %v1155, %v1233
      %v1284 = vadd.f32 %v1156, %v1236
      %v1285 = vadd.f32 %v1157, %v1239
      %v1286 = vadd.f32 %v1158, %v1242
      %v1287 = vadd.f32 %v1159, %v1245
      %v1288 = vadd.f32 %v1160, %v1248
      %v1289 = vadd.f32 %v1161, %v1251
      %v1290 = vadd.f32 %v1162, %v1254
      %v1291 = vadd.f32 %v1163, %v1257
      %v1292 = vadd.f32 %v1164, %v1260
      %vm1293 = vcmask 7168
      %1294 = vst.msk [vmem:[%s276] sm:$0xff] %vm1293, %v1261
      %1295 = vst.msk [vmem:[%s276 + $0x8] sm:$0xff] %vm1293, %v1262
      %1296 = vst.msk [vmem:[%s276 + $0x10] sm:$0xff] %vm1293, %v1263
      %1297 = vst.msk [vmem:[%s276 + $0x18] sm:$0xff] %vm1293, %v1264
      %1298 = vst.msk [vmem:[%s276 + $0x20] sm:$0xff] %vm1293, %v1265
      %1299 = vst.msk [vmem:[%s276 + $0x28] sm:$0xff] %vm1293, %v1266
      %1300 = vst.msk [vmem:[%s276 + $0x30] sm:$0xff] %vm1293, %v1267
      %1301 = vst.msk [vmem:[%s276 + $0x38] sm:$0xff] %vm1293, %v1268
      %1302 = vst.msk [vmem:[%s276 + $0x40] sm:$0xff] %vm1293, %v1269
      %1303 = vst.msk [vmem:[%s276 + $0x48] sm:$0xff] %vm1293, %v1270
      %1304 = vst.msk [vmem:[%s276 + $0x50] sm:$0xff] %vm1293, %v1271
      %1305 = vst.msk [vmem:[%s276 + $0x58] sm:$0xff] %vm1293, %v1272
      %1306 = vst.msk [vmem:[%s276 + $0x60] sm:$0xff] %vm1293, %v1273
      %1307 = vst.msk [vmem:[%s276 + $0x68] sm:$0xff] %vm1293, %v1274
      %1308 = vst.msk [vmem:[%s276 + $0x70] sm:$0xff] %vm1293, %v1275
      %1309 = vst.msk [vmem:[%s276 + $0x78] sm:$0xff] %vm1293, %v1276
      %1310 = vst.msk [vmem:[%s276 + $0x80] sm:$0xff] %vm1293, %v1277
      %1311 = vst.msk [vmem:[%s276 + $0x88] sm:$0xff] %vm1293, %v1278
      %1312 = vst.msk [vmem:[%s276 + $0x90] sm:$0xff] %vm1293, %v1279
      %1313 = vst.msk [vmem:[%s276 + $0x98] sm:$0xff] %vm1293, %v1280
      %1314 = vst.msk [vmem:[%s276 + $0xa0] sm:$0xff] %vm1293, %v1281
      %1315 = vst.msk [vmem:[%s276 + $0xa8] sm:$0xff] %vm1293, %v1282
      %1316 = vst.msk [vmem:[%s276 + $0xb0] sm:$0xff] %vm1293, %v1283
      %1317 = vst.msk [vmem:[%s276 + $0xb8] sm:$0xff] %vm1293, %v1284
      %1318 = vst.msk [vmem:[%s276 + $0xc0] sm:$0xff] %vm1293, %v1285
      %1319 = vst.msk [vmem:[%s276 + $0xc8] sm:$0xff] %vm1293, %v1286
      %1320 = vst.msk [vmem:[%s276 + $0xd0] sm:$0xff] %vm1293, %v1287
      %1321 = vst.msk [vmem:[%s276 + $0xd8] sm:$0xff] %vm1293, %v1288
      %1322 = vst.msk [vmem:[%s276 + $0xe0] sm:$0xff] %vm1293, %v1289
      %1323 = vst.msk [vmem:[%s276 + $0xe8] sm:$0xff] %vm1293, %v1290
      %1324 = vst.msk [vmem:[%s276 + $0xf0] sm:$0xff] %vm1293, %v1291
      %1325 = vst.msk [vmem:[%s276 + $0xf8] sm:$0xff] %vm1293, %v1292
      %v1326 = vld [vmem:[%s276] sm:$0xff]
      %v1327 = vld [vmem:[%s276 + $0x8] sm:$0xff]
      %v1328 = vld [vmem:[%s276 + $0x10] sm:$0xff]
      %v1329 = vld [vmem:[%s276 + $0x18] sm:$0xff]
      %v1330 = vld [vmem:[%s276 + $0x20] sm:$0xff]
      %v1331 = vld [vmem:[%s276 + $0x28] sm:$0xff]
      %v1332 = vld [vmem:[%s276 + $0x30] sm:$0xff]
      %v1333 = vld [vmem:[%s276 + $0x38] sm:$0xff]
      %v1334 = vld [vmem:[%s276 + $0x40] sm:$0xff]
      %v1335 = vld [vmem:[%s276 + $0x48] sm:$0xff]
      %v1336 = vld [vmem:[%s276 + $0x50] sm:$0xff]
      %v1337 = vld [vmem:[%s276 + $0x58] sm:$0xff]
      %v1338 = vld [vmem:[%s276 + $0x60] sm:$0xff]
      %v1339 = vld [vmem:[%s276 + $0x68] sm:$0xff]
      %v1340 = vld [vmem:[%s276 + $0x70] sm:$0xff]
      %v1341 = vld [vmem:[%s276 + $0x78] sm:$0xff]
      %v1342 = vld [vmem:[%s276 + $0x80] sm:$0xff]
      %v1343 = vld [vmem:[%s276 + $0x88] sm:$0xff]
      %v1344 = vld [vmem:[%s276 + $0x90] sm:$0xff]
      %v1345 = vld [vmem:[%s276 + $0x98] sm:$0xff]
      %v1346 = vld [vmem:[%s276 + $0xa0] sm:$0xff]
      %v1347 = vld [vmem:[%s276 + $0xa8] sm:$0xff]
      %v1348 = vld [vmem:[%s276 + $0xb0] sm:$0xff]
      %v1349 = vld [vmem:[%s276 + $0xb8] sm:$0xff]
      %v1350 = vld [vmem:[%s276 + $0xc0] sm:$0xff]
      %v1351 = vld [vmem:[%s276 + $0xc8] sm:$0xff]
      %v1352 = vld [vmem:[%s276 + $0xd0] sm:$0xff]
      %v1353 = vld [vmem:[%s276 + $0xd8] sm:$0xff]
      %v1354 = vld [vmem:[%s276 + $0xe0] sm:$0xff]
      %v1355 = vld [vmem:[%s276 + $0xe8] sm:$0xff]
      %v1356 = vld [vmem:[%s276 + $0xf0] sm:$0xff]
      %v1357 = vld [vmem:[%s276 + $0xf8] sm:$0xff]
      %v1358 = vmul.f32 %v1069, %v1069
      %v1359 = vmul.f32 %v1070, %v1070
      %v1360 = vmul.f32 %v1071, %v1071
      %v1361 = vmul.f32 %v1072, %v1072
      %v1362 = vmul.f32 %v1073, %v1073
      %v1363 = vmul.f32 %v1074, %v1074
      %v1364 = vmul.f32 %v1075, %v1075
      %v1365 = vmul.f32 %v1076, %v1076
      %v1366 = vmul.f32 %v1077, %v1077
      %v1367 = vmul.f32 %v1078, %v1078
      %v1368 = vmul.f32 %v1079, %v1079
      %v1369 = vmul.f32 %v1080, %v1080
      %v1370 = vmul.f32 %v1081, %v1081
      %v1371 = vmul.f32 %v1082, %v1082
      %v1372 = vmul.f32 %v1083, %v1083
      %v1373 = vmul.f32 %v1084, %v1084
      %v1374 = vmul.f32 %v1085, %v1085
      %v1375 = vmul.f32 %v1086, %v1086
      %v1376 = vmul.f32 %v1087, %v1087
      %v1377 = vmul.f32 %v1088, %v1088
      %v1378 = vmul.f32 %v1089, %v1089
      %v1379 = vmul.f32 %v1090, %v1090
      %v1380 = vmul.f32 %v1091, %v1091
      %v1381 = vmul.f32 %v1092, %v1092
      %v1382 = vmul.f32 %v1093, %v1093
      %v1383 = vmul.f32 %v1094, %v1094
      %v1384 = vmul.f32 %v1095, %v1095
      %v1385 = vmul.f32 %v1096, %v1096
      %v1386 = vmul.f32 %v1097, %v1097
      %v1387 = vmul.f32 %v1098, %v1098
      %v1388 = vmul.f32 %v1099, %v1099
      %v1389 = vmul.f32 %v1100, %v1100
      %v1390 = vmul.f32 %v1101, %v1101
      %v1391 = vmul.f32 %v1102, %v1102
      %v1392 = vmul.f32 %v1103, %v1103
      %v1393 = vmul.f32 %v1104, %v1104
      %v1394 = vmul.f32 %v1105, %v1105
      %v1395 = vmul.f32 %v1106, %v1106
      %v1396 = vmul.f32 %v1107, %v1107
      %v1397 = vmul.f32 %v1108, %v1108
      %v1398 = vmul.f32 %v1109, %v1109
      %v1399 = vmul.f32 %v1110, %v1110
      %v1400 = vmul.f32 %v1111, %v1111
      %v1401 = vmul.f32 %v1112, %v1112
      %v1402 = vmul.f32 %v1113, %v1113
      %v1403 = vmul.f32 %v1114, %v1114
      %v1404 = vmul.f32 %v1115, %v1115
      %v1405 = vmul.f32 %v1116, %v1116
      %v1406 = vmul.f32 %v1117, %v1117
      %v1407 = vmul.f32 %v1118, %v1118
      %v1408 = vmul.f32 %v1119, %v1119
      %v1409 = vmul.f32 %v1120, %v1120
      %v1410 = vmul.f32 %v1121, %v1121
      %v1411 = vmul.f32 %v1122, %v1122
      %v1412 = vmul.f32 %v1123, %v1123
      %v1413 = vmul.f32 %v1124, %v1124
      %v1414 = vmul.f32 %v1125, %v1125
      %v1415 = vmul.f32 %v1126, %v1126
      %v1416 = vmul.f32 %v1127, %v1127
      %v1417 = vmul.f32 %v1128, %v1128
      %v1418 = vmul.f32 %v1129, %v1129
      %v1419 = vmul.f32 %v1130, %v1130
      %v1420 = vmul.f32 %v1131, %v1131
      %v1421 = vmul.f32 %v1132, %v1132
      %v1422 = vadd.f32 %v1358, %v1359
      %1423 = vadd.xlane.f32.xlu0 %v1422
      %v1424 = vpop.xlane.xlu0 %1423
      %v1425 = vadd.f32 %v1360, %v1361
      %1426 = vadd.xlane.f32.xlu0 %v1425
      %v1427 = vpop.xlane.xlu0 %1426
      %v1428 = vadd.f32 %v1362, %v1363
      %1429 = vadd.xlane.f32.xlu0 %v1428
      %v1430 = vpop.xlane.xlu0 %1429
      %v1431 = vadd.f32 %v1364, %v1365
      %1432 = vadd.xlane.f32.xlu0 %v1431
      %v1433 = vpop.xlane.xlu0 %1432
      %v1434 = vadd.f32 %v1366, %v1367
      %1435 = vadd.xlane.f32.xlu0 %v1434
      %v1436 = vpop.xlane.xlu0 %1435
      %v1437 = vadd.f32 %v1368, %v1369
      %1438 = vadd.xlane.f32.xlu0 %v1437
      %v1439 = vpop.xlane.xlu0 %1438
      %v1440 = vadd.f32 %v1370, %v1371
      %1441 = vadd.xlane.f32.xlu0 %v1440
      %v1442 = vpop.xlane.xlu0 %1441
      %v1443 = vadd.f32 %v1372, %v1373
      %1444 = vadd.xlane.f32.xlu0 %v1443
      %v1445 = vpop.xlane.xlu0 %1444
      %v1446 = vadd.f32 %v1374, %v1375
      %1447 = vadd.xlane.f32.xlu0 %v1446
      %v1448 = vpop.xlane.xlu0 %1447
      %v1449 = vadd.f32 %v1376, %v1377
      %1450 = vadd.xlane.f32.xlu0 %v1449
      %v1451 = vpop.xlane.xlu0 %1450
      %v1452 = vadd.f32 %v1378, %v1379
      %1453 = vadd.xlane.f32.xlu0 %v1452
      %v1454 = vpop.xlane.xlu0 %1453
      %v1455 = vadd.f32 %v1380, %v1381
      %1456 = vadd.xlane.f32.xlu0 %v1455
      %v1457 = vpop.xlane.xlu0 %1456
      %v1458 = vadd.f32 %v1382, %v1383
      %1459 = vadd.xlane.f32.xlu0 %v1458
      %v1460 = vpop.xlane.xlu0 %1459
      %v1461 = vadd.f32 %v1384, %v1385
      %1462 = vadd.xlane.f32.xlu0 %v1461
      %v1463 = vpop.xlane.xlu0 %1462
      %v1464 = vadd.f32 %v1386, %v1387
      %1465 = vadd.xlane.f32.xlu0 %v1464
      %v1466 = vpop.xlane.xlu0 %1465
      %v1467 = vadd.f32 %v1388, %v1389
      %1468 = vadd.xlane.f32.xlu0 %v1467
      %v1469 = vpop.xlane.xlu0 %1468
      %v1470 = vadd.f32 %v1390, %v1391
      %1471 = vadd.xlane.f32.xlu0 %v1470
      %v1472 = vpop.xlane.xlu0 %1471
      %v1473 = vadd.f32 %v1392, %v1393
      %1474 = vadd.xlane.f32.xlu0 %v1473
      %v1475 = vpop.xlane.xlu0 %1474
      %v1476 = vadd.f32 %v1394, %v1395
      %1477 = vadd.xlane.f32.xlu0 %v1476
      %v1478 = vpop.xlane.xlu0 %1477
      %v1479 = vadd.f32 %v1396, %v1397
      %1480 = vadd.xlane.f32.xlu0 %v1479
      %v1481 = vpop.xlane.xlu0 %1480
      %v1482 = vadd.f32 %v1398, %v1399
      %1483 = vadd.xlane.f32.xlu0 %v1482
      %v1484 = vpop.xlane.xlu0 %1483
      %v1485 = vadd.f32 %v1400, %v1401
      %1486 = vadd.xlane.f32.xlu0 %v1485
      %v1487 = vpop.xlane.xlu0 %1486
      %v1488 = vadd.f32 %v1402, %v1403
      %1489 = vadd.xlane.f32.xlu0 %v1488
      %v1490 = vpop.xlane.xlu0 %1489
      %v1491 = vadd.f32 %v1404, %v1405
      %1492 = vadd.xlane.f32.xlu0 %v1491
      %v1493 = vpop.xlane.xlu0 %1492
      %v1494 = vadd.f32 %v1406, %v1407
      %1495 = vadd.xlane.f32.xlu0 %v1494
      %v1496 = vpop.xlane.xlu0 %1495
      %v1497 = vadd.f32 %v1408, %v1409
      %1498 = vadd.xlane.f32.xlu0 %v1497
      %v1499 = vpop.xlane.xlu0 %1498
      %v1500 = vadd.f32 %v1410, %v1411
      %1501 = vadd.xlane.f32.xlu0 %v1500
      %v1502 = vpop.xlane.xlu0 %1501
      %v1503 = vadd.f32 %v1412, %v1413
      %1504 = vadd.xlane.f32.xlu0 %v1503
      %v1505 = vpop.xlane.xlu0 %1504
      %v1506 = vadd.f32 %v1414, %v1415
      %1507 = vadd.xlane.f32.xlu0 %v1506
      %v1508 = vpop.xlane.xlu0 %1507
      %v1509 = vadd.f32 %v1416, %v1417
      %1510 = vadd.xlane.f32.xlu0 %v1509
      %v1511 = vpop.xlane.xlu0 %1510
      %v1512 = vadd.f32 %v1418, %v1419
      %1513 = vadd.xlane.f32.xlu0 %v1512
      %v1514 = vpop.xlane.xlu0 %1513
      %v1515 = vadd.f32 %v1420, %v1421
      %1516 = vadd.xlane.f32.xlu0 %v1515
      %v1517 = vpop.xlane.xlu0 %1516
      %v1518 = vadd.f32 %v1326, %v1424
      %v1519 = vadd.f32 %v1327, %v1427
      %v1520 = vadd.f32 %v1328, %v1430
      %v1521 = vadd.f32 %v1329, %v1433
      %v1522 = vadd.f32 %v1330, %v1436
      %v1523 = vadd.f32 %v1331, %v1439
      %v1524 = vadd.f32 %v1332, %v1442
      %v1525 = vadd.f32 %v1333, %v1445
      %v1526 = vadd.f32 %v1334, %v1448
      %v1527 = vadd.f32 %v1335, %v1451
      %v1528 = vadd.f32 %v1336, %v1454
      %v1529 = vadd.f32 %v1337, %v1457
      %v1530 = vadd.f32 %v1338, %v1460
      %v1531 = vadd.f32 %v1339, %v1463
      %v1532 = vadd.f32 %v1340, %v1466
      %v1533 = vadd.f32 %v1341, %v1469
      %v1534 = vadd.f32 %v1342, %v1472
      %v1535 = vadd.f32 %v1343, %v1475
      %v1536 = vadd.f32 %v1344, %v1478
      %v1537 = vadd.f32 %v1345, %v1481
      %v1538 = vadd.f32 %v1346, %v1484
      %v1539 = vadd.f32 %v1347, %v1487
      %v1540 = vadd.f32 %v1348, %v1490
      %v1541 = vadd.f32 %v1349, %v1493
      %v1542 = vadd.f32 %v1350, %v1496
      %v1543 = vadd.f32 %v1351, %v1499
      %v1544 = vadd.f32 %v1352, %v1502
      %v1545 = vadd.f32 %v1353, %v1505
      %v1546 = vadd.f32 %v1354, %v1508
      %v1547 = vadd.f32 %v1355, %v1511
      %v1548 = vadd.f32 %v1356, %v1514
      %v1549 = vadd.f32 %v1357, %v1517
      %vm1550 = vcmask 15368
      %1551 = vst.msk [vmem:[%s276] sm:$0xff] %vm1550, %v1518
      %1552 = vst.msk [vmem:[%s276 + $0x8] sm:$0xff] %vm1550, %v1519
      %1553 = vst.msk [vmem:[%s276 + $0x10] sm:$0xff] %vm1550, %v1520
      %1554 = vst.msk [vmem:[%s276 + $0x18] sm:$0xff] %vm1550, %v1521
      %1555 = vst.msk [vmem:[%s276 + $0x20] sm:$0xff] %vm1550, %v1522
      %1556 = vst.msk [vmem:[%s276 + $0x28] sm:$0xff] %vm1550, %v1523
      %1557 = vst.msk [vmem:[%s276 + $0x30] sm:$0xff] %vm1550, %v1524
      %1558 = vst.msk [vmem:[%s276 + $0x38] sm:$0xff] %vm1550, %v1525
      %1559 = vst.msk [vmem:[%s276 + $0x40] sm:$0xff] %vm1550, %v1526
      %1560 = vst.msk [vmem:[%s276 + $0x48] sm:$0xff] %vm1550, %v1527
      %1561 = vst.msk [vmem:[%s276 + $0x50] sm:$0xff] %vm1550, %v1528
      %1562 = vst.msk [vmem:[%s276 + $0x58] sm:$0xff] %vm1550, %v1529
      %1563 = vst.msk [vmem:[%s276 + $0x60] sm:$0xff] %vm1550, %v1530
      %1564 = vst.msk [vmem:[%s276 + $0x68] sm:$0xff] %vm1550, %v1531
      %1565 = vst.msk [vmem:[%s276 + $0x70] sm:$0xff] %vm1550, %v1532
      %1566 = vst.msk [vmem:[%s276 + $0x78] sm:$0xff] %vm1550, %v1533
      %1567 = vst.msk [vmem:[%s276 + $0x80] sm:$0xff] %vm1550, %v1534
      %1568 = vst.msk [vmem:[%s276 + $0x88] sm:$0xff] %vm1550, %v1535
      %1569 = vst.msk [vmem:[%s276 + $0x90] sm:$0xff] %vm1550, %v1536
      %1570 = vst.msk [vmem:[%s276 + $0x98] sm:$0xff] %vm1550, %v1537
      %1571 = vst.msk [vmem:[%s276 + $0xa0] sm:$0xff] %vm1550, %v1538
      %1572 = vst.msk [vmem:[%s276 + $0xa8] sm:$0xff] %vm1550, %v1539
      %1573 = vst.msk [vmem:[%s276 + $0xb0] sm:$0xff] %vm1550, %v1540
      %1574 = vst.msk [vmem:[%s276 + $0xb8] sm:$0xff] %vm1550, %v1541
      %1575 = vst.msk [vmem:[%s276 + $0xc0] sm:$0xff] %vm1550, %v1542
      %1576 = vst.msk [vmem:[%s276 + $0xc8] sm:$0xff] %vm1550, %v1543
      %1577 = vst.msk [vmem:[%s276 + $0xd0] sm:$0xff] %vm1550, %v1544
      %1578 = vst.msk [vmem:[%s276 + $0xd8] sm:$0xff] %vm1550, %v1545
      %1579 = vst.msk [vmem:[%s276 + $0xe0] sm:$0xff] %vm1550, %v1546
      %1580 = vst.msk [vmem:[%s276 + $0xe8] sm:$0xff] %vm1550, %v1547
      %1581 = vst.msk [vmem:[%s276 + $0xf0] sm:$0xff] %vm1550, %v1548
      %1582 = vst.msk [vmem:[%s276 + $0xf8] sm:$0xff] %vm1550, %v1549
      %s1583 = smul.u32 2, %s22
      %p1584 = scmp.lt.s32.totalorder %s21, 1
      %s1585 = scalar_select %p1584, %s21, 1
      %p1586 = scmp.lt.s32.totalorder %s1583, 1
      %s1587 = scalar_select %p1586, %s1583, 1
      %s1588 = smul.addr %s1585, 64
      %s1589 = sadd.s32 %s1587, %s1588
      %s1590 = smul.addr %s1589, 4
      %s1591 = scalar_lea.vmem %s4, %s1590
      %p1592 = scmp.lt.s32.totalorder %s21, 1
      %s1593 = scalar_select %p1592, %s21, 1
      %s1594 = smul.addr %s1593, 32
      %s1595 = smul.addr %s1594, 8
      %s1596 = scalar_lea.vmem %s5, %s1595
      // Predicated region
      $region41: #{bottleneck_ibn_forward.6} parent=35 // pred_check
        %p1597 = pneg %p140
      $region42: #{bottleneck_ibn_forward.6} parent=35 // pred_check_branch
        %1599 = sbr.rel (%p1597) target = $region44
      $region43: #{bottleneck_ibn_forward.6} parent=35 // pred_region
        %s1600 = smul.u32 2, %s22
      $region44: #{bottleneck_ibn_forward.6} parent=35 // pred_fallthru
        _
      // Predicated region
      $region45: #{bottleneck_ibn_forward.6} parent=35 // pred_check
        %p1601 = pneg %p166
      $region46: #{bottleneck_ibn_forward.6} parent=35 // pred_check_branch
        %1603 = sbr.rel (%p1601) target = $region48
      $region47: #{bottleneck_ibn_forward.6} parent=35 // pred_region
        _
      $region48: #{bottleneck_ibn_forward.6} parent=35 // pred_fallthru
        _
    $region36: #{bottleneck_ibn_forward.6} parent=5 // pred_fallthru
      _
    %p1604 = scmp.le.s32.totalorder 2, %s12
    // Predicated region
    $region49: #{bottleneck_ibn_forward.6} parent=5 // pred_check
      %p1605 = pneg %p1604
    $region50: #{bottleneck_ibn_forward.6} parent=5 // pred_check_branch
      %1607 = sbr.rel (%p1605) target = $region52
    $region51: #{bottleneck_ibn_forward.6} parent=5 // pred_region
      %s1608 = ssub.s32 %s12, 2
      // Predicated region
      $region53: #{bottleneck_ibn_forward.6} parent=51 // pred_check
        %p1609 = pneg %p146
      $region54: #{bottleneck_ibn_forward.6} parent=51 // pred_check_branch
        %1611 = sbr.rel (%p1609) target = $region56
      $region55: #{bottleneck_ibn_forward.6} parent=51 // pred_region
        %s1612 = smul.u32 2, %s24
        %p1613 = scmp.lt.s32.totalorder %s23, 1
        %s1614 = scalar_select %p1613, %s23, 1
        %p1615 = scmp.lt.s32.totalorder %s1612, 1
        %s1616 = scalar_select %p1615, %s1612, 1
        %s1617 = smul.addr %s1614, 64
        %s1618 = sadd.s32 %s1616, %s1617
        %s1619 = smul.addr %s1618, 4
        %s1620 = scalar_lea.vmem %s4, %s1619
      $region56: #{bottleneck_ibn_forward.6} parent=51 // pred_fallthru
        _
      // Predicated region
      $region57: #{bottleneck_ibn_forward.6} parent=51 // pred_check
        %p1621 = pneg %p172
      $region58: #{bottleneck_ibn_forward.6} parent=51 // pred_check_branch
        %1623 = sbr.rel (%p1621) target = $region60
      $region59: #{bottleneck_ibn_forward.6} parent=51 // pred_region
        %p1624 = scmp.lt.s32.totalorder %s23, 1
        %s1625 = scalar_select %p1624, %s23, 1
        %s1626 = smul.addr %s1625, 32
        %s1627 = smul.addr %s1626, 8
        %s1628 = scalar_lea.vmem %s5, %s1627
      $region60: #{bottleneck_ibn_forward.6} parent=51 // pred_fallthru
        _
    $region52: #{bottleneck_ibn_forward.6} parent=5 // pred_fallthru
      _
  $region6: #{bottleneck_ibn_forward.6} parent=0 // loop_footer
    %s16 = sadd.s32 1, %s12
  $region7: #{bottleneck_ibn_forward.6} parent=0 // loop_footer_branch
    %11 = sbr.rel target = $region3
  $region8: #{bottleneck_ibn_forward.6} parent=0 // loop_exit
    _

// kernel: bottleneck_ibn_forward.7
$region0: #{bottleneck_ibn_forward.7}
  #allocation0 [shape = 'u32[]', space=smem, size = 0x4, offset = 0x4, fixed_abs, tag = 'smem constant byte address 0x4 - core index']
  #allocation1 [shape = 'u32[144,128]{1,0:T(1,128)}', space=vmem, size = 0x12000, scoped, tag = 'internal scratch']
  %s0 = inlined_call_operand.vmem [shape: bf16[2,256,256], index: 0, kind: input, shape index: {}]
  %s1 = inlined_call_operand.vmem [shape: f32[2,256,256], index: 1, kind: input, shape index: {}]
  %s2 = inlined_call_operand.vmem [shape: f32[256,1], index: 2, kind: input, shape index: {}]
  %s3 = inlined_call_operand.vmem [shape: f32[256,1], index: 3, kind: input, shape index: {}]
  %s4 = inlined_call_operand.vmem [shape: f32[2,256,256], index: 4, kind: output, shape index: {}]
  %s5 = sld [smem:[#allocation0]]
  $region49: #{bottleneck_ibn_forward.7} parent=0
    _
  %s7 = ssub.s32 1, %s5
  %s8 = scalar_select 0, %s7, %s5
  loop: start=0, step=1, limit=4
  $region2: #{bottleneck_ibn_forward.7} parent=0 // loop_pre_header
    _
  $region3: #{bottleneck_ibn_forward.7} parent=0 // loop_header
    %s10 = sphi 0, %s14
    %p11 = scmp.ge.s32.totalorder %s10, 4
    %s17 = sphi 0, %s29
    %s18 = sphi 0, %s25
    %s19 = sphi 0, %s17
    %s20 = sphi 0, %s18
    %s21 = sphi 0, %s19
    %s22 = sphi 0, %s20
    %s34 = sphi 0, %s36
    %s37 = sphi 0, %s34
    %s38 = sphi 0, %s37
    %s54 = sphi 0, %s38
    %s62 = sphi 0, %s64
    %s65 = sphi 0, %s62
    %s66 = sphi 0, %s65
    %s82 = sphi 0, %s66
    %s86 = sphi 0, %s86
    %s88 = sphi 0, %s86
    %s89 = sphi 0, %s88
    %s103 = sphi 0, %s89
    %s107 = sphi 0, %s107
    %s109 = sphi 0, %s107
    %s110 = sphi 0, %s109
    %s124 = sphi 0, %s110
    %s132 = sphi 0, %s134
    %s135 = sphi 0, %s132
    %s136 = sphi 0, %s135
    %s152 = sphi 0, %s136
  $region4: #{bottleneck_ibn_forward.7} parent=0 // loop_header_branch
    %13 = sbr.rel (%p11) target = $region8
  $region5: #{bottleneck_ibn_forward.7} parent=0 // loop_body
    %s15 = ssub.s32 %s10, 1
    %s16 = ssub.s32 %s10, 2
    %s23 = sadd.s32 1, %s18
    %p24 = scmp.ge.s32.totalorder %s23, 1
    %s25 = scalar_select %p24, 0, %s23
    %s26 = sadd.s32 1, %s17
    %s27 = scalar_select %p24, %s26, %s17
    %p28 = scmp.ge.s32.totalorder %s27, 2
    %s29 = scalar_select %p28, 0, %s27
    %s30 = ssub.s32 %s17, %s29
    %s31 = ssub.s32 %s18, %s25
    %s32 = sor.u32 %s30, %s31
    %p33 = scmp.eq.s32.totalorder %s32, 0
    %s35 = sadd.s32 %s34, 1
    %s36 = scalar_select %p33, %s34, %s35
    %p39 = pneg %p33
    %p40 = scmp.eq.s32.totalorder %s10, 1
    %p41 = por %p39, %p40
    %p42 = scmp.ne.s32.totalorder %s34, %s37
    %p43 = scmp.eq.s32.totalorder %s10, 0
    %p44 = por %p42, %p43
    %p45 = scmp.ne.s32.totalorder %s34, %s37
    %p46 = scmp.eq.s32.totalorder %s15, 1
    %p47 = por %p45, %p46
    %p48 = scmp.ne.s32.totalorder %s37, %s38
    %p49 = scmp.eq.s32.totalorder %s15, 0
    %p50 = por %p48, %p49
    %p51 = scmp.ne.s32.totalorder %s37, %s38
    %p52 = scmp.eq.s32.totalorder %s16, 1
    %p53 = por %p51, %p52
    %p55 = scmp.ne.s32.totalorder %s38, %s54
    %p56 = scmp.eq.s32.totalorder %s16, 0
    %p57 = por %p55, %p56
    %s58 = ssub.s32 %s17, %s29
    %s59 = ssub.s32 %s18, %s25
    %s60 = sor.u32 %s58, %s59
    %p61 = scmp.eq.s32.totalorder %s60, 0
    %s63 = sadd.s32 %s62, 1
    %s64 = scalar_select %p61, %s62, %s63
    %p67 = pneg %p61
    %p68 = scmp.eq.s32.totalorder %s10, 1
    %p69 = por %p67, %p68
    %p70 = scmp.ne.s32.totalorder %s62, %s65
    %p71 = scmp.eq.s32.totalorder %s10, 0
    %p72 = por %p70, %p71
    %p73 = scmp.ne.s32.totalorder %s62, %s65
    %p74 = scmp.eq.s32.totalorder %s15, 1
    %p75 = por %p73, %p74
    %p76 = scmp.ne.s32.totalorder %s65, %s66
    %p77 = scmp.eq.s32.totalorder %s15, 0
    %p78 = por %p76, %p77
    %p79 = scmp.ne.s32.totalorder %s65, %s66
    %p80 = scmp.eq.s32.totalorder %s16, 1
    %p81 = por %p79, %p80
    %p83 = scmp.ne.s32.totalorder %s66, %s82
    %p84 = scmp.eq.s32.totalorder %s16, 0
    %p85 = por %p83, %p84
    %s87 = sadd.s32 %s86, 1
    %p90 = scmp.eq.s32.totalorder %s10, 1
    %p91 = scmp.ne.s32.totalorder %s86, %s88
    %p92 = scmp.eq.s32.totalorder %s10, 0
    %p93 = por %p91, %p92
    %p94 = scmp.ne.s32.totalorder %s86, %s88
    %p95 = scmp.eq.s32.totalorder %s15, 1
    %p96 = por %p94, %p95
    %p97 = scmp.ne.s32.totalorder %s88, %s89
    %p98 = scmp.eq.s32.totalorder %s15, 0
    %p99 = por %p97, %p98
    %p100 = scmp.ne.s32.totalorder %s88, %s89
    %p101 = scmp.eq.s32.totalorder %s16, 1
    %p102 = por %p100, %p101
    %p104 = scmp.ne.s32.totalorder %s89, %s103
    %p105 = scmp.eq.s32.totalorder %s16, 0
    %p106 = por %p104, %p105
    %s108 = sadd.s32 %s107, 1
    %p111 = scmp.eq.s32.totalorder %s10, 1
    %p112 = scmp.ne.s32.totalorder %s107, %s109
    %p113 = scmp.eq.s32.totalorder %s10, 0
    %p114 = por %p112, %p113
    %p115 = scmp.ne.s32.totalorder %s107, %s109
    %p116 = scmp.eq.s32.totalorder %s15, 1
    %p117 = por %p115, %p116
    %p118 = scmp.ne.s32.totalorder %s109, %s110
    %p119 = scmp.eq.s32.totalorder %s15, 0
    %p120 = por %p118, %p119
    %p121 = scmp.ne.s32.totalorder %s109, %s110
    %p122 = scmp.eq.s32.totalorder %s16, 1
    %p123 = por %p121, %p122
    %p125 = scmp.ne.s32.totalorder %s110, %s124
    %p126 = scmp.eq.s32.totalorder %s16, 0
    %p127 = por %p125, %p126
    %s128 = ssub.s32 %s17, %s29
    %s129 = ssub.s32 %s18, %s25
    %s130 = sor.u32 %s128, %s129
    %p131 = scmp.eq.s32.totalorder %s130, 0
    %s133 = sadd.s32 %s132, 1
    %s134 = scalar_select %p131, %s132, %s133
    %p137 = pneg %p131
    %p138 = scmp.eq.s32.totalorder %s10, 1
    %p139 = por %p137, %p138
    %p140 = scmp.ne.s32.totalorder %s132, %s135
    %p141 = scmp.eq.s32.totalorder %s10, 0
    %p142 = por %p140, %p141
    %p143 = scmp.ne.s32.totalorder %s132, %s135
    %p144 = scmp.eq.s32.totalorder %s15, 1
    %p145 = por %p143, %p144
    %p146 = scmp.ne.s32.totalorder %s135, %s136
    %p147 = scmp.eq.s32.totalorder %s15, 0
    %p148 = por %p146, %p147
    %p149 = scmp.ne.s32.totalorder %s135, %s136
    %p150 = scmp.eq.s32.totalorder %s16, 1
    %p151 = por %p149, %p150
    %p153 = scmp.ne.s32.totalorder %s136, %s152
    %p154 = scmp.eq.s32.totalorder %s16, 0
    %p155 = por %p153, %p154
    %p156 = scmp.le.s32.totalorder 1, %s10
    %p157 = scmp.lt.s32.totalorder %s10, 3
    %p158 = pnand %p156, %p157
    %p159 = pneg %p158
    // Predicated region
    $region9: #{bottleneck_ibn_forward.7} parent=5 // pred_check
      _
    $region10: #{bottleneck_ibn_forward.7} parent=5 // pred_check_branch
      %161 = sbr.rel (%p158) target = $region12
    $region11: #{bottleneck_ibn_forward.7} parent=5 // pred_region
      %s162 = ssub.s32 %s10, 1
      // Predicated region
      $region13: #{bottleneck_ibn_forward.7} parent=11 // pred_check
        %p163 = pneg %p99
      $region14: #{bottleneck_ibn_forward.7} parent=11 // pred_check_branch
        %165 = sbr.rel (%p163) target = $region16
      $region15: #{bottleneck_ibn_forward.7} parent=11 // pred_region
        _
      $region16: #{bottleneck_ibn_forward.7} parent=11 // pred_fallthru
        _
      // Predicated region
      $region17: #{bottleneck_ibn_forward.7} parent=11 // pred_check
        %p166 = pneg %p120
      $region18: #{bottleneck_ibn_forward.7} parent=11 // pred_check_branch
        %168 = sbr.rel (%p166) target = $region20
      $region19: #{bottleneck_ibn_forward.7} parent=11 // pred_region
        _
      $region20: #{bottleneck_ibn_forward.7} parent=11 // pred_fallthru
        _
    $region12: #{bottleneck_ibn_forward.7} parent=5 // pred_fallthru
      _
    %p169 = scmp.lt.s32.totalorder %s10, 2
    // Predicated region
    $region21: #{bottleneck_ibn_forward.7} parent=5 // pred_check
      %p170 = pneg %p169
    $region22: #{bottleneck_ibn_forward.7} parent=5 // pred_check_branch
      %172 = sbr.rel (%p170) target = $region24
    $region23: #{bottleneck_ibn_forward.7} parent=5 // pred_region
      // Predicated region
      $region25: #{bottleneck_ibn_forward.7} parent=23 // pred_check
        %p173 = pneg %p44
      $region26: #{bottleneck_ibn_forward.7} parent=23 // pred_check_branch
        %175 = sbr.rel (%p173) target = $region28
      $region27: #{bottleneck_ibn_forward.7} parent=23 // pred_region
        %s176 = smul.u32 2, %s18
        %p177 = scmp.lt.s32.totalorder %s17, 1
        %s178 = scalar_select %p177, %s17, 1
        %p179 = scmp.lt.s32.totalorder %s176, 1
        %s180 = scalar_select %p179, %s176, 1
        %s181 = smul.addr %s178, 64
        %s182 = sadd.s32 %s180, %s181
        %s183 = smul.addr %s182, 4
        %s184 = scalar_lea.vmem %s0, %s183
        %s185 = smul.u32 2, %s18
      $region28: #{bottleneck_ibn_forward.7} parent=23 // pred_fallthru
        _
      // Predicated region
      $region29: #{bottleneck_ibn_forward.7} parent=23 // pred_check
        %p186 = pneg %p72
      $region30: #{bottleneck_ibn_forward.7} parent=23 // pred_check_branch
        %188 = sbr.rel (%p186) target = $region32
      $region31: #{bottleneck_ibn_forward.7} parent=23 // pred_region
        %s189 = smul.u32 2, %s18
        %p190 = scmp.lt.s32.totalorder %s17, 1
        %s191 = scalar_select %p190, %s17, 1
        %p192 = scmp.lt.s32.totalorder %s189, 1
        %s193 = scalar_select %p192, %s189, 1
        %s194 = smul.addr %s191, 64
        %s195 = sadd.s32 %s193, %s194
        %s196 = smul.addr %s195, 8
        %s197 = scalar_lea.vmem %s1, %s196
        %s198 = smul.u32 2, %s18
      $region32: #{bottleneck_ibn_forward.7} parent=23 // pred_fallthru
        _
    $region24: #{bottleneck_ibn_forward.7} parent=5 // pred_fallthru
      _
    %p199 = scmp.le.s32.totalorder 1, %s10
    %p200 = scmp.lt.s32.totalorder %s10, 3
    %p201 = pnand %p199, %p200
    %p202 = pneg %p201
    // Predicated region
    $region33: #{bottleneck_ibn_forward.7} parent=5 // pred_check
      _
    $region34: #{bottleneck_ibn_forward.7} parent=5 // pred_check_branch
      %204 = sbr.rel (%p201) target = $region36
    $region35: #{bottleneck_ibn_forward.7} parent=5 // pred_region
      %s205 = ssub.s32 %s10, 1
      %s206 = smul.u32 2, %s20
      %p207 = scmp.lt.s32.totalorder %s19, 1
      %s208 = scalar_select %p207, %s19, 1
      %p209 = scmp.lt.s32.totalorder %s206, 1
      %s210 = scalar_select %p209, %s206, 1
      %s211 = smul.addr %s208, 64
      %s212 = sadd.s32 %s210, %s211
      %s213 = smul.addr %s212, 4
      %s214 = scalar_lea.vmem %s0, %s213
      %p215 = pneg %p50
      %p216 = pneg %p47
      %s217 = smul.u32 2, %s20
      %p218 = scmp.lt.s32.totalorder %s19, 1
      %s219 = scalar_select %p218, %s19, 1
      %p220 = scmp.lt.s32.totalorder %s217, 1
      %s221 = scalar_select %p220, %s217, 1
      %s222 = smul.addr %s219, 64
      %s223 = sadd.s32 %s221, %s222
      %s224 = smul.addr %s223, 8
      %s225 = scalar_lea.vmem %s1, %s224
      %p226 = pneg %p78
      %p227 = pneg %p75
      %p228 = pneg %p99
      %p229 = pneg %p96
      %p230 = pneg %p120
      %p231 = pneg %p117
      %p232 = pneg %p148
      %p233 = pneg %p145
      %s234 = smul.u32 2, %s20
      %p235 = scmp.lt.s32.totalorder %s19, 1
      %s236 = scalar_select %p235, %s19, 1
      %p237 = scmp.lt.s32.totalorder %s234, 1
      %s238 = scalar_select %p237, %s234, 1
      %s239 = smul.addr %s236, 64
      %s240 = sadd.s32 %s238, %s239
      %s241 = smul.addr %s240, 8
      %s242 = scalar_lea.vmem %s4, %s241
      %s243 = smul.u32 2, %s20
      %p244 = scmp.lt.s32.totalorder %s19, 1
      %s245 = scalar_select %p244, %s19, 1
      %p246 = scmp.lt.s32.totalorder %s243, 1
      %s247 = scalar_select %p246, %s243, 1
      %s248 = smul.addr %s245, 64
      %s249 = sadd.s32 %s247, %s248
      %s250 = smul.addr %s249, 4
      %s251 = scalar_lea.vmem %s0, %s250
      %s252 = smul.u32 2, %s20
      %s253 = smul.u32 2, %s20
      %p254 = scmp.lt.s32.totalorder %s19, 1
      %s255 = scalar_select %p254, %s19, 1
      %p256 = scmp.lt.s32.totalorder %s253, 1
      %s257 = scalar_select %p256, %s253, 1
      %s258 = smul.addr %s255, 64
      %s259 = sadd.s32 %s257, %s258
      %s260 = smul.addr %s259, 8
      %s261 = scalar_lea.vmem %s1, %s260
      %s262 = smul.u32 2, %s20
      %s263 = smul.u32 2, %s20
      %p264 = scmp.lt.s32.totalorder %s19, 1
      %s265 = scalar_select %p264, %s19, 1
      %p266 = scmp.lt.s32.totalorder %s263, 1
      %s267 = scalar_select %p266, %s263, 1
      %s268 = smul.addr %s265, 64
      %s269 = sadd.s32 %s267, %s268
      %s270 = smul.addr %s269, 8
      %s271 = scalar_lea.vmem %s4, %s270
      %s272 = smul.u32 2, %s20
      %v273 = vld [vmem:[%s251] sm:$0xff]
      %v274 = vld [vmem:[%s251 + $0x8] sm:$0xff]
      %v275 = vld [vmem:[%s251 + $0x10] sm:$0xff]
      %v276 = vld [vmem:[%s251 + $0x18] sm:$0xff]
      %v277 = vld [vmem:[%s251 + $0x20] sm:$0xff]
      %v278 = vld [vmem:[%s251 + $0x28] sm:$0xff]
      %v279 = vld [vmem:[%s251 + $0x30] sm:$0xff]
      %v280 = vld [vmem:[%s251 + $0x38] sm:$0xff]
      %v281 = vld [vmem:[%s251 + $0x40] sm:$0xff]
      %v282 = vld [vmem:[%s251 + $0x48] sm:$0xff]
      %v283 = vld [vmem:[%s251 + $0x50] sm:$0xff]
      %v284 = vld [vmem:[%s251 + $0x58] sm:$0xff]
      %v285 = vld [vmem:[%s251 + $0x60] sm:$0xff]
      %v286 = vld [vmem:[%s251 + $0x68] sm:$0xff]
      %v287 = vld [vmem:[%s251 + $0x70] sm:$0xff]
      %v288 = vld [vmem:[%s251 + $0x78] sm:$0xff]
      %v289 = vld [vmem:[%s251 + $0x80] sm:$0xff]
      %v290 = vld [vmem:[%s251 + $0x88] sm:$0xff]
      %v291 = vld [vmem:[%s251 + $0x90] sm:$0xff]
      %v292 = vld [vmem:[%s251 + $0x98] sm:$0xff]
      %v293 = vld [vmem:[%s251 + $0xa0] sm:$0xff]
      %v294 = vld [vmem:[%s251 + $0xa8] sm:$0xff]
      %v295 = vld [vmem:[%s251 + $0xb0] sm:$0xff]
      %v296 = vld [vmem:[%s251 + $0xb8] sm:$0xff]
      %v297 = vld [vmem:[%s251 + $0xc0] sm:$0xff]
      %v298 = vld [vmem:[%s251 + $0xc8] sm:$0xff]
      %v299 = vld [vmem:[%s251 + $0xd0] sm:$0xff]
      %v300 = vld [vmem:[%s251 + $0xd8] sm:$0xff]
      %v301 = vld [vmem:[%s251 + $0xe0] sm:$0xff]
      %v302 = vld [vmem:[%s251 + $0xe8] sm:$0xff]
      %v303 = vld [vmem:[%s251 + $0xf0] sm:$0xff]
      %v304 = vld [vmem:[%s251 + $0xf8] sm:$0xff]
      %v305 = vunpack.c.l.bf16 %v273
      %v306 = vunpack.c.h.bf16 %v273
      %v307 = vunpack.c.l.bf16 %v274
      %v308 = vunpack.c.h.bf16 %v274
      %v309 = vunpack.c.l.bf16 %v275
      %v310 = vunpack.c.h.bf16 %v275
      %v311 = vunpack.c.l.bf16 %v276
      %v312 = vunpack.c.h.bf16 %v276
      %v313 = vunpack.c.l.bf16 %v277
      %v314 = vunpack.c.h.bf16 %v277
      %v315 = vunpack.c.l.bf16 %v278
      %v316 = vunpack.c.h.bf16 %v278
      %v317 = vunpack.c.l.bf16 %v279
      %v318 = vunpack.c.h.bf16 %v279
      %v319 = vunpack.c.l.bf16 %v280
      %v320 = vunpack.c.h.bf16 %v280
      %v321 = vunpack.c.l.bf16 %v281
      %v322 = vunpack.c.h.bf16 %v281
      %v323 = vunpack.c.l.bf16 %v282
      %v324 = vunpack.c.h.bf16 %v282
      %v325 = vunpack.c.l.bf16 %v283
      %v326 = vunpack.c.h.bf16 %v283
      %v327 = vunpack.c.l.bf16 %v284
      %v328 = vunpack.c.h.bf16 %v284
      %v329 = vunpack.c.l.bf16 %v285
      %v330 = vunpack.c.h.bf16 %v285
      %v331 = vunpack.c.l.bf16 %v286
      %v332 = vunpack.c.h.bf16 %v286
      %v333 = vunpack.c.l.bf16 %v287
      %v334 = vunpack.c.h.bf16 %v287
      %v335 = vunpack.c.l.bf16 %v288
      %v336 = vunpack.c.h.bf16 %v288
      %v337 = vunpack.c.l.bf16 %v289
      %v338 = vunpack.c.h.bf16 %v289
      %v339 = vunpack.c.l.bf16 %v290
      %v340 = vunpack.c.h.bf16 %v290
      %v341 = vunpack.c.l.bf16 %v291
      %v342 = vunpack.c.h.bf16 %v291
      %v343 = vunpack.c.l.bf16 %v292
      %v344 = vunpack.c.h.bf16 %v292
      %v345 = vunpack.c.l.bf16 %v293
      %v346 = vunpack.c.h.bf16 %v293
      %v347 = vunpack.c.l.bf16 %v294
      %v348 = vunpack.c.h.bf16 %v294
      %v349 = vunpack.c.l.bf16 %v295
      %v350 = vunpack.c.h.bf16 %v295
      %v351 = vunpack.c.l.bf16 %v296
      %v352 = vunpack.c.h.bf16 %v296
      %v353 = vunpack.c.l.bf16 %v297
      %v354 = vunpack.c.h.bf16 %v297
      %v355 = vunpack.c.l.bf16 %v298
      %v356 = vunpack.c.h.bf16 %v298
      %v357 = vunpack.c.l.bf16 %v299
      %v358 = vunpack.c.h.bf16 %v299
      %v359 = vunpack.c.l.bf16 %v300
      %v360 = vunpack.c.h.bf16 %v300
      %v361 = vunpack.c.l.bf16 %v301
      %v362 = vunpack.c.h.bf16 %v301
      %v363 = vunpack.c.l.bf16 %v302
      %v364 = vunpack.c.h.bf16 %v302
      %v365 = vunpack.c.l.bf16 %v303
      %v366 = vunpack.c.h.bf16 %v303
      %v367 = vunpack.c.l.bf16 %v304
      %v368 = vunpack.c.h.bf16 %v304
      %v369 = vld [vmem:[%s2] sm:$0xff]
      %v370 = vld [vmem:[%s2 + $0x8] sm:$0xff]
      %v371 = vld [vmem:[%s2 + $0x10] sm:$0xff]
      %v372 = vld [vmem:[%s2 + $0x18] sm:$0xff]
      %v373 = vld [vmem:[%s2 + $0x20] sm:$0xff]
      %v374 = vld [vmem:[%s2 + $0x28] sm:$0xff]
      %v375 = vld [vmem:[%s2 + $0x30] sm:$0xff]
      %v376 = vld [vmem:[%s2 + $0x38] sm:$0xff]
      %v377 = vld [vmem:[%s2 + $0x40] sm:$0xff]
      %v378 = vld [vmem:[%s2 + $0x48] sm:$0xff]
      %v379 = vld [vmem:[%s2 + $0x50] sm:$0xff]
      %v380 = vld [vmem:[%s2 + $0x58] sm:$0xff]
      %v381 = vld [vmem:[%s2 + $0x60] sm:$0xff]
      %v382 = vld [vmem:[%s2 + $0x68] sm:$0xff]
      %v383 = vld [vmem:[%s2 + $0x70] sm:$0xff]
      %v384 = vld [vmem:[%s2 + $0x78] sm:$0xff]
      %v385 = vld [vmem:[%s2 + $0x80] sm:$0xff]
      %v386 = vld [vmem:[%s2 + $0x88] sm:$0xff]
      %v387 = vld [vmem:[%s2 + $0x90] sm:$0xff]
      %v388 = vld [vmem:[%s2 + $0x98] sm:$0xff]
      %v389 = vld [vmem:[%s2 + $0xa0] sm:$0xff]
      %v390 = vld [vmem:[%s2 + $0xa8] sm:$0xff]
      %v391 = vld [vmem:[%s2 + $0xb0] sm:$0xff]
      %v392 = vld [vmem:[%s2 + $0xb8] sm:$0xff]
      %v393 = vld [vmem:[%s2 + $0xc0] sm:$0xff]
      %v394 = vld [vmem:[%s2 + $0xc8] sm:$0xff]
      %v395 = vld [vmem:[%s2 + $0xd0] sm:$0xff]
      %v396 = vld [vmem:[%s2 + $0xd8] sm:$0xff]
      %v397 = vld [vmem:[%s2 + $0xe0] sm:$0xff]
      %v398 = vld [vmem:[%s2 + $0xe8] sm:$0xff]
      %v399 = vld [vmem:[%s2 + $0xf0] sm:$0xff]
      %v400 = vld [vmem:[%s2 + $0xf8] sm:$0xff]
      %402 = vset.pattern.permute.xlu0 0
      %403 = vperm.xlu0 %402, %v369
      %v404 = vpop.permute.xlu0 %403
      %407 = vset.pattern.permute.xlu0 0
      %408 = vperm.xlu0 %407, %v370
      %v409 = vpop.permute.xlu0 %408
      %412 = vset.pattern.permute.xlu0 0
      %413 = vperm.xlu0 %412, %v371
      %v414 = vpop.permute.xlu0 %413
      %417 = vset.pattern.permute.xlu0 0
      %418 = vperm.xlu0 %417, %v372
      %v419 = vpop.permute.xlu0 %418
      %422 = vset.pattern.permute.xlu0 0
      %423 = vperm.xlu0 %422, %v373
      %v424 = vpop.permute.xlu0 %423
      %427 = vset.pattern.permute.xlu0 0
      %428 = vperm.xlu0 %427, %v374
      %v429 = vpop.permute.xlu0 %428
      %432 = vset.pattern.permute.xlu0 0
      %433 = vperm.xlu0 %432, %v375
      %v434 = vpop.permute.xlu0 %433
      %437 = vset.pattern.permute.xlu0 0
      %438 = vperm.xlu0 %437, %v376
      %v439 = vpop.permute.xlu0 %438
      %442 = vset.pattern.permute.xlu0 0
      %443 = vperm.xlu0 %442, %v377
      %v444 = vpop.permute.xlu0 %443
      %447 = vset.pattern.permute.xlu0 0
      %448 = vperm.xlu0 %447, %v378
      %v449 = vpop.permute.xlu0 %448
      %452 = vset.pattern.permute.xlu0 0
      %453 = vperm.xlu0 %452, %v379
      %v454 = vpop.permute.xlu0 %453
      %457 = vset.pattern.permute.xlu0 0
      %458 = vperm.xlu0 %457, %v380
      %v459 = vpop.permute.xlu0 %458
      %462 = vset.pattern.permute.xlu0 0
      %463 = vperm.xlu0 %462, %v381
      %v464 = vpop.permute.xlu0 %463
      %467 = vset.pattern.permute.xlu0 0
      %468 = vperm.xlu0 %467, %v382
      %v469 = vpop.permute.xlu0 %468
      %472 = vset.pattern.permute.xlu0 0
      %473 = vperm.xlu0 %472, %v383
      %v474 = vpop.permute.xlu0 %473
      %477 = vset.pattern.permute.xlu0 0
      %478 = vperm.xlu0 %477, %v384
      %v479 = vpop.permute.xlu0 %478
      %482 = vset.pattern.permute.xlu0 0
      %483 = vperm.xlu0 %482, %v385
      %v484 = vpop.permute.xlu0 %483
      %487 = vset.pattern.permute.xlu0 0
      %488 = vperm.xlu0 %487, %v386
      %v489 = vpop.permute.xlu0 %488
      %492 = vset.pattern.permute.xlu0 0
      %493 = vperm.xlu0 %492, %v387
      %v494 = vpop.permute.xlu0 %493
      %497 = vset.pattern.permute.xlu0 0
      %498 = vperm.xlu0 %497, %v388
      %v499 = vpop.permute.xlu0 %498
      %502 = vset.pattern.permute.xlu0 0
      %503 = vperm.xlu0 %502, %v389
      %v504 = vpop.permute.xlu0 %503
      %507 = vset.pattern.permute.xlu0 0
      %508 = vperm.xlu0 %507, %v390
      %v509 = vpop.permute.xlu0 %508
      %512 = vset.pattern.permute.xlu0 0
      %513 = vperm.xlu0 %512, %v391
      %v514 = vpop.permute.xlu0 %513
      %517 = vset.pattern.permute.xlu0 0
      %518 = vperm.xlu0 %517, %v392
      %v519 = vpop.permute.xlu0 %518
      %522 = vset.pattern.permute.xlu0 0
      %523 = vperm.xlu0 %522, %v393
      %v524 = vpop.permute.xlu0 %523
      %527 = vset.pattern.permute.xlu0 0
      %528 = vperm.xlu0 %527, %v394
      %v529 = vpop.permute.xlu0 %528
      %532 = vset.pattern.permute.xlu0 0
      %533 = vperm.xlu0 %532, %v395
      %v534 = vpop.permute.xlu0 %533
      %537 = vset.pattern.permute.xlu0 0
      %538 = vperm.xlu0 %537, %v396
      %v539 = vpop.permute.xlu0 %538
      %542 = vset.pattern.permute.xlu0 0
      %543 = vperm.xlu0 %542, %v397
      %v544 = vpop.permute.xlu0 %543
      %547 = vset.pattern.permute.xlu0 0
      %548 = vperm.xlu0 %547, %v398
      %v549 = vpop.permute.xlu0 %548
      %552 = vset.pattern.permute.xlu0 0
      %553 = vperm.xlu0 %552, %v399
      %v554 = vpop.permute.xlu0 %553
      %557 = vset.pattern.permute.xlu0 0
      %558 = vperm.xlu0 %557, %v400
      %v559 = vpop.permute.xlu0 %558
      %v561 = vmul.f32 %v305, %v404
      %v562 = vmul.f32 %v306, %v404
      %v563 = vmul.f32 %v307, %v409
      %v564 = vmul.f32 %v308, %v409
      %v565 = vmul.f32 %v309, %v414
      %v566 = vmul.f32 %v310, %v414
      %v567 = vmul.f32 %v311, %v419
      %v568 = vmul.f32 %v312, %v419
      %v569 = vmul.f32 %v313, %v424
      %v570 = vmul.f32 %v314, %v424
      %v571 = vmul.f32 %v315, %v429
      %v572 = vmul.f32 %v316, %v429
      %v573 = vmul.f32 %v317, %v434
      %v574 = vmul.f32 %v318, %v434
      %v575 = vmul.f32 %v319, %v439
      %v576 = vmul.f32 %v320, %v439
      %v577 = vmul.f32 %v321, %v444
      %v578 = vmul.f32 %v322, %v444
      %v579 = vmul.f32 %v323, %v449
      %v580 = vmul.f32 %v324, %v449
      %v581 = vmul.f32 %v325, %v454
      %v582 = vmul.f32 %v326, %v454
      %v583 = vmul.f32 %v327, %v459
      %v584 = vmul.f32 %v328, %v459
      %v585 = vmul.f32 %v329, %v464
      %v586 = vmul.f32 %v330, %v464
      %v587 = vmul.f32 %v331, %v469
      %v588 = vmul.f32 %v332, %v469
      %v589 = vmul.f32 %v333, %v474
      %v590 = vmul.f32 %v334, %v474
      %v591 = vmul.f32 %v335, %v479
      %v592 = vmul.f32 %v336, %v479
      %v593 = vmul.f32 %v337, %v484
      %v594 = vmul.f32 %v338, %v484
      %v595 = vmul.f32 %v339, %v489
      %v596 = vmul.f32 %v340, %v489
      %v597 = vmul.f32 %v341, %v494
      %v598 = vmul.f32 %v342, %v494
      %v599 = vmul.f32 %v343, %v499
      %v600 = vmul.f32 %v344, %v499
      %v601 = vmul.f32 %v345, %v504
      %v602 = vmul.f32 %v346, %v504
      %v603 = vmul.f32 %v347, %v509
      %v604 = vmul.f32 %v348, %v509
      %v605 = vmul.f32 %v349, %v514
      %v606 = vmul.f32 %v350, %v514
      %v607 = vmul.f32 %v351, %v519
      %v608 = vmul.f32 %v352, %v519
      %v609 = vmul.f32 %v353, %v524
      %v610 = vmul.f32 %v354, %v524
      %v611 = vmul.f32 %v355, %v529
      %v612 = vmul.f32 %v356, %v529
      %v613 = vmul.f32 %v357, %v534
      %v614 = vmul.f32 %v358, %v534
      %v615 = vmul.f32 %v359, %v539
      %v616 = vmul.f32 %v360, %v539
      %v617 = vmul.f32 %v361, %v544
      %v618 = vmul.f32 %v362, %v544
      %v619 = vmul.f32 %v363, %v549
      %v620 = vmul.f32 %v364, %v549
      %v621 = vmul.f32 %v365, %v554
      %v622 = vmul.f32 %v366, %v554
      %v623 = vmul.f32 %v367, %v559
      %v624 = vmul.f32 %v368, %v559
      %v625 = vld [vmem:[%s3] sm:$0xff]
      %v626 = vld [vmem:[%s3 + $0x8] sm:$0xff]
      %v627 = vld [vmem:[%s3 + $0x10] sm:$0xff]
      %v628 = vld [vmem:[%s3 + $0x18] sm:$0xff]
      %v629 = vld [vmem:[%s3 + $0x20] sm:$0xff]
      %v630 = vld [vmem:[%s3 + $0x28] sm:$0xff]
      %v631 = vld [vmem:[%s3 + $0x30] sm:$0xff]
      %v632 = vld [vmem:[%s3 + $0x38] sm:$0xff]
      %v633 = vld [vmem:[%s3 + $0x40] sm:$0xff]
      %v634 = vld [vmem:[%s3 + $0x48] sm:$0xff]
      %v635 = vld [vmem:[%s3 + $0x50] sm:$0xff]
      %v636 = vld [vmem:[%s3 + $0x58] sm:$0xff]
      %v637 = vld [vmem:[%s3 + $0x60] sm:$0xff]
      %v638 = vld [vmem:[%s3 + $0x68] sm:$0xff]
      %v639 = vld [vmem:[%s3 + $0x70] sm:$0xff]
      %v640 = vld [vmem:[%s3 + $0x78] sm:$0xff]
      %v641 = vld [vmem:[%s3 + $0x80] sm:$0xff]
      %v642 = vld [vmem:[%s3 + $0x88] sm:$0xff]
      %v643 = vld [vmem:[%s3 + $0x90] sm:$0xff]
      %v644 = vld [vmem:[%s3 + $0x98] sm:$0xff]
      %v645 = vld [vmem:[%s3 + $0xa0] sm:$0xff]
      %v646 = vld [vmem:[%s3 + $0xa8] sm:$0xff]
      %v647 = vld [vmem:[%s3 + $0xb0] sm:$0xff]
      %v648 = vld [vmem:[%s3 + $0xb8] sm:$0xff]
      %v649 = vld [vmem:[%s3 + $0xc0] sm:$0xff]
      %v650 = vld [vmem:[%s3 + $0xc8] sm:$0xff]
      %v651 = vld [vmem:[%s3 + $0xd0] sm:$0xff]
      %v652 = vld [vmem:[%s3 + $0xd8] sm:$0xff]
      %v653 = vld [vmem:[%s3 + $0xe0] sm:$0xff]
      %v654 = vld [vmem:[%s3 + $0xe8] sm:$0xff]
      %v655 = vld [vmem:[%s3 + $0xf0] sm:$0xff]
      %v656 = vld [vmem:[%s3 + $0xf8] sm:$0xff]
      %658 = vset.pattern.permute.xlu0 0
      %659 = vperm.xlu0 %658, %v625
      %v660 = vpop.permute.xlu0 %659
      %663 = vset.pattern.permute.xlu0 0
      %664 = vperm.xlu0 %663, %v626
      %v665 = vpop.permute.xlu0 %664
      %668 = vset.pattern.permute.xlu0 0
      %669 = vperm.xlu0 %668, %v627
      %v670 = vpop.permute.xlu0 %669
      %673 = vset.pattern.permute.xlu0 0
      %674 = vperm.xlu0 %673, %v628
      %v675 = vpop.permute.xlu0 %674
      %678 = vset.pattern.permute.xlu0 0
      %679 = vperm.xlu0 %678, %v629
      %v680 = vpop.permute.xlu0 %679
      %683 = vset.pattern.permute.xlu0 0
      %684 = vperm.xlu0 %683, %v630
      %v685 = vpop.permute.xlu0 %684
      %688 = vset.pattern.permute.xlu0 0
      %689 = vperm.xlu0 %688, %v631
      %v690 = vpop.permute.xlu0 %689
      %693 = vset.pattern.permute.xlu0 0
      %694 = vperm.xlu0 %693, %v632
      %v695 = vpop.permute.xlu0 %694
      %698 = vset.pattern.permute.xlu0 0
      %699 = vperm.xlu0 %698, %v633
      %v700 = vpop.permute.xlu0 %699
      %703 = vset.pattern.permute.xlu0 0
      %704 = vperm.xlu0 %703, %v634
      %v705 = vpop.permute.xlu0 %704
      %708 = vset.pattern.permute.xlu0 0
      %709 = vperm.xlu0 %708, %v635
      %v710 = vpop.permute.xlu0 %709
      %713 = vset.pattern.permute.xlu0 0
      %714 = vperm.xlu0 %713, %v636
      %v715 = vpop.permute.xlu0 %714
      %718 = vset.pattern.permute.xlu0 0
      %719 = vperm.xlu0 %718, %v637
      %v720 = vpop.permute.xlu0 %719
      %723 = vset.pattern.permute.xlu0 0
      %724 = vperm.xlu0 %723, %v638
      %v725 = vpop.permute.xlu0 %724
      %728 = vset.pattern.permute.xlu0 0
      %729 = vperm.xlu0 %728, %v639
      %v730 = vpop.permute.xlu0 %729
      %733 = vset.pattern.permute.xlu0 0
      %734 = vperm.xlu0 %733, %v640
      %v735 = vpop.permute.xlu0 %734
      %738 = vset.pattern.permute.xlu0 0
      %739 = vperm.xlu0 %738, %v641
      %v740 = vpop.permute.xlu0 %739
      %743 = vset.pattern.permute.xlu0 0
      %744 = vperm.xlu0 %743, %v642
      %v745 = vpop.permute.xlu0 %744
      %748 = vset.pattern.permute.xlu0 0
      %749 = vperm.xlu0 %748, %v643
      %v750 = vpop.permute.xlu0 %749
      %753 = vset.pattern.permute.xlu0 0
      %754 = vperm.xlu0 %753, %v644
      %v755 = vpop.permute.xlu0 %754
      %758 = vset.pattern.permute.xlu0 0
      %759 = vperm.xlu0 %758, %v645
      %v760 = vpop.permute.xlu0 %759
      %763 = vset.pattern.permute.xlu0 0
      %764 = vperm.xlu0 %763, %v646
      %v765 = vpop.permute.xlu0 %764
      %768 = vset.pattern.permute.xlu0 0
      %769 = vperm.xlu0 %768, %v647
      %v770 = vpop.permute.xlu0 %769
      %773 = vset.pattern.permute.xlu0 0
      %774 = vperm.xlu0 %773, %v648
      %v775 = vpop.permute.xlu0 %774
      %778 = vset.pattern.permute.xlu0 0
      %779 = vperm.xlu0 %778, %v649
      %v780 = vpop.permute.xlu0 %779
      %783 = vset.pattern.permute.xlu0 0
      %784 = vperm.xlu0 %783, %v650
      %v785 = vpop.permute.xlu0 %784
      %788 = vset.pattern.permute.xlu0 0
      %789 = vperm.xlu0 %788, %v651
      %v790 = vpop.permute.xlu0 %789
      %793 = vset.pattern.permute.xlu0 0
      %794 = vperm.xlu0 %793, %v652
      %v795 = vpop.permute.xlu0 %794
      %798 = vset.pattern.permute.xlu0 0
      %799 = vperm.xlu0 %798, %v653
      %v800 = vpop.permute.xlu0 %799
      %803 = vset.pattern.permute.xlu0 0
      %804 = vperm.xlu0 %803, %v654
      %v805 = vpop.permute.xlu0 %804
      %808 = vset.pattern.permute.xlu0 0
      %809 = vperm.xlu0 %808, %v655
      %v810 = vpop.permute.xlu0 %809
      %813 = vset.pattern.permute.xlu0 0
      %814 = vperm.xlu0 %813, %v656
      %v815 = vpop.permute.xlu0 %814
      %v817 = vadd.f32 %v561, %v660
      %v818 = vadd.f32 %v562, %v660
      %v819 = vadd.f32 %v563, %v665
      %v820 = vadd.f32 %v564, %v665
      %v821 = vadd.f32 %v565, %v670
      %v822 = vadd.f32 %v566, %v670
      %v823 = vadd.f32 %v567, %v675
      %v824 = vadd.f32 %v568, %v675
      %v825 = vadd.f32 %v569, %v680
      %v826 = vadd.f32 %v570, %v680
      %v827 = vadd.f32 %v571, %v685
      %v828 = vadd.f32 %v572, %v685
      %v829 = vadd.f32 %v573, %v690
      %v830 = vadd.f32 %v574, %v690
      %v831 = vadd.f32 %v575, %v695
      %v832 = vadd.f32 %v576, %v695
      %v833 = vadd.f32 %v577, %v700
      %v834 = vadd.f32 %v578, %v700
      %v835 = vadd.f32 %v579, %v705
      %v836 = vadd.f32 %v580, %v705
      %v837 = vadd.f32 %v581, %v710
      %v838 = vadd.f32 %v582, %v710
      %v839 = vadd.f32 %v583, %v715
      %v840 = vadd.f32 %v584, %v715
      %v841 = vadd.f32 %v585, %v720
      %v842 = vadd.f32 %v586, %v720
      %v843 = vadd.f32 %v587, %v725
      %v844 = vadd.f32 %v588, %v725
      %v845 = vadd.f32 %v589, %v730
      %v846 = vadd.f32 %v590, %v730
      %v847 = vadd.f32 %v591, %v735
      %v848 = vadd.f32 %v592, %v735
      %v849 = vadd.f32 %v593, %v740
      %v850 = vadd.f32 %v594, %v740
      %v851 = vadd.f32 %v595, %v745
      %v852 = vadd.f32 %v596, %v745
      %v853 = vadd.f32 %v597, %v750
      %v854 = vadd.f32 %v598, %v750
      %v855 = vadd.f32 %v599, %v755
      %v856 = vadd.f32 %v600, %v755
      %v857 = vadd.f32 %v601, %v760
      %v858 = vadd.f32 %v602, %v760
      %v859 = vadd.f32 %v603, %v765
      %v860 = vadd.f32 %v604, %v765
      %v861 = vadd.f32 %v605, %v770
      %v862 = vadd.f32 %v606, %v770
      %v863 = vadd.f32 %v607, %v775
      %v864 = vadd.f32 %v608, %v775
      %v865 = vadd.f32 %v609, %v780
      %v866 = vadd.f32 %v610, %v780
      %v867 = vadd.f32 %v611, %v785
      %v868 = vadd.f32 %v612, %v785
      %v869 = vadd.f32 %v613, %v790
      %v870 = vadd.f32 %v614, %v790
      %v871 = vadd.f32 %v615, %v795
      %v872 = vadd.f32 %v616, %v795
      %v873 = vadd.f32 %v617, %v800
      %v874 = vadd.f32 %v618, %v800
      %v875 = vadd.f32 %v619, %v805
      %v876 = vadd.f32 %v620, %v805
      %v877 = vadd.f32 %v621, %v810
      %v878 = vadd.f32 %v622, %v810
      %v879 = vadd.f32 %v623, %v815
      %v880 = vadd.f32 %v624, %v815
      %v881 = vld [vmem:[%s261] sm:$0xff]
      %v882 = vld [vmem:[%s261 + $0x8] sm:$0xff]
      %v883 = vld [vmem:[%s261 + $0x10] sm:$0xff]
      %v884 = vld [vmem:[%s261 + $0x18] sm:$0xff]
      %v885 = vld [vmem:[%s261 + $0x20] sm:$0xff]
      %v886 = vld [vmem:[%s261 + $0x28] sm:$0xff]
      %v887 = vld [vmem:[%s261 + $0x30] sm:$0xff]
      %v888 = vld [vmem:[%s261 + $0x38] sm:$0xff]
      %v889 = vld [vmem:[%s261 + $0x40] sm:$0xff]
      %v890 = vld [vmem:[%s261 + $0x48] sm:$0xff]
      %v891 = vld [vmem:[%s261 + $0x50] sm:$0xff]
      %v892 = vld [vmem:[%s261 + $0x58] sm:$0xff]
      %v893 = vld [vmem:[%s261 + $0x60] sm:$0xff]
      %v894 = vld [vmem:[%s261 + $0x68] sm:$0xff]
      %v895 = vld [vmem:[%s261 + $0x70] sm:$0xff]
      %v896 = vld [vmem:[%s261 + $0x78] sm:$0xff]
      %v897 = vld [vmem:[%s261 + $0x80] sm:$0xff]
      %v898 = vld [vmem:[%s261 + $0x88] sm:$0xff]
      %v899 = vld [vmem:[%s261 + $0x90] sm:$0xff]
      %v900 = vld [vmem:[%s261 + $0x98] sm:$0xff]
      %v901 = vld [vmem:[%s261 + $0xa0] sm:$0xff]
      %v902 = vld [vmem:[%s261 + $0xa8] sm:$0xff]
      %v903 = vld [vmem:[%s261 + $0xb0] sm:$0xff]
      %v904 = vld [vmem:[%s261 + $0xb8] sm:$0xff]
      %v905 = vld [vmem:[%s261 + $0xc0] sm:$0xff]
      %v906 = vld [vmem:[%s261 + $0xc8] sm:$0xff]
      %v907 = vld [vmem:[%s261 + $0xd0] sm:$0xff]
      %v908 = vld [vmem:[%s261 + $0xd8] sm:$0xff]
      %v909 = vld [vmem:[%s261 + $0xe0] sm:$0xff]
      %v910 = vld [vmem:[%s261 + $0xe8] sm:$0xff]
      %v911 = vld [vmem:[%s261 + $0xf0] sm:$0xff]
      %v912 = vld [vmem:[%s261 + $0xf8] sm:$0xff]
      %v913 = vld [vmem:[%s261 + $0x100] sm:$0xff]
      %v914 = vld [vmem:[%s261 + $0x108] sm:$0xff]
      %v915 = vld [vmem:[%s261 + $0x110] sm:$0xff]
      %v916 = vld [vmem:[%s261 + $0x118] sm:$0xff]
      %v917 = vld [vmem:[%s261 + $0x120] sm:$0xff]
      %v918 = vld [vmem:[%s261 + $0x128] sm:$0xff]
      %v919 = vld [vmem:[%s261 + $0x130] sm:$0xff]
      %v920 = vld [vmem:[%s261 + $0x138] sm:$0xff]
      %v921 = vld [vmem:[%s261 + $0x140] sm:$0xff]
      %v922 = vld [vmem:[%s261 + $0x148] sm:$0xff]
      %v923 = vld [vmem:[%s261 + $0x150] sm:$0xff]
      %v924 = vld [vmem:[%s261 + $0x158] sm:$0xff]
      %v925 = vld [vmem:[%s261 + $0x160] sm:$0xff]
      %v926 = vld [vmem:[%s261 + $0x168] sm:$0xff]
      %v927 = vld [vmem:[%s261 + $0x170] sm:$0xff]
      %v928 = vld [vmem:[%s261 + $0x178] sm:$0xff]
      %v929 = vld [vmem:[%s261 + $0x180] sm:$0xff]
      %v930 = vld [vmem:[%s261 + $0x188] sm:$0xff]
      %v931 = vld [vmem:[%s261 + $0x190] sm:$0xff]
      %v932 = vld [vmem:[%s261 + $0x198] sm:$0xff]
      %v933 = vld [vmem:[%s261 + $0x1a0] sm:$0xff]
      %v934 = vld [vmem:[%s261 + $0x1a8] sm:$0xff]
      %v935 = vld [vmem:[%s261 + $0x1b0] sm:$0xff]
      %v936 = vld [vmem:[%s261 + $0x1b8] sm:$0xff]
      %v937 = vld [vmem:[%s261 + $0x1c0] sm:$0xff]
      %v938 = vld [vmem:[%s261 + $0x1c8] sm:$0xff]
      %v939 = vld [vmem:[%s261 + $0x1d0] sm:$0xff]
      %v940 = vld [vmem:[%s261 + $0x1d8] sm:$0xff]
      %v941 = vld [vmem:[%s261 + $0x1e0] sm:$0xff]
      %v942 = vld [vmem:[%s261 + $0x1e8] sm:$0xff]
      %v943 = vld [vmem:[%s261 + $0x1f0] sm:$0xff]
      %v944 = vld [vmem:[%s261 + $0x1f8] sm:$0xff]
      %v945 = vadd.f32 %v817, %v881
      %v946 = vadd.f32 %v818, %v882
      %v947 = vadd.f32 %v819, %v883
      %v948 = vadd.f32 %v820, %v884
      %v949 = vadd.f32 %v821, %v885
      %v950 = vadd.f32 %v822, %v886
      %v951 = vadd.f32 %v823, %v887
      %v952 = vadd.f32 %v824, %v888
      %v953 = vadd.f32 %v825, %v889
      %v954 = vadd.f32 %v826, %v890
      %v955 = vadd.f32 %v827, %v891
      %v956 = vadd.f32 %v828, %v892
      %v957 = vadd.f32 %v829, %v893
      %v958 = vadd.f32 %v830, %v894
      %v959 = vadd.f32 %v831, %v895
      %v960 = vadd.f32 %v832, %v896
      %v961 = vadd.f32 %v833, %v897
      %v962 = vadd.f32 %v834, %v898
      %v963 = vadd.f32 %v835, %v899
      %v964 = vadd.f32 %v836, %v900
      %v965 = vadd.f32 %v837, %v901
      %v966 = vadd.f32 %v838, %v902
      %v967 = vadd.f32 %v839, %v903
      %v968 = vadd.f32 %v840, %v904
      %v969 = vadd.f32 %v841, %v905
      %v970 = vadd.f32 %v842, %v906
      %v971 = vadd.f32 %v843, %v907
      %v972 = vadd.f32 %v844, %v908
      %v973 = vadd.f32 %v845, %v909
      %v974 = vadd.f32 %v846, %v910
      %v975 = vadd.f32 %v847, %v911
      %v976 = vadd.f32 %v848, %v912
      %v977 = vadd.f32 %v849, %v913
      %v978 = vadd.f32 %v850, %v914
      %v979 = vadd.f32 %v851, %v915
      %v980 = vadd.f32 %v852, %v916
      %v981 = vadd.f32 %v853, %v917
      %v982 = vadd.f32 %v854, %v918
      %v983 = vadd.f32 %v855, %v919
      %v984 = vadd.f32 %v856, %v920
      %v985 = vadd.f32 %v857, %v921
      %v986 = vadd.f32 %v858, %v922
      %v987 = vadd.f32 %v859, %v923
      %v988 = vadd.f32 %v860, %v924
      %v989 = vadd.f32 %v861, %v925
      %v990 = vadd.f32 %v862, %v926
      %v991 = vadd.f32 %v863, %v927
      %v992 = vadd.f32 %v864, %v928
      %v993 = vadd.f32 %v865, %v929
      %v994 = vadd.f32 %v866, %v930
      %v995 = vadd.f32 %v867, %v931
      %v996 = vadd.f32 %v868, %v932
      %v997 = vadd.f32 %v869, %v933
      %v998 = vadd.f32 %v870, %v934
      %v999 = vadd.f32 %v871, %v935
      %v1000 = vadd.f32 %v872, %v936
      %v1001 = vadd.f32 %v873, %v937
      %v1002 = vadd.f32 %v874, %v938
      %v1003 = vadd.f32 %v875, %v939
      %v1004 = vadd.f32 %v876, %v940
      %v1005 = vadd.f32 %v877, %v941
      %v1006 = vadd.f32 %v878, %v942
      %v1007 = vadd.f32 %v879, %v943
      %v1008 = vadd.f32 %v880, %v944
      %v1009 = vmax.f32 %v945, 0.0
      %v1010 = vmax.f32 %v946, 0.0
      %v1011 = vmax.f32 %v947, 0.0
      %v1012 = vmax.f32 %v948, 0.0
      %v1013 = vmax.f32 %v949, 0.0
      %v1014 = vmax.f32 %v950, 0.0
      %v1015 = vmax.f32 %v951, 0.0
      %v1016 = vmax.f32 %v952, 0.0
      %v1017 = vmax.f32 %v953, 0.0
      %v1018 = vmax.f32 %v954, 0.0
      %v1019 = vmax.f32 %v955, 0.0
      %v1020 = vmax.f32 %v956, 0.0
      %v1021 = vmax.f32 %v957, 0.0
      %v1022 = vmax.f32 %v958, 0.0
      %v1023 = vmax.f32 %v959, 0.0
      %v1024 = vmax.f32 %v960, 0.0
      %v1025 = vmax.f32 %v961, 0.0
      %v1026 = vmax.f32 %v962, 0.0
      %v1027 = vmax.f32 %v963, 0.0
      %v1028 = vmax.f32 %v964, 0.0
      %v1029 = vmax.f32 %v965, 0.0
      %v1030 = vmax.f32 %v966, 0.0
      %v1031 = vmax.f32 %v967, 0.0
      %v1032 = vmax.f32 %v968, 0.0
      %v1033 = vmax.f32 %v969, 0.0
      %v1034 = vmax.f32 %v970, 0.0
      %v1035 = vmax.f32 %v971, 0.0
      %v1036 = vmax.f32 %v972, 0.0
      %v1037 = vmax.f32 %v973, 0.0
      %v1038 = vmax.f32 %v974, 0.0
      %v1039 = vmax.f32 %v975, 0.0
      %v1040 = vmax.f32 %v976, 0.0
      %v1041 = vmax.f32 %v977, 0.0
      %v1042 = vmax.f32 %v978, 0.0
      %v1043 = vmax.f32 %v979, 0.0
      %v1044 = vmax.f32 %v980, 0.0
      %v1045 = vmax.f32 %v981, 0.0
      %v1046 = vmax.f32 %v982, 0.0
      %v1047 = vmax.f32 %v983, 0.0
      %v1048 = vmax.f32 %v984, 0.0
      %v1049 = vmax.f32 %v985, 0.0
      %v1050 = vmax.f32 %v986, 0.0
      %v1051 = vmax.f32 %v987, 0.0
      %v1052 = vmax.f32 %v988, 0.0
      %v1053 = vmax.f32 %v989, 0.0
      %v1054 = vmax.f32 %v990, 0.0
      %v1055 = vmax.f32 %v991, 0.0
      %v1056 = vmax.f32 %v992, 0.0
      %v1057 = vmax.f32 %v993, 0.0
      %v1058 = vmax.f32 %v994, 0.0
      %v1059 = vmax.f32 %v995, 0.0
      %v1060 = vmax.f32 %v996, 0.0
      %v1061 = vmax.f32 %v997, 0.0
      %v1062 = vmax.f32 %v998, 0.0
      %v1063 = vmax.f32 %v999, 0.0
      %v1064 = vmax.f32 %v1000, 0.0
      %v1065 = vmax.f32 %v1001, 0.0
      %v1066 = vmax.f32 %v1002, 0.0
      %v1067 = vmax.f32 %v1003, 0.0
      %v1068 = vmax.f32 %v1004, 0.0
      %v1069 = vmax.f32 %v1005, 0.0
      %v1070 = vmax.f32 %v1006, 0.0
      %v1071 = vmax.f32 %v1007, 0.0
      %v1072 = vmax.f32 %v1008, 0.0
      %1073 = vst [vmem:[%s271] sm:$0xff] %v1009
      %1074 = vst [vmem:[%s271 + $0x8] sm:$0xff] %v1010
      %1075 = vst [vmem:[%s271 + $0x10] sm:$0xff] %v1011
      %1076 = vst [vmem:[%s271 + $0x18] sm:$0xff] %v1012
      %1077 = vst [vmem:[%s271 + $0x20] sm:$0xff] %v1013
      %1078 = vst [vmem:[%s271 + $0x28] sm:$0xff] %v1014
      %1079 = vst [vmem:[%s271 + $0x30] sm:$0xff] %v1015
      %1080 = vst [vmem:[%s271 + $0x38] sm:$0xff] %v1016
      %1081 = vst [vmem:[%s271 + $0x40] sm:$0xff] %v1017
      %1082 = vst [vmem:[%s271 + $0x48] sm:$0xff] %v1018
      %1083 = vst [vmem:[%s271 + $0x50] sm:$0xff] %v1019
      %1084 = vst [vmem:[%s271 + $0x58] sm:$0xff] %v1020
      %1085 = vst [vmem:[%s271 + $0x60] sm:$0xff] %v1021
      %1086 = vst [vmem:[%s271 + $0x68] sm:$0xff] %v1022
      %1087 = vst [vmem:[%s271 + $0x70] sm:$0xff] %v1023
      %1088 = vst [vmem:[%s271 + $0x78] sm:$0xff] %v1024
      %1089 = vst [vmem:[%s271 + $0x80] sm:$0xff] %v1025
      %1090 = vst [vmem:[%s271 + $0x88] sm:$0xff] %v1026
      %1091 = vst [vmem:[%s271 + $0x90] sm:$0xff] %v1027
      %1092 = vst [vmem:[%s271 + $0x98] sm:$0xff] %v1028
      %1093 = vst [vmem:[%s271 + $0xa0] sm:$0xff] %v1029
      %1094 = vst [vmem:[%s271 + $0xa8] sm:$0xff] %v1030
      %1095 = vst [vmem:[%s271 + $0xb0] sm:$0xff] %v1031
      %1096 = vst [vmem:[%s271 + $0xb8] sm:$0xff] %v1032
      %1097 = vst [vmem:[%s271 + $0xc0] sm:$0xff] %v1033
      %1098 = vst [vmem:[%s271 + $0xc8] sm:$0xff] %v1034
      %1099 = vst [vmem:[%s271 + $0xd0] sm:$0xff] %v1035
      %1100 = vst [vmem:[%s271 + $0xd8] sm:$0xff] %v1036
      %1101 = vst [vmem:[%s271 + $0xe0] sm:$0xff] %v1037
      %1102 = vst [vmem:[%s271 + $0xe8] sm:$0xff] %v1038
      %1103 = vst [vmem:[%s271 + $0xf0] sm:$0xff] %v1039
      %1104 = vst [vmem:[%s271 + $0xf8] sm:$0xff] %v1040
      %1105 = vst [vmem:[%s271 + $0x100] sm:$0xff] %v1041
      %1106 = vst [vmem:[%s271 + $0x108] sm:$0xff] %v1042
      %1107 = vst [vmem:[%s271 + $0x110] sm:$0xff] %v1043
      %1108 = vst [vmem:[%s271 + $0x118] sm:$0xff] %v1044
      %1109 = vst [vmem:[%s271 + $0x120] sm:$0xff] %v1045
      %1110 = vst [vmem:[%s271 + $0x128] sm:$0xff] %v1046
      %1111 = vst [vmem:[%s271 + $0x130] sm:$0xff] %v1047
      %1112 = vst [vmem:[%s271 + $0x138] sm:$0xff] %v1048
      %1113 = vst [vmem:[%s271 + $0x140] sm:$0xff] %v1049
      %1114 = vst [vmem:[%s271 + $0x148] sm:$0xff] %v1050
      %1115 = vst [vmem:[%s271 + $0x150] sm:$0xff] %v1051
      %1116 = vst [vmem:[%s271 + $0x158] sm:$0xff] %v1052
      %1117 = vst [vmem:[%s271 + $0x160] sm:$0xff] %v1053
      %1118 = vst [vmem:[%s271 + $0x168] sm:$0xff] %v1054
      %1119 = vst [vmem:[%s271 + $0x170] sm:$0xff] %v1055
      %1120 = vst [vmem:[%s271 + $0x178] sm:$0xff] %v1056
      %1121 = vst [vmem:[%s271 + $0x180] sm:$0xff] %v1057
      %1122 = vst [vmem:[%s271 + $0x188] sm:$0xff] %v1058
      %1123 = vst [vmem:[%s271 + $0x190] sm:$0xff] %v1059
      %1124 = vst [vmem:[%s271 + $0x198] sm:$0xff] %v1060
      %1125 = vst [vmem:[%s271 + $0x1a0] sm:$0xff] %v1061
      %1126 = vst [vmem:[%s271 + $0x1a8] sm:$0xff] %v1062
      %1127 = vst [vmem:[%s271 + $0x1b0] sm:$0xff] %v1063
      %1128 = vst [vmem:[%s271 + $0x1b8] sm:$0xff] %v1064
      %1129 = vst [vmem:[%s271 + $0x1c0] sm:$0xff] %v1065
      %1130 = vst [vmem:[%s271 + $0x1c8] sm:$0xff] %v1066
      %1131 = vst [vmem:[%s271 + $0x1d0] sm:$0xff] %v1067
      %1132 = vst [vmem:[%s271 + $0x1d8] sm:$0xff] %v1068
      %1133 = vst [vmem:[%s271 + $0x1e0] sm:$0xff] %v1069
      %1134 = vst [vmem:[%s271 + $0x1e8] sm:$0xff] %v1070
      %1135 = vst [vmem:[%s271 + $0x1f0] sm:$0xff] %v1071
      %1136 = vst [vmem:[%s271 + $0x1f8] sm:$0xff] %v1072
      %s1137 = smul.u32 2, %s20
      %p1138 = scmp.lt.s32.totalorder %s19, 1
      %s1139 = scalar_select %p1138, %s19, 1
      %p1140 = scmp.lt.s32.totalorder %s1137, 1
      %s1141 = scalar_select %p1140, %s1137, 1
      %s1142 = smul.addr %s1139, 64
      %s1143 = sadd.s32 %s1141, %s1142
      %s1144 = smul.addr %s1143, 8
      %s1145 = scalar_lea.vmem %s4, %s1144
      // Predicated region
      $region37: #{bottleneck_ibn_forward.7} parent=35 // pred_check
        %p1146 = pneg %p145
      $region38: #{bottleneck_ibn_forward.7} parent=35 // pred_check_branch
        %1148 = sbr.rel (%p1146) target = $region40
      $region39: #{bottleneck_ibn_forward.7} parent=35 // pred_region
        %s1149 = smul.u32 2, %s20
      $region40: #{bottleneck_ibn_forward.7} parent=35 // pred_fallthru
        _
    $region36: #{bottleneck_ibn_forward.7} parent=5 // pred_fallthru
      _
    %p1150 = scmp.le.s32.totalorder 2, %s10
    // Predicated region
    $region41: #{bottleneck_ibn_forward.7} parent=5 // pred_check
      %p1151 = pneg %p1150
    $region42: #{bottleneck_ibn_forward.7} parent=5 // pred_check_branch
      %1153 = sbr.rel (%p1151) target = $region44
    $region43: #{bottleneck_ibn_forward.7} parent=5 // pred_region
      %s1154 = ssub.s32 %s10, 2
      // Predicated region
      $region45: #{bottleneck_ibn_forward.7} parent=43 // pred_check
        %p1155 = pneg %p151
      $region46: #{bottleneck_ibn_forward.7} parent=43 // pred_check_branch
        %1157 = sbr.rel (%p1155) target = $region48
      $region47: #{bottleneck_ibn_forward.7} parent=43 // pred_region
        %s1158 = smul.u32 2, %s22
        %p1159 = scmp.lt.s32.totalorder %s21, 1
        %s1160 = scalar_select %p1159, %s21, 1
        %p1161 = scmp.lt.s32.totalorder %s1158, 1
        %s1162 = scalar_select %p1161, %s1158, 1
        %s1163 = smul.addr %s1160, 64
        %s1164 = sadd.s32 %s1162, %s1163
        %s1165 = smul.addr %s1164, 8
        %s1166 = scalar_lea.vmem %s4, %s1165
      $region48: #{bottleneck_ibn_forward.7} parent=43 // pred_fallthru
        _
    $region44: #{bottleneck_ibn_forward.7} parent=5 // pred_fallthru
      _
  $region6: #{bottleneck_ibn_forward.7} parent=0 // loop_footer
    %s14 = sadd.s32 1, %s10
  $region7: #{bottleneck_ibn_forward.7} parent=0 // loop_footer_branch
    %9 = sbr.rel target = $region3
  $region8: #{bottleneck_ibn_forward.7} parent=0 // loop_exit
    _

// kernel: bottleneck_ibn_forward.5
$region0: #{bottleneck_ibn_forward.5}
  #allocation0 [shape = 'u32[]', space=smem, size = 0x4, offset = 0x4, fixed_abs, tag = 'smem constant byte address 0x4 - core index']
  #allocation1 [shape = 'u32[144,128]{1,0:T(1,128)}', space=vmem, size = 0x12000, scoped, tag = 'internal scratch']
  #allocation2 [shape = 'bf16[64,512]{1,0:T(16,128)(2,1)}', space=vmem, size = 0x10000, scoped, tag = 'scratch operand']
  %s0 = inlined_call_operand.vmem [shape: bf16[2,64,256], index: 0, kind: input, shape index: {}]
  %s1 = inlined_call_operand.vmem [shape: f32[2,64,1], index: 1, kind: input, shape index: {}]
  %s2 = inlined_call_operand.vmem [shape: f32[2,64,1], index: 2, kind: input, shape index: {}]
  %s3 = inlined_call_operand.vmem [shape: bf16[3,64,192], index: 3, kind: input, shape index: {}]
  %s4 = inlined_call_operand.vmem [shape: bf16[2,64,256], index: 4, kind: output, shape index: {0}]
  %s5 = inlined_call_operand.vmem [shape: f32[2,64,2], index: 5, kind: output, shape index: {1}]
  %6 = xla_tuple %s4, %s5
  %s7 = sld [smem:[#allocation0]]
  $region57: #{bottleneck_ibn_forward.5} parent=0
    _
  %s9 = ssub.s32 1, %s7
  %s10 = scalar_select 0, %s9, %s7
  loop: start=0, step=1, limit=4
  $region2: #{bottleneck_ibn_forward.5} parent=0 // loop_pre_header
    _
  $region3: #{bottleneck_ibn_forward.5} parent=0 // loop_header
    %s12 = sphi 0, %s16
    %p13 = scmp.ge.s32.totalorder %s12, 4
    %s22 = sphi 0, %s24
    %s25 = sphi 0, %s22
    %s26 = sphi 0, %s25
    %s42 = sphi 0, %s26
    %s48 = sphi 0, %s50
    %s51 = sphi 0, %s48
    %s52 = sphi 0, %s51
    %s68 = sphi 0, %s52
    %s74 = sphi 0, %s76
    %s77 = sphi 0, %s74
    %s78 = sphi 0, %s77
    %s94 = sphi 0, %s78
    %s98 = sphi 0, %s98
    %s100 = sphi 0, %s98
    %s101 = sphi 0, %s100
    %s115 = sphi 0, %s101
    %s121 = sphi 0, %s123
    %s124 = sphi 0, %s121
    %s125 = sphi 0, %s124
    %s141 = sphi 0, %s125
    %s147 = sphi 0, %s149
    %s150 = sphi 0, %s147
    %s151 = sphi 0, %s150
    %s167 = sphi 0, %s151
  $region4: #{bottleneck_ibn_forward.5} parent=0 // loop_header_branch
    %15 = sbr.rel (%p13) target = $region8
  $region5: #{bottleneck_ibn_forward.5} parent=0 // loop_body
    %s17 = ssub.s32 %s12, 1
    %s18 = ssub.s32 %s12, 2
    %s19 = sadd.s32 %s12, 1
    %s20 = ssub.s32 %s12, %s19
    %p21 = scmp.eq.s32.totalorder %s20, 0
    %s23 = sadd.s32 %s22, 1
    %s24 = scalar_select %p21, %s22, %s23
    %p27 = pneg %p21
    %p28 = scmp.eq.s32.totalorder %s12, 1
    %p29 = por %p27, %p28
    %p30 = scmp.ne.s32.totalorder %s22, %s25
    %p31 = scmp.eq.s32.totalorder %s12, 0
    %p32 = por %p30, %p31
    %p33 = scmp.ne.s32.totalorder %s22, %s25
    %p34 = scmp.eq.s32.totalorder %s17, 1
    %p35 = por %p33, %p34
    %p36 = scmp.ne.s32.totalorder %s25, %s26
    %p37 = scmp.eq.s32.totalorder %s17, 0
    %p38 = por %p36, %p37
    %p39 = scmp.ne.s32.totalorder %s25, %s26
    %p40 = scmp.eq.s32.totalorder %s18, 1
    %p41 = por %p39, %p40
    %p43 = scmp.ne.s32.totalorder %s26, %s42
    %p44 = scmp.eq.s32.totalorder %s18, 0
    %p45 = por %p43, %p44
    %s46 = ssub.s32 %s12, %s19
    %p47 = scmp.eq.s32.totalorder %s46, 0
    %s49 = sadd.s32 %s48, 1
    %s50 = scalar_select %p47, %s48, %s49
    %p53 = pneg %p47
    %p54 = scmp.eq.s32.totalorder %s12, 1
    %p55 = por %p53, %p54
    %p56 = scmp.ne.s32.totalorder %s48, %s51
    %p57 = scmp.eq.s32.totalorder %s12, 0
    %p58 = por %p56, %p57
    %p59 = scmp.ne.s32.totalorder %s48, %s51
    %p60 = scmp.eq.s32.totalorder %s17, 1
    %p61 = por %p59, %p60
    %p62 = scmp.ne.s32.totalorder %s51, %s52
    %p63 = scmp.eq.s32.totalorder %s17, 0
    %p64 = por %p62, %p63
    %p65 = scmp.ne.s32.totalorder %s51, %s52
    %p66 = scmp.eq.s32.totalorder %s18, 1
    %p67 = por %p65, %p66
    %p69 = scmp.ne.s32.totalorder %s52, %s68
    %p70 = scmp.eq.s32.totalorder %s18, 0
    %p71 = por %p69, %p70
    %s72 = ssub.s32 %s12, %s19
    %p73 = scmp.eq.s32.totalorder %s72, 0
    %s75 = sadd.s32 %s74, 1
    %s76 = scalar_select %p73, %s74, %s75
    %p79 = pneg %p73
    %p80 = scmp.eq.s32.totalorder %s12, 1
    %p81 = por %p79, %p80
    %p82 = scmp.ne.s32.totalorder %s74, %s77
    %p83 = scmp.eq.s32.totalorder %s12, 0
    %p84 = por %p82, %p83
    %p85 = scmp.ne.s32.totalorder %s74, %s77
    %p86 = scmp.eq.s32.totalorder %s17, 1
    %p87 = por %p85, %p86
    %p88 = scmp.ne.s32.totalorder %s77, %s78
    %p89 = scmp.eq.s32.totalorder %s17, 0
    %p90 = por %p88, %p89
    %p91 = scmp.ne.s32.totalorder %s77, %s78
    %p92 = scmp.eq.s32.totalorder %s18, 1
    %p93 = por %p91, %p92
    %p95 = scmp.ne.s32.totalorder %s78, %s94
    %p96 = scmp.eq.s32.totalorder %s18, 0
    %p97 = por %p95, %p96
    %s99 = sadd.s32 %s98, 1
    %p102 = scmp.eq.s32.totalorder %s12, 1
    %p103 = scmp.ne.s32.totalorder %s98, %s100
    %p104 = scmp.eq.s32.totalorder %s12, 0
    %p105 = por %p103, %p104
    %p106 = scmp.ne.s32.totalorder %s98, %s100
    %p107 = scmp.eq.s32.totalorder %s17, 1
    %p108 = por %p106, %p107
    %p109 = scmp.ne.s32.totalorder %s100, %s101
    %p110 = scmp.eq.s32.totalorder %s17, 0
    %p111 = por %p109, %p110
    %p112 = scmp.ne.s32.totalorder %s100, %s101
    %p113 = scmp.eq.s32.totalorder %s18, 1
    %p114 = por %p112, %p113
    %p116 = scmp.ne.s32.totalorder %s101, %s115
    %p117 = scmp.eq.s32.totalorder %s18, 0
    %p118 = por %p116, %p117
    %s119 = ssub.s32 %s12, %s19
    %p120 = scmp.eq.s32.totalorder %s119, 0
    %s122 = sadd.s32 %s121, 1
    %s123 = scalar_select %p120, %s121, %s122
    %p126 = pneg %p120
    %p127 = scmp.eq.s32.totalorder %s12, 1
    %p128 = por %p126, %p127
    %p129 = scmp.ne.s32.totalorder %s121, %s124
    %p130 = scmp.eq.s32.totalorder %s12, 0
    %p131 = por %p129, %p130
    %p132 = scmp.ne.s32.totalorder %s121, %s124
    %p133 = scmp.eq.s32.totalorder %s17, 1
    %p134 = por %p132, %p133
    %p135 = scmp.ne.s32.totalorder %s124, %s125
    %p136 = scmp.eq.s32.totalorder %s17, 0
    %p137 = por %p135, %p136
    %p138 = scmp.ne.s32.totalorder %s124, %s125
    %p139 = scmp.eq.s32.totalorder %s18, 1
    %p140 = por %p138, %p139
    %p142 = scmp.ne.s32.totalorder %s125, %s141
    %p143 = scmp.eq.s32.totalorder %s18, 0
    %p144 = por %p142, %p143
    %s145 = ssub.s32 %s12, %s19
    %p146 = scmp.eq.s32.totalorder %s145, 0
    %s148 = sadd.s32 %s147, 1
    %s149 = scalar_select %p146, %s147, %s148
    %p152 = pneg %p146
    %p153 = scmp.eq.s32.totalorder %s12, 1
    %p154 = por %p152, %p153
    %p155 = scmp.ne.s32.totalorder %s147, %s150
    %p156 = scmp.eq.s32.totalorder %s12, 0
    %p157 = por %p155, %p156
    %p158 = scmp.ne.s32.totalorder %s147, %s150
    %p159 = scmp.eq.s32.totalorder %s17, 1
    %p160 = por %p158, %p159
    %p161 = scmp.ne.s32.totalorder %s150, %s151
    %p162 = scmp.eq.s32.totalorder %s17, 0
    %p163 = por %p161, %p162
    %p164 = scmp.ne.s32.totalorder %s150, %s151
    %p165 = scmp.eq.s32.totalorder %s18, 1
    %p166 = por %p164, %p165
    %p168 = scmp.ne.s32.totalorder %s151, %s167
    %p169 = scmp.eq.s32.totalorder %s18, 0
    %p170 = por %p168, %p169
    %p171 = scmp.le.s32.totalorder 1, %s12
    %p172 = scmp.lt.s32.totalorder %s12, 3
    %p173 = pnand %p171, %p172
    %p174 = pneg %p173
    // Predicated region
    $region9: #{bottleneck_ibn_forward.5} parent=5 // pred_check
      _
    $region10: #{bottleneck_ibn_forward.5} parent=5 // pred_check_branch
      %176 = sbr.rel (%p173) target = $region12
    $region11: #{bottleneck_ibn_forward.5} parent=5 // pred_region
      %s177 = ssub.s32 %s12, 1
      // Predicated region
      $region13: #{bottleneck_ibn_forward.5} parent=11 // pred_check
        %p178 = pneg %p111
      $region14: #{bottleneck_ibn_forward.5} parent=11 // pred_check_branch
        %180 = sbr.rel (%p178) target = $region16
      $region15: #{bottleneck_ibn_forward.5} parent=11 // pred_region
        _
      $region16: #{bottleneck_ibn_forward.5} parent=11 // pred_fallthru
        _
    $region12: #{bottleneck_ibn_forward.5} parent=5 // pred_fallthru
      _
    %p181 = scmp.lt.s32.totalorder %s12, 2
    // Predicated region
    $region17: #{bottleneck_ibn_forward.5} parent=5 // pred_check
      %p182 = pneg %p181
    $region18: #{bottleneck_ibn_forward.5} parent=5 // pred_check_branch
      %184 = sbr.rel (%p182) target = $region20
    $region19: #{bottleneck_ibn_forward.5} parent=5 // pred_region
      // Predicated region
      $region21: #{bottleneck_ibn_forward.5} parent=19 // pred_check
        %p185 = pneg %p32
      $region22: #{bottleneck_ibn_forward.5} parent=19 // pred_check_branch
        %187 = sbr.rel (%p185) target = $region24
      $region23: #{bottleneck_ibn_forward.5} parent=19 // pred_region
        %p188 = scmp.lt.s32.totalorder %s12, 1
        %s189 = scalar_select %p188, %s12, 1
        %s190 = smul.addr %s189, 16
        %s191 = smul.addr %s190, 4
        %s192 = scalar_lea.vmem %s0, %s191
      $region24: #{bottleneck_ibn_forward.5} parent=19 // pred_fallthru
        _
      // Predicated region
      $region25: #{bottleneck_ibn_forward.5} parent=19 // pred_check
        %p193 = pneg %p58
      $region26: #{bottleneck_ibn_forward.5} parent=19 // pred_check_branch
        %195 = sbr.rel (%p193) target = $region28
      $region27: #{bottleneck_ibn_forward.5} parent=19 // pred_region
        %p196 = scmp.lt.s32.totalorder %s12, 1
        %s197 = scalar_select %p196, %s12, 1
        %s198 = smul.addr %s197, 8
        %s199 = smul.addr %s198, 8
        %s200 = scalar_lea.vmem %s1, %s199
      $region28: #{bottleneck_ibn_forward.5} parent=19 // pred_fallthru
        _
      // Predicated region
      $region29: #{bottleneck_ibn_forward.5} parent=19 // pred_check
        %p201 = pneg %p84
      $region30: #{bottleneck_ibn_forward.5} parent=19 // pred_check_branch
        %203 = sbr.rel (%p201) target = $region32
      $region31: #{bottleneck_ibn_forward.5} parent=19 // pred_region
        %p204 = scmp.lt.s32.totalorder %s12, 1
        %s205 = scalar_select %p204, %s12, 1
        %s206 = smul.addr %s205, 8
        %s207 = smul.addr %s206, 8
        %s208 = scalar_lea.vmem %s2, %s207
      $region32: #{bottleneck_ibn_forward.5} parent=19 // pred_fallthru
        _
    $region20: #{bottleneck_ibn_forward.5} parent=5 // pred_fallthru
      _
    %p209 = scmp.le.s32.totalorder 1, %s12
    %p210 = scmp.lt.s32.totalorder %s12, 3
    %p211 = pnand %p209, %p210
    %p212 = pneg %p211
    // Predicated region
    $region33: #{bottleneck_ibn_forward.5} parent=5 // pred_check
      _
    $region34: #{bottleneck_ibn_forward.5} parent=5 // pred_check_branch
      %214 = sbr.rel (%p211) target = $region36
    $region35: #{bottleneck_ibn_forward.5} parent=5 // pred_region
      %s215 = ssub.s32 %s12, 1
      %p216 = scmp.lt.s32.totalorder %s17, 1
      %s217 = scalar_select %p216, %s17, 1
      %s218 = smul.addr %s217, 16
      %s219 = smul.addr %s218, 4
      %s220 = scalar_lea.vmem %s0, %s219
      %p221 = pneg %p38
      %p222 = pneg %p35
      %p223 = scmp.lt.s32.totalorder %s17, 1
      %s224 = scalar_select %p223, %s17, 1
      %s225 = smul.addr %s224, 8
      %s226 = smul.addr %s225, 8
      %s227 = scalar_lea.vmem %s1, %s226
      %p228 = pneg %p64
      %p229 = pneg %p61
      %p230 = scmp.lt.s32.totalorder %s17, 1
      %s231 = scalar_select %p230, %s17, 1
      %s232 = smul.addr %s231, 8
      %s233 = smul.addr %s232, 8
      %s234 = scalar_lea.vmem %s2, %s233
      %p235 = pneg %p90
      %p236 = pneg %p87
      %p237 = pneg %p111
      %p238 = pneg %p108
      %p239 = pneg %p137
      %p240 = pneg %p134
      %p241 = scmp.lt.s32.totalorder %s17, 1
      %s242 = scalar_select %p241, %s17, 1
      %s243 = smul.addr %s242, 16
      %s244 = smul.addr %s243, 4
      %s245 = scalar_lea.vmem %s4, %s244
      %p246 = pneg %p163
      %p247 = pneg %p160
      %p248 = scmp.lt.s32.totalorder %s17, 1
      %s249 = scalar_select %p248, %s17, 1
      %s250 = smul.addr %s249, 8
      %s251 = smul.addr %s250, 8
      %s252 = scalar_lea.vmem %s5, %s251
      %p253 = scmp.lt.s32.totalorder %s17, 1
      %s254 = scalar_select %p253, %s17, 1
      %s255 = smul.addr %s254, 16
      %s256 = smul.addr %s255, 4
      %s257 = scalar_lea.vmem %s0, %s256
      %p258 = scmp.lt.s32.totalorder %s17, 1
      %s259 = scalar_select %p258, %s17, 1
      %s260 = smul.addr %s259, 8
      %s261 = smul.addr %s260, 8
      %s262 = scalar_lea.vmem %s1, %s261
      %p263 = scmp.lt.s32.totalorder %s17, 1
      %s264 = scalar_select %p263, %s17, 1
      %s265 = smul.addr %s264, 8
      %s266 = smul.addr %s265, 8
      %s267 = scalar_lea.vmem %s2, %s266
      %p268 = scmp.lt.s32.totalorder %s17, 1
      %s269 = scalar_select %p268, %s17, 1
      %s270 = smul.addr %s269, 16
      %s271 = smul.addr %s270, 4
      %s272 = scalar_lea.vmem %s4, %s271
      %p273 = scmp.lt.s32.totalorder %s17, 1
      %s274 = scalar_select %p273, %s17, 1
      %s275 = smul.addr %s274, 8
      %s276 = smul.addr %s275, 8
      %s277 = scalar_lea.vmem %s5, %s276
      %vm281 = vcmask 1048440
      %282 = vst.msk [vmem:[#allocation2] sm:$0xff] %vm281, 0
      %283 = vst.msk [vmem:[#allocation2 + $0x20] sm:$0xff] %vm281, 0
      %284 = vst.msk [vmem:[#allocation2 + $0x40] sm:$0xff] %vm281, 0
      %285 = vst.msk [vmem:[#allocation2 + $0x60] sm:$0xff] %vm281, 0
      %vm286 = vcmask 138240
      %287 = vst.msk [vmem:[#allocation2 + $0x18] sm:$0xff] %vm286, 0
      %288 = vst.msk [vmem:[#allocation2 + $0x38] sm:$0xff] %vm286, 0
      %289 = vst.msk [vmem:[#allocation2 + $0x58] sm:$0xff] %vm286, 0
      %290 = vst.msk [vmem:[#allocation2 + $0x78] sm:$0xff] %vm286, 0
      %v291 = vld [vmem:[%s257] sm:$0xff]
      %v292 = vld [vmem:[%s257 + $0x8] sm:$0xff]
      %v293 = vld [vmem:[%s257 + $0x10] sm:$0xff]
      %v294 = vld [vmem:[%s257 + $0x18] sm:$0xff]
      %v295 = vld [vmem:[%s257 + $0x20] sm:$0xff]
      %v296 = vld [vmem:[%s257 + $0x28] sm:$0xff]
      %v297 = vld [vmem:[%s257 + $0x30] sm:$0xff]
      %v298 = vld [vmem:[%s257 + $0x38] sm:$0xff]
      %v299 = vunpack.c.l.bf16 %v291
      %v300 = vunpack.c.h.bf16 %v291
      %v301 = vunpack.c.l.bf16 %v292
      %v302 = vunpack.c.h.bf16 %v292
      %v303 = vunpack.c.l.bf16 %v293
      %v304 = vunpack.c.h.bf16 %v293
      %v305 = vunpack.c.l.bf16 %v294
      %v306 = vunpack.c.h.bf16 %v294
      %v307 = vunpack.c.l.bf16 %v295
      %v308 = vunpack.c.h.bf16 %v295
      %v309 = vunpack.c.l.bf16 %v296
      %v310 = vunpack.c.h.bf16 %v296
      %v311 = vunpack.c.l.bf16 %v297
      %v312 = vunpack.c.h.bf16 %v297
      %v313 = vunpack.c.l.bf16 %v298
      %v314 = vunpack.c.h.bf16 %v298
      %v315 = vld [vmem:[%s262] sm:$0xff]
      %v316 = vld [vmem:[%s262 + $0x8] sm:$0xff]
      %v317 = vld [vmem:[%s262 + $0x10] sm:$0xff]
      %v318 = vld [vmem:[%s262 + $0x18] sm:$0xff]
      %v319 = vld [vmem:[%s262 + $0x20] sm:$0xff]
      %v320 = vld [vmem:[%s262 + $0x28] sm:$0xff]
      %v321 = vld [vmem:[%s262 + $0x30] sm:$0xff]
      %v322 = vld [vmem:[%s262 + $0x38] sm:$0xff]
      %324 = vset.pattern.permute.xlu0 0
      %325 = vperm.xlu0 %324, %v315
      %v326 = vpop.permute.xlu0 %325
      %329 = vset.pattern.permute.xlu0 0
      %330 = vperm.xlu0 %329, %v316
      %v331 = vpop.permute.xlu0 %330
      %334 = vset.pattern.permute.xlu0 0
      %335 = vperm.xlu0 %334, %v317
      %v336 = vpop.permute.xlu0 %335
      %339 = vset.pattern.permute.xlu0 0
      %340 = vperm.xlu0 %339, %v318
      %v341 = vpop.permute.xlu0 %340
      %344 = vset.pattern.permute.xlu0 0
      %345 = vperm.xlu0 %344, %v319
      %v346 = vpop.permute.xlu0 %345
      %349 = vset.pattern.permute.xlu0 0
      %350 = vperm.xlu0 %349, %v320
      %v351 = vpop.permute.xlu0 %350
      %354 = vset.pattern.permute.xlu0 0
      %355 = vperm.xlu0 %354, %v321
      %v356 = vpop.permute.xlu0 %355
      %359 = vset.pattern.permute.xlu0 0
      %360 = vperm.xlu0 %359, %v322
      %v361 = vpop.permute.xlu0 %360
      %v363 = vmul.f32 %v299, %v326
      %v364 = vmul.f32 %v300, %v326
      %v365 = vmul.f32 %v301, %v331
      %v366 = vmul.f32 %v302, %v331
      %v367 = vmul.f32 %v303, %v336
      %v368 = vmul.f32 %v304, %v336
      %v369 = vmul.f32 %v305, %v341
      %v370 = vmul.f32 %v306, %v341
      %v371 = vmul.f32 %v307, %v346
      %v372 = vmul.f32 %v308, %v346
      %v373 = vmul.f32 %v309, %v351
      %v374 = vmul.f32 %v310, %v351
      %v375 = vmul.f32 %v311, %v356
      %v376 = vmul.f32 %v312, %v356
      %v377 = vmul.f32 %v313, %v361
      %v378 = vmul.f32 %v314, %v361
      %v379 = vld [vmem:[%s267] sm:$0xff]
      %v380 = vld [vmem:[%s267 + $0x8] sm:$0xff]
      %v381 = vld [vmem:[%s267 + $0x10] sm:$0xff]
      %v382 = vld [vmem:[%s267 + $0x18] sm:$0xff]
      %v383 = vld [vmem:[%s267 + $0x20] sm:$0xff]
      %v384 = vld [vmem:[%s267 + $0x28] sm:$0xff]
      %v385 = vld [vmem:[%s267 + $0x30] sm:$0xff]
      %v386 = vld [vmem:[%s267 + $0x38] sm:$0xff]
      %388 = vset.pattern.permute.xlu0 0
      %389 = vperm.xlu0 %388, %v379
      %v390 = vpop.permute.xlu0 %389
      %393 = vset.pattern.permute.xlu0 0
      %394 = vperm.xlu0 %393, %v380
      %v395 = vpop.permute.xlu0 %394
      %398 = vset.pattern.permute.xlu0 0
      %399 = vperm.xlu0 %398, %v381
      %v400 = vpop.permute.xlu0 %399
      %403 = vset.pattern.permute.xlu0 0
      %404 = vperm.xlu0 %403, %v382
      %v405 = vpop.permute.xlu0 %404
      %408 = vset.pattern.permute.xlu0 0
      %409 = vperm.xlu0 %408, %v383
      %v410 = vpop.permute.xlu0 %409
      %413 = vset.pattern.permute.xlu0 0
      %414 = vperm.xlu0 %413, %v384
      %v415 = vpop.permute.xlu0 %414
      %418 = vset.pattern.permute.xlu0 0
      %419 = vperm.xlu0 %418, %v385
      %v420 = vpop.permute.xlu0 %419
      %423 = vset.pattern.permute.xlu0 0
      %424 = vperm.xlu0 %423, %v386
      %v425 = vpop.permute.xlu0 %424
      %v427 = vadd.f32 %v363, %v390
      %v428 = vadd.f32 %v364, %v390
      %v429 = vadd.f32 %v365, %v395
      %v430 = vadd.f32 %v366, %v395
      %v431 = vadd.f32 %v367, %v400
      %v432 = vadd.f32 %v368, %v400
      %v433 = vadd.f32 %v369, %v405
      %v434 = vadd.f32 %v370, %v405
      %v435 = vadd.f32 %v371, %v410
      %v436 = vadd.f32 %v372, %v410
      %v437 = vadd.f32 %v373, %v415
      %v438 = vadd.f32 %v374, %v415
      %v439 = vadd.f32 %v375, %v420
      %v440 = vadd.f32 %v376, %v420
      %v441 = vadd.f32 %v377, %v425
      %v442 = vadd.f32 %v378, %v425
      %v443 = vmax.f32 %v427, 0.0
      %v444 = vmax.f32 %v428, 0.0
      %v445 = vmax.f32 %v429, 0.0
      %v446 = vmax.f32 %v430, 0.0
      %v447 = vmax.f32 %v431, 0.0
      %v448 = vmax.f32 %v432, 0.0
      %v449 = vmax.f32 %v433, 0.0
      %v450 = vmax.f32 %v434, 0.0
      %v451 = vmax.f32 %v435, 0.0
      %v452 = vmax.f32 %v436, 0.0
      %v453 = vmax.f32 %v437, 0.0
      %v454 = vmax.f32 %v438, 0.0
      %v455 = vmax.f32 %v439, 0.0
      %v456 = vmax.f32 %v440, 0.0
      %v457 = vmax.f32 %v441, 0.0
      %v458 = vmax.f32 %v442, 0.0
      %v459 = vpack.c.bf16 %v445, %v443
      %v460 = vpack.c.bf16 %v446, %v444
      %v461 = vpack.c.bf16 %v449, %v447
      %v462 = vpack.c.bf16 %v450, %v448
      %v463 = vpack.c.bf16 %v453, %v451
      %v464 = vpack.c.bf16 %v454, %v452
      %v465 = vpack.c.bf16 %v457, %v455
      %v466 = vpack.c.bf16 %v458, %v456
      %467 = vst [vmem:[#allocation2 + $0x8] sm:$0xff] %v459
      %468 = vst [vmem:[#allocation2 + $0x10] sm:$0xff] %v460
      %469 = vst [vmem:[#allocation2 + $0x28] sm:$0xff] %v461
      %470 = vst [vmem:[#allocation2 + $0x30] sm:$0xff] %v462
      %471 = vst [vmem:[#allocation2 + $0x48] sm:$0xff] %v463
      %472 = vst [vmem:[#allocation2 + $0x50] sm:$0xff] %v464
      %473 = vst [vmem:[#allocation2 + $0x68] sm:$0xff] %v465
      %474 = vst [vmem:[#allocation2 + $0x70] sm:$0xff] %v466
      %v475 = vlaneseq
      %v476 = vand.u32 %v475, 127
      %vm477 = vcmp.lt.s32.totalorder %v476, 0
      %v478 = vsub.s32 0, %v476
      %v479 = vsel %vm477, %v478, %v476
      %v480 = vshrl.u32 %v479, 4
      %v481 = vand.u32 %v479, 15
      %v482 = vsub.s32 0, %v481
      %v483 = vsel %vm477, %v482, %v481
      %vm484 = vcmp.ne.s32.totalorder %v483, 0
      %vm485 = vcmp.lt.s32.totalorder %v483, 0
      %vm486 = vmand %vm485, %vm484
      %v487 = vadd.s32 %v483, 16
      %v488 = vsel %vm486, %v487, %v483
      %vm489 = vcmp.ne.s32.totalorder %v488, 0
      %vm490 = vcmp.ne.s32.totalorder %v488, 15
      %v491 = vld [vmem:[#allocation2] sm:$0xff]
      %v492 = vld [vmem:[#allocation2 + $0x8] sm:$0xff]
      %v493 = vld [vmem:[#allocation2 + $0x20] sm:$0xff]
      %v494 = vld [vmem:[#allocation2 + $0x28] sm:$0xff]
      %v495 = vld [vmem:[#allocation2 + $0x40] sm:$0xff]
      %v496 = vld [vmem:[#allocation2 + $0x48] sm:$0xff]
      %v497 = vld [vmem:[#allocation2 + $0x60] sm:$0xff]
      %v498 = vld [vmem:[#allocation2 + $0x68] sm:$0xff]
      %v499 = vsel %vm489, 1, 0
      %vm500 = vcmp.eq.s32.totalorder %v499, 1
      %vm501 = vmpackc.low %vm500, %vm500
      %v502 = vsel %vm501, 65537, 0
      %v503 = vlaneseq
      %v504 = vshrl.u32 %v503, 7
      %v505 = vsub.s32 0, %v504
      %v506 = vrot.slane %v502, %v505
      %507 = vrot.lane.b32.xlu0 %v506, 111
      %v508 = vpop.permute.xlu0 %507
      %vm509 = vcmp.ne.s16.totalorder %v508, 0
      %v510 = vsel %vm509, %v491, 0
      %v511 = vsel %vm509, %v492, 0
      %v512 = vsel %vm509, %v493, 0
      %v513 = vsel %vm509, %v494, 0
      %v514 = vsel %vm509, %v495, 0
      %v515 = vsel %vm509, %v496, 0
      %v516 = vsel %vm509, %v497, 0
      %v517 = vsel %vm509, %v498, 0
      %v518 = vsel %vm490, 1, 0
      %vm519 = vcmp.eq.s32.totalorder %v518, 1
      %vm520 = vmpackc.low %vm519, %vm519
      %v521 = vsel %vm520, 65537, 0
      %v522 = vlaneseq
      %v523 = vshrl.u32 %v522, 7
      %v524 = vsub.s32 0, %v523
      %v525 = vrot.slane %v521, %v524
      %526 = vrot.lane.b32.xlu0 %v525, 113
      %v527 = vpop.permute.xlu0 %526
      %vm528 = vcmp.ne.s16.totalorder %v527, 0
      %v529 = vsel %vm528, %v491, 0
      %v530 = vsel %vm528, %v492, 0
      %v531 = vsel %vm528, %v493, 0
      %v532 = vsel %vm528, %v494, 0
      %v533 = vsel %vm528, %v495, 0
      %v534 = vsel %vm528, %v496, 0
      %v535 = vsel %vm528, %v497, 0
      %v536 = vsel %vm528, %v498, 0
      %545 = vrot.lane.b32.xlu0 %v491, 127
      %v546 = vpop.permute.xlu0 %545
      %547 = vrot.lane.b32.xlu0 %v492, 127
      %v548 = vpop.permute.xlu0 %547
      %549 = vrot.lane.b32.xlu0 %v493, 127
      %v550 = vpop.permute.xlu0 %549
      %551 = vrot.lane.b32.xlu0 %v494, 127
      %v552 = vpop.permute.xlu0 %551
      %553 = vrot.lane.b32.xlu0 %v495, 127
      %v554 = vpop.permute.xlu0 %553
      %555 = vrot.lane.b32.xlu0 %v496, 127
      %v556 = vpop.permute.xlu0 %555
      %557 = vrot.lane.b32.xlu0 %v497, 127
      %v558 = vpop.permute.xlu0 %557
      %559 = vrot.lane.b32.xlu0 %v498, 127
      %v560 = vpop.permute.xlu0 %559
      %vm561 = vcmask 1039360
      %v562 = vsel %vm561, %v546, %v548
      %v563 = vsel %vm561, %v550, %v552
      %v564 = vsel %vm561, %v554, %v556
      %v565 = vsel %vm561, %v558, %v560
      %574 = vrot.lane.b32.xlu0 %v529, 126
      %v575 = vpop.permute.xlu0 %574
      %576 = vrot.lane.b32.xlu0 %v530, 126
      %v577 = vpop.permute.xlu0 %576
      %578 = vrot.lane.b32.xlu0 %v531, 126
      %v579 = vpop.permute.xlu0 %578
      %580 = vrot.lane.b32.xlu0 %v532, 126
      %v581 = vpop.permute.xlu0 %580
      %582 = vrot.lane.b32.xlu0 %v533, 126
      %v583 = vpop.permute.xlu0 %582
      %584 = vrot.lane.b32.xlu0 %v534, 126
      %v585 = vpop.permute.xlu0 %584
      %586 = vrot.lane.b32.xlu0 %v535, 126
      %v587 = vpop.permute.xlu0 %586
      %588 = vrot.lane.b32.xlu0 %v536, 126
      %v589 = vpop.permute.xlu0 %588
      %vm590 = vcmask 1031168
      %v591 = vsel %vm590, %v575, %v577
      %v592 = vsel %vm590, %v579, %v581
      %v593 = vsel %vm590, %v583, %v585
      %v594 = vsel %vm590, %v587, %v589
      %v595 = vld [vmem:[%s3] sm:$0xff]
      %v596 = vld [vmem:[%s3 + $0x8] sm:$0xff]
      %v597 = vld [vmem:[%s3 + $0x10] sm:$0xff]
      %v598 = vld [vmem:[%s3 + $0x18] sm:$0xff]
      %v599 = vld [vmem:[%s3 + $0x20] sm:$0xff]
      %v600 = vld [vmem:[%s3 + $0x28] sm:$0xff]
      %v601 = vld [vmem:[%s3 + $0x30] sm:$0xff]
      %v602 = vld [vmem:[%s3 + $0x38] sm:$0xff]
      %v603 = vld [vmem:[#allocation2 + $0x10] sm:$0xff]
      %v604 = vld [vmem:[#allocation2 + $0x30] sm:$0xff]
      %v605 = vld [vmem:[#allocation2 + $0x50] sm:$0xff]
      %v606 = vld [vmem:[#allocation2 + $0x70] sm:$0xff]
      %607 = vrot.lane.b32.xlu0 %v506, 127
      %v608 = vpop.permute.xlu0 %607
      %vm609 = vcmp.ne.s16.totalorder %v608, 0
      %v610 = vsel %vm609, %v491, 0
      %v611 = vsel %vm609, %v492, 0
      %v612 = vsel %vm609, %v493, 0
      %v613 = vsel %vm609, %v494, 0
      %v614 = vsel %vm609, %v495, 0
      %v615 = vsel %vm609, %v496, 0
      %v616 = vsel %vm609, %v497, 0
      %v617 = vsel %vm609, %v498, 0
      %618 = vrot.lane.b32.xlu0 %v525, 1
      %v619 = vpop.permute.xlu0 %618
      %vm620 = vcmp.ne.s16.totalorder %v619, 0
      %v621 = vsel %vm620, %v492, 0
      %v622 = vsel %vm620, %v603, 0
      %v623 = vsel %vm620, %v494, 0
      %v624 = vsel %vm620, %v604, 0
      %v625 = vsel %vm620, %v496, 0
      %v626 = vsel %vm620, %v605, 0
      %v627 = vsel %vm620, %v498, 0
      %v628 = vsel %vm620, %v606, 0
      %637 = vrot.lane.b32.xlu0 %v621, 126
      %v638 = vpop.permute.xlu0 %637
      %639 = vrot.lane.b32.xlu0 %v622, 126
      %v640 = vpop.permute.xlu0 %639
      %641 = vrot.lane.b32.xlu0 %v623, 126
      %v642 = vpop.permute.xlu0 %641
      %643 = vrot.lane.b32.xlu0 %v624, 126
      %v644 = vpop.permute.xlu0 %643
      %645 = vrot.lane.b32.xlu0 %v625, 126
      %v646 = vpop.permute.xlu0 %645
      %647 = vrot.lane.b32.xlu0 %v626, 126
      %v648 = vpop.permute.xlu0 %647
      %649 = vrot.lane.b32.xlu0 %v627, 126
      %v650 = vpop.permute.xlu0 %649
      %651 = vrot.lane.b32.xlu0 %v628, 126
      %v652 = vpop.permute.xlu0 %651
      %v653 = vsel %vm590, %v638, %v640
      %v654 = vsel %vm590, %v642, %v644
      %v655 = vsel %vm590, %v646, %v648
      %v656 = vsel %vm590, %v650, %v652
      %s657 = scalar_lea.vmem %s3, 64
      %v658 = vld [vmem:[%s657] sm:$0xff]
      %v659 = vld [vmem:[%s657 + $0x8] sm:$0xff]
      %v660 = vld [vmem:[%s657 + $0x10] sm:$0xff]
      %v661 = vld [vmem:[%s657 + $0x18] sm:$0xff]
      %v662 = vld [vmem:[%s657 + $0x20] sm:$0xff]
      %v663 = vld [vmem:[%s657 + $0x28] sm:$0xff]
      %v664 = vld [vmem:[%s657 + $0x30] sm:$0xff]
      %v665 = vld [vmem:[%s657 + $0x38] sm:$0xff]
      %v674 = vunpack.c.l.b16 %v658
      %v675 = vunpack.c.h.b16 %v658
      %v676 = vunpack.c.l.b16 %v659
      %v677 = vunpack.c.h.b16 %v659
      %v678 = vunpack.c.l.b16 %v660
      %v679 = vunpack.c.h.b16 %v660
      %v680 = vunpack.c.l.b16 %v661
      %v681 = vunpack.c.h.b16 %v661
      %v682 = vunpack.c.l.b16 %v662
      %v683 = vunpack.c.h.b16 %v662
      %v684 = vunpack.c.l.b16 %v663
      %v685 = vunpack.c.h.b16 %v663
      %v686 = vunpack.c.l.b16 %v664
      %v687 = vunpack.c.h.b16 %v664
      %v688 = vunpack.c.l.b16 %v665
      %v689 = vunpack.c.h.b16 %v665
      %v690 = vpack.c.b16 %v676, %v674
      %v691 = vpack.c.b16 %v677, %v675
      %v692 = vpack.c.b16 %v680, %v678
      %v693 = vpack.c.b16 %v681, %v679
      %v694 = vpack.c.b16 %v684, %v682
      %v695 = vpack.c.b16 %v685, %v683
      %v696 = vpack.c.b16 %v688, %v686
      %v697 = vpack.c.b16 %v689, %v687
      %710 = vrot.lane.b32.xlu0 %v610, 1
      %v711 = vpop.permute.xlu0 %710
      %712 = vrot.lane.b32.xlu0 %v611, 1
      %v713 = vpop.permute.xlu0 %712
      %714 = vrot.lane.b32.xlu0 %v612, 1
      %v715 = vpop.permute.xlu0 %714
      %716 = vrot.lane.b32.xlu0 %v613, 1
      %v717 = vpop.permute.xlu0 %716
      %718 = vrot.lane.b32.xlu0 %v614, 1
      %v719 = vpop.permute.xlu0 %718
      %720 = vrot.lane.b32.xlu0 %v615, 1
      %v721 = vpop.permute.xlu0 %720
      %722 = vrot.lane.b32.xlu0 %v616, 1
      %v723 = vpop.permute.xlu0 %722
      %724 = vrot.lane.b32.xlu0 %v617, 1
      %v725 = vpop.permute.xlu0 %724
      %726 = vrot.lane.b32.xlu0 %v548, 1
      %v727 = vpop.permute.xlu0 %726
      %728 = vrot.lane.b32.xlu0 %v552, 1
      %v729 = vpop.permute.xlu0 %728
      %730 = vrot.lane.b32.xlu0 %v556, 1
      %v731 = vpop.permute.xlu0 %730
      %732 = vrot.lane.b32.xlu0 %v560, 1
      %v733 = vpop.permute.xlu0 %732
      %734 = vrot.lane.b32.xlu0 %v638, 1
      %v735 = vpop.permute.xlu0 %734
      %736 = vrot.lane.b32.xlu0 %v653, 1
      %v737 = vpop.permute.xlu0 %736
      %738 = vrot.lane.b32.xlu0 %v642, 1
      %v739 = vpop.permute.xlu0 %738
      %740 = vrot.lane.b32.xlu0 %v654, 1
      %v741 = vpop.permute.xlu0 %740
      %742 = vrot.lane.b32.xlu0 %v646, 1
      %v743 = vpop.permute.xlu0 %742
      %744 = vrot.lane.b32.xlu0 %v655, 1
      %v745 = vpop.permute.xlu0 %744
      %746 = vrot.lane.b32.xlu0 %v650, 1
      %v747 = vpop.permute.xlu0 %746
      %748 = vrot.lane.b32.xlu0 %v656, 1
      %v749 = vpop.permute.xlu0 %748
      %vm750 = vcmask 7168
      %v751 = vsel %vm750, %v711, %v713
      %v752 = vsel %vm750, %v715, %v717
      %v753 = vsel %vm750, %v719, %v721
      %v754 = vsel %vm750, %v723, %v725
      %v755 = vsel %vm750, %v735, %v737
      %v756 = vsel %vm750, %v739, %v741
      %v757 = vsel %vm750, %v743, %v745
      %v758 = vsel %vm750, %v747, %v749
      %vm771 = vcmask 523264
      %v773 = vsel %vm771, %v691, 0
      %v776 = vsel %vm771, %v693, 0
      %v779 = vsel %vm771, %v695, 0
      %v782 = vsel %vm771, %v697, 0
      %784 = vmatprep.subr.bf16.mxu0 0
      %785 = vmatpush1.bf16.msra.mxu0 %v751
      %786 = vmatprep.subr.bf16.mxu0 0
      %787 = vmatpush1.bf16.msra.mxu0 %v752
      %788 = vmatprep.subr.bf16.mxu0 0
      %789 = vmatpush1.bf16.msra.mxu0 %v753
      %790 = vmatprep.subr.bf16.mxu0 0
      %791 = vmatpush1.bf16.msra.mxu0 %v754
      %792 = vmatprep.subr.bf16.mxu0 0
      %793 = vmatpush1.bf16.msra.mxu0 %v727
      %794 = vmatprep.subr.bf16.mxu0 0
      %795 = vmatpush1.bf16.msra.mxu0 %v729
      %796 = vmatprep.subr.bf16.mxu0 0
      %797 = vmatpush1.bf16.msra.mxu0 %v731
      %798 = vmatprep.subr.bf16.mxu0 0
      %799 = vmatpush1.bf16.msra.mxu0 %v733
      %800 = vmatprep.subr.bf16.mxu0 0
      %801 = vmatpush1.bf16.msra.mxu0 %v755
      %802 = vmatprep.subr.bf16.mxu0 0
      %803 = vmatpush1.bf16.msra.mxu0 %v756
      %804 = vmatprep.subr.bf16.mxu0 0
      %805 = vmatpush1.bf16.msra.mxu0 %v757
      %806 = vmatprep.subr.bf16.mxu0 0
      %807 = vmatpush1.bf16.msra.mxu0 %v758
      %808 = vmatprep.subr.bf16.mxu0 0
      %809 = vmatpush1.bf16.msra.mxu0 0
      %810 = vmatprep.subr.bf16.mxu0 0
      %811 = vmatpush1.bf16.msra.mxu0 0
      %812 = vmatprep.subr.bf16.mxu0 0
      %813 = vmatpush1.bf16.msra.mxu0 0
      %814 = vmatprep.subr.bf16.mxu0 0
      %815 = vmatpush1.bf16.msra.mxu0 0
      %816 = vmatprep.mubr.bf16.mxu0 %v773
      %817 = vmatmul.mubr.bf16.gmra.mrb[0].mxu0 %v690
      %v818 = vpop.f32.mrb[0].mxu0
      %v819 = vadd.f32 0.0, %v818
      %v820 = vpop.f32.mrb[0].mxu0
      %v821 = vpop.f32.mrb[0].mxu0
      %v822 = vadd.f32 0.0, %v821
      %v823 = vpop.f32.mrb[0].mxu0
      %824 = vmatprep.mubr.bf16.mxu0 %v776
      %825 = vmatmul.mubr.bf16.gmra.mrb[0].mxu0 %v692
      %v826 = vpop.f32.mrb[0].mxu0
      %v827 = vadd.f32 0.0, %v826
      %v828 = vpop.f32.mrb[0].mxu0
      %v829 = vpop.f32.mrb[0].mxu0
      %v830 = vadd.f32 0.0, %v829
      %v831 = vpop.f32.mrb[0].mxu0
      %832 = vmatprep.mubr.bf16.mxu0 %v779
      %833 = vmatmul.mubr.bf16.gmra.mrb[0].mxu0 %v694
      %v834 = vpop.f32.mrb[0].mxu0
      %v835 = vadd.f32 0.0, %v834
      %v836 = vpop.f32.mrb[0].mxu0
      %v837 = vpop.f32.mrb[0].mxu0
      %v838 = vadd.f32 0.0, %v837
      %v839 = vpop.f32.mrb[0].mxu0
      %840 = vmatprep.mubr.bf16.mxu0 %v782
      %841 = vmatmul.mubr.bf16.gmra.mrb[0].mxu0 %v696
      %v842 = vpop.f32.mrb[0].mxu0
      %v843 = vadd.f32 0.0, %v842
      %v844 = vpop.f32.mrb[0].mxu0
      %v845 = vpop.f32.mrb[0].mxu0
      %v846 = vadd.f32 0.0, %v845
      %v847 = vpop.f32.mrb[0].mxu0
      %848 = vdwg.mxu0
      %v857 = vunpack.c.l.b16 %v595
      %v858 = vunpack.c.h.b16 %v595
      %v859 = vunpack.c.l.b16 %v596
      %v860 = vunpack.c.h.b16 %v596
      %v861 = vunpack.c.l.b16 %v597
      %v862 = vunpack.c.h.b16 %v597
      %v863 = vunpack.c.l.b16 %v598
      %v864 = vunpack.c.h.b16 %v598
      %v865 = vunpack.c.l.b16 %v599
      %v866 = vunpack.c.h.b16 %v599
      %v867 = vunpack.c.l.b16 %v600
      %v868 = vunpack.c.h.b16 %v600
      %v869 = vunpack.c.l.b16 %v601
      %v870 = vunpack.c.h.b16 %v601
      %v871 = vunpack.c.l.b16 %v602
      %v872 = vunpack.c.h.b16 %v602
      %v873 = vpack.c.b16 %v859, %v857
      %v874 = vpack.c.b16 %v860, %v858
      %v875 = vpack.c.b16 %v863, %v861
      %v876 = vpack.c.b16 %v864, %v862
      %v877 = vpack.c.b16 %v867, %v865
      %v878 = vpack.c.b16 %v868, %v866
      %v879 = vpack.c.b16 %v871, %v869
      %v880 = vpack.c.b16 %v872, %v870
      %893 = vrot.lane.b32.xlu0 %v510, 17
      %v894 = vpop.permute.xlu0 %893
      %895 = vrot.lane.b32.xlu0 %v511, 17
      %v896 = vpop.permute.xlu0 %895
      %897 = vrot.lane.b32.xlu0 %v512, 17
      %v898 = vpop.permute.xlu0 %897
      %899 = vrot.lane.b32.xlu0 %v513, 17
      %v900 = vpop.permute.xlu0 %899
      %901 = vrot.lane.b32.xlu0 %v514, 17
      %v902 = vpop.permute.xlu0 %901
      %903 = vrot.lane.b32.xlu0 %v515, 17
      %v904 = vpop.permute.xlu0 %903
      %905 = vrot.lane.b32.xlu0 %v516, 17
      %v906 = vpop.permute.xlu0 %905
      %907 = vrot.lane.b32.xlu0 %v517, 17
      %v908 = vpop.permute.xlu0 %907
      %909 = vrot.lane.b32.xlu0 %v562, 17
      %v910 = vpop.permute.xlu0 %909
      %911 = vrot.lane.b32.xlu0 %v548, 17
      %v912 = vpop.permute.xlu0 %911
      %913 = vrot.lane.b32.xlu0 %v563, 17
      %v914 = vpop.permute.xlu0 %913
      %915 = vrot.lane.b32.xlu0 %v552, 17
      %v916 = vpop.permute.xlu0 %915
      %917 = vrot.lane.b32.xlu0 %v564, 17
      %v918 = vpop.permute.xlu0 %917
      %919 = vrot.lane.b32.xlu0 %v556, 17
      %v920 = vpop.permute.xlu0 %919
      %921 = vrot.lane.b32.xlu0 %v565, 17
      %v922 = vpop.permute.xlu0 %921
      %923 = vrot.lane.b32.xlu0 %v560, 17
      %v924 = vpop.permute.xlu0 %923
      %925 = vrot.lane.b32.xlu0 %v591, 17
      %v926 = vpop.permute.xlu0 %925
      %927 = vrot.lane.b32.xlu0 %v577, 17
      %v928 = vpop.permute.xlu0 %927
      %929 = vrot.lane.b32.xlu0 %v592, 17
      %v930 = vpop.permute.xlu0 %929
      %931 = vrot.lane.b32.xlu0 %v581, 17
      %v932 = vpop.permute.xlu0 %931
      %933 = vrot.lane.b32.xlu0 %v593, 17
      %v934 = vpop.permute.xlu0 %933
      %935 = vrot.lane.b32.xlu0 %v585, 17
      %v936 = vpop.permute.xlu0 %935
      %937 = vrot.lane.b32.xlu0 %v594, 17
      %v938 = vpop.permute.xlu0 %937
      %939 = vrot.lane.b32.xlu0 %v589, 17
      %v940 = vpop.permute.xlu0 %939
      %vm941 = vcmask 138240
      %v942 = vsel %vm941, %v894, %v896
      %v943 = vsel %vm941, %v898, %v900
      %v944 = vsel %vm941, %v902, %v904
      %v945 = vsel %vm941, %v906, %v908
      %v946 = vsel %vm941, %v910, %v912
      %v947 = vsel %vm941, %v914, %v916
      %v948 = vsel %vm941, %v918, %v920
      %v949 = vsel %vm941, %v922, %v924
      %v950 = vsel %vm941, %v926, %v928
      %v951 = vsel %vm941, %v930, %v932
      %v952 = vsel %vm941, %v934, %v936
      %v953 = vsel %vm941, %v938, %v940
      %v967 = vsel %vm771, %v874, 0
      %v970 = vsel %vm771, %v876, 0
      %v973 = vsel %vm771, %v878, 0
      %v976 = vsel %vm771, %v880, 0
      %978 = vmatprep.subr.bf16.mxu0 0
      %979 = vmatpush1.bf16.msra.mxu0 %v942
      %980 = vmatprep.subr.bf16.mxu0 0
      %981 = vmatpush1.bf16.msra.mxu0 %v943
      %982 = vmatprep.subr.bf16.mxu0 0
      %983 = vmatpush1.bf16.msra.mxu0 %v944
      %984 = vmatprep.subr.bf16.mxu0 0
      %985 = vmatpush1.bf16.msra.mxu0 %v945
      %986 = vmatprep.subr.bf16.mxu0 0
      %987 = vmatpush1.bf16.msra.mxu0 %v946
      %988 = vmatprep.subr.bf16.mxu0 0
      %989 = vmatpush1.bf16.msra.mxu0 %v947
      %990 = vmatprep.subr.bf16.mxu0 0
      %991 = vmatpush1.bf16.msra.mxu0 %v948
      %992 = vmatprep.subr.bf16.mxu0 0
      %993 = vmatpush1.bf16.msra.mxu0 %v949
      %994 = vmatprep.subr.bf16.mxu0 0
      %995 = vmatpush1.bf16.msra.mxu0 %v950
      %996 = vmatprep.subr.bf16.mxu0 0
      %997 = vmatpush1.bf16.msra.mxu0 %v951
      %998 = vmatprep.subr.bf16.mxu0 0
      %999 = vmatpush1.bf16.msra.mxu0 %v952
      %1000 = vmatprep.subr.bf16.mxu0 0
      %1001 = vmatpush1.bf16.msra.mxu0 %v953
      %1002 = vmatprep.subr.bf16.mxu0 0
      %1003 = vmatpush1.bf16.msra.mxu0 0
      %1004 = vmatprep.subr.bf16.mxu0 0
      %1005 = vmatpush1.bf16.msra.mxu0 0
      %1006 = vmatprep.subr.bf16.mxu0 0
      %1007 = vmatpush1.bf16.msra.mxu0 0
      %1008 = vmatprep.subr.bf16.mxu0 0
      %1009 = vmatpush1.bf16.msra.mxu0 0
      %1010 = vmatprep.mubr.bf16.mxu0 %v967
      %1011 = vmatmul.mubr.bf16.gmra.mrb[0].mxu0 %v873
      %v1012 = vpop.f32.mrb[0].mxu0
      %v1013 = vadd.f32 %v819, %v1012
      %v1014 = vpop.f32.mrb[0].mxu0
      %v1015 = vpop.f32.mrb[0].mxu0
      %v1016 = vadd.f32 %v822, %v1015
      %v1017 = vpop.f32.mrb[0].mxu0
      %1018 = vmatprep.mubr.bf16.mxu0 %v970
      %1019 = vmatmul.mubr.bf16.gmra.mrb[0].mxu0 %v875
      %v1020 = vpop.f32.mrb[0].mxu0
      %v1021 = vadd.f32 %v827, %v1020
      %v1022 = vpop.f32.mrb[0].mxu0
      %v1023 = vpop.f32.mrb[0].mxu0
      %v1024 = vadd.f32 %v830, %v1023
      %v1025 = vpop.f32.mrb[0].mxu0
      %1026 = vmatprep.mubr.bf16.mxu0 %v973
      %1027 = vmatmul.mubr.bf16.gmra.mrb[0].mxu0 %v877
      %v1028 = vpop.f32.mrb[0].mxu0
      %v1029 = vadd.f32 %v835, %v1028
      %v1030 = vpop.f32.mrb[0].mxu0
      %v1031 = vpop.f32.mrb[0].mxu0
      %v1032 = vadd.f32 %v838, %v1031
      %v1033 = vpop.f32.mrb[0].mxu0
      %1034 = vmatprep.mubr.bf16.mxu0 %v976
      %1035 = vmatmul.mubr.bf16.gmra.mrb[0].mxu0 %v879
      %v1036 = vpop.f32.mrb[0].mxu0
      %v1037 = vadd.f32 %v843, %v1036
      %v1038 = vpop.f32.mrb[0].mxu0
      %v1039 = vpop.f32.mrb[0].mxu0
      %v1040 = vadd.f32 %v846, %v1039
      %v1041 = vpop.f32.mrb[0].mxu0
      %1042 = vdwg.mxu0
      %1043 = vrot.lane.b32.xlu0 %v506, 15
      %v1044 = vpop.permute.xlu0 %1043
      %vm1045 = vcmp.ne.s16.totalorder %v1044, 0
      %v1046 = vsel %vm1045, %v492, 0
      %v1047 = vsel %vm1045, %v603, 0
      %v1048 = vsel %vm1045, %v494, 0
      %v1049 = vsel %vm1045, %v604, 0
      %v1050 = vsel %vm1045, %v496, 0
      %v1051 = vsel %vm1045, %v605, 0
      %v1052 = vsel %vm1045, %v498, 0
      %v1053 = vsel %vm1045, %v606, 0
      %1054 = vrot.lane.b32.xlu0 %v525, 17
      %v1055 = vpop.permute.xlu0 %1054
      %vm1056 = vcmp.ne.s16.totalorder %v1055, 0
      %v1057 = vsel %vm1056, %v492, 0
      %v1058 = vsel %vm1056, %v603, 0
      %v1059 = vsel %vm1056, %v494, 0
      %v1060 = vsel %vm1056, %v604, 0
      %v1061 = vsel %vm1056, %v496, 0
      %v1062 = vsel %vm1056, %v605, 0
      %v1063 = vsel %vm1056, %v498, 0
      %v1064 = vsel %vm1056, %v606, 0
      %1069 = vrot.lane.b32.xlu0 %v603, 127
      %v1070 = vpop.permute.xlu0 %1069
      %1071 = vrot.lane.b32.xlu0 %v604, 127
      %v1072 = vpop.permute.xlu0 %1071
      %1073 = vrot.lane.b32.xlu0 %v605, 127
      %v1074 = vpop.permute.xlu0 %1073
      %1075 = vrot.lane.b32.xlu0 %v606, 127
      %v1076 = vpop.permute.xlu0 %1075
      %v1077 = vsel %vm561, %v548, %v1070
      %v1078 = vsel %vm561, %v552, %v1072
      %v1079 = vsel %vm561, %v556, %v1074
      %v1080 = vsel %vm561, %v560, %v1076
      %1089 = vrot.lane.b32.xlu0 %v1057, 126
      %v1090 = vpop.permute.xlu0 %1089
      %1091 = vrot.lane.b32.xlu0 %v1058, 126
      %v1092 = vpop.permute.xlu0 %1091
      %1093 = vrot.lane.b32.xlu0 %v1059, 126
      %v1094 = vpop.permute.xlu0 %1093
      %1095 = vrot.lane.b32.xlu0 %v1060, 126
      %v1096 = vpop.permute.xlu0 %1095
      %1097 = vrot.lane.b32.xlu0 %v1061, 126
      %v1098 = vpop.permute.xlu0 %1097
      %1099 = vrot.lane.b32.xlu0 %v1062, 126
      %v1100 = vpop.permute.xlu0 %1099
      %1101 = vrot.lane.b32.xlu0 %v1063, 126
      %v1102 = vpop.permute.xlu0 %1101
      %1103 = vrot.lane.b32.xlu0 %v1064, 126
      %v1104 = vpop.permute.xlu0 %1103
      %v1105 = vsel %vm590, %v1090, %v1092
      %v1106 = vsel %vm590, %v1094, %v1096
      %v1107 = vsel %vm590, %v1098, %v1100
      %v1108 = vsel %vm590, %v1102, %v1104
      %s1109 = scalar_lea.vmem %s3, 128
      %v1110 = vld [vmem:[%s1109] sm:$0xff]
      %v1111 = vld [vmem:[%s1109 + $0x8] sm:$0xff]
      %v1112 = vld [vmem:[%s1109 + $0x10] sm:$0xff]
      %v1113 = vld [vmem:[%s1109 + $0x18] sm:$0xff]
      %v1114 = vld [vmem:[%s1109 + $0x20] sm:$0xff]
      %v1115 = vld [vmem:[%s1109 + $0x28] sm:$0xff]
      %v1116 = vld [vmem:[%s1109 + $0x30] sm:$0xff]
      %v1117 = vld [vmem:[%s1109 + $0x38] sm:$0xff]
      %v1126 = vunpack.c.l.b16 %v1110
      %v1127 = vunpack.c.h.b16 %v1110
      %v1128 = vunpack.c.l.b16 %v1111
      %v1129 = vunpack.c.h.b16 %v1111
      %v1130 = vunpack.c.l.b16 %v1112
      %v1131 = vunpack.c.h.b16 %v1112
      %v1132 = vunpack.c.l.b16 %v1113
      %v1133 = vunpack.c.h.b16 %v1113
      %v1134 = vunpack.c.l.b16 %v1114
      %v1135 = vunpack.c.h.b16 %v1114
      %v1136 = vunpack.c.l.b16 %v1115
      %v1137 = vunpack.c.h.b16 %v1115
      %v1138 = vunpack.c.l.b16 %v1116
      %v1139 = vunpack.c.h.b16 %v1116
      %v1140 = vunpack.c.l.b16 %v1117
      %v1141 = vunpack.c.h.b16 %v1117
      %v1142 = vpack.c.b16 %v1128, %v1126
      %v1143 = vpack.c.b16 %v1129, %v1127
      %v1144 = vpack.c.b16 %v1132, %v1130
      %v1145 = vpack.c.b16 %v1133, %v1131
      %v1146 = vpack.c.b16 %v1136, %v1134
      %v1147 = vpack.c.b16 %v1137, %v1135
      %v1148 = vpack.c.b16 %v1140, %v1138
      %v1149 = vpack.c.b16 %v1141, %v1139
      %1162 = vrot.lane.b32.xlu0 %v1046, 113
      %v1163 = vpop.permute.xlu0 %1162
      %1164 = vrot.lane.b32.xlu0 %v1047, 113
      %v1165 = vpop.permute.xlu0 %1164
      %1166 = vrot.lane.b32.xlu0 %v1048, 113
      %v1167 = vpop.permute.xlu0 %1166
      %1168 = vrot.lane.b32.xlu0 %v1049, 113
      %v1169 = vpop.permute.xlu0 %1168
      %1170 = vrot.lane.b32.xlu0 %v1050, 113
      %v1171 = vpop.permute.xlu0 %1170
      %1172 = vrot.lane.b32.xlu0 %v1051, 113
      %v1173 = vpop.permute.xlu0 %1172
      %1174 = vrot.lane.b32.xlu0 %v1052, 113
      %v1175 = vpop.permute.xlu0 %1174
      %1176 = vrot.lane.b32.xlu0 %v1053, 113
      %v1177 = vpop.permute.xlu0 %1176
      %1178 = vrot.lane.b32.xlu0 %v1077, 113
      %v1179 = vpop.permute.xlu0 %1178
      %1180 = vrot.lane.b32.xlu0 %v1070, 113
      %v1181 = vpop.permute.xlu0 %1180
      %1182 = vrot.lane.b32.xlu0 %v1078, 113
      %v1183 = vpop.permute.xlu0 %1182
      %1184 = vrot.lane.b32.xlu0 %v1072, 113
      %v1185 = vpop.permute.xlu0 %1184
      %1186 = vrot.lane.b32.xlu0 %v1079, 113
      %v1187 = vpop.permute.xlu0 %1186
      %1188 = vrot.lane.b32.xlu0 %v1074, 113
      %v1189 = vpop.permute.xlu0 %1188
      %1190 = vrot.lane.b32.xlu0 %v1080, 113
      %v1191 = vpop.permute.xlu0 %1190
      %1192 = vrot.lane.b32.xlu0 %v1076, 113
      %v1193 = vpop.permute.xlu0 %1192
      %1194 = vrot.lane.b32.xlu0 %v1105, 113
      %v1195 = vpop.permute.xlu0 %1194
      %1196 = vrot.lane.b32.xlu0 %v1092, 113
      %v1197 = vpop.permute.xlu0 %1196
      %1198 = vrot.lane.b32.xlu0 %v1106, 113
      %v1199 = vpop.permute.xlu0 %1198
      %1200 = vrot.lane.b32.xlu0 %v1096, 113
      %v1201 = vpop.permute.xlu0 %1200
      %1202 = vrot.lane.b32.xlu0 %v1107, 113
      %v1203 = vpop.permute.xlu0 %1202
      %1204 = vrot.lane.b32.xlu0 %v1100, 113
      %v1205 = vpop.permute.xlu0 %1204
      %1206 = vrot.lane.b32.xlu0 %v1108, 113
      %v1207 = vpop.permute.xlu0 %1206
      %1208 = vrot.lane.b32.xlu0 %v1104, 113
      %v1209 = vpop.permute.xlu0 %1208
      %vm1210 = vcmask 924672
      %v1211 = vsel %vm1210, %v1163, %v1165
      %v1212 = vsel %vm1210, %v1167, %v1169
      %v1213 = vsel %vm1210, %v1171, %v1173
      %v1214 = vsel %vm1210, %v1175, %v1177
      %v1215 = vsel %vm1210, %v1179, %v1181
      %v1216 = vsel %vm1210, %v1183, %v1185
      %v1217 = vsel %vm1210, %v1187, %v1189
      %v1218 = vsel %vm1210, %v1191, %v1193
      %v1219 = vsel %vm1210, %v1195, %v1197
      %v1220 = vsel %vm1210, %v1199, %v1201
      %v1221 = vsel %vm1210, %v1203, %v1205
      %v1222 = vsel %vm1210, %v1207, %v1209
      %v1236 = vsel %vm771, %v1143, 0
      %v1239 = vsel %vm771, %v1145, 0
      %v1242 = vsel %vm771, %v1147, 0
      %v1245 = vsel %vm771, %v1149, 0
      %1247 = vmatprep.subr.bf16.mxu0 0
      %1248 = vmatpush1.bf16.msra.mxu0 %v1211
      %1249 = vmatprep.subr.bf16.mxu0 0
      %1250 = vmatpush1.bf16.msra.mxu0 %v1212
      %1251 = vmatprep.subr.bf16.mxu0 0
      %1252 = vmatpush1.bf16.msra.mxu0 %v1213
      %1253 = vmatprep.subr.bf16.mxu0 0
      %1254 = vmatpush1.bf16.msra.mxu0 %v1214
      %1255 = vmatprep.subr.bf16.mxu0 0
      %1256 = vmatpush1.bf16.msra.mxu0 %v1215
      %1257 = vmatprep.subr.bf16.mxu0 0
      %1258 = vmatpush1.bf16.msra.mxu0 %v1216
      %1259 = vmatprep.subr.bf16.mxu0 0
      %1260 = vmatpush1.bf16.msra.mxu0 %v1217
      %1261 = vmatprep.subr.bf16.mxu0 0
      %1262 = vmatpush1.bf16.msra.mxu0 %v1218
      %1263 = vmatprep.subr.bf16.mxu0 0
      %1264 = vmatpush1.bf16.msra.mxu0 %v1219
      %1265 = vmatprep.subr.bf16.mxu0 0
      %1266 = vmatpush1.bf16.msra.mxu0 %v1220
      %1267 = vmatprep.subr.bf16.mxu0 0
      %1268 = vmatpush1.bf16.msra.mxu0 %v1221
      %1269 = vmatprep.subr.bf16.mxu0 0
      %1270 = vmatpush1.bf16.msra.mxu0 %v1222
      %1271 = vmatprep.subr.bf16.mxu0 0
      %1272 = vmatpush1.bf16.msra.mxu0 0
      %1273 = vmatprep.subr.bf16.mxu0 0
      %1274 = vmatpush1.bf16.msra.mxu0 0
      %1275 = vmatprep.subr.bf16.mxu0 0
      %1276 = vmatpush1.bf16.msra.mxu0 0
      %1277 = vmatprep.subr.bf16.mxu0 0
      %1278 = vmatpush1.bf16.msra.mxu0 0
      %1279 = vmatprep.mubr.bf16.mxu0 %v1236
      %1280 = vmatmul.mubr.bf16.gmra.mrb[0].mxu0 %v1142
      %v1281 = vpop.f32.mrb[0].mxu0
      %v1282 = vadd.f32 0.0, %v1281
      %v1283 = vpop.f32.mrb[0].mxu0
      %v1284 = vpop.f32.mrb[0].mxu0
      %v1285 = vadd.f32 0.0, %v1284
      %v1286 = vpop.f32.mrb[0].mxu0
      %1287 = vmatprep.mubr.bf16.mxu0 %v1239
      %1288 = vmatmul.mubr.bf16.gmra.mrb[0].mxu0 %v1144
      %v1289 = vpop.f32.mrb[0].mxu0
      %v1290 = vadd.f32 0.0, %v1289
      %v1291 = vpop.f32.mrb[0].mxu0
      %v1292 = vpop.f32.mrb[0].mxu0
      %v1293 = vadd.f32 0.0, %v1292
      %v1294 = vpop.f32.mrb[0].mxu0
      %1295 = vmatprep.mubr.bf16.mxu0 %v1242
      %1296 = vmatmul.mubr.bf16.gmra.mrb[0].mxu0 %v1146
      %v1297 = vpop.f32.mrb[0].mxu0
      %v1298 = vadd.f32 0.0, %v1297
      %v1299 = vpop.f32.mrb[0].mxu0
      %v1300 = vpop.f32.mrb[0].mxu0
      %v1301 = vadd.f32 0.0, %v1300
      %v1302 = vpop.f32.mrb[0].mxu0
      %1303 = vmatprep.mubr.bf16.mxu0 %v1245
      %1304 = vmatmul.mubr.bf16.gmra.mrb[0].mxu0 %v1148
      %v1305 = vpop.f32.mrb[0].mxu0
      %v1306 = vadd.f32 0.0, %v1305
      %v1307 = vpop.f32.mrb[0].mxu0
      %v1308 = vpop.f32.mrb[0].mxu0
      %v1309 = vadd.f32 0.0, %v1308
      %v1310 = vpop.f32.mrb[0].mxu0
      %1311 = vdwg.mxu0
      %v1312 = vadd.f32 %v1013, %v1282
      %v1313 = vadd.f32 %v1016, %v1285
      %v1314 = vadd.f32 %v1021, %v1290
      %v1315 = vadd.f32 %v1024, %v1293
      %v1316 = vadd.f32 %v1029, %v1298
      %v1317 = vadd.f32 %v1032, %v1301
      %v1318 = vadd.f32 %v1037, %v1306
      %v1319 = vadd.f32 %v1040, %v1309
      %v1320 = vpack.c.bf16 %v1313, %v1312
      %v1321 = vpack.c.bf16 %v1315, %v1314
      %v1322 = vpack.c.bf16 %v1317, %v1316
      %v1323 = vpack.c.bf16 %v1319, %v1318
      %v1328 = vunpack.c.l.b16 %v1320
      %v1329 = vunpack.c.h.b16 %v1320
      %v1330 = vunpack.c.l.b16 %v1321
      %v1331 = vunpack.c.h.b16 %v1321
      %v1332 = vunpack.c.l.b16 %v1322
      %v1333 = vunpack.c.h.b16 %v1322
      %v1334 = vunpack.c.l.b16 %v1323
      %v1335 = vunpack.c.h.b16 %v1323
      %v1336 = vpack.c.b16 %v1328, %v1328
      %v1337 = vpack.c.b16 %v1329, %v1329
      %v1338 = vpack.c.b16 %v1330, %v1330
      %v1339 = vpack.c.b16 %v1331, %v1331
      %v1340 = vpack.c.b16 %v1332, %v1332
      %v1341 = vpack.c.b16 %v1333, %v1333
      %v1342 = vpack.c.b16 %v1334, %v1334
      %v1343 = vpack.c.b16 %v1335, %v1335
      %1352 = vst [vmem:[%s272] sm:$0xf] %v1336
      %1353 = vst [vmem:[%s272 + $0x8] sm:$0xf] %v1337
      %1354 = vst [vmem:[%s272 + $0x10] sm:$0xf] %v1338
      %1355 = vst [vmem:[%s272 + $0x18] sm:$0xf] %v1339
      %1356 = vst [vmem:[%s272 + $0x20] sm:$0xf] %v1340
      %1357 = vst [vmem:[%s272 + $0x28] sm:$0xf] %v1341
      %1358 = vst [vmem:[%s272 + $0x30] sm:$0xf] %v1342
      %1359 = vst [vmem:[%s272 + $0x38] sm:$0xf] %v1343
      %v1360 = vunpack.c.l.bf16 %v1320
      %v1361 = vunpack.c.h.bf16 %v1320
      %v1362 = vunpack.c.l.bf16 %v1321
      %v1363 = vunpack.c.h.bf16 %v1321
      %v1364 = vunpack.c.l.bf16 %v1322
      %v1365 = vunpack.c.h.bf16 %v1322
      %v1366 = vunpack.c.l.bf16 %v1323
      %v1367 = vunpack.c.h.bf16 %v1323
      %1368 = vadd.xlane.f32.xlu0 %v1360
      %v1369 = vpop.xlane.xlu0 %1368
      %1370 = vadd.xlane.f32.xlu0 %v1361
      %v1371 = vpop.xlane.xlu0 %1370
      %1372 = vadd.xlane.f32.xlu0 %v1362
      %v1373 = vpop.xlane.xlu0 %1372
      %1374 = vadd.xlane.f32.xlu0 %v1363
      %v1375 = vpop.xlane.xlu0 %1374
      %1376 = vadd.xlane.f32.xlu0 %v1364
      %v1377 = vpop.xlane.xlu0 %1376
      %1378 = vadd.xlane.f32.xlu0 %v1365
      %v1379 = vpop.xlane.xlu0 %1378
      %1380 = vadd.xlane.f32.xlu0 %v1366
      %v1381 = vpop.xlane.xlu0 %1380
      %1382 = vadd.xlane.f32.xlu0 %v1367
      %v1383 = vpop.xlane.xlu0 %1382
      %v1384 = vadd.f32 %v1369, 0.0
      %v1385 = vadd.f32 %v1371, 0.0
      %v1386 = vadd.f32 %v1373, 0.0
      %v1387 = vadd.f32 %v1375, 0.0
      %v1388 = vadd.f32 %v1377, 0.0
      %v1389 = vadd.f32 %v1379, 0.0
      %v1390 = vadd.f32 %v1381, 0.0
      %v1391 = vadd.f32 %v1383, 0.0
      %v1392 = vmul.f32 %v1360, %v1360
      %v1393 = vmul.f32 %v1361, %v1361
      %v1394 = vmul.f32 %v1362, %v1362
      %v1395 = vmul.f32 %v1363, %v1363
      %v1396 = vmul.f32 %v1364, %v1364
      %v1397 = vmul.f32 %v1365, %v1365
      %v1398 = vmul.f32 %v1366, %v1366
      %v1399 = vmul.f32 %v1367, %v1367
      %1400 = vadd.xlane.f32.xlu0 %v1392
      %v1401 = vpop.xlane.xlu0 %1400
      %1402 = vadd.xlane.f32.xlu0 %v1393
      %v1403 = vpop.xlane.xlu0 %1402
      %1404 = vadd.xlane.f32.xlu0 %v1394
      %v1405 = vpop.xlane.xlu0 %1404
      %1406 = vadd.xlane.f32.xlu0 %v1395
      %v1407 = vpop.xlane.xlu0 %1406
      %1408 = vadd.xlane.f32.xlu0 %v1396
      %v1409 = vpop.xlane.xlu0 %1408
      %1410 = vadd.xlane.f32.xlu0 %v1397
      %v1411 = vpop.xlane.xlu0 %1410
      %1412 = vadd.xlane.f32.xlu0 %v1398
      %v1413 = vpop.xlane.xlu0 %1412
      %1414 = vadd.xlane.f32.xlu0 %v1399
      %v1415 = vpop.xlane.xlu0 %1414
      %v1416 = vadd.f32 %v1401, 0.0
      %v1417 = vadd.f32 %v1403, 0.0
      %v1418 = vadd.f32 %v1405, 0.0
      %v1419 = vadd.f32 %v1407, 0.0
      %v1420 = vadd.f32 %v1409, 0.0
      %v1421 = vadd.f32 %v1411, 0.0
      %v1422 = vadd.f32 %v1413, 0.0
      %v1423 = vadd.f32 %v1415, 0.0
      %v1424 = vadd.s32 %v476, 128
      %vm1425 = vcmp.lt.s32.totalorder %v1424, 0
      %v1426 = vsub.s32 0, %v1424
      %v1427 = vsel %vm1425, %v1426, %v1424
      %v1428 = vshrl.u32 %v1427, 4
      %v1429 = vand.u32 %v1427, 15
      %v1430 = vsub.s32 0, %v1429
      %v1431 = vsel %vm1425, %v1430, %v1429
      %vm1432 = vcmp.ne.s32.totalorder %v1431, 0
      %vm1433 = vcmp.lt.s32.totalorder %v1431, 0
      %vm1434 = vmand %vm1433, %vm1432
      %v1435 = vadd.s32 %v1431, 16
      %v1436 = vsel %vm1434, %v1435, %v1431
      %vm1437 = vcmp.ne.s32.totalorder %v1436, 0
      %vm1438 = vcmp.ne.s32.totalorder %v1436, 15
      %v1439 = vld [vmem:[#allocation2 + $0x8] sm:$0xff]
      %v1440 = vld [vmem:[#allocation2 + $0x10] sm:$0xff]
      %v1441 = vld [vmem:[#allocation2 + $0x28] sm:$0xff]
      %v1442 = vld [vmem:[#allocation2 + $0x30] sm:$0xff]
      %v1443 = vld [vmem:[#allocation2 + $0x48] sm:$0xff]
      %v1444 = vld [vmem:[#allocation2 + $0x50] sm:$0xff]
      %v1445 = vld [vmem:[#allocation2 + $0x68] sm:$0xff]
      %v1446 = vld [vmem:[#allocation2 + $0x70] sm:$0xff]
      %v1447 = vsel %vm1437, 1, 0
      %vm1448 = vcmp.eq.s32.totalorder %v1447, 1
      %vm1449 = vmpackc.low %vm1448, %vm1448
      %v1450 = vsel %vm1449, 65537, 0
      %v1451 = vlaneseq
      %v1452 = vshrl.u32 %v1451, 7
      %v1453 = vsub.s32 0, %v1452
      %v1454 = vrot.slane %v1450, %v1453
      %1455 = vrot.lane.b32.xlu0 %v1454, 111
      %v1456 = vpop.permute.xlu0 %1455
      %vm1457 = vcmp.ne.s16.totalorder %v1456, 0
      %v1458 = vsel %vm1457, %v1439, 0
      %v1459 = vsel %vm1457, %v1440, 0
      %v1460 = vsel %vm1457, %v1441, 0
      %v1461 = vsel %vm1457, %v1442, 0
      %v1462 = vsel %vm1457, %v1443, 0
      %v1463 = vsel %vm1457, %v1444, 0
      %v1464 = vsel %vm1457, %v1445, 0
      %v1465 = vsel %vm1457, %v1446, 0
      %v1466 = vsel %vm1438, 1, 0
      %vm1467 = vcmp.eq.s32.totalorder %v1466, 1
      %vm1468 = vmpackc.low %vm1467, %vm1467
      %v1469 = vsel %vm1468, 65537, 0
      %v1470 = vlaneseq
      %v1471 = vshrl.u32 %v1470, 7
      %v1472 = vsub.s32 0, %v1471
      %v1473 = vrot.slane %v1469, %v1472
      %1474 = vrot.lane.b32.xlu0 %v1473, 113
      %v1475 = vpop.permute.xlu0 %1474
      %vm1476 = vcmp.ne.s16.totalorder %v1475, 0
      %v1477 = vsel %vm1476, %v1439, 0
      %v1478 = vsel %vm1476, %v1440, 0
      %v1479 = vsel %vm1476, %v1441, 0
      %v1480 = vsel %vm1476, %v1442, 0
      %v1481 = vsel %vm1476, %v1443, 0
      %v1482 = vsel %vm1476, %v1444, 0
      %v1483 = vsel %vm1476, %v1445, 0
      %v1484 = vsel %vm1476, %v1446, 0
      %1493 = vrot.lane.b32.xlu0 %v1439, 127
      %v1494 = vpop.permute.xlu0 %1493
      %1495 = vrot.lane.b32.xlu0 %v1440, 127
      %v1496 = vpop.permute.xlu0 %1495
      %1497 = vrot.lane.b32.xlu0 %v1441, 127
      %v1498 = vpop.permute.xlu0 %1497
      %1499 = vrot.lane.b32.xlu0 %v1442, 127
      %v1500 = vpop.permute.xlu0 %1499
      %1501 = vrot.lane.b32.xlu0 %v1443, 127
      %v1502 = vpop.permute.xlu0 %1501
      %1503 = vrot.lane.b32.xlu0 %v1444, 127
      %v1504 = vpop.permute.xlu0 %1503
      %1505 = vrot.lane.b32.xlu0 %v1445, 127
      %v1506 = vpop.permute.xlu0 %1505
      %1507 = vrot.lane.b32.xlu0 %v1446, 127
      %v1508 = vpop.permute.xlu0 %1507
      %v1509 = vsel %vm561, %v1494, %v1496
      %v1510 = vsel %vm561, %v1498, %v1500
      %v1511 = vsel %vm561, %v1502, %v1504
      %v1512 = vsel %vm561, %v1506, %v1508
      %1521 = vrot.lane.b32.xlu0 %v1477, 126
      %v1522 = vpop.permute.xlu0 %1521
      %1523 = vrot.lane.b32.xlu0 %v1478, 126
      %v1524 = vpop.permute.xlu0 %1523
      %1525 = vrot.lane.b32.xlu0 %v1479, 126
      %v1526 = vpop.permute.xlu0 %1525
      %1527 = vrot.lane.b32.xlu0 %v1480, 126
      %v1528 = vpop.permute.xlu0 %1527
      %1529 = vrot.lane.b32.xlu0 %v1481, 126
      %v1530 = vpop.permute.xlu0 %1529
      %1531 = vrot.lane.b32.xlu0 %v1482, 126
      %v1532 = vpop.permute.xlu0 %1531
      %1533 = vrot.lane.b32.xlu0 %v1483, 126
      %v1534 = vpop.permute.xlu0 %1533
      %1535 = vrot.lane.b32.xlu0 %v1484, 126
      %v1536 = vpop.permute.xlu0 %1535
      %v1537 = vsel %vm590, %v1522, %v1524
      %v1538 = vsel %vm590, %v1526, %v1528
      %v1539 = vsel %vm590, %v1530, %v1532
      %v1540 = vsel %vm590, %v1534, %v1536
      %v1541 = vld [vmem:[%s3] sm:$0xff]
      %v1542 = vld [vmem:[%s3 + $0x8] sm:$0xff]
      %v1543 = vld [vmem:[%s3 + $0x10] sm:$0xff]
      %v1544 = vld [vmem:[%s3 + $0x18] sm:$0xff]
      %v1545 = vld [vmem:[%s3 + $0x20] sm:$0xff]
      %v1546 = vld [vmem:[%s3 + $0x28] sm:$0xff]
      %v1547 = vld [vmem:[%s3 + $0x30] sm:$0xff]
      %v1548 = vld [vmem:[%s3 + $0x38] sm:$0xff]
      %v1549 = vld [vmem:[#allocation2 + $0x10] sm:$0xff]
      %v1550 = vld [vmem:[#allocation2 + $0x18] sm:$0xff]
      %v1551 = vld [vmem:[#allocation2 + $0x30] sm:$0xff]
      %v1552 = vld [vmem:[#allocation2 + $0x38] sm:$0xff]
      %v1553 = vld [vmem:[#allocation2 + $0x50] sm:$0xff]
      %v1554 = vld [vmem:[#allocation2 + $0x58] sm:$0xff]
      %v1555 = vld [vmem:[#allocation2 + $0x70] sm:$0xff]
      %v1556 = vld [vmem:[#allocation2 + $0x78] sm:$0xff]
      %1557 = vrot.lane.b32.xlu0 %v1454, 127
      %v1558 = vpop.permute.xlu0 %1557
      %vm1559 = vcmp.ne.s16.totalorder %v1558, 0
      %v1560 = vsel %vm1559, %v1439, 0
      %v1561 = vsel %vm1559, %v1440, 0
      %v1562 = vsel %vm1559, %v1441, 0
      %v1563 = vsel %vm1559, %v1442, 0
      %v1564 = vsel %vm1559, %v1443, 0
      %v1565 = vsel %vm1559, %v1444, 0
      %v1566 = vsel %vm1559, %v1445, 0
      %v1567 = vsel %vm1559, %v1446, 0
      %1568 = vrot.lane.b32.xlu0 %v1473, 1
      %v1569 = vpop.permute.xlu0 %1568
      %vm1570 = vcmp.ne.s16.totalorder %v1569, 0
      %v1571 = vsel %vm1570, %v1549, 0
      %v1572 = vsel %vm1570, %v1550, 0
      %v1573 = vsel %vm1570, %v1551, 0
      %v1574 = vsel %vm1570, %v1552, 0
      %v1575 = vsel %vm1570, %v1553, 0
      %v1576 = vsel %vm1570, %v1554, 0
      %v1577 = vsel %vm1570, %v1555, 0
      %v1578 = vsel %vm1570, %v1556, 0
      %1587 = vrot.lane.b32.xlu0 %v1571, 126
      %v1588 = vpop.permute.xlu0 %1587
      %1589 = vrot.lane.b32.xlu0 %v1572, 126
      %v1590 = vpop.permute.xlu0 %1589
      %1591 = vrot.lane.b32.xlu0 %v1573, 126
      %v1592 = vpop.permute.xlu0 %1591
      %1593 = vrot.lane.b32.xlu0 %v1574, 126
      %v1594 = vpop.permute.xlu0 %1593
      %1595 = vrot.lane.b32.xlu0 %v1575, 126
      %v1596 = vpop.permute.xlu0 %1595
      %1597 = vrot.lane.b32.xlu0 %v1576, 126
      %v1598 = vpop.permute.xlu0 %1597
      %1599 = vrot.lane.b32.xlu0 %v1577, 126
      %v1600 = vpop.permute.xlu0 %1599
      %1601 = vrot.lane.b32.xlu0 %v1578, 126
      %v1602 = vpop.permute.xlu0 %1601
      %v1603 = vsel %vm590, %v1588, %v1590
      %v1604 = vsel %vm590, %v1592, %v1594
      %v1605 = vsel %vm590, %v1596, %v1598
      %v1606 = vsel %vm590, %v1600, %v1602
      %v1607 = vld [vmem:[%s657] sm:$0xff]
      %v1608 = vld [vmem:[%s657 + $0x8] sm:$0xff]
      %v1609 = vld [vmem:[%s657 + $0x10] sm:$0xff]
      %v1610 = vld [vmem:[%s657 + $0x18] sm:$0xff]
      %v1611 = vld [vmem:[%s657 + $0x20] sm:$0xff]
      %v1612 = vld [vmem:[%s657 + $0x28] sm:$0xff]
      %v1613 = vld [vmem:[%s657 + $0x30] sm:$0xff]
      %v1614 = vld [vmem:[%s657 + $0x38] sm:$0xff]
      %v1623 = vunpack.c.l.b16 %v1607
      %v1624 = vunpack.c.h.b16 %v1607
      %v1625 = vunpack.c.l.b16 %v1608
      %v1626 = vunpack.c.h.b16 %v1608
      %v1627 = vunpack.c.l.b16 %v1609
      %v1628 = vunpack.c.h.b16 %v1609
      %v1629 = vunpack.c.l.b16 %v1610
      %v1630 = vunpack.c.h.b16 %v1610
      %v1631 = vunpack.c.l.b16 %v1611
      %v1632 = vunpack.c.h.b16 %v1611
      %v1633 = vunpack.c.l.b16 %v1612
      %v1634 = vunpack.c.h.b16 %v1612
      %v1635 = vunpack.c.l.b16 %v1613
      %v1636 = vunpack.c.h.b16 %v1613
      %v1637 = vunpack.c.l.b16 %v1614
      %v1638 = vunpack.c.h.b16 %v1614
      %v1639 = vpack.c.b16 %v1625, %v1623
      %v1640 = vpack.c.b16 %v1626, %v1624
      %v1641 = vpack.c.b16 %v1629, %v1627
      %v1642 = vpack.c.b16 %v1630, %v1628
      %v1643 = vpack.c.b16 %v1633, %v1631
      %v1644 = vpack.c.b16 %v1634, %v1632
      %v1645 = vpack.c.b16 %v1637, %v1635
      %v1646 = vpack.c.b16 %v1638, %v1636
      %1659 = vrot.lane.b32.xlu0 %v1560, 1
      %v1660 = vpop.permute.xlu0 %1659
      %1661 = vrot.lane.b32.xlu0 %v1561, 1
      %v1662 = vpop.permute.xlu0 %1661
      %1663 = vrot.lane.b32.xlu0 %v1562, 1
      %v1664 = vpop.permute.xlu0 %1663
      %1665 = vrot.lane.b32.xlu0 %v1563, 1
      %v1666 = vpop.permute.xlu0 %1665
      %1667 = vrot.lane.b32.xlu0 %v1564, 1
      %v1668 = vpop.permute.xlu0 %1667
      %1669 = vrot.lane.b32.xlu0 %v1565, 1
      %v1670 = vpop.permute.xlu0 %1669
      %1671 = vrot.lane.b32.xlu0 %v1566, 1
      %v1672 = vpop.permute.xlu0 %1671
      %1673 = vrot.lane.b32.xlu0 %v1567, 1
      %v1674 = vpop.permute.xlu0 %1673
      %1675 = vrot.lane.b32.xlu0 %v1496, 1
      %v1676 = vpop.permute.xlu0 %1675
      %1677 = vrot.lane.b32.xlu0 %v1500, 1
      %v1678 = vpop.permute.xlu0 %1677
      %1679 = vrot.lane.b32.xlu0 %v1504, 1
      %v1680 = vpop.permute.xlu0 %1679
      %1681 = vrot.lane.b32.xlu0 %v1508, 1
      %v1682 = vpop.permute.xlu0 %1681
      %1683 = vrot.lane.b32.xlu0 %v1588, 1
      %v1684 = vpop.permute.xlu0 %1683
      %1685 = vrot.lane.b32.xlu0 %v1603, 1
      %v1686 = vpop.permute.xlu0 %1685
      %1687 = vrot.lane.b32.xlu0 %v1592, 1
      %v1688 = vpop.permute.xlu0 %1687
      %1689 = vrot.lane.b32.xlu0 %v1604, 1
      %v1690 = vpop.permute.xlu0 %1689
      %1691 = vrot.lane.b32.xlu0 %v1596, 1
      %v1692 = vpop.permute.xlu0 %1691
      %1693 = vrot.lane.b32.xlu0 %v1605, 1
      %v1694 = vpop.permute.xlu0 %1693
      %1695 = vrot.lane.b32.xlu0 %v1600, 1
      %v1696 = vpop.permute.xlu0 %1695
      %1697 = vrot.lane.b32.xlu0 %v1606, 1
      %v1698 = vpop.permute.xlu0 %1697
      %v1699 = vsel %vm750, %v1660, %v1662
      %v1700 = vsel %vm750, %v1664, %v1666
      %v1701 = vsel %vm750, %v1668, %v1670
      %v1702 = vsel %vm750, %v1672, %v1674
      %v1703 = vsel %vm750, %v1684, %v1686
      %v1704 = vsel %vm750, %v1688, %v1690
      %v1705 = vsel %vm750, %v1692, %v1694
      %v1706 = vsel %vm750, %v1696, %v1698
      %v1720 = vsel %vm771, %v1640, 0
      %v1723 = vsel %vm771, %v1642, 0
      %v1726 = vsel %vm771, %v1644, 0
      %v1729 = vsel %vm771, %v1646, 0
      %1731 = vmatprep.subr.bf16.mxu0 0
      %1732 = vmatpush1.bf16.msra.mxu0 %v1699
      %1733 = vmatprep.subr.bf16.mxu0 0
      %1734 = vmatpush1.bf16.msra.mxu0 %v1700
      %1735 = vmatprep.subr.bf16.mxu0 0
      %1736 = vmatpush1.bf16.msra.mxu0 %v1701
      %1737 = vmatprep.subr.bf16.mxu0 0
      %1738 = vmatpush1.bf16.msra.mxu0 %v1702
      %1739 = vmatprep.subr.bf16.mxu0 0
      %1740 = vmatpush1.bf16.msra.mxu0 %v1676
      %1741 = vmatprep.subr.bf16.mxu0 0
      %1742 = vmatpush1.bf16.msra.mxu0 %v1678
      %1743 = vmatprep.subr.bf16.mxu0 0
      %1744 = vmatpush1.bf16.msra.mxu0 %v1680
      %1745 = vmatprep.subr.bf16.mxu0 0
      %1746 = vmatpush1.bf16.msra.mxu0 %v1682
      %1747 = vmatprep.subr.bf16.mxu0 0
      %1748 = vmatpush1.bf16.msra.mxu0 %v1703
      %1749 = vmatprep.subr.bf16.mxu0 0
      %1750 = vmatpush1.bf16.msra.mxu0 %v1704
      %1751 = vmatprep.subr.bf16.mxu0 0
      %1752 = vmatpush1.bf16.msra.mxu0 %v1705
      %1753 = vmatprep.subr.bf16.mxu0 0
      %1754 = vmatpush1.bf16.msra.mxu0 %v1706
      %1755 = vmatprep.subr.bf16.mxu0 0
      %1756 = vmatpush1.bf16.msra.mxu0 0
      %1757 = vmatprep.subr.bf16.mxu0 0
      %1758 = vmatpush1.bf16.msra.mxu0 0
      %1759 = vmatprep.subr.bf16.mxu0 0
      %1760 = vmatpush1.bf16.msra.mxu0 0
      %1761 = vmatprep.subr.bf16.mxu0 0
      %1762 = vmatpush1.bf16.msra.mxu0 0
      %1763 = vmatprep.mubr.bf16.mxu0 %v1720
      %1764 = vmatmul.mubr.bf16.gmra.mrb[0].mxu0 %v1639
      %v1765 = vpop.f32.mrb[0].mxu0
      %v1766 = vadd.f32 0.0, %v1765
      %v1767 = vpop.f32.mrb[0].mxu0
      %v1768 = vpop.f32.mrb[0].mxu0
      %v1769 = vadd.f32 0.0, %v1768
      %v1770 = vpop.f32.mrb[0].mxu0
      %1771 = vmatprep.mubr.bf16.mxu0 %v1723
      %1772 = vmatmul.mubr.bf16.gmra.mrb[0].mxu0 %v1641
      %v1773 = vpop.f32.mrb[0].mxu0
      %v1774 = vadd.f32 0.0, %v1773
      %v1775 = vpop.f32.mrb[0].mxu0
      %v1776 = vpop.f32.mrb[0].mxu0
      %v1777 = vadd.f32 0.0, %v1776
      %v1778 = vpop.f32.mrb[0].mxu0
      %1779 = vmatprep.mubr.bf16.mxu0 %v1726
      %1780 = vmatmul.mubr.bf16.gmra.mrb[0].mxu0 %v1643
      %v1781 = vpop.f32.mrb[0].mxu0
      %v1782 = vadd.f32 0.0, %v1781
      %v1783 = vpop.f32.mrb[0].mxu0
      %v1784 = vpop.f32.mrb[0].mxu0
      %v1785 = vadd.f32 0.0, %v1784
      %v1786 = vpop.f32.mrb[0].mxu0
      %1787 = vmatprep.mubr.bf16.mxu0 %v1729
      %1788 = vmatmul.mubr.bf16.gmra.mrb[0].mxu0 %v1645
      %v1789 = vpop.f32.mrb[0].mxu0
      %v1790 = vadd.f32 0.0, %v1789
      %v1791 = vpop.f32.mrb[0].mxu0
      %v1792 = vpop.f32.mrb[0].mxu0
      %v1793 = vadd.f32 0.0, %v1792
      %v1794 = vpop.f32.mrb[0].mxu0
      %1795 = vdwg.mxu0
      %v1804 = vunpack.c.l.b16 %v1541
      %v1805 = vunpack.c.h.b16 %v1541
      %v1806 = vunpack.c.l.b16 %v1542
      %v1807 = vunpack.c.h.b16 %v1542
      %v1808 = vunpack.c.l.b16 %v1543
      %v1809 = vunpack.c.h.b16 %v1543
      %v1810 = vunpack.c.l.b16 %v1544
      %v1811 = vunpack.c.h.b16 %v1544
      %v1812 = vunpack.c.l.b16 %v1545
      %v1813 = vunpack.c.h.b16 %v1545
      %v1814 = vunpack.c.l.b16 %v1546
      %v1815 = vunpack.c.h.b16 %v1546
      %v1816 = vunpack.c.l.b16 %v1547
      %v1817 = vunpack.c.h.b16 %v1547
      %v1818 = vunpack.c.l.b16 %v1548
      %v1819 = vunpack.c.h.b16 %v1548
      %v1820 = vpack.c.b16 %v1806, %v1804
      %v1821 = vpack.c.b16 %v1807, %v1805
      %v1822 = vpack.c.b16 %v1810, %v1808
      %v1823 = vpack.c.b16 %v1811, %v1809
      %v1824 = vpack.c.b16 %v1814, %v1812
      %v1825 = vpack.c.b16 %v1815, %v1813
      %v1826 = vpack.c.b16 %v1818, %v1816
      %v1827 = vpack.c.b16 %v1819, %v1817
      %1840 = vrot.lane.b32.xlu0 %v1458, 17
      %v1841 = vpop.permute.xlu0 %1840
      %1842 = vrot.lane.b32.xlu0 %v1459, 17
      %v1843 = vpop.permute.xlu0 %1842
      %1844 = vrot.lane.b32.xlu0 %v1460, 17
      %v1845 = vpop.permute.xlu0 %1844
      %1846 = vrot.lane.b32.xlu0 %v1461, 17
      %v1847 = vpop.permute.xlu0 %1846
      %1848 = vrot.lane.b32.xlu0 %v1462, 17
      %v1849 = vpop.permute.xlu0 %1848
      %1850 = vrot.lane.b32.xlu0 %v1463, 17
      %v1851 = vpop.permute.xlu0 %1850
      %1852 = vrot.lane.b32.xlu0 %v1464, 17
      %v1853 = vpop.permute.xlu0 %1852
      %1854 = vrot.lane.b32.xlu0 %v1465, 17
      %v1855 = vpop.permute.xlu0 %1854
      %1856 = vrot.lane.b32.xlu0 %v1509, 17
      %v1857 = vpop.permute.xlu0 %1856
      %1858 = vrot.lane.b32.xlu0 %v1496, 17
      %v1859 = vpop.permute.xlu0 %1858
      %1860 = vrot.lane.b32.xlu0 %v1510, 17
      %v1861 = vpop.permute.xlu0 %1860
      %1862 = vrot.lane.b32.xlu0 %v1500, 17
      %v1863 = vpop.permute.xlu0 %1862
      %1864 = vrot.lane.b32.xlu0 %v1511, 17
      %v1865 = vpop.permute.xlu0 %1864
      %1866 = vrot.lane.b32.xlu0 %v1504, 17
      %v1867 = vpop.permute.xlu0 %1866
      %1868 = vrot.lane.b32.xlu0 %v1512, 17
      %v1869 = vpop.permute.xlu0 %1868
      %1870 = vrot.lane.b32.xlu0 %v1508, 17
      %v1871 = vpop.permute.xlu0 %1870
      %1872 = vrot.lane.b32.xlu0 %v1537, 17
      %v1873 = vpop.permute.xlu0 %1872
      %1874 = vrot.lane.b32.xlu0 %v1524, 17
      %v1875 = vpop.permute.xlu0 %1874
      %1876 = vrot.lane.b32.xlu0 %v1538, 17
      %v1877 = vpop.permute.xlu0 %1876
      %1878 = vrot.lane.b32.xlu0 %v1528, 17
      %v1879 = vpop.permute.xlu0 %1878
      %1880 = vrot.lane.b32.xlu0 %v1539, 17
      %v1881 = vpop.permute.xlu0 %1880
      %1882 = vrot.lane.b32.xlu0 %v1532, 17
      %v1883 = vpop.permute.xlu0 %1882
      %1884 = vrot.lane.b32.xlu0 %v1540, 17
      %v1885 = vpop.permute.xlu0 %1884
      %1886 = vrot.lane.b32.xlu0 %v1536, 17
      %v1887 = vpop.permute.xlu0 %1886
      %v1888 = vsel %vm941, %v1841, %v1843
      %v1889 = vsel %vm941, %v1845, %v1847
      %v1890 = vsel %vm941, %v1849, %v1851
      %v1891 = vsel %vm941, %v1853, %v1855
      %v1892 = vsel %vm941, %v1857, %v1859
      %v1893 = vsel %vm941, %v1861, %v1863
      %v1894 = vsel %vm941, %v1865, %v1867
      %v1895 = vsel %vm941, %v1869, %v1871
      %v1896 = vsel %vm941, %v1873, %v1875
      %v1897 = vsel %vm941, %v1877, %v1879
      %v1898 = vsel %vm941, %v1881, %v1883
      %v1899 = vsel %vm941, %v1885, %v1887
      %v1913 = vsel %vm771, %v1821, 0
      %v1916 = vsel %vm771, %v1823, 0
      %v1919 = vsel %vm771, %v1825, 0
      %v1922 = vsel %vm771, %v1827, 0
      %1924 = vmatprep.subr.bf16.mxu0 0
      %1925 = vmatpush1.bf16.msra.mxu0 %v1888
      %1926 = vmatprep.subr.bf16.mxu0 0
      %1927 = vmatpush1.bf16.msra.mxu0 %v1889
      %1928 = vmatprep.subr.bf16.mxu0 0
      %1929 = vmatpush1.bf16.msra.mxu0 %v1890
      %1930 = vmatprep.subr.bf16.mxu0 0
      %1931 = vmatpush1.bf16.msra.mxu0 %v1891
      %1932 = vmatprep.subr.bf16.mxu0 0
      %1933 = vmatpush1.bf16.msra.mxu0 %v1892
      %1934 = vmatprep.subr.bf16.mxu0 0
      %1935 = vmatpush1.bf16.msra.mxu0 %v1893
      %1936 = vmatprep.subr.bf16.mxu0 0
      %1937 = vmatpush1.bf16.msra.mxu0 %v1894
      %1938 = vmatprep.subr.bf16.mxu0 0
      %1939 = vmatpush1.bf16.msra.mxu0 %v1895
      %1940 = vmatprep.subr.bf16.mxu0 0
      %1941 = vmatpush1.bf16.msra.mxu0 %v1896
      %1942 = vmatprep.subr.bf16.mxu0 0
      %1943 = vmatpush1.bf16.msra.mxu0 %v1897
      %1944 = vmatprep.subr.bf16.mxu0 0
      %1945 = vmatpush1.bf16.msra.mxu0 %v1898
      %1946 = vmatprep.subr.bf16.mxu0 0
      %1947 = vmatpush1.bf16.msra.mxu0 %v1899
      %1948 = vmatprep.subr.bf16.mxu0 0
      %1949 = vmatpush1.bf16.msra.mxu0 0
      %1950 = vmatprep.subr.bf16.mxu0 0
      %1951 = vmatpush1.bf16.msra.mxu0 0
      %1952 = vmatprep.subr.bf16.mxu0 0
      %1953 = vmatpush1.bf16.msra.mxu0 0
      %1954 = vmatprep.subr.bf16.mxu0 0
      %1955 = vmatpush1.bf16.msra.mxu0 0
      %1956 = vmatprep.mubr.bf16.mxu0 %v1913
      %1957 = vmatmul.mubr.bf16.gmra.mrb[0].mxu0 %v1820
      %v1958 = vpop.f32.mrb[0].mxu0
      %v1959 = vadd.f32 %v1766, %v1958
      %v1960 = vpop.f32.mrb[0].mxu0
      %v1961 = vpop.f32.mrb[0].mxu0
      %v1962 = vadd.f32 %v1769, %v1961
      %v1963 = vpop.f32.mrb[0].mxu0
      %1964 = vmatprep.mubr.bf16.mxu0 %v1916
      %1965 = vmatmul.mubr.bf16.gmra.mrb[0].mxu0 %v1822
      %v1966 = vpop.f32.mrb[0].mxu0
      %v1967 = vadd.f32 %v1774, %v1966
      %v1968 = vpop.f32.mrb[0].mxu0
      %v1969 = vpop.f32.mrb[0].mxu0
      %v1970 = vadd.f32 %v1777, %v1969
      %v1971 = vpop.f32.mrb[0].mxu0
      %1972 = vmatprep.mubr.bf16.mxu0 %v1919
      %1973 = vmatmul.mubr.bf16.gmra.mrb[0].mxu0 %v1824
      %v1974 = vpop.f32.mrb[0].mxu0
      %v1975 = vadd.f32 %v1782, %v1974
      %v1976 = vpop.f32.mrb[0].mxu0
      %v1977 = vpop.f32.mrb[0].mxu0
      %v1978 = vadd.f32 %v1785, %v1977
      %v1979 = vpop.f32.mrb[0].mxu0
      %1980 = vmatprep.mubr.bf16.mxu0 %v1922
      %1981 = vmatmul.mubr.bf16.gmra.mrb[0].mxu0 %v1826
      %v1982 = vpop.f32.mrb[0].mxu0
      %v1983 = vadd.f32 %v1790, %v1982
      %v1984 = vpop.f32.mrb[0].mxu0
      %v1985 = vpop.f32.mrb[0].mxu0
      %v1986 = vadd.f32 %v1793, %v1985
      %v1987 = vpop.f32.mrb[0].mxu0
      %1988 = vdwg.mxu0
      %1989 = vrot.lane.b32.xlu0 %v1454, 15
      %v1990 = vpop.permute.xlu0 %1989
      %vm1991 = vcmp.ne.s16.totalorder %v1990, 0
      %v1992 = vsel %vm1991, %v1549, 0
      %v1993 = vsel %vm1991, %v1550, 0
      %v1994 = vsel %vm1991, %v1551, 0
      %v1995 = vsel %vm1991, %v1552, 0
      %v1996 = vsel %vm1991, %v1553, 0
      %v1997 = vsel %vm1991, %v1554, 0
      %v1998 = vsel %vm1991, %v1555, 0
      %v1999 = vsel %vm1991, %v1556, 0
      %2000 = vrot.lane.b32.xlu0 %v1473, 17
      %v2001 = vpop.permute.xlu0 %2000
      %vm2002 = vcmp.ne.s16.totalorder %v2001, 0
      %v2003 = vsel %vm2002, %v1549, 0
      %v2004 = vsel %vm2002, %v1550, 0
      %v2005 = vsel %vm2002, %v1551, 0
      %v2006 = vsel %vm2002, %v1552, 0
      %v2007 = vsel %vm2002, %v1553, 0
      %v2008 = vsel %vm2002, %v1554, 0
      %v2009 = vsel %vm2002, %v1555, 0
      %v2010 = vsel %vm2002, %v1556, 0
      %2019 = vrot.lane.b32.xlu0 %v1549, 127
      %v2020 = vpop.permute.xlu0 %2019
      %2021 = vrot.lane.b32.xlu0 %v1550, 127
      %v2022 = vpop.permute.xlu0 %2021
      %2023 = vrot.lane.b32.xlu0 %v1551, 127
      %v2024 = vpop.permute.xlu0 %2023
      %2025 = vrot.lane.b32.xlu0 %v1552, 127
      %v2026 = vpop.permute.xlu0 %2025
      %2027 = vrot.lane.b32.xlu0 %v1553, 127
      %v2028 = vpop.permute.xlu0 %2027
      %2029 = vrot.lane.b32.xlu0 %v1554, 127
      %v2030 = vpop.permute.xlu0 %2029
      %2031 = vrot.lane.b32.xlu0 %v1555, 127
      %v2032 = vpop.permute.xlu0 %2031
      %2033 = vrot.lane.b32.xlu0 %v1556, 127
      %v2034 = vpop.permute.xlu0 %2033
      %v2035 = vsel %vm561, %v2020, %v2022
      %v2036 = vsel %vm561, %v2024, %v2026
      %v2037 = vsel %vm561, %v2028, %v2030
      %v2038 = vsel %vm561, %v2032, %v2034
      %2047 = vrot.lane.b32.xlu0 %v2003, 126
      %v2048 = vpop.permute.xlu0 %2047
      %2049 = vrot.lane.b32.xlu0 %v2004, 126
      %v2050 = vpop.permute.xlu0 %2049
      %2051 = vrot.lane.b32.xlu0 %v2005, 126
      %v2052 = vpop.permute.xlu0 %2051
      %2053 = vrot.lane.b32.xlu0 %v2006, 126
      %v2054 = vpop.permute.xlu0 %2053
      %2055 = vrot.lane.b32.xlu0 %v2007, 126
      %v2056 = vpop.permute.xlu0 %2055
      %2057 = vrot.lane.b32.xlu0 %v2008, 126
      %v2058 = vpop.permute.xlu0 %2057
      %2059 = vrot.lane.b32.xlu0 %v2009, 126
      %v2060 = vpop.permute.xlu0 %2059
      %2061 = vrot.lane.b32.xlu0 %v2010, 126
      %v2062 = vpop.permute.xlu0 %2061
      %v2063 = vsel %vm590, %v2048, %v2050
      %v2064 = vsel %vm590, %v2052, %v2054
      %v2065 = vsel %vm590, %v2056, %v2058
      %v2066 = vsel %vm590, %v2060, %v2062
      %v2067 = vld [vmem:[%s1109] sm:$0xff]
      %v2068 = vld [vmem:[%s1109 + $0x8] sm:$0xff]
      %v2069 = vld [vmem:[%s1109 + $0x10] sm:$0xff]
      %v2070 = vld [vmem:[%s1109 + $0x18] sm:$0xff]
      %v2071 = vld [vmem:[%s1109 + $0x20] sm:$0xff]
      %v2072 = vld [vmem:[%s1109 + $0x28] sm:$0xff]
      %v2073 = vld [vmem:[%s1109 + $0x30] sm:$0xff]
      %v2074 = vld [vmem:[%s1109 + $0x38] sm:$0xff]
      %v2083 = vunpack.c.l.b16 %v2067
      %v2084 = vunpack.c.h.b16 %v2067
      %v2085 = vunpack.c.l.b16 %v2068
      %v2086 = vunpack.c.h.b16 %v2068
      %v2087 = vunpack.c.l.b16 %v2069
      %v2088 = vunpack.c.h.b16 %v2069
      %v2089 = vunpack.c.l.b16 %v2070
      %v2090 = vunpack.c.h.b16 %v2070
      %v2091 = vunpack.c.l.b16 %v2071
      %v2092 = vunpack.c.h.b16 %v2071
      %v2093 = vunpack.c.l.b16 %v2072
      %v2094 = vunpack.c.h.b16 %v2072
      %v2095 = vunpack.c.l.b16 %v2073
      %v2096 = vunpack.c.h.b16 %v2073
      %v2097 = vunpack.c.l.b16 %v2074
      %v2098 = vunpack.c.h.b16 %v2074
      %v2099 = vpack.c.b16 %v2085, %v2083
      %v2100 = vpack.c.b16 %v2086, %v2084
      %v2101 = vpack.c.b16 %v2089, %v2087
      %v2102 = vpack.c.b16 %v2090, %v2088
      %v2103 = vpack.c.b16 %v2093, %v2091
      %v2104 = vpack.c.b16 %v2094, %v2092
      %v2105 = vpack.c.b16 %v2097, %v2095
      %v2106 = vpack.c.b16 %v2098, %v2096
      %2119 = vrot.lane.b32.xlu0 %v1992, 113
      %v2120 = vpop.permute.xlu0 %2119
      %2121 = vrot.lane.b32.xlu0 %v1993, 113
      %v2122 = vpop.permute.xlu0 %2121
      %2123 = vrot.lane.b32.xlu0 %v1994, 113
      %v2124 = vpop.permute.xlu0 %2123
      %2125 = vrot.lane.b32.xlu0 %v1995, 113
      %v2126 = vpop.permute.xlu0 %2125
      %2127 = vrot.lane.b32.xlu0 %v1996, 113
      %v2128 = vpop.permute.xlu0 %2127
      %2129 = vrot.lane.b32.xlu0 %v1997, 113
      %v2130 = vpop.permute.xlu0 %2129
      %2131 = vrot.lane.b32.xlu0 %v1998, 113
      %v2132 = vpop.permute.xlu0 %2131
      %2133 = vrot.lane.b32.xlu0 %v1999, 113
      %v2134 = vpop.permute.xlu0 %2133
      %2135 = vrot.lane.b32.xlu0 %v2035, 113
      %v2136 = vpop.permute.xlu0 %2135
      %2137 = vrot.lane.b32.xlu0 %v2022, 113
      %v2138 = vpop.permute.xlu0 %2137
      %2139 = vrot.lane.b32.xlu0 %v2036, 113
      %v2140 = vpop.permute.xlu0 %2139
      %2141 = vrot.lane.b32.xlu0 %v2026, 113
      %v2142 = vpop.permute.xlu0 %2141
      %2143 = vrot.lane.b32.xlu0 %v2037, 113
      %v2144 = vpop.permute.xlu0 %2143
      %2145 = vrot.lane.b32.xlu0 %v2030, 113
      %v2146 = vpop.permute.xlu0 %2145
      %2147 = vrot.lane.b32.xlu0 %v2038, 113
      %v2148 = vpop.permute.xlu0 %2147
      %2149 = vrot.lane.b32.xlu0 %v2034, 113
      %v2150 = vpop.permute.xlu0 %2149
      %2151 = vrot.lane.b32.xlu0 %v2063, 113
      %v2152 = vpop.permute.xlu0 %2151
      %2153 = vrot.lane.b32.xlu0 %v2050, 113
      %v2154 = vpop.permute.xlu0 %2153
      %2155 = vrot.lane.b32.xlu0 %v2064, 113
      %v2156 = vpop.permute.xlu0 %2155
      %2157 = vrot.lane.b32.xlu0 %v2054, 113
      %v2158 = vpop.permute.xlu0 %2157
      %2159 = vrot.lane.b32.xlu0 %v2065, 113
      %v2160 = vpop.permute.xlu0 %2159
      %2161 = vrot.lane.b32.xlu0 %v2058, 113
      %v2162 = vpop.permute.xlu0 %2161
      %2163 = vrot.lane.b32.xlu0 %v2066, 113
      %v2164 = vpop.permute.xlu0 %2163
      %2165 = vrot.lane.b32.xlu0 %v2062, 113
      %v2166 = vpop.permute.xlu0 %2165
      %v2167 = vsel %vm1210, %v2120, %v2122
      %v2168 = vsel %vm1210, %v2124, %v2126
      %v2169 = vsel %vm1210, %v2128, %v2130
      %v2170 = vsel %vm1210, %v2132, %v2134
      %v2171 = vsel %vm1210, %v2136, %v2138
      %v2172 = vsel %vm1210, %v2140, %v2142
      %v2173 = vsel %vm1210, %v2144, %v2146
      %v2174 = vsel %vm1210, %v2148, %v2150
      %v2175 = vsel %vm1210, %v2152, %v2154
      %v2176 = vsel %vm1210, %v2156, %v2158
      %v2177 = vsel %vm1210, %v2160, %v2162
      %v2178 = vsel %vm1210, %v2164, %v2166
      %v2192 = vsel %vm771, %v2100, 0
      %v2195 = vsel %vm771, %v2102, 0
      %v2198 = vsel %vm771, %v2104, 0
      %v2201 = vsel %vm771, %v2106, 0
      %2203 = vmatprep.subr.bf16.mxu0 0
      %2204 = vmatpush1.bf16.msra.mxu0 %v2167
      %2205 = vmatprep.subr.bf16.mxu0 0
      %2206 = vmatpush1.bf16.msra.mxu0 %v2168
      %2207 = vmatprep.subr.bf16.mxu0 0
      %2208 = vmatpush1.bf16.msra.mxu0 %v2169
      %2209 = vmatprep.subr.bf16.mxu0 0
      %2210 = vmatpush1.bf16.msra.mxu0 %v2170
      %2211 = vmatprep.subr.bf16.mxu0 0
      %2212 = vmatpush1.bf16.msra.mxu0 %v2171
      %2213 = vmatprep.subr.bf16.mxu0 0
      %2214 = vmatpush1.bf16.msra.mxu0 %v2172
      %2215 = vmatprep.subr.bf16.mxu0 0
      %2216 = vmatpush1.bf16.msra.mxu0 %v2173
      %2217 = vmatprep.subr.bf16.mxu0 0
      %2218 = vmatpush1.bf16.msra.mxu0 %v2174
      %2219 = vmatprep.subr.bf16.mxu0 0
      %2220 = vmatpush1.bf16.msra.mxu0 %v2175
      %2221 = vmatprep.subr.bf16.mxu0 0
      %2222 = vmatpush1.bf16.msra.mxu0 %v2176
      %2223 = vmatprep.subr.bf16.mxu0 0
      %2224 = vmatpush1.bf16.msra.mxu0 %v2177
      %2225 = vmatprep.subr.bf16.mxu0 0
      %2226 = vmatpush1.bf16.msra.mxu0 %v2178
      %2227 = vmatprep.subr.bf16.mxu0 0
      %2228 = vmatpush1.bf16.msra.mxu0 0
      %2229 = vmatprep.subr.bf16.mxu0 0
      %2230 = vmatpush1.bf16.msra.mxu0 0
      %2231 = vmatprep.subr.bf16.mxu0 0
      %2232 = vmatpush1.bf16.msra.mxu0 0
      %2233 = vmatprep.subr.bf16.mxu0 0
      %2234 = vmatpush1.bf16.msra.mxu0 0
      %2235 = vmatprep.mubr.bf16.mxu0 %v2192
      %2236 = vmatmul.mubr.bf16.gmra.mrb[0].mxu0 %v2099
      %v2237 = vpop.f32.mrb[0].mxu0
      %v2238 = vadd.f32 0.0, %v2237
      %v2239 = vpop.f32.mrb[0].mxu0
      %v2240 = vpop.f32.mrb[0].mxu0
      %v2241 = vadd.f32 0.0, %v2240
      %v2242 = vpop.f32.mrb[0].mxu0
      %2243 = vmatprep.mubr.bf16.mxu0 %v2195
      %2244 = vmatmul.mubr.bf16.gmra.mrb[0].mxu0 %v2101
      %v2245 = vpop.f32.mrb[0].mxu0
      %v2246 = vadd.f32 0.0, %v2245
      %v2247 = vpop.f32.mrb[0].mxu0
      %v2248 = vpop.f32.mrb[0].mxu0
      %v2249 = vadd.f32 0.0, %v2248
      %v2250 = vpop.f32.mrb[0].mxu0
      %2251 = vmatprep.mubr.bf16.mxu0 %v2198
      %2252 = vmatmul.mubr.bf16.gmra.mrb[0].mxu0 %v2103
      %v2253 = vpop.f32.mrb[0].mxu0
      %v2254 = vadd.f32 0.0, %v2253
      %v2255 = vpop.f32.mrb[0].mxu0
      %v2256 = vpop.f32.mrb[0].mxu0
      %v2257 = vadd.f32 0.0, %v2256
      %v2258 = vpop.f32.mrb[0].mxu0
      %2259 = vmatprep.mubr.bf16.mxu0 %v2201
      %2260 = vmatmul.mubr.bf16.gmra.mrb[0].mxu0 %v2105
      %v2261 = vpop.f32.mrb[0].mxu0
      %v2262 = vadd.f32 0.0, %v2261
      %v2263 = vpop.f32.mrb[0].mxu0
      %v2264 = vpop.f32.mrb[0].mxu0
      %v2265 = vadd.f32 0.0, %v2264
      %v2266 = vpop.f32.mrb[0].mxu0
      %2267 = vdwg.mxu0
      %v2268 = vadd.f32 %v1959, %v2238
      %v2269 = vadd.f32 %v1962, %v2241
      %v2270 = vadd.f32 %v1967, %v2246
      %v2271 = vadd.f32 %v1970, %v2249
      %v2272 = vadd.f32 %v1975, %v2254
      %v2273 = vadd.f32 %v1978, %v2257
      %v2274 = vadd.f32 %v1983, %v2262
      %v2275 = vadd.f32 %v1986, %v2265
      %v2276 = vpack.c.bf16 %v2269, %v2268
      %v2277 = vpack.c.bf16 %v2271, %v2270
      %v2278 = vpack.c.bf16 %v2273, %v2272
      %v2279 = vpack.c.bf16 %v2275, %v2274
      %v2284 = vunpack.c.l.b16 %v2276
      %v2285 = vunpack.c.h.b16 %v2276
      %v2286 = vunpack.c.l.b16 %v2277
      %v2287 = vunpack.c.h.b16 %v2277
      %v2288 = vunpack.c.l.b16 %v2278
      %v2289 = vunpack.c.h.b16 %v2278
      %v2290 = vunpack.c.l.b16 %v2279
      %v2291 = vunpack.c.h.b16 %v2279
      %v2292 = vpack.c.b16 %v2284, %v2284
      %v2293 = vpack.c.b16 %v2285, %v2285
      %v2294 = vpack.c.b16 %v2286, %v2286
      %v2295 = vpack.c.b16 %v2287, %v2287
      %v2296 = vpack.c.b16 %v2288, %v2288
      %v2297 = vpack.c.b16 %v2289, %v2289
      %v2298 = vpack.c.b16 %v2290, %v2290
      %v2299 = vpack.c.b16 %v2291, %v2291
      %2308 = vst [vmem:[%s272 + $0x4] sm:$0xf] %v2292
      %2309 = vst [vmem:[%s272 + $0xc] sm:$0xf] %v2293
      %2310 = vst [vmem:[%s272 + $0x14] sm:$0xf] %v2294
      %2311 = vst [vmem:[%s272 + $0x1c] sm:$0xf] %v2295
      %2312 = vst [vmem:[%s272 + $0x24] sm:$0xf] %v2296
      %2313 = vst [vmem:[%s272 + $0x2c] sm:$0xf] %v2297
      %2314 = vst [vmem:[%s272 + $0x34] sm:$0xf] %v2298
      %2315 = vst [vmem:[%s272 + $0x3c] sm:$0xf] %v2299
      %v2316 = vunpack.c.l.bf16 %v2276
      %v2317 = vunpack.c.h.bf16 %v2276
      %v2318 = vunpack.c.l.bf16 %v2277
      %v2319 = vunpack.c.h.bf16 %v2277
      %v2320 = vunpack.c.l.bf16 %v2278
      %v2321 = vunpack.c.h.bf16 %v2278
      %v2322 = vunpack.c.l.bf16 %v2279
      %v2323 = vunpack.c.h.bf16 %v2279
      %2324 = vadd.xlane.f32.xlu0 %v2316
      %v2325 = vpop.xlane.xlu0 %2324
      %2326 = vadd.xlane.f32.xlu0 %v2317
      %v2327 = vpop.xlane.xlu0 %2326
      %2328 = vadd.xlane.f32.xlu0 %v2318
      %v2329 = vpop.xlane.xlu0 %2328
      %2330 = vadd.xlane.f32.xlu0 %v2319
      %v2331 = vpop.xlane.xlu0 %2330
      %2332 = vadd.xlane.f32.xlu0 %v2320
      %v2333 = vpop.xlane.xlu0 %2332
      %2334 = vadd.xlane.f32.xlu0 %v2321
      %v2335 = vpop.xlane.xlu0 %2334
      %2336 = vadd.xlane.f32.xlu0 %v2322
      %v2337 = vpop.xlane.xlu0 %2336
      %2338 = vadd.xlane.f32.xlu0 %v2323
      %v2339 = vpop.xlane.xlu0 %2338
      %v2340 = vadd.f32 %v1384, %v2325
      %v2341 = vadd.f32 %v1385, %v2327
      %v2342 = vadd.f32 %v1386, %v2329
      %v2343 = vadd.f32 %v1387, %v2331
      %v2344 = vadd.f32 %v1388, %v2333
      %v2345 = vadd.f32 %v1389, %v2335
      %v2346 = vadd.f32 %v1390, %v2337
      %v2347 = vadd.f32 %v1391, %v2339
      %v2348 = vmul.f32 %v2316, %v2316
      %v2349 = vmul.f32 %v2317, %v2317
      %v2350 = vmul.f32 %v2318, %v2318
      %v2351 = vmul.f32 %v2319, %v2319
      %v2352 = vmul.f32 %v2320, %v2320
      %v2353 = vmul.f32 %v2321, %v2321
      %v2354 = vmul.f32 %v2322, %v2322
      %v2355 = vmul.f32 %v2323, %v2323
      %2356 = vadd.xlane.f32.xlu0 %v2348
      %v2357 = vpop.xlane.xlu0 %2356
      %2358 = vadd.xlane.f32.xlu0 %v2349
      %v2359 = vpop.xlane.xlu0 %2358
      %2360 = vadd.xlane.f32.xlu0 %v2350
      %v2361 = vpop.xlane.xlu0 %2360
      %2362 = vadd.xlane.f32.xlu0 %v2351
      %v2363 = vpop.xlane.xlu0 %2362
      %2364 = vadd.xlane.f32.xlu0 %v2352
      %v2365 = vpop.xlane.xlu0 %2364
      %2366 = vadd.xlane.f32.xlu0 %v2353
      %v2367 = vpop.xlane.xlu0 %2366
      %2368 = vadd.xlane.f32.xlu0 %v2354
      %v2369 = vpop.xlane.xlu0 %2368
      %2370 = vadd.xlane.f32.xlu0 %v2355
      %v2371 = vpop.xlane.xlu0 %2370
      %v2372 = vadd.f32 %v1416, %v2357
      %v2373 = vadd.f32 %v1417, %v2359
      %v2374 = vadd.f32 %v1418, %v2361
      %v2375 = vadd.f32 %v1419, %v2363
      %v2376 = vadd.f32 %v1420, %v2365
      %v2377 = vadd.f32 %v1421, %v2367
      %v2378 = vadd.f32 %v1422, %v2369
      %v2379 = vadd.f32 %v1423, %v2371
      %vm2380 = vcmask 7168
      %2381 = vst.msk [vmem:[%s277] sm:$0xff] %vm2380, %v2340
      %2382 = vst.msk [vmem:[%s277 + $0x8] sm:$0xff] %vm2380, %v2341
      %2383 = vst.msk [vmem:[%s277 + $0x10] sm:$0xff] %vm2380, %v2342
      %2384 = vst.msk [vmem:[%s277 + $0x18] sm:$0xff] %vm2380, %v2343
      %2385 = vst.msk [vmem:[%s277 + $0x20] sm:$0xff] %vm2380, %v2344
      %2386 = vst.msk [vmem:[%s277 + $0x28] sm:$0xff] %vm2380, %v2345
      %2387 = vst.msk [vmem:[%s277 + $0x30] sm:$0xff] %vm2380, %v2346
      %2388 = vst.msk [vmem:[%s277 + $0x38] sm:$0xff] %vm2380, %v2347
      %vm2389 = vcmask 15368
      %2390 = vst.msk [vmem:[%s277] sm:$0xff] %vm2389, %v2372
      %2391 = vst.msk [vmem:[%s277 + $0x8] sm:$0xff] %vm2389, %v2373
      %2392 = vst.msk [vmem:[%s277 + $0x10] sm:$0xff] %vm2389, %v2374
      %2393 = vst.msk [vmem:[%s277 + $0x18] sm:$0xff] %vm2389, %v2375
      %2394 = vst.msk [vmem:[%s277 + $0x20] sm:$0xff] %vm2389, %v2376
      %2395 = vst.msk [vmem:[%s277 + $0x28] sm:$0xff] %vm2389, %v2377
      %2396 = vst.msk [vmem:[%s277 + $0x30] sm:$0xff] %vm2389, %v2378
      %2397 = vst.msk [vmem:[%s277 + $0x38] sm:$0xff] %vm2389, %v2379
      %p2398 = scmp.lt.s32.totalorder %s17, 1
      %s2399 = scalar_select %p2398, %s17, 1
      %s2400 = smul.addr %s2399, 16
      %s2401 = smul.addr %s2400, 4
      %s2402 = scalar_lea.vmem %s4, %s2401
      %p2403 = scmp.lt.s32.totalorder %s17, 1
      %s2404 = scalar_select %p2403, %s17, 1
      %s2405 = smul.addr %s2404, 8
      %s2406 = smul.addr %s2405, 8
      %s2407 = scalar_lea.vmem %s5, %s2406
      // Predicated region
      $region37: #{bottleneck_ibn_forward.5} parent=35 // pred_check
        %p2408 = pneg %p134
      $region38: #{bottleneck_ibn_forward.5} parent=35 // pred_check_branch
        %2410 = sbr.rel (%p2408) target = $region40
      $region39: #{bottleneck_ibn_forward.5} parent=35 // pred_region
        _
      $region40: #{bottleneck_ibn_forward.5} parent=35 // pred_fallthru
        _
      // Predicated region
      $region41: #{bottleneck_ibn_forward.5} parent=35 // pred_check
        %p2411 = pneg %p160
      $region42: #{bottleneck_ibn_forward.5} parent=35 // pred_check_branch
        %2413 = sbr.rel (%p2411) target = $region44
      $region43: #{bottleneck_ibn_forward.5} parent=35 // pred_region
        _
      $region44: #{bottleneck_ibn_forward.5} parent=35 // pred_fallthru
        _
    $region36: #{bottleneck_ibn_forward.5} parent=5 // pred_fallthru
      _
    %p2414 = scmp.le.s32.totalorder 2, %s12
    // Predicated region
    $region45: #{bottleneck_ibn_forward.5} parent=5 // pred_check
      %p2415 = pneg %p2414
    $region46: #{bottleneck_ibn_forward.5} parent=5 // pred_check_branch
      %2417 = sbr.rel (%p2415) target = $region48
    $region47: #{bottleneck_ibn_forward.5} parent=5 // pred_region
      %s2418 = ssub.s32 %s12, 2
      // Predicated region
      $region49: #{bottleneck_ibn_forward.5} parent=47 // pred_check
        %p2419 = pneg %p140
      $region50: #{bottleneck_ibn_forward.5} parent=47 // pred_check_branch
        %2421 = sbr.rel (%p2419) target = $region52
      $region51: #{bottleneck_ibn_forward.5} parent=47 // pred_region
        %p2422 = scmp.lt.s32.totalorder %s18, 1
        %s2423 = scalar_select %p2422, %s18, 1
        %s2424 = smul.addr %s2423, 16
        %s2425 = smul.addr %s2424, 4
        %s2426 = scalar_lea.vmem %s4, %s2425
      $region52: #{bottleneck_ibn_forward.5} parent=47 // pred_fallthru
        _
      // Predicated region
      $region53: #{bottleneck_ibn_forward.5} parent=47 // pred_check
        %p2427 = pneg %p166
      $region54: #{bottleneck_ibn_forward.5} parent=47 // pred_check_branch
        %2429 = sbr.rel (%p2427) target = $region56
      $region55: #{bottleneck_ibn_forward.5} parent=47 // pred_region
        %p2430 = scmp.lt.s32.totalorder %s18, 1
        %s2431 = scalar_select %p2430, %s18, 1
        %s2432 = smul.addr %s2431, 8
        %s2433 = smul.addr %s2432, 8
        %s2434 = scalar_lea.vmem %s5, %s2433
      $region56: #{bottleneck_ibn_forward.5} parent=47 // pred_fallthru
        _
    $region48: #{bottleneck_ibn_forward.5} parent=5 // pred_fallthru
      _
  $region6: #{bottleneck_ibn_forward.5} parent=0 // loop_footer
    %s16 = sadd.s32 1, %s12
  $region7: #{bottleneck_ibn_forward.5} parent=0 // loop_footer_branch
    %11 = sbr.rel target = $region3
  $region8: #{bottleneck_ibn_forward.5} parent=0 // loop_exit
    _

</llo_original>
